<compile_context>
chip_gen: v7x
topology: tpu7x:2x2x1
jax: 0.10.0
libtpu: 0.0.40
codegen_flags: <defaults>
</compile_context>

<pallas_src>
import functools

import jax
import jax.numpy as jnp
from jax import lax
from jax.experimental import pallas as pl
from jax.experimental.pallas import tpu as pltpu


# ----------------------------- tiling helpers ------------------------------

def _vmem_limit_bytes():
    try:
        cap = int(pltpu.get_tpu_info().vmem_capacity_bytes)
        return min(cap * 3 // 4, 100 * 1024 * 1024)
    except Exception:
        return 64 * 1024 * 1024


_VMEM_LIMIT = _vmem_limit_bytes()


def _compiler_params(ndims):
    return pltpu.CompilerParams(
        dimension_semantics=("parallel",) * ndims,
        vmem_limit_bytes=_VMEM_LIMIT)


def _hw_tile(n, target=2048):
    """Largest multiple-of-128 divisor of n that is <= target (or n itself)."""
    if n <= target:
        return n
    for t in range(target, 127, -128):
        if n % t == 0:
            return t
    return n


def _cout_tile(c, target=256):
    if c <= target:
        return c
    for t in range(target, 7, -8):
        if c % t == 0:
            return t
    return c


# ----------------------------- Pallas kernels ------------------------------

def _stage_kernel(wproj_ref, wgb_ref, words_ref, wordsn_ref, mbias_ref,
                  chan_ref, x_ref, o_ref, *, C, approx):
    """Fused attention-conditioned BatchNorm stage for one (batch, HW-tile).

    wproj_ref  : (T, C)     proj_region 1x1 weight, bf16
    wgb_ref    : (2C, T)    stacked [gamma_ctx ; beta_ctx] 1x1 weights, bf16
    words_ref  : (1, T, L)  raw word embeddings, bf16
    wordsn_ref : (1, T, L)  L2-normalized word embeddings (hoisted), bf16
    mbias_ref  : (1, L, 1)  additive mask bias (0 valid / -1e30 padded), f32
    chan_ref   : (1, C, 4)  packed per-channel scalars:
                            [:,0]=bn_scale [:,1]=bn_shift
                            [:,2]=gamma_global+bias [:,3]=beta_global+bias
    x_ref      : (1, C, N)  activations ;  o_ref : (1, C, N) bf16
    """
    xin = x_ref[0]
    xb = xin.astype(jnp.bfloat16)
    xf = xin.astype(jnp.float32)
    cp = chan_ref[0]

    # proj_region (1x1 conv, no bias) — bf16 MXU, f32 accumulation
    img = jnp.dot(wproj_ref[...], xb, preferred_element_type=jnp.float32)

    # cosine similarity: L2-normalize image features in f32
    img_n = img * lax.rsqrt(
        jnp.maximum(jnp.sum(img * img, axis=0, keepdims=True), 1e-24))

    # logits[l, p] = <words_n[:, l], img_n[:, p]>   -> (L, N)
    logits = lax.dot_general(wordsn_ref[0], img_n.astype(jnp.bfloat16),
                             (((0,), (0,)), ((), ())),
                             preferred_element_type=jnp.float32)
    logits = logits + mbias_ref[0]                 # finite mask (NaN-safe)

    # softmax over words (axis 0) in f32
    mx = jnp.max(logits, axis=0, keepdims=True)
    p = jnp.exp(logits - mx)
    den = jnp.sum(p, axis=0, keepdims=True)
    inv = pl.reciprocal(den, approx=True) if approx else 1.0 / den
    attn = (p * inv).astype(jnp.bfloat16)

    # context embeddings + stacked gamma/beta in two bf16 MXU passes
    ctx = jnp.dot(words_ref[0], attn, preferred_element_type=jnp.float32)
    gb = jnp.dot(wgb_ref[...], ctx.astype(jnp.bfloat16),
                 preferred_element_type=jnp.float32)

    gamma = gb[:C] + cp[:, 2:3]
    beta = gb[C:] + cp[:, 3:4]
    bnx = xf * cp[:, 0:1] + cp[:, 1:2]             # folded training-mode BN
    o_ref[0] = jnp.maximum(gamma * bnx + beta, 0.0).astype(o_ref.dtype)


def _phase_conv(wstk_ref, src_ref, o_ref, pad_ref, stk_ref, extra,
                *, Hl, Wl, Cin, up, in_phases, padl):
    """3x3 conv on the 2x-nearest-upsampled image in phase-major form.

    Output phase (qy, qx), low-res pixel (ly, lx) == high-res pixel
    (2*ly+qy, 2*lx+qx).  Each of the 9 taps maps to one input phase and a
    low-res offset in {-1,0,1}^2.  For `in_phases == 1` the input phases all
    alias the single low-res slab (this IS the folded nearest upsample).
    Boundary handling: zero-padded halo buffer + static shifted window loads
    (row padding exact, column wrap removed with a per-lane mask).
    The 9*Cin taps are stacked along the contraction axis -> one MXU matmul
    per output phase (bf16 operands, f32 accumulation).
    """
    HWl = Hl * Wl
    lane = lax.broadcasted_iota(jnp.int32, (1, HWl), 1)
    lx = lane % Wl
    width = HWl + 2 * padl

    for p in range(in_phases):
        pad_ref[p] = jnp.zeros((Cin, width), jnp.float32)
        pad_ref[p, :, padl:padl + HWl] = src_ref[0, :, p, :].astype(jnp.float32)

    out_phases = ((0, 0), (0, 1), (1, 0), (1, 1)) if up else ((0, 0),)
    accs = []
    for qy, qx in out_phases:
        for dh in (-1, 0, 1):
            for dw in (-1, 0, 1):
                if up:
                    py, oy = (qy + dh) % 2, (qy + dh) // 2
                    px, ox = (qx + dw) % 2, (qx + dw) // 2
                else:
                    py, px, oy, ox = 0, 0, dh, dw
                pin = (py * 2 + px) % in_phases
                start = padl + oy * Wl + ox
                win = pad_ref[pin, :, start:start + HWl]
                if ox == -1:
                    win = jnp.where(lx >= 1, win, 0.0)
                elif ox == 1:
                    win = jnp.where(lx < Wl - 1, win, 0.0)
                t = (dh + 1) * 3 + (dw + 1)
                stk_ref[t * Cin:(t + 1) * Cin, :] = win
        acc = jnp.dot(wstk_ref[...], stk_ref[...].astype(jnp.bfloat16),
                      preferred_element_type=jnp.float32) + extra
        o_ref[0, :, qy * 2 + qx, :] = acc.astype(o_ref.dtype)
        accs.append(acc)
    return accs


def _conv_mid_kernel(wstk_ref, b_ref, src_ref, o_ref, st_ref, pad_ref, stk_ref,
                     *, Hl, Wl, Cin, up, padl):
    # c1 (+ folded nearest-2x upsample) + fused BN2 partial statistics.
    accs = _phase_conv(wstk_ref, src_ref, o_ref, pad_ref, stk_ref, b_ref[...],
                       Hl=Hl, Wl=Wl, Cin=Cin, up=up, in_phases=1, padl=padl)
    ssum = sum(jnp.sum(a, axis=1, keepdims=True) for a in accs)
    ssq = sum(jnp.sum(a * a, axis=1, keepdims=True) for a in accs)
    st_ref[0, :, 0:1] = ssum
    st_ref[0, :, 1:2] = ssq


def _conv_out_sc_kernel(wstk_ref, b_ref, wsc_ref, src_ref, xsc_ref, o_ref,
                        pad_ref, stk_ref, *, Hl, Wl, Cin, up, padl):
    # c2 + learnable 1x1 shortcut computed at LOW resolution (phase replicate).
    extra = b_ref[...] + jnp.dot(wsc_ref[...], xsc_ref[0].astype(jnp.bfloat16),
                                 preferred_element_type=jnp.float32)
    _phase_conv(wstk_ref, src_ref, o_ref, pad_ref, stk_ref, extra,
                Hl=Hl, Wl=Wl, Cin=Cin, up=up,
                in_phases=(4 if up else 1), padl=padl)


def _conv_out_id_kernel(wstk_ref, b_ref, src_ref, xsc_ref, o_ref,
                        pad_ref, stk_ref, *, Hl, Wl, Cin, up, padl):
    # c2 + identity shortcut (in_dim == out_dim), phase-replicated add.
    extra = b_ref[...] + xsc_ref[0].astype(jnp.float32)
    _phase_conv(wstk_ref, src_ref, o_ref, pad_ref, stk_ref, extra,
                Hl=Hl, Wl=Wl, Cin=Cin, up=up,
                in_phases=(4 if up else 1), padl=padl)


# --------------------------- pallas_call wrappers ---------------------------

def _shared2(arr):
    n = arr.ndim
    return pl.BlockSpec(arr.shape, lambda b, t: (0,) * n)


def fused_stage(wproj, wgb, words_b, words_n, mbias, chan, x, *, approx=True):
    """One attention-conditioned-BN stage; grid over (batch, HW tiles)."""
    B, C, N = x.shape
    tile = _hw_tile(N)
    kern = functools.partial(_stage_kernel, C=C, approx=approx)
    return pl.pallas_call(
        kern,
        out_shape=jax.ShapeDtypeStruct((B, C, N), jnp.bfloat16),
        grid=(B, N // tile),
        in_specs=[_shared2(wproj), _shared2(wgb),
                  pl.BlockSpec((1,) + words_b.shape[1:], lambda b, t: (b, 0, 0)),
                  pl.BlockSpec((1,) + words_n.shape[1:], lambda b, t: (b, 0, 0)),
                  pl.BlockSpec((1,) + mbias.shape[1:], lambda b, t: (b, 0, 0)),
                  pl.BlockSpec((1,) + chan.shape[1:], lambda b, t: (b, 0, 0)),
                  pl.BlockSpec((1, C, tile), lambda b, t: (b, 0, t))],
        out_specs=pl.BlockSpec((1, C, tile), lambda b, t: (b, 0, t)),
        compiler_params=_compiler_params(2),
    )(wproj, wgb, words_b, words_n, mbias, chan, x)


def _stacked_weight(w4):
    cout, cin = w4.shape[0], w4.shape[1]
    return jnp.transpose(w4, (0, 2, 3, 1)).reshape(cout, 9 * cin).astype(
        jnp.bfloat16)


def conv_mid(w4, bias, src, Hl, Wl, *, up):
    """c1 with folded nearest-2x upsample + fused BN2 partial sums."""
    B, Cin, _, HWl = src.shape                      # src: (B, Cin, 1, Hl*Wl)
    Cout = w4.shape[0]
    P = 4 if up else 1
    padl = -((Wl + 1) // -128) * 128
    wstk = _stacked_weight(w4)
    b2 = bias.reshape(Cout, 1).astype(jnp.float32)
    tc = _cout_tile(Cout)
    kern = functools.partial(_conv_mid_kernel, Hl=Hl, Wl=Wl, Cin=Cin, up=up,
                             padl=padl)
    return pl.pallas_call(
        kern,
        out_shape=(jax.ShapeDtypeStruct((B, Cout, P, HWl), jnp.bfloat16),
                   jax.ShapeDtypeStruct((B, Cout, 2), jnp.float32)),
        grid=(B, Cout // tc),
        in_specs=[pl.BlockSpec((tc, 9 * Cin), lambda b, j: (j, 0)),
                  pl.BlockSpec((tc, 1), lambda b, j: (j, 0)),
                  pl.BlockSpec((1, Cin, 1, HWl), lambda b, j: (b, 0, 0, 0))],
        out_specs=(pl.BlockSpec((1, tc, P, HWl), lambda b, j: (b, j, 0, 0)),
                   pl.BlockSpec((1, tc, 2), lambda b, j: (b, j, 0))),
        scratch_shapes=[pltpu.VMEM((1, Cin, HWl + 2 * padl), jnp.float32),
                        pltpu.VMEM((9 * Cin, HWl), jnp.float32)],
        compiler_params=_compiler_params(2),
    )(wstk, b2, src)


def conv_out(w4, bias, src, x_sc, Hl, Wl, *, up, wsc=None, bsc=None):
    """c2 (phase-major) + shortcut (learnable 1x1 at low res, or identity)."""
    B, Cin, P, HWl = src.shape
    Cout = w4.shape[0]
    padl = -((Wl + 1) // -128) * 128
    wstk = _stacked_weight(w4)
    tc = _cout_tile(Cout)
    scratch = [pltpu.VMEM((P, Cin, HWl + 2 * padl), jnp.float32),
               pltpu.VMEM((9 * Cin, HWl), jnp.float32)]
    if wsc is not None:
        b2 = (bias + bsc).reshape(Cout, 1).astype(jnp.float32)
        kern = functools.partial(_conv_out_sc_kernel, Hl=Hl, Wl=Wl, Cin=Cin,
                                 up=up, padl=padl)
        args = (wstk, b2, wsc.astype(jnp.bfloat16), src, x_sc)
        in_specs = [pl.BlockSpec((tc, 9 * Cin), lambda b, j: (j, 0)),
                    pl.BlockSpec((tc, 1), lambda b, j: (j, 0)),
                    pl.BlockSpec((tc, x_sc.shape[1]), lambda b, j: (j, 0)),
                    pl.BlockSpec((1, Cin, P, HWl), lambda b, j: (b, 0, 0, 0)),
                    pl.BlockSpec((1, x_sc.shape[1], HWl),
                                 lambda b, j: (b, 0, 0))]
    else:
        b2 = bias.reshape(Cout, 1).astype(jnp.float32)
        kern = functools.partial(_conv_out_id_kernel, Hl=Hl, Wl=Wl, Cin=Cin,
                                 up=up, padl=padl)
        args = (wstk, b2, src, x_sc)
        in_specs = [pl.BlockSpec((tc, 9 * Cin), lambda b, j: (j, 0)),
                    pl.BlockSpec((tc, 1), lambda b, j: (j, 0)),
                    pl.BlockSpec((1, Cin, P, HWl), lambda b, j: (b, 0, 0, 0)),
                    pl.BlockSpec((1, tc, HWl), lambda b, j: (b, j, 0))]
    return pl.pallas_call(
        kern,
        out_shape=jax.ShapeDtypeStruct((B, Cout, P, HWl), jnp.float32),
        grid=(B, Cout // tc),
        in_specs=in_specs,
        out_specs=pl.BlockSpec((1, tc, P, HWl), lambda b, j: (b, j, 0, 0)),
        scratch_shapes=scratch,
        compiler_params=_compiler_params(2),
    )(*args)


# ------------------------------ JAX-level glue ------------------------------

def up2_nearest(x):
    # F.interpolate(scale_factor=2) default mode='nearest' (reference only)
    return jnp.repeat(jnp.repeat(x, 2, axis=2), 2, axis=3)


def _bn_fold(x, axes, gamma, beta, eps=1e-5):
    """Training-mode BatchNorm folded to per-channel scale/shift (f32)."""
    mu = x.mean(axis=axes)
    var = x.var(axis=axes)
    scale = gamma / jnp.sqrt(var + eps)
    return scale, beta - mu * scale


def _stage_inputs(gw, g_bias, bw, b_bias, bn_scale, bn_shift, global_cond,
                  gdim):
    """Stacked ctx gamma/beta weight (2C, T) + packed per-channel table."""
    wgb = jnp.concatenate([gw[:, gdim:], bw[:, gdim:]], axis=0)      # (2C, T)
    g_glob = global_cond @ gw[:, :gdim].T + g_bias                   # (B, C)
    b_glob = global_cond @ bw[:, :gdim].T + b_bias                   # (B, C)
    B = global_cond.shape[0]
    C = gw.shape[0]
    chan = jnp.stack([jnp.broadcast_to(bn_scale, (B, C)),
                      jnp.broadcast_to(bn_shift, (B, C)),
                      g_glob, b_glob], axis=-1)                      # (B, C, 4)
    return wgb.astype(jnp.bfloat16), chan.astype(jnp.float32)


def attn_res_block_up(params, x, global_cond, words_embs, mask,
                      upsample=True, learnable_sc=True,
                      exact_softmax_recip=False):
    B, Cin, H0, W0 = x.shape
    Cout = params["c1_w"].shape[0]
    HW0 = H0 * W0
    gdim = global_cond.shape[1]
    P = 4 if upsample else 1

    x_flat = x.reshape(B, Cin, HW0).astype(jnp.float32)

    # hoisted word normalization + mask bias (tiny, done once per forward)
    w32 = words_embs.astype(jnp.float32)
    wnorm = jnp.sqrt(jnp.sum(w32 * w32, axis=1, keepdims=True))
    words_n = (w32 / jnp.maximum(wnorm, 1e-12)).astype(jnp.bfloat16)
    words_b = words_embs.astype(jnp.bfloat16)
    mbias = jnp.where(mask, -1e30, 0.0).astype(jnp.float32)[:, :, None]

    approx = not exact_softmax_recip

    # ---- stage 1: fused attention-conditioned BN + ReLU ----
    bn1_scale, bn1_shift = _bn_fold(x, (0, 2, 3), params["bn1_w"],
                                    params["bn1_b"])
    wgb1, chan1 = _stage_inputs(params["g1_w"], params["g1_b"],
                                params["b1_w"], params["b1_b"],
                                bn1_scale, bn1_shift, global_cond, gdim)
    out1 = fused_stage(params["proj1_w"].astype(jnp.bfloat16), wgb1,
                       words_b, words_n, mbias, chan1, x_flat, approx=approx)

    # ---- c1 with folded nearest-2x upsample + fused BN2 partial sums ----
    h, stats = conv_mid(params["c1_w"], params["c1_b"],
                        out1.reshape(B, Cin, 1, HW0), H0, W0, up=upsample)

    # BN2 scale/shift from the in-kernel partial sums (no HBM re-read of h)
    n = B * P * HW0
    tot = jnp.sum(stats, axis=0)                       # (Cout, 2)
    mean = tot[:, 0] / n
    var = tot[:, 1] / n - mean * mean
    bn2_scale = params["bn2_w"] / jnp.sqrt(var + 1e-5)
    bn2_shift = params["bn2_b"] - mean * bn2_scale

    # ---- stage 2 on the phase-major pixel axis (per-pixel, order-free) ----
    wgb2, chan2 = _stage_inputs(params["g2_w"], params["g2_b"],
                                params["b2_w"], params["b2_b"],
                                bn2_scale, bn2_shift, global_cond, gdim)
    out2 = fused_stage(params["proj2_w"].astype(jnp.bfloat16), wgb2,
                       words_b, words_n, mbias, chan2,
                       h.reshape(B, Cout, P * HW0), approx=approx)

    # ---- c2 + shortcut (csc at LOW res; upsample == phase replication) ----
    if learnable_sc:
        y = conv_out(params["c2_w"], params["c2_b"],
                     out2.reshape(B, Cout, P, HW0), x_flat, H0, W0,
                     up=upsample, wsc=params["csc_w"], bsc=params["csc_b"])
    else:
        y = conv_out(params["c2_w"], params["c2_b"],
                     out2.reshape(B, Cout, P, HW0), x_flat, H0, W0,
                     up=upsample)

    # ---- phase-major -> NCHW (single XLA transpose of the final output) ----
    if upsample:
        y = y.reshape(B, Cout, 2, 2, H0, W0).transpose(0, 1, 4, 2, 5, 3)
        y = y.reshape(B, Cout, 2 * H0, 2 * W0)
    else:
        y = y.reshape(B, Cout, H0, W0)
    return y


# ------------------------- pure-JAX reference check -------------------------

def reference(params, x, global_cond, words_embs, mask,
              upsample=True, learnable_sc=True):
    P = lax.Precision.HIGHEST

    def mm(a, b):
        return jnp.matmul(a, b, precision=P)

    def normalize(v):
        n = jnp.sqrt(jnp.sum(v * v, axis=1, keepdims=True))
        return v / jnp.maximum(n, 1e-12)

    def context(imgf, words, msk):
        xn, wn = normalize(imgf), normalize(words)
        attn = mm(jnp.swapaxes(xn, 1, 2), wn)
        attn = jnp.where(msk[:, None, :], -jnp.inf, attn)
        attn = jax.nn.softmax(attn, axis=2)
        ctx = mm(attn, jnp.swapaxes(words, 1, 2))
        return jnp.swapaxes(ctx, 1, 2)

    def conv1d(w, b, v):
        o = jnp.einsum("mk,bkn->bmn", w, v, precision=P)
        return o if b is None else o + b[None, :, None]

    def bn(v, w, b):
        mu = v.mean(axis=(0, 2, 3), keepdims=True)
        var = v.var(axis=(0, 2, 3), keepdims=True)
        return ((v - mu) / jnp.sqrt(var + 1e-5) * w.reshape(1, -1, 1, 1)
                + b.reshape(1, -1, 1, 1))

    def conv3(v, w, b):
        o = lax.conv_general_dilated(v, w, (1, 1), ((1, 1), (1, 1)),
                                     dimension_numbers=("NCHW", "OIHW", "NCHW"),
                                     precision=P)
        return o + b.reshape(1, -1, 1, 1)

    B, Cin, H, W = x.shape
    HW = H * W
    gdim = global_cond.shape[1]
    hw_full = 4 * HW if upsample else HW
    gc = jnp.broadcast_to(global_cond[:, :, None], (B, gdim, hw_full))

    img_feat = conv1d(params["proj1_w"], None, x.reshape(B, Cin, HW))
    ctx1 = context(img_feat, words_embs, mask)
    cond1 = jnp.concatenate([gc[:, :, :HW], ctx1], axis=1)
    out = (conv1d(params["g1_w"], params["g1_b"], cond1).reshape(B, Cin, H, W)
           * bn(x, params["bn1_w"], params["bn1_b"])
           + conv1d(params["b1_w"], params["b1_b"], cond1).reshape(B, Cin, H, W))
    out = jax.nn.relu(out)
    if upsample:
        out = up2_nearest(out)
        H, W = 2 * H, 2 * W
        HW = H * W
    out = conv3(out, params["c1_w"], params["c1_b"])
    Cout = out.shape[1]
    img_feat = conv1d(params["proj2_w"], None, out.reshape(B, Cout, HW))
    ctx2 = context(img_feat, words_embs, mask)
    cond2 = jnp.concatenate([gc[:, :, :HW], ctx2], axis=1)
    out2 = (conv1d(params["g2_w"], params["g2_b"], cond2).reshape(B, Cout, H, W)
            * bn(out, params["bn2_w"], params["bn2_b"])
            + conv1d(params["b2_w"], params["b2_b"], cond2).reshape(B, Cout, H, W))
    out2 = jax.nn.relu(out2)
    out2 = conv3(out2, params["c2_w"], params["c2_b"])
    sc = up2_nearest(x) if upsample else x
    if learnable_sc:
        sc = conv1d(params["csc_w"], params["csc_b"],
                    sc.reshape(B, Cin, HW)).reshape(B, Cout, H, W)
    return out2 + sc


# --------------------------------- params -----------------------------------

def init_params(key, in_dim, out_dim, cond_dim, text_dim):
    ks = jax.random.split(key, 20)

    def w(k, shape, scale=0.05):
        return scale * jax.random.normal(k, shape, jnp.float32)

    return dict(
        proj1_w=w(ks[0], (text_dim, in_dim)),
        proj2_w=w(ks[1], (text_dim, out_dim)),
        c1_w=w(ks[2], (out_dim, in_dim, 3, 3)),
        c1_b=w(ks[3], (out_dim,)),
        c2_w=w(ks[4], (out_dim, out_dim, 3, 3)),
        c2_b=w(ks[5], (out_dim,)),
        bn1_w=1.0 + w(ks[6], (in_dim,)),
        bn1_b=w(ks[7], (in_dim,)),
        bn2_w=1.0 + w(ks[8], (out_dim,)),
        bn2_b=w(ks[9], (out_dim,)),
        g1_w=w(ks[10], (in_dim, cond_dim)),
        g1_b=w(ks[11], (in_dim,)),
        b1_w=w(ks[12], (in_dim, cond_dim)),
        b1_b=w(ks[13], (in_dim,)),
        g2_w=w(ks[14], (out_dim, cond_dim)),
        g2_b=w(ks[15], (out_dim,)),
        b2_w=w(ks[16], (out_dim, cond_dim)),
        b2_b=w(ks[17], (out_dim,)),
        csc_w=w(ks[18], (out_dim, in_dim)),
        csc_b=w(ks[19], (out_dim,)),
    )


# ----------------------------------- main ------------------------------------

if __name__ == "__main__":
    in_dim, out_dim, text_dim, gdim = 8, 16, 32, 32
    cond_dim = gdim + text_dim            # cond = cat([global_cond, context])
    B, H, W, L = 2, 8, 8, 16

    key = jax.random.PRNGKey(0)
    kx, kg, kw, kp = jax.random.split(key, 4)
    x = jax.random.normal(kx, (B, in_dim, H, W), jnp.float32)
    global_cond = jax.random.normal(kg, (B, gdim), jnp.float32)
    words_embs = jax.random.normal(kw, (B, text_dim, L), jnp.float32)
    lens = jnp.array([12, 10])
    mask = jnp.arange(L)[None, :] >= lens[:, None]   # True = padded word

    params = init_params(kp, in_dim, out_dim, cond_dim, text_dim)

    fwd = jax.jit(functools.partial(attn_res_block_up,
                                    upsample=True, learnable_sc=True))
    out = jax.block_until_ready(fwd(params, x, global_cond, words_embs, mask))

    ref = reference(params, x, global_cond, words_embs, mask)
    assert out.shape == (B, out_dim, 2 * H, 2 * W), out.shape
    assert bool(jnp.all(jnp.isfinite(out)))
    # bf16 MXU operands + bf16 intermediate activations -> 2e-2 parity budget
    # against the f32 HIGHEST-precision reference.
    if bool(jnp.allclose(out, ref, atol=2e-2, rtol=2e-2)):
        print("KERNEL_OK")
    else:
        print("MISMATCH max_abs_err=",
              float(jnp.max(jnp.abs(out - ref))))
</pallas_src>

<mosaic_0001>
module attributes {stable_mosaic.version = 11 : i64} {
  func.func @_stage_kernel(%arg0: i32, %arg1: i32, %arg2: memref<32x8xbf16, #tpu.memory_space<vmem>>, %arg3: memref<16x32xbf16, #tpu.memory_space<vmem>>, %arg4: memref<1x32x16xbf16, #tpu.memory_space<vmem>>, %arg5: memref<1x32x16xbf16, #tpu.memory_space<vmem>>, %arg6: memref<1x16x1xf32, #tpu.memory_space<vmem>>, %arg7: memref<1x8x4xf32, #tpu.memory_space<vmem>>, %arg8: memref<1x8x64xf32, #tpu.memory_space<vmem>>, %arg9: memref<1x8x64xbf16, #tpu.memory_space<vmem>>) attributes {dimension_semantics = [#tpu.dimension_semantics<parallel>, #tpu.dimension_semantics<parallel>], iteration_bounds = array<i64: 2, 1>, scalar_prefetch = 0 : i64, scratch_operands = 0 : i64, tpu.core_type = #tpu.core_type<tc>, window_params = [{pipeline_mode = #tpu.pipeline_mode<synchronous>, transform_indices = @transform_0, window_bounds = array<i64: 32, 8>}, {pipeline_mode = #tpu.pipeline_mode<synchronous>, transform_indices = @transform_1, window_bounds = array<i64: 16, 32>}, {transform_indices = @transform_2, window_bounds = array<i64: 1, 32, 16>}, {transform_indices = @transform_3, window_bounds = array<i64: 1, 32, 16>}, {transform_indices = @transform_4, window_bounds = array<i64: 1, 16, 1>}, {transform_indices = @transform_5, window_bounds = array<i64: 1, 8, 4>}, {transform_indices = @transform_6, window_bounds = array<i64: 1, 8, 64>}, {transform_indices = @transform_7, window_bounds = array<i64: 1, 8, 64>}]} {
    %c0 = arith.constant 0 : index
    %c0_0 = arith.constant 0 : index
    %c0_1 = arith.constant 0 : index
    %0 = vector.load %arg8[%c0, %c0_0, %c0_1] : memref<1x8x64xf32, #tpu.memory_space<vmem>>, vector<1x8x64xf32>
    %1 = vector.shape_cast %0 : vector<1x8x64xf32> to vector<8x64xf32>
    %2 = arith.truncf %1 : vector<8x64xf32> to vector<8x64xbf16>
    %c0_2 = arith.constant 0 : index
    %c0_3 = arith.constant 0 : index
    %c0_4 = arith.constant 0 : index
    %3 = vector.load %arg7[%c0_2, %c0_3, %c0_4] : memref<1x8x4xf32, #tpu.memory_space<vmem>>, vector<1x8x4xf32>
    %4 = vector.shape_cast %3 : vector<1x8x4xf32> to vector<8x4xf32>
    %c0_5 = arith.constant 0 : index
    %c0_6 = arith.constant 0 : index
    %5 = vector.load %arg2[%c0_5, %c0_6] : memref<32x8xbf16, #tpu.memory_space<vmem>>, vector<32x8xbf16>
    %cst = arith.constant dense<0.000000e+00> : vector<32x64xf32>
    %6 = tpu.matmul %5, %2, %cst {dimension_numbers = #tpu.dot_dimension_numbers<[1], [0], [0], [1], [0, 0, 1, 1], [], []>} : vector<32x8xbf16>, vector<8x64xbf16>, vector<32x64xf32> -> vector<32x64xf32>
    %7 = arith.mulf %6, %6 : vector<32x64xf32>
    %cst_7 = arith.constant dense<0.000000e+00> : vector<64xf32>
    %8 = vector.multi_reduction <add>, %7, %cst_7 [0] : vector<32x64xf32> to vector<64xf32>
    %9 = vector.shape_cast %8 : vector<64xf32> to vector<1x64xf32>
    %cst_8 = arith.constant 1.000000e-24 : f32
    %10 = vector.broadcast %cst_8 : f32 to vector<1x64xf32>
    %11 = arith.maximumf %9, %10 : vector<1x64xf32>
    %12 = math.rsqrt %11 : vector<1x64xf32>
    %13 = vector.broadcast %12 : vector<1x64xf32> to vector<32x64xf32>
    %14 = arith.mulf %6, %13 : vector<32x64xf32>
    %c0_9 = arith.constant 0 : index
    %c0_10 = arith.constant 0 : index
    %c0_11 = arith.constant 0 : index
    %15 = vector.load %arg5[%c0_9, %c0_10, %c0_11] : memref<1x32x16xbf16, #tpu.memory_space<vmem>>, vector<1x32x16xbf16>
    %16 = vector.shape_cast %15 : vector<1x32x16xbf16> to vector<32x16xbf16>
    %17 = arith.truncf %14 : vector<32x64xf32> to vector<32x64xbf16>
    %cst_12 = arith.constant dense<0.000000e+00> : vector<16x64xf32>
    %18 = tpu.matmul %16, %17, %cst_12 {dimension_numbers = #tpu.dot_dimension_numbers<[0], [0], [1], [1], [0, 1, 1, 1], [], []>} : vector<32x16xbf16>, vector<32x64xbf16>, vector<16x64xf32> -> vector<16x64xf32>
    %c0_13 = arith.constant 0 : index
    %c0_14 = arith.constant 0 : index
    %c0_15 = arith.constant 0 : index
    %19 = vector.load %arg6[%c0_13, %c0_14, %c0_15] : memref<1x16x1xf32, #tpu.memory_space<vmem>>, vector<1x16x1xf32>
    %20 = vector.shape_cast %19 : vector<1x16x1xf32> to vector<16x1xf32>
    %21 = vector.broadcast %20 : vector<16x1xf32> to vector<16x64xf32>
    %22 = arith.addf %18, %21 : vector<16x64xf32>
    %cst_16 = arith.constant dense<0xFF800000> : vector<64xf32>
    %23 = vector.multi_reduction <maximumf>, %22, %cst_16 [0] : vector<16x64xf32> to vector<64xf32>
    %24 = vector.shape_cast %23 : vector<64xf32> to vector<1x64xf32>
    %25 = vector.broadcast %24 : vector<1x64xf32> to vector<16x64xf32>
    %26 = arith.subf %22, %25 : vector<16x64xf32>
    %27 = math.exp %26 : vector<16x64xf32>
    %cst_17 = arith.constant dense<0.000000e+00> : vector<64xf32>
    %28 = vector.multi_reduction <add>, %27, %cst_17 [0] : vector<16x64xf32> to vector<64xf32>
    %29 = vector.shape_cast %28 : vector<64xf32> to vector<1x64xf32>
    %30 = tpu.reciprocal %29 {approx = true} : vector<1x64xf32> -> vector<1x64xf32>
    %31 = vector.broadcast %30 : vector<1x64xf32> to vector<16x64xf32>
    %32 = arith.mulf %27, %31 : vector<16x64xf32>
    %33 = arith.truncf %32 : vector<16x64xf32> to vector<16x64xbf16>
    %c0_18 = arith.constant 0 : index
    %c0_19 = arith.constant 0 : index
    %c0_20 = arith.constant 0 : index
    %34 = vector.load %arg4[%c0_18, %c0_19, %c0_20] : memref<1x32x16xbf16, #tpu.memory_space<vmem>>, vector<1x32x16xbf16>
    %35 = vector.shape_cast %34 : vector<1x32x16xbf16> to vector<32x16xbf16>
    %cst_21 = arith.constant dense<0.000000e+00> : vector<32x64xf32>
    %36 = tpu.matmul %35, %33, %cst_21 {dimension_numbers = #tpu.dot_dimension_numbers<[1], [0], [0], [1], [0, 0, 1, 1], [], []>} : vector<32x16xbf16>, vector<16x64xbf16>, vector<32x64xf32> -> vector<32x64xf32>
    %c0_22 = arith.constant 0 : index
    %c0_23 = arith.constant 0 : index
    %37 = vector.load %arg3[%c0_22, %c0_23] : memref<16x32xbf16, #tpu.memory_space<vmem>>, vector<16x32xbf16>
    %38 = arith.truncf %36 : vector<32x64xf32> to vector<32x64xbf16>
    %cst_24 = arith.constant dense<0.000000e+00> : vector<16x64xf32>
    %39 = tpu.matmul %37, %38, %cst_24 {dimension_numbers = #tpu.dot_dimension_numbers<[1], [0], [0], [1], [0, 0, 1, 1], [], []>} : vector<16x32xbf16>, vector<32x64xbf16>, vector<16x64xf32> -> vector<16x64xf32>
    %40 = vector.extract_strided_slice %39 {offsets = [0, 0], sizes = [8, 64], strides = [1, 1]} : vector<16x64xf32> to vector<8x64xf32>
    %41 = vector.extract_strided_slice %4 {offsets = [0, 2], sizes = [8, 1], strides = [1, 1]} : vector<8x4xf32> to vector<8x1xf32>
    %42 = vector.broadcast %41 : vector<8x1xf32> to vector<8x64xf32>
    %43 = arith.addf %40, %42 : vector<8x64xf32>
    %44 = vector.extract_strided_slice %39 {offsets = [8, 0], sizes = [8, 64], strides = [1, 1]} : vector<16x64xf32> to vector<8x64xf32>
    %45 = vector.extract_strided_slice %4 {offsets = [0, 3], sizes = [8, 1], strides = [1, 1]} : vector<8x4xf32> to vector<8x1xf32>
    %46 = vector.broadcast %45 : vector<8x1xf32> to vector<8x64xf32>
    %47 = arith.addf %44, %46 : vector<8x64xf32>
    %48 = vector.extract_strided_slice %4 {offsets = [0, 0], sizes = [8, 1], strides = [1, 1]} : vector<8x4xf32> to vector<8x1xf32>
    %49 = vector.broadcast %48 : vector<8x1xf32> to vector<8x64xf32>
    %50 = arith.mulf %1, %49 : vector<8x64xf32>
    %51 = vector.extract_strided_slice %4 {offsets = [0, 1], sizes = [8, 1], strides = [1, 1]} : vector<8x4xf32> to vector<8x1xf32>
    %52 = vector.broadcast %51 : vector<8x1xf32> to vector<8x64xf32>
    %53 = arith.addf %50, %52 : vector<8x64xf32>
    %54 = arith.mulf %43, %53 : vector<8x64xf32>
    %55 = arith.addf %54, %47 : vector<8x64xf32>
    %cst_25 = arith.constant 0.000000e+00 : f32
    %56 = vector.broadcast %cst_25 : f32 to vector<8x64xf32>
    %57 = arith.maximumf %55, %56 : vector<8x64xf32>
    %58 = arith.truncf %57 : vector<8x64xf32> to vector<8x64xbf16>
    %c0_26 = arith.constant 0 : index
    %c0_27 = arith.constant 0 : index
    %c0_28 = arith.constant 0 : index
    %59 = vector.load %arg9[%c0_26, %c0_27, %c0_28] : memref<1x8x64xbf16, #tpu.memory_space<vmem>>, vector<1x8x64xbf16>
    %60 = vector.shape_cast %59 : vector<1x8x64xbf16> to vector<8x64xbf16>
    %61 = vector.shape_cast %58 : vector<8x64xbf16> to vector<1x8x64xbf16>
    tpu.vector_store %arg9[%c0_26, %c0_27, %c0_28], %61 {strides = array<i32>} : memref<1x8x64xbf16, #tpu.memory_space<vmem>>, vector<1x8x64xbf16>,
    return
  }
  func.func @transform_0(%arg0: i32, %arg1: i32) -> (i32, i32) {
    %c0_i32 = arith.constant 0 : i32
    %c0_i32_0 = arith.constant 0 : i32
    %c0_i32_1 = arith.constant 0 : i32
    return %c0_i32, %c0_i32_0 : i32, i32
  }
  func.func @transform_1(%arg0: i32, %arg1: i32) -> (i32, i32) {
    %c0_i32 = arith.constant 0 : i32
    %c0_i32_0 = arith.constant 0 : i32
    %c0_i32_1 = arith.constant 0 : i32
    return %c0_i32, %c0_i32_0 : i32, i32
  }
  func.func @transform_2(%arg0: i32, %arg1: i32) -> (i32, i32, i32) {
    %c0_i32 = arith.constant 0 : i32
    %c0_i32_0 = arith.constant 0 : i32
    %c0_i32_1 = arith.constant 0 : i32
    return %arg0, %c0_i32, %c0_i32_0 : i32, i32, i32
  }
  func.func @transform_3(%arg0: i32, %arg1: i32) -> (i32, i32, i32) {
    %c0_i32 = arith.constant 0 : i32
    %c0_i32_0 = arith.constant 0 : i32
    %c0_i32_1 = arith.constant 0 : i32
    return %arg0, %c0_i32, %c0_i32_0 : i32, i32, i32
  }
  func.func @transform_4(%arg0: i32, %arg1: i32) -> (i32, i32, i32) {
    %c0_i32 = arith.constant 0 : i32
    %c0_i32_0 = arith.constant 0 : i32
    %c0_i32_1 = arith.constant 0 : i32
    return %arg0, %c0_i32, %c0_i32_0 : i32, i32, i32
  }
  func.func @transform_5(%arg0: i32, %arg1: i32) -> (i32, i32, i32) {
    %c0_i32 = arith.constant 0 : i32
    %c0_i32_0 = arith.constant 0 : i32
    %c0_i32_1 = arith.constant 0 : i32
    return %arg0, %c0_i32, %c0_i32_0 : i32, i32, i32
  }
  func.func @transform_6(%arg0: i32, %arg1: i32) -> (i32, i32, i32) {
    %c0_i32 = arith.constant 0 : i32
    %c0_i32_0 = arith.constant 0 : i32
    return %arg0, %c0_i32, %arg1 : i32, i32, i32
  }
  func.func @transform_7(%arg0: i32, %arg1: i32) -> (i32, i32, i32) {
    %c0_i32 = arith.constant 0 : i32
    %c0_i32_0 = arith.constant 0 : i32
    return %arg0, %c0_i32, %arg1 : i32, i32, i32
  }
}

module attributes {stable_mosaic.version = 11 : i64} {
  func.func @_conv_mid_kernel(%arg0: i32, %arg1: i32, %arg2: memref<16x72xbf16, #tpu.memory_space<vmem>>, %arg3: memref<16x1xf32, #tpu.memory_space<vmem>>, %arg4: memref<1x8x1x64xbf16, #tpu.memory_space<vmem>>, %arg5: memref<1x16x4x64xbf16, #tpu.memory_space<vmem>>, %arg6: memref<1x16x2xf32, #tpu.memory_space<vmem>>, %arg7: memref<1x8x320xf32, #tpu.memory_space<vmem>>, %arg8: memref<72x64xf32, #tpu.memory_space<vmem>>) attributes {dimension_semantics = [#tpu.dimension_semantics<parallel>, #tpu.dimension_semantics<parallel>], iteration_bounds = array<i64: 2, 1>, scalar_prefetch = 0 : i64, scratch_operands = 2 : i64, tpu.core_type = #tpu.core_type<tc>, window_params = [{transform_indices = @transform_0, window_bounds = array<i64: 16, 72>}, {transform_indices = @transform_1, window_bounds = array<i64: 16, 1>}, {transform_indices = @transform_2, window_bounds = array<i64: 1, 8, 1, 64>}, {transform_indices = @transform_3, window_bounds = array<i64: 1, 16, 4, 64>}, {transform_indices = @transform_4, window_bounds = array<i64: 1, 16, 2>}]} {
    %c0 = arith.constant 0 : index
    %c0_0 = arith.constant 0 : index
    %0 = vector.load %arg3[%c0, %c0_0] : memref<16x1xf32, #tpu.memory_space<vmem>>, vector<16x1xf32>
    %1 = tpu.iota {dimensions = array<i32: 1>} : vector<1x64xi32>
    %c8_i32 = arith.constant 8 : i32
    %c0_i32 = arith.constant 0 : i32
    %2 = arith.cmpi eq, %c8_i32, %c0_i32 : i32
    %c1_i32 = arith.constant 1 : i32
    %3 = arith.select %2, %c1_i32, %c8_i32 : i32
    %4 = vector.broadcast %3 : i32 to vector<1x64xi32>
    %5 = arith.remsi %1, %4 : vector<1x64xi32>
    %c0_i32_1 = arith.constant 0 : i32
    %6 = vector.broadcast %c0_i32_1 : i32 to vector<1x64xi32>
    %7 = arith.cmpi ne, %5, %6 : vector<1x64xi32>
    %c0_i32_2 = arith.constant 0 : i32
    %8 = vector.broadcast %c0_i32_2 : i32 to vector<1x64xi32>
    %9 = arith.cmpi slt, %5, %8 : vector<1x64xi32>
    %c0_i32_3 = arith.constant 0 : i32
    %10 = arith.cmpi slt, %3, %c0_i32_3 : i32
    %11 = vector.broadcast %10 : i1 to vector<1x64xi1>
    %12 = vector.broadcast %11 : vector<1x64xi1> to vector<1x64xi1>
    %13 = arith.xori %9, %12 : vector<1x64xi1>
    %14 = arith.andi %13, %7 : vector<1x64xi1>
    %15 = vector.broadcast %3 : i32 to vector<1x64xi32>
    %16 = arith.addi %5, %15 : vector<1x64xi32>
    %17 = arith.select %14, %16, %5 : vector<1x64xi1>, vector<1x64xi32>
    %cst = arith.constant 0.000000e+00 : f32
    %18 = vector.broadcast %cst : f32 to vector<8x320xf32>
    %c0_4 = arith.constant 0 : index
    %c0_5 = arith.constant 0 : index
    %c0_6 = arith.constant 0 : index
    %19 = vector.load %arg7[%c0_4, %c0_5, %c0_6] : memref<1x8x320xf32, #tpu.memory_space<vmem>>, vector<1x8x320xf32>
    %20 = vector.shape_cast %19 : vector<1x8x320xf32> to vector<8x320xf32>
    %21 = vector.shape_cast %18 : vector<8x320xf32> to vector<1x8x320xf32>
    tpu.vector_store %arg7[%c0_4, %c0_5, %c0_6], %21 {strides = array<i32>} : memref<1x8x320xf32, #tpu.memory_space<vmem>>, vector<1x8x320xf32>,
    %c0_7 = arith.constant 0 : index
    %c0_8 = arith.constant 0 : index
    %c0_9 = arith.constant 0 : index
    %c0_10 = arith.constant 0 : index
    %22 = vector.load %arg4[%c0_7, %c0_8, %c0_9, %c0_10] : memref<1x8x1x64xbf16, #tpu.memory_space<vmem>>, vector<1x8x1x64xbf16>
    %23 = vector.shape_cast %22 : vector<1x8x1x64xbf16> to vector<8x64xbf16>
    %24 = arith.extf %23 : vector<8x64xbf16> to vector<8x64xf32>
    %c0_11 = arith.constant 0 : index
    %c0_12 = arith.constant 0 : index
    %c128 = arith.constant 128 : index
    %25 = vector.load %arg7[%c0_11, %c0_12, %c128] : memref<1x8x320xf32, #tpu.memory_space<vmem>>, vector<1x8x64xf32>
    %26 = vector.shape_cast %25 : vector<1x8x64xf32> to vector<8x64xf32>
    %27 = vector.shape_cast %24 : vector<8x64xf32> to vector<1x8x64xf32>
    tpu.vector_store %arg7[%c0_11, %c0_12, %c128], %27 {strides = array<i32>} : memref<1x8x320xf32, #tpu.memory_space<vmem>>, vector<1x8x64xf32>,
    %c0_13 = arith.constant 0 : index
    %c0_14 = arith.constant 0 : index
    %c119 = arith.constant 119 : index
    %28 = vector.load %arg7[%c0_13, %c0_14, %c119] : memref<1x8x320xf32, #tpu.memory_space<vmem>>, vector<1x8x64xf32>
    %29 = vector.shape_cast %28 : vector<1x8x64xf32> to vector<8x64xf32>
    %c1_i32_15 = arith.constant 1 : i32
    %30 = vector.broadcast %c1_i32_15 : i32 to vector<1x64xi32>
    %31 = arith.cmpi sge, %17, %30 : vector<1x64xi32>
    %cst_16 = arith.constant 0.000000e+00 : f32
    %32 = vector.shape_cast %31 : vector<1x64xi1> to vector<1x64xi1>
    %33 = vector.broadcast %32 : vector<1x64xi1> to vector<8x64xi1>
    %34 = vector.broadcast %cst_16 : f32 to vector<8x64xf32>
    %35 = arith.select %33, %29, %34 : vector<8x64xi1>, vector<8x64xf32>
    %c0_17 = arith.constant 0 : index
    %c0_18 = arith.constant 0 : index
    %36 = vector.load %arg8[%c0_17, %c0_18] : memref<72x64xf32, #tpu.memory_space<vmem>>, vector<8x64xf32>
    tpu.vector_store %arg8[%c0_17, %c0_18], %35 {strides = array<i32>} : memref<72x64xf32, #tpu.memory_space<vmem>>, vector<8x64xf32>,
    %c0_19 = arith.constant 0 : index
    %c0_20 = arith.constant 0 : index
    %c120 = arith.constant 120 : index
    %37 = vector.load %arg7[%c0_19, %c0_20, %c120] : memref<1x8x320xf32, #tpu.memory_space<vmem>>, vector<1x8x64xf32>
    %38 = vector.shape_cast %37 : vector<1x8x64xf32> to vector<8x64xf32>
    %c8 = arith.constant 8 : index
    %c0_21 = arith.constant 0 : index
    %39 = vector.load %arg8[%c8, %c0_21] : memref<72x64xf32, #tpu.memory_space<vmem>>, vector<8x64xf32>
    tpu.vector_store %arg8[%c8, %c0_21], %38 {strides = array<i32>} : memref<72x64xf32, #tpu.memory_space<vmem>>, vector<8x64xf32>,
    %c0_22 = arith.constant 0 : index
    %c0_23 = arith.constant 0 : index
    %c120_24 = arith.constant 120 : index
    %40 = vector.load %arg7[%c0_22, %c0_23, %c120_24] : memref<1x8x320xf32, #tpu.memory_space<vmem>>, vector<1x8x64xf32>
    %41 = vector.shape_cast %40 : vector<1x8x64xf32> to vector<8x64xf32>
    %c16 = arith.constant 16 : index
    %c0_25 = arith.constant 0 : index
    %42 = vector.load %arg8[%c16, %c0_25] : memref<72x64xf32, #tpu.memory_space<vmem>>, vector<8x64xf32>
    tpu.vector_store %arg8[%c16, %c0_25], %41 {strides = array<i32>} : memref<72x64xf32, #tpu.memory_space<vmem>>, vector<8x64xf32>,
    %c0_26 = arith.constant 0 : index
    %c0_27 = arith.constant 0 : index
    %c127 = arith.constant 127 : index
    %43 = vector.load %arg7[%c0_26, %c0_27, %c127] : memref<1x8x320xf32, #tpu.memory_space<vmem>>, vector<1x8x64xf32>
    %44 = vector.shape_cast %43 : vector<1x8x64xf32> to vector<8x64xf32>
    %c1_i32_28 = arith.constant 1 : i32
    %45 = vector.broadcast %c1_i32_28 : i32 to vector<1x64xi32>
    %46 = arith.cmpi sge, %17, %45 : vector<1x64xi32>
    %cst_29 = arith.constant 0.000000e+00 : f32
    %47 = vector.shape_cast %46 : vector<1x64xi1> to vector<1x64xi1>
    %48 = vector.broadcast %47 : vector<1x64xi1> to vector<8x64xi1>
    %49 = vector.broadcast %cst_29 : f32 to vector<8x64xf32>
    %50 = arith.select %48, %44, %49 : vector<8x64xi1>, vector<8x64xf32>
    %c24 = arith.constant 24 : index
    %c0_30 = arith.constant 0 : index
    %51 = vector.load %arg8[%c24, %c0_30] : memref<72x64xf32, #tpu.memory_space<vmem>>, vector<8x64xf32>
    tpu.vector_store %arg8[%c24, %c0_30], %50 {strides = array<i32>} : memref<72x64xf32, #tpu.memory_space<vmem>>, vector<8x64xf32>,
    %c0_31 = arith.constant 0 : index
    %c0_32 = arith.constant 0 : index
    %c128_33 = arith.constant 128 : index
    %52 = vector.load %arg7[%c0_31, %c0_32, %c128_33] : memref<1x8x320xf32, #tpu.memory_space<vmem>>, vector<1x8x64xf32>
    %53 = vector.shape_cast %52 : vector<1x8x64xf32> to vector<8x64xf32>
    %c32 = arith.constant 32 : index
    %c0_34 = arith.constant 0 : index
    %54 = vector.load %arg8[%c32, %c0_34] : memref<72x64xf32, #tpu.memory_space<vmem>>, vector<8x64xf32>
    tpu.vector_store %arg8[%c32, %c0_34], %53 {strides = array<i32>} : memref<72x64xf32, #tpu.memory_space<vmem>>, vector<8x64xf32>,
    %c0_35 = arith.constant 0 : index
    %c0_36 = arith.constant 0 : index
    %c128_37 = arith.constant 128 : index
    %55 = vector.load %arg7[%c0_35, %c0_36, %c128_37] : memref<1x8x320xf32, #tpu.memory_space<vmem>>, vector<1x8x64xf32>
    %56 = vector.shape_cast %55 : vector<1x8x64xf32> to vector<8x64xf32>
    %c40 = arith.constant 40 : index
    %c0_38 = arith.constant 0 : index
    %57 = vector.load %arg8[%c40, %c0_38] : memref<72x64xf32, #tpu.memory_space<vmem>>, vector<8x64xf32>
    tpu.vector_store %arg8[%c40, %c0_38], %56 {strides = array<i32>} : memref<72x64xf32, #tpu.memory_space<vmem>>, vector<8x64xf32>,
    %c0_39 = arith.constant 0 : index
    %c0_40 = arith.constant 0 : index
    %c127_41 = arith.constant 127 : index
    %58 = vector.load %arg7[%c0_39, %c0_40, %c127_41] : memref<1x8x320xf32, #tpu.memory_space<vmem>>, vector<1x8x64xf32>
    %59 = vector.shape_cast %58 : vector<1x8x64xf32> to vector<8x64xf32>
    %c1_i32_42 = arith.constant 1 : i32
    %60 = vector.broadcast %c1_i32_42 : i32 to vector<1x64xi32>
    %61 = arith.cmpi sge, %17, %60 : vector<1x64xi32>
    %cst_43 = arith.constant 0.000000e+00 : f32
    %62 = vector.shape_cast %61 : vector<1x64xi1> to vector<1x64xi1>
    %63 = vector.broadcast %62 : vector<1x64xi1> to vector<8x64xi1>
    %64 = vector.broadcast %cst_43 : f32 to vector<8x64xf32>
    %65 = arith.select %63, %59, %64 : vector<8x64xi1>, vector<8x64xf32>
    %c48 = arith.constant 48 : index
    %c0_44 = arith.constant 0 : index
    %66 = vector.load %arg8[%c48, %c0_44] : memref<72x64xf32, #tpu.memory_space<vmem>>, vector<8x64xf32>
    tpu.vector_store %arg8[%c48, %c0_44], %65 {strides = array<i32>} : memref<72x64xf32, #tpu.memory_space<vmem>>, vector<8x64xf32>,
    %c0_45 = arith.constant 0 : index
    %c0_46 = arith.constant 0 : index
    %c128_47 = arith.constant 128 : index
    %67 = vector.load %arg7[%c0_45, %c0_46, %c128_47] : memref<1x8x320xf32, #tpu.memory_space<vmem>>, vector<1x8x64xf32>
    %68 = vector.shape_cast %67 : vector<1x8x64xf32> to vector<8x64xf32>
    %c56 = arith.constant 56 : index
    %c0_48 = arith.constant 0 : index
    %69 = vector.load %arg8[%c56, %c0_48] : memref<72x64xf32, #tpu.memory_space<vmem>>, vector<8x64xf32>
    tpu.vector_store %arg8[%c56, %c0_48], %68 {strides = array<i32>} : memref<72x64xf32, #tpu.memory_space<vmem>>, vector<8x64xf32>,
    %c0_49 = arith.constant 0 : index
    %c0_50 = arith.constant 0 : index
    %c128_51 = arith.constant 128 : index
    %70 = vector.load %arg7[%c0_49, %c0_50, %c128_51] : memref<1x8x320xf32, #tpu.memory_space<vmem>>, vector<1x8x64xf32>
    %71 = vector.shape_cast %70 : vector<1x8x64xf32> to vector<8x64xf32>
    %c64 = arith.constant 64 : index
    %c0_52 = arith.constant 0 : index
    %72 = vector.load %arg8[%c64, %c0_52] : memref<72x64xf32, #tpu.memory_space<vmem>>, vector<8x64xf32>
    tpu.vector_store %arg8[%c64, %c0_52], %71 {strides = array<i32>} : memref<72x64xf32, #tpu.memory_space<vmem>>, vector<8x64xf32>,
    %c0_53 = arith.constant 0 : index
    %c0_54 = arith.constant 0 : index
    %73 = vector.load %arg2[%c0_53, %c0_54] : memref<16x72xbf16, #tpu.memory_space<vmem>>, vector<16x72xbf16>
    %c0_55 = arith.constant 0 : index
    %c0_56 = arith.constant 0 : index
    %74 = vector.load %arg8[%c0_55, %c0_56] : memref<72x64xf32, #tpu.memory_space<vmem>>, vector<72x64xf32>
    %75 = arith.truncf %74 : vector<72x64xf32> to vector<72x64xbf16>
    %cst_57 = arith.constant dense<0.000000e+00> : vector<16x64xf32>
    %76 = tpu.matmul %73, %75, %cst_57 {dimension_numbers = #tpu.dot_dimension_numbers<[1], [0], [0], [1], [0, 0, 1, 1], [], []>} : vector<16x72xbf16>, vector<72x64xbf16>, vector<16x64xf32> -> vector<16x64xf32>
    %77 = vector.broadcast %0 : vector<16x1xf32> to vector<16x64xf32>
    %78 = arith.addf %76, %77 : vector<16x64xf32>
    %79 = arith.truncf %78 : vector<16x64xf32> to vector<16x64xbf16>
    %c0_58 = arith.constant 0 : index
    %c0_59 = arith.constant 0 : index
    %c0_60 = arith.constant 0 : index
    %c0_61 = arith.constant 0 : index
    %80 = vector.load %arg5[%c0_58, %c0_59, %c0_60, %c0_61] : memref<1x16x4x64xbf16, #tpu.memory_space<vmem>>, vector<1x16x1x64xbf16>
    %81 = vector.shape_cast %80 : vector<1x16x1x64xbf16> to vector<16x64xbf16>
    %82 = vector.shape_cast %79 : vector<16x64xbf16> to vector<1x16x1x64xbf16>
    tpu.vector_store %arg5[%c0_58, %c0_59, %c0_60, %c0_61], %82 {strides = array<i32>} : memref<1x16x4x64xbf16, #tpu.memory_space<vmem>>, vector<1x16x1x64xbf16>,
    %c0_62 = arith.constant 0 : index
    %c0_63 = arith.constant 0 : index
    %c120_64 = arith.constant 120 : index
    %83 = vector.load %arg7[%c0_62, %c0_63, %c120_64] : memref<1x8x320xf32, #tpu.memory_space<vmem>>, vector<1x8x64xf32>
    %84 = vector.shape_cast %83 : vector<1x8x64xf32> to vector<8x64xf32>
    %c0_65 = arith.constant 0 : index
    %c0_66 = arith.constant 0 : index
    %85 = vector.load %arg8[%c0_65, %c0_66] : memref<72x64xf32, #tpu.memory_space<vmem>>, vector<8x64xf32>
    tpu.vector_store %arg8[%c0_65, %c0_66], %84 {strides = array<i32>} : memref<72x64xf32, #tpu.memory_space<vmem>>, vector<8x64xf32>,
    %c0_67 = arith.constant 0 : index
    %c0_68 = arith.constant 0 : index
    %c120_69 = arith.constant 120 : index
    %86 = vector.load %arg7[%c0_67, %c0_68, %c120_69] : memref<1x8x320xf32, #tpu.memory_space<vmem>>, vector<1x8x64xf32>
    %87 = vector.shape_cast %86 : vector<1x8x64xf32> to vector<8x64xf32>
    %c8_70 = arith.constant 8 : index
    %c0_71 = arith.constant 0 : index
    %88 = vector.load %arg8[%c8_70, %c0_71] : memref<72x64xf32, #tpu.memory_space<vmem>>, vector<8x64xf32>
    tpu.vector_store %arg8[%c8_70, %c0_71], %87 {strides = array<i32>} : memref<72x64xf32, #tpu.memory_space<vmem>>, vector<8x64xf32>,
    %c0_72 = arith.constant 0 : index
    %c0_73 = arith.constant 0 : index
    %c121 = arith.constant 121 : index
    %89 = vector.load %arg7[%c0_72, %c0_73, %c121] : memref<1x8x320xf32, #tpu.memory_space<vmem>>, vector<1x8x64xf32>
    %90 = vector.shape_cast %89 : vector<1x8x64xf32> to vector<8x64xf32>
    %c7_i32 = arith.constant 7 : i32
    %91 = vector.broadcast %c7_i32 : i32 to vector<1x64xi32>
    %92 = arith.cmpi slt, %17, %91 : vector<1x64xi32>
    %cst_74 = arith.constant 0.000000e+00 : f32
    %93 = vector.shape_cast %92 : vector<1x64xi1> to vector<1x64xi1>
    %94 = vector.broadcast %93 : vector<1x64xi1> to vector<8x64xi1>
    %95 = vector.broadcast %cst_74 : f32 to vector<8x64xf32>
    %96 = arith.select %94, %90, %95 : vector<8x64xi1>, vector<8x64xf32>
    %c16_75 = arith.constant 16 : index
    %c0_76 = arith.constant 0 : index
    %97 = vector.load %arg8[%c16_75, %c0_76] : memref<72x64xf32, #tpu.memory_space<vmem>>, vector<8x64xf32>
    tpu.vector_store %arg8[%c16_75, %c0_76], %96 {strides = array<i32>} : memref<72x64xf32, #tpu.memory_space<vmem>>, vector<8x64xf32>,
    %c0_77 = arith.constant 0 : index
    %c0_78 = arith.constant 0 : index
    %c128_79 = arith.constant 128 : index
    %98 = vector.load %arg7[%c0_77, %c0_78, %c128_79] : memref<1x8x320xf32, #tpu.memory_space<vmem>>, vector<1x8x64xf32>
    %99 = vector.shape_cast %98 : vector<1x8x64xf32> to vector<8x64xf32>
    %c24_80 = arith.constant 24 : index
    %c0_81 = arith.constant 0 : index
    %100 = vector.load %arg8[%c24_80, %c0_81] : memref<72x64xf32, #tpu.memory_space<vmem>>, vector<8x64xf32>
    tpu.vector_store %arg8[%c24_80, %c0_81], %99 {strides = array<i32>} : memref<72x64xf32, #tpu.memory_space<vmem>>, vector<8x64xf32>,
    %c0_82 = arith.constant 0 : index
    %c0_83 = arith.constant 0 : index
    %c128_84 = arith.constant 128 : index
    %101 = vector.load %arg7[%c0_82, %c0_83, %c128_84] : memref<1x8x320xf32, #tpu.memory_space<vmem>>, vector<1x8x64xf32>
    %102 = vector.shape_cast %101 : vector<1x8x64xf32> to vector<8x64xf32>
    %c32_85 = arith.constant 32 : index
    %c0_86 = arith.constant 0 : index
    %103 = vector.load %arg8[%c32_85, %c0_86] : memref<72x64xf32, #tpu.memory_space<vmem>>, vector<8x64xf32>
    tpu.vector_store %arg8[%c32_85, %c0_86], %102 {strides = array<i32>} : memref<72x64xf32, #tpu.memory_space<vmem>>, vector<8x64xf32>,
    %c0_87 = arith.constant 0 : index
    %c0_88 = arith.constant 0 : index
    %c129 = arith.constant 129 : index
    %104 = vector.load %arg7[%c0_87, %c0_88, %c129] : memref<1x8x320xf32, #tpu.memory_space<vmem>>, vector<1x8x64xf32>
    %105 = vector.shape_cast %104 : vector<1x8x64xf32> to vector<8x64xf32>
    %c7_i32_89 = arith.constant 7 : i32
    %106 = vector.broadcast %c7_i32_89 : i32 to vector<1x64xi32>
    %107 = arith.cmpi slt, %17, %106 : vector<1x64xi32>
    %cst_90 = arith.constant 0.000000e+00 : f32
    %108 = vector.shape_cast %107 : vector<1x64xi1> to vector<1x64xi1>
    %109 = vector.broadcast %108 : vector<1x64xi1> to vector<8x64xi1>
    %110 = vector.broadcast %cst_90 : f32 to vector<8x64xf32>
    %111 = arith.select %109, %105, %110 : vector<8x64xi1>, vector<8x64xf32>
    %c40_91 = arith.constant 40 : index
    %c0_92 = arith.constant 0 : index
    %112 = vector.load %arg8[%c40_91, %c0_92] : memref<72x64xf32, #tpu.memory_space<vmem>>, vector<8x64xf32>
    tpu.vector_store %arg8[%c40_91, %c0_92], %111 {strides = array<i32>} : memref<72x64xf32, #tpu.memory_space<vmem>>, vector<8x64xf32>,
    %c0_93 = arith.constant 0 : index
    %c0_94 = arith.constant 0 : index
    %c128_95 = arith.constant 128 : index
    %113 = vector.load %arg7[%c0_93, %c0_94, %c128_95] : memref<1x8x320xf32, #tpu.memory_space<vmem>>, vector<1x8x64xf32>
    %114 = vector.shape_cast %113 : vector<1x8x64xf32> to vector<8x64xf32>
    %c48_96 = arith.constant 48 : index
    %c0_97 = arith.constant 0 : index
    %115 = vector.load %arg8[%c48_96, %c0_97] : memref<72x64xf32, #tpu.memory_space<vmem>>, vector<8x64xf32>
    tpu.vector_store %arg8[%c48_96, %c0_97], %114 {strides = array<i32>} : memref<72x64xf32, #tpu.memory_space<vmem>>, vector<8x64xf32>,
    %c0_98 = arith.constant 0 : index
    %c0_99 = arith.constant 0 : index
    %c128_100 = arith.constant 128 : index
    %116 = vector.load %arg7[%c0_98, %c0_99, %c128_100] : memref<1x8x320xf32, #tpu.memory_space<vmem>>, vector<1x8x64xf32>
    %117 = vector.shape_cast %116 : vector<1x8x64xf32> to vector<8x64xf32>
    %c56_101 = arith.constant 56 : index
    %c0_102 = arith.constant 0 : index
    %118 = vector.load %arg8[%c56_101, %c0_102] : memref<72x64xf32, #tpu.memory_space<vmem>>, vector<8x64xf32>
    tpu.vector_store %arg8[%c56_101, %c0_102], %117 {strides = array<i32>} : memref<72x64xf32, #tpu.memory_space<vmem>>, vector<8x64xf32>,
    %c0_103 = arith.constant 0 : index
    %c0_104 = arith.constant 0 : index
    %c129_105 = arith.constant 129 : index
    %119 = vector.load %arg7[%c0_103, %c0_104, %c129_105] : memref<1x8x320xf32, #tpu.memory_space<vmem>>, vector<1x8x64xf32>
    %120 = vector.shape_cast %119 : vector<1x8x64xf32> to vector<8x64xf32>
    %c7_i32_106 = arith.constant 7 : i32
    %121 = vector.broadcast %c7_i32_106 : i32 to vector<1x64xi32>
    %122 = arith.cmpi slt, %17, %121 : vector<1x64xi32>
    %cst_107 = arith.constant 0.000000e+00 : f32
    %123 = vector.shape_cast %122 : vector<1x64xi1> to vector<1x64xi1>
    %124 = vector.broadcast %123 : vector<1x64xi1> to vector<8x64xi1>
    %125 = vector.broadcast %cst_107 : f32 to vector<8x64xf32>
    %126 = arith.select %124, %120, %125 : vector<8x64xi1>, vector<8x64xf32>
    %c64_108 = arith.constant 64 : index
    %c0_109 = arith.constant 0 : index
    %127 = vector.load %arg8[%c64_108, %c0_109] : memref<72x64xf32, #tpu.memory_space<vmem>>, vector<8x64xf32>
    tpu.vector_store %arg8[%c64_108, %c0_109], %126 {strides = array<i32>} : memref<72x64xf32, #tpu.memory_space<vmem>>, vector<8x64xf32>,
    %c0_110 = arith.constant 0 : index
    %c0_111 = arith.constant 0 : index
    %128 = vector.load %arg2[%c0_110, %c0_111] : memref<16x72xbf16, #tpu.memory_space<vmem>>, vector<16x72xbf16>
    %c0_112 = arith.constant 0 : index
    %c0_113 = arith.constant 0 : index
    %129 = vector.load %arg8[%c0_112, %c0_113] : memref<72x64xf32, #tpu.memory_space<vmem>>, vector<72x64xf32>
    %130 = arith.truncf %129 : vector<72x64xf32> to vector<72x64xbf16>
    %cst_114 = arith.constant dense<0.000000e+00> : vector<16x64xf32>
    %131 = tpu.matmul %128, %130, %cst_114 {dimension_numbers = #tpu.dot_dimension_numbers<[1], [0], [0], [1], [0, 0, 1, 1], [], []>} : vector<16x72xbf16>, vector<72x64xbf16>, vector<16x64xf32> -> vector<16x64xf32>
    %132 = vector.broadcast %0 : vector<16x1xf32> to vector<16x64xf32>
    %133 = arith.addf %131, %132 : vector<16x64xf32>
    %134 = arith.truncf %133 : vector<16x64xf32> to vector<16x64xbf16>
    %c0_115 = arith.constant 0 : index
    %c0_116 = arith.constant 0 : index
    %c1 = arith.constant 1 : index
    %c0_117 = arith.constant 0 : index
    %135 = vector.load %arg5[%c0_115, %c0_116, %c1, %c0_117] : memref<1x16x4x64xbf16, #tpu.memory_space<vmem>>, vector<1x16x1x64xbf16>
    %136 = vector.shape_cast %135 : vector<1x16x1x64xbf16> to vector<16x64xbf16>
    %137 = vector.shape_cast %134 : vector<16x64xbf16> to vector<1x16x1x64xbf16>
    tpu.vector_store %arg5[%c0_115, %c0_116, %c1, %c0_117], %137 {strides = array<i32>} : memref<1x16x4x64xbf16, #tpu.memory_space<vmem>>, vector<1x16x1x64xbf16>,
    %c0_118 = arith.constant 0 : index
    %c0_119 = arith.constant 0 : index
    %c127_120 = arith.constant 127 : index
    %138 = vector.load %arg7[%c0_118, %c0_119, %c127_120] : memref<1x8x320xf32, #tpu.memory_space<vmem>>, vector<1x8x64xf32>
    %139 = vector.shape_cast %138 : vector<1x8x64xf32> to vector<8x64xf32>
    %c1_i32_121 = arith.constant 1 : i32
    %140 = vector.broadcast %c1_i32_121 : i32 to vector<1x64xi32>
    %141 = arith.cmpi sge, %17, %140 : vector<1x64xi32>
    %cst_122 = arith.constant 0.000000e+00 : f32
    %142 = vector.shape_cast %141 : vector<1x64xi1> to vector<1x64xi1>
    %143 = vector.broadcast %142 : vector<1x64xi1> to vector<8x64xi1>
    %144 = vector.broadcast %cst_122 : f32 to vector<8x64xf32>
    %145 = arith.select %143, %139, %144 : vector<8x64xi1>, vector<8x64xf32>
    %c0_123 = arith.constant 0 : index
    %c0_124 = arith.constant 0 : index
    %146 = vector.load %arg8[%c0_123, %c0_124] : memref<72x64xf32, #tpu.memory_space<vmem>>, vector<8x64xf32>
    tpu.vector_store %arg8[%c0_123, %c0_124], %145 {strides = array<i32>} : memref<72x64xf32, #tpu.memory_space<vmem>>, vector<8x64xf32>,
    %c0_125 = arith.constant 0 : index
    %c0_126 = arith.constant 0 : index
    %c128_127 = arith.constant 128 : index
    %147 = vector.load %arg7[%c0_125, %c0_126, %c128_127] : memref<1x8x320xf32, #tpu.memory_space<vmem>>, vector<1x8x64xf32>
    %148 = vector.shape_cast %147 : vector<1x8x64xf32> to vector<8x64xf32>
    %c8_128 = arith.constant 8 : index
    %c0_129 = arith.constant 0 : index
    %149 = vector.load %arg8[%c8_128, %c0_129] : memref<72x64xf32, #tpu.memory_space<vmem>>, vector<8x64xf32>
    tpu.vector_store %arg8[%c8_128, %c0_129], %148 {strides = array<i32>} : memref<72x64xf32, #tpu.memory_space<vmem>>, vector<8x64xf32>,
    %c0_130 = arith.constant 0 : index
    %c0_131 = arith.constant 0 : index
    %c128_132 = arith.constant 128 : index
    %150 = vector.load %arg7[%c0_130, %c0_131, %c128_132] : memref<1x8x320xf32, #tpu.memory_space<vmem>>, vector<1x8x64xf32>
    %151 = vector.shape_cast %150 : vector<1x8x64xf32> to vector<8x64xf32>
    %c16_133 = arith.constant 16 : index
    %c0_134 = arith.constant 0 : index
    %152 = vector.load %arg8[%c16_133, %c0_134] : memref<72x64xf32, #tpu.memory_space<vmem>>, vector<8x64xf32>
    tpu.vector_store %arg8[%c16_133, %c0_134], %151 {strides = array<i32>} : memref<72x64xf32, #tpu.memory_space<vmem>>, vector<8x64xf32>,
    %c0_135 = arith.constant 0 : index
    %c0_136 = arith.constant 0 : index
    %c127_137 = arith.constant 127 : index
    %153 = vector.load %arg7[%c0_135, %c0_136, %c127_137] : memref<1x8x320xf32, #tpu.memory_space<vmem>>, vector<1x8x64xf32>
    %154 = vector.shape_cast %153 : vector<1x8x64xf32> to vector<8x64xf32>
    %c1_i32_138 = arith.constant 1 : i32
    %155 = vector.broadcast %c1_i32_138 : i32 to vector<1x64xi32>
    %156 = arith.cmpi sge, %17, %155 : vector<1x64xi32>
    %cst_139 = arith.constant 0.000000e+00 : f32
    %157 = vector.shape_cast %156 : vector<1x64xi1> to vector<1x64xi1>
    %158 = vector.broadcast %157 : vector<1x64xi1> to vector<8x64xi1>
    %159 = vector.broadcast %cst_139 : f32 to vector<8x64xf32>
    %160 = arith.select %158, %154, %159 : vector<8x64xi1>, vector<8x64xf32>
    %c24_140 = arith.constant 24 : index
    %c0_141 = arith.constant 0 : index
    %161 = vector.load %arg8[%c24_140, %c0_141] : memref<72x64xf32, #tpu.memory_space<vmem>>, vector<8x64xf32>
    tpu.vector_store %arg8[%c24_140, %c0_141], %160 {strides = array<i32>} : memref<72x64xf32, #tpu.memory_space<vmem>>, vector<8x64xf32>,
    %c0_142 = arith.constant 0 : index
    %c0_143 = arith.constant 0 : index
    %c128_144 = arith.constant 128 : index
    %162 = vector.load %arg7[%c0_142, %c0_143, %c128_144] : memref<1x8x320xf32, #tpu.memory_space<vmem>>, vector<1x8x64xf32>
    %163 = vector.shape_cast %162 : vector<1x8x64xf32> to vector<8x64xf32>
    %c32_145 = arith.constant 32 : index
    %c0_146 = arith.constant 0 : index
    %164 = vector.load %arg8[%c32_145, %c0_146] : memref<72x64xf32, #tpu.memory_space<vmem>>, vector<8x64xf32>
    tpu.vector_store %arg8[%c32_145, %c0_146], %163 {strides = array<i32>} : memref<72x64xf32, #tpu.memory_space<vmem>>, vector<8x64xf32>,
    %c0_147 = arith.constant 0 : index
    %c0_148 = arith.constant 0 : index
    %c128_149 = arith.constant 128 : index
    %165 = vector.load %arg7[%c0_147, %c0_148, %c128_149] : memref<1x8x320xf32, #tpu.memory_space<vmem>>, vector<1x8x64xf32>
    %166 = vector.shape_cast %165 : vector<1x8x64xf32> to vector<8x64xf32>
    %c40_150 = arith.constant 40 : index
    %c0_151 = arith.constant 0 : index
    %167 = vector.load %arg8[%c40_150, %c0_151] : memref<72x64xf32, #tpu.memory_space<vmem>>, vector<8x64xf32>
    tpu.vector_store %arg8[%c40_150, %c0_151], %166 {strides = array<i32>} : memref<72x64xf32, #tpu.memory_space<vmem>>, vector<8x64xf32>,
    %c0_152 = arith.constant 0 : index
    %c0_153 = arith.constant 0 : index
    %c135 = arith.constant 135 : index
    %168 = vector.load %arg7[%c0_152, %c0_153, %c135] : memref<1x8x320xf32, #tpu.memory_space<vmem>>, vector<1x8x64xf32>
    %169 = vector.shape_cast %168 : vector<1x8x64xf32> to vector<8x64xf32>
    %c1_i32_154 = arith.constant 1 : i32
    %170 = vector.broadcast %c1_i32_154 : i32 to vector<1x64xi32>
    %171 = arith.cmpi sge, %17, %170 : vector<1x64xi32>
    %cst_155 = arith.constant 0.000000e+00 : f32
    %172 = vector.shape_cast %171 : vector<1x64xi1> to vector<1x64xi1>
    %173 = vector.broadcast %172 : vector<1x64xi1> to vector<8x64xi1>
    %174 = vector.broadcast %cst_155 : f32 to vector<8x64xf32>
    %175 = arith.select %173, %169, %174 : vector<8x64xi1>, vector<8x64xf32>
    %c48_156 = arith.constant 48 : index
    %c0_157 = arith.constant 0 : index
    %176 = vector.load %arg8[%c48_156, %c0_157] : memref<72x64xf32, #tpu.memory_space<vmem>>, vector<8x64xf32>
    tpu.vector_store %arg8[%c48_156, %c0_157], %175 {strides = array<i32>} : memref<72x64xf32, #tpu.memory_space<vmem>>, vector<8x64xf32>,
    %c0_158 = arith.constant 0 : index
    %c0_159 = arith.constant 0 : index
    %c136 = arith.constant 136 : index
    %177 = vector.load %arg7[%c0_158, %c0_159, %c136] : memref<1x8x320xf32, #tpu.memory_space<vmem>>, vector<1x8x64xf32>
    %178 = vector.shape_cast %177 : vector<1x8x64xf32> to vector<8x64xf32>
    %c56_160 = arith.constant 56 : index
    %c0_161 = arith.constant 0 : index
    %179 = vector.load %arg8[%c56_160, %c0_161] : memref<72x64xf32, #tpu.memory_space<vmem>>, vector<8x64xf32>
    tpu.vector_store %arg8[%c56_160, %c0_161], %178 {strides = array<i32>} : memref<72x64xf32, #tpu.memory_space<vmem>>, vector<8x64xf32>,
    %c0_162 = arith.constant 0 : index
    %c0_163 = arith.constant 0 : index
    %c136_164 = arith.constant 136 : index
    %180 = vector.load %arg7[%c0_162, %c0_163, %c136_164] : memref<1x8x320xf32, #tpu.memory_space<vmem>>, vector<1x8x64xf32>
    %181 = vector.shape_cast %180 : vector<1x8x64xf32> to vector<8x64xf32>
    %c64_165 = arith.constant 64 : index
    %c0_166 = arith.constant 0 : index
    %182 = vector.load %arg8[%c64_165, %c0_166] : memref<72x64xf32, #tpu.memory_space<vmem>>, vector<8x64xf32>
    tpu.vector_store %arg8[%c64_165, %c0_166], %181 {strides = array<i32>} : memref<72x64xf32, #tpu.memory_space<vmem>>, vector<8x64xf32>,
    %c0_167 = arith.constant 0 : index
    %c0_168 = arith.constant 0 : index
    %183 = vector.load %arg2[%c0_167, %c0_168] : memref<16x72xbf16, #tpu.memory_space<vmem>>, vector<16x72xbf16>
    %c0_169 = arith.constant 0 : index
    %c0_170 = arith.constant 0 : index
    %184 = vector.load %arg8[%c0_169, %c0_170] : memref<72x64xf32, #tpu.memory_space<vmem>>, vector<72x64xf32>
    %185 = arith.truncf %184 : vector<72x64xf32> to vector<72x64xbf16>
    %cst_171 = arith.constant dense<0.000000e+00> : vector<16x64xf32>
    %186 = tpu.matmul %183, %185, %cst_171 {dimension_numbers = #tpu.dot_dimension_numbers<[1], [0], [0], [1], [0, 0, 1, 1], [], []>} : vector<16x72xbf16>, vector<72x64xbf16>, vector<16x64xf32> -> vector<16x64xf32>
    %187 = vector.broadcast %0 : vector<16x1xf32> to vector<16x64xf32>
    %188 = arith.addf %186, %187 : vector<16x64xf32>
    %189 = arith.truncf %188 : vector<16x64xf32> to vector<16x64xbf16>
    %c0_172 = arith.constant 0 : index
    %c0_173 = arith.constant 0 : index
    %c2 = arith.constant 2 : index
    %c0_174 = arith.constant 0 : index
    %190 = vector.load %arg5[%c0_172, %c0_173, %c2, %c0_174] : memref<1x16x4x64xbf16, #tpu.memory_space<vmem>>, vector<1x16x1x64xbf16>
    %191 = vector.shape_cast %190 : vector<1x16x1x64xbf16> to vector<16x64xbf16>
    %192 = vector.shape_cast %189 : vector<16x64xbf16> to vector<1x16x1x64xbf16>
    tpu.vector_store %arg5[%c0_172, %c0_173, %c2, %c0_174], %192 {strides = array<i32>} : memref<1x16x4x64xbf16, #tpu.memory_space<vmem>>, vector<1x16x1x64xbf16>,
    %c0_175 = arith.constant 0 : index
    %c0_176 = arith.constant 0 : index
    %c128_177 = arith.constant 128 : index
    %193 = vector.load %arg7[%c0_175, %c0_176, %c128_177] : memref<1x8x320xf32, #tpu.memory_space<vmem>>, vector<1x8x64xf32>
    %194 = vector.shape_cast %193 : vector<1x8x64xf32> to vector<8x64xf32>
    %c0_178 = arith.constant 0 : index
    %c0_179 = arith.constant 0 : index
    %195 = vector.load %arg8[%c0_178, %c0_179] : memref<72x64xf32, #tpu.memory_space<vmem>>, vector<8x64xf32>
    tpu.vector_store %arg8[%c0_178, %c0_179], %194 {strides = array<i32>} : memref<72x64xf32, #tpu.memory_space<vmem>>, vector<8x64xf32>,
    %c0_180 = arith.constant 0 : index
    %c0_181 = arith.constant 0 : index
    %c128_182 = arith.constant 128 : index
    %196 = vector.load %arg7[%c0_180, %c0_181, %c128_182] : memref<1x8x320xf32, #tpu.memory_space<vmem>>, vector<1x8x64xf32>
    %197 = vector.shape_cast %196 : vector<1x8x64xf32> to vector<8x64xf32>
    %c8_183 = arith.constant 8 : index
    %c0_184 = arith.constant 0 : index
    %198 = vector.load %arg8[%c8_183, %c0_184] : memref<72x64xf32, #tpu.memory_space<vmem>>, vector<8x64xf32>
    tpu.vector_store %arg8[%c8_183, %c0_184], %197 {strides = array<i32>} : memref<72x64xf32, #tpu.memory_space<vmem>>, vector<8x64xf32>,
    %c0_185 = arith.constant 0 : index
    %c0_186 = arith.constant 0 : index
    %c129_187 = arith.constant 129 : index
    %199 = vector.load %arg7[%c0_185, %c0_186, %c129_187] : memref<1x8x320xf32, #tpu.memory_space<vmem>>, vector<1x8x64xf32>
    %200 = vector.shape_cast %199 : vector<1x8x64xf32> to vector<8x64xf32>
    %c7_i32_188 = arith.constant 7 : i32
    %201 = vector.broadcast %c7_i32_188 : i32 to vector<1x64xi32>
    %202 = arith.cmpi slt, %17, %201 : vector<1x64xi32>
    %cst_189 = arith.constant 0.000000e+00 : f32
    %203 = vector.shape_cast %202 : vector<1x64xi1> to vector<1x64xi1>
    %204 = vector.broadcast %203 : vector<1x64xi1> to vector<8x64xi1>
    %205 = vector.broadcast %cst_189 : f32 to vector<8x64xf32>
    %206 = arith.select %204, %200, %205 : vector<8x64xi1>, vector<8x64xf32>
    %c16_190 = arith.constant 16 : index
    %c0_191 = arith.constant 0 : index
    %207 = vector.load %arg8[%c16_190, %c0_191] : memref<72x64xf32, #tpu.memory_space<vmem>>, vector<8x64xf32>
    tpu.vector_store %arg8[%c16_190, %c0_191], %206 {strides = array<i32>} : memref<72x64xf32, #tpu.memory_space<vmem>>, vector<8x64xf32>,
    %c0_192 = arith.constant 0 : index
    %c0_193 = arith.constant 0 : index
    %c128_194 = arith.constant 128 : index
    %208 = vector.load %arg7[%c0_192, %c0_193, %c128_194] : memref<1x8x320xf32, #tpu.memory_space<vmem>>, vector<1x8x64xf32>
    %209 = vector.shape_cast %208 : vector<1x8x64xf32> to vector<8x64xf32>
    %c24_195 = arith.constant 24 : index
    %c0_196 = arith.constant 0 : index
    %210 = vector.load %arg8[%c24_195, %c0_196] : memref<72x64xf32, #tpu.memory_space<vmem>>, vector<8x64xf32>
    tpu.vector_store %arg8[%c24_195, %c0_196], %209 {strides = array<i32>} : memref<72x64xf32, #tpu.memory_space<vmem>>, vector<8x64xf32>,
    %c0_197 = arith.constant 0 : index
    %c0_198 = arith.constant 0 : index
    %c128_199 = arith.constant 128 : index
    %211 = vector.load %arg7[%c0_197, %c0_198, %c128_199] : memref<1x8x320xf32, #tpu.memory_space<vmem>>, vector<1x8x64xf32>
    %212 = vector.shape_cast %211 : vector<1x8x64xf32> to vector<8x64xf32>
    %c32_200 = arith.constant 32 : index
    %c0_201 = arith.constant 0 : index
    %213 = vector.load %arg8[%c32_200, %c0_201] : memref<72x64xf32, #tpu.memory_space<vmem>>, vector<8x64xf32>
    tpu.vector_store %arg8[%c32_200, %c0_201], %212 {strides = array<i32>} : memref<72x64xf32, #tpu.memory_space<vmem>>, vector<8x64xf32>,
    %c0_202 = arith.constant 0 : index
    %c0_203 = arith.constant 0 : index
    %c129_204 = arith.constant 129 : index
    %214 = vector.load %arg7[%c0_202, %c0_203, %c129_204] : memref<1x8x320xf32, #tpu.memory_space<vmem>>, vector<1x8x64xf32>
    %215 = vector.shape_cast %214 : vector<1x8x64xf32> to vector<8x64xf32>
    %c7_i32_205 = arith.constant 7 : i32
    %216 = vector.broadcast %c7_i32_205 : i32 to vector<1x64xi32>
    %217 = arith.cmpi slt, %17, %216 : vector<1x64xi32>
    %cst_206 = arith.constant 0.000000e+00 : f32
    %218 = vector.shape_cast %217 : vector<1x64xi1> to vector<1x64xi1>
    %219 = vector.broadcast %218 : vector<1x64xi1> to vector<8x64xi1>
    %220 = vector.broadcast %cst_206 : f32 to vector<8x64xf32>
    %221 = arith.select %219, %215, %220 : vector<8x64xi1>, vector<8x64xf32>
    %c40_207 = arith.constant 40 : index
    %c0_208 = arith.constant 0 : index
    %222 = vector.load %arg8[%c40_207, %c0_208] : memref<72x64xf32, #tpu.memory_space<vmem>>, vector<8x64xf32>
    tpu.vector_store %arg8[%c40_207, %c0_208], %221 {strides = array<i32>} : memref<72x64xf32, #tpu.memory_space<vmem>>, vector<8x64xf32>,
    %c0_209 = arith.constant 0 : index
    %c0_210 = arith.constant 0 : index
    %c136_211 = arith.constant 136 : index
    %223 = vector.load %arg7[%c0_209, %c0_210, %c136_211] : memref<1x8x320xf32, #tpu.memory_space<vmem>>, vector<1x8x64xf32>
    %224 = vector.shape_cast %223 : vector<1x8x64xf32> to vector<8x64xf32>
    %c48_212 = arith.constant 48 : index
    %c0_213 = arith.constant 0 : index
    %225 = vector.load %arg8[%c48_212, %c0_213] : memref<72x64xf32, #tpu.memory_space<vmem>>, vector<8x64xf32>
    tpu.vector_store %arg8[%c48_212, %c0_213], %224 {strides = array<i32>} : memref<72x64xf32, #tpu.memory_space<vmem>>, vector<8x64xf32>,
    %c0_214 = arith.constant 0 : index
    %c0_215 = arith.constant 0 : index
    %c136_216 = arith.constant 136 : index
    %226 = vector.load %arg7[%c0_214, %c0_215, %c136_216] : memref<1x8x320xf32, #tpu.memory_space<vmem>>, vector<1x8x64xf32>
    %227 = vector.shape_cast %226 : vector<1x8x64xf32> to vector<8x64xf32>
    %c56_217 = arith.constant 56 : index
    %c0_218 = arith.constant 0 : index
    %228 = vector.load %arg8[%c56_217, %c0_218] : memref<72x64xf32, #tpu.memory_space<vmem>>, vector<8x64xf32>
    tpu.vector_store %arg8[%c56_217, %c0_218], %227 {strides = array<i32>} : memref<72x64xf32, #tpu.memory_space<vmem>>, vector<8x64xf32>,
    %c0_219 = arith.constant 0 : index
    %c0_220 = arith.constant 0 : index
    %c137 = arith.constant 137 : index
    %229 = vector.load %arg7[%c0_219, %c0_220, %c137] : memref<1x8x320xf32, #tpu.memory_space<vmem>>, vector<1x8x64xf32>
    %230 = vector.shape_cast %229 : vector<1x8x64xf32> to vector<8x64xf32>
    %c7_i32_221 = arith.constant 7 : i32
    %231 = vector.broadcast %c7_i32_221 : i32 to vector<1x64xi32>
    %232 = arith.cmpi slt, %17, %231 : vector<1x64xi32>
    %cst_222 = arith.constant 0.000000e+00 : f32
    %233 = vector.shape_cast %232 : vector<1x64xi1> to vector<1x64xi1>
    %234 = vector.broadcast %233 : vector<1x64xi1> to vector<8x64xi1>
    %235 = vector.broadcast %cst_222 : f32 to vector<8x64xf32>
    %236 = arith.select %234, %230, %235 : vector<8x64xi1>, vector<8x64xf32>
    %c64_223 = arith.constant 64 : index
    %c0_224 = arith.constant 0 : index
    %237 = vector.load %arg8[%c64_223, %c0_224] : memref<72x64xf32, #tpu.memory_space<vmem>>, vector<8x64xf32>
    tpu.vector_store %arg8[%c64_223, %c0_224], %236 {strides = array<i32>} : memref<72x64xf32, #tpu.memory_space<vmem>>, vector<8x64xf32>,
    %c0_225 = arith.constant 0 : index
    %c0_226 = arith.constant 0 : index
    %238 = vector.load %arg2[%c0_225, %c0_226] : memref<16x72xbf16, #tpu.memory_space<vmem>>, vector<16x72xbf16>
    %c0_227 = arith.constant 0 : index
    %c0_228 = arith.constant 0 : index
    %239 = vector.load %arg8[%c0_227, %c0_228] : memref<72x64xf32, #tpu.memory_space<vmem>>, vector<72x64xf32>
    %240 = arith.truncf %239 : vector<72x64xf32> to vector<72x64xbf16>
    %cst_229 = arith.constant dense<0.000000e+00> : vector<16x64xf32>
    %241 = tpu.matmul %238, %240, %cst_229 {dimension_numbers = #tpu.dot_dimension_numbers<[1], [0], [0], [1], [0, 0, 1, 1], [], []>} : vector<16x72xbf16>, vector<72x64xbf16>, vector<16x64xf32> -> vector<16x64xf32>
    %242 = vector.broadcast %0 : vector<16x1xf32> to vector<16x64xf32>
    %243 = arith.addf %241, %242 : vector<16x64xf32>
    %244 = arith.truncf %243 : vector<16x64xf32> to vector<16x64xbf16>
    %c0_230 = arith.constant 0 : index
    %c0_231 = arith.constant 0 : index
    %c3 = arith.constant 3 : index
    %c0_232 = arith.constant 0 : index
    %245 = vector.load %arg5[%c0_230, %c0_231, %c3, %c0_232] : memref<1x16x4x64xbf16, #tpu.memory_space<vmem>>, vector<1x16x1x64xbf16>
    %246 = vector.shape_cast %245 : vector<1x16x1x64xbf16> to vector<16x64xbf16>
    %247 = vector.shape_cast %244 : vector<16x64xbf16> to vector<1x16x1x64xbf16>
    tpu.vector_store %arg5[%c0_230, %c0_231, %c3, %c0_232], %247 {strides = array<i32>} : memref<1x16x4x64xbf16, #tpu.memory_space<vmem>>, vector<1x16x1x64xbf16>,
    %cst_233 = arith.constant dense<0.000000e+00> : vector<16xf32>
    %248 = vector.multi_reduction <add>, %78, %cst_233 [1] : vector<16x64xf32> to vector<16xf32>
    %249 = vector.shape_cast %248 : vector<16xf32> to vector<16x1xf32>
    %cst_234 = arith.constant 0.000000e+00 : f32
    %250 = vector.broadcast %cst_234 : f32 to vector<16x1xf32>
    %251 = arith.addf %250, %249 : vector<16x1xf32>
    %cst_235 = arith.constant dense<0.000000e+00> : vector<16xf32>
    %252 = vector.multi_reduction <add>, %133, %cst_235 [1] : vector<16x64xf32> to vector<16xf32>
    %253 = vector.shape_cast %252 : vector<16xf32> to vector<16x1xf32>
    %254 = arith.addf %251, %253 : vector<16x1xf32>
    %cst_236 = arith.constant dense<0.000000e+00> : vector<16xf32>
    %255 = vector.multi_reduction <add>, %188, %cst_236 [1] : vector<16x64xf32> to vector<16xf32>
    %256 = vector.shape_cast %255 : vector<16xf32> to vector<16x1xf32>
    %257 = arith.addf %254, %256 : vector<16x1xf32>
    %cst_237 = arith.constant dense<0.000000e+00> : vector<16xf32>
    %258 = vector.multi_reduction <add>, %243, %cst_237 [1] : vector<16x64xf32> to vector<16xf32>
    %259 = vector.shape_cast %258 : vector<16xf32> to vector<16x1xf32>
    %260 = arith.addf %257, %259 : vector<16x1xf32>
    %261 = arith.mulf %78, %78 : vector<16x64xf32>
    %cst_238 = arith.constant dense<0.000000e+00> : vector<16xf32>
    %262 = vector.multi_reduction <add>, %261, %cst_238 [1] : vector<16x64xf32> to vector<16xf32>
    %263 = vector.shape_cast %262 : vector<16xf32> to vector<16x1xf32>
    %cst_239 = arith.constant 0.000000e+00 : f32
    %264 = vector.broadcast %cst_239 : f32 to vector<16x1xf32>
    %265 = arith.addf %264, %263 : vector<16x1xf32>
    %266 = arith.mulf %133, %133 : vector<16x64xf32>
    %cst_240 = arith.constant dense<0.000000e+00> : vector<16xf32>
    %267 = vector.multi_reduction <add>, %266, %cst_240 [1] : vector<16x64xf32> to vector<16xf32>
    %268 = vector.shape_cast %267 : vector<16xf32> to vector<16x1xf32>
    %269 = arith.addf %265, %268 : vector<16x1xf32>
    %270 = arith.mulf %188, %188 : vector<16x64xf32>
    %cst_241 = arith.constant dense<0.000000e+00> : vector<16xf32>
    %271 = vector.multi_reduction <add>, %270, %cst_241 [1] : vector<16x64xf32> to vector<16xf32>
    %272 = vector.shape_cast %271 : vector<16xf32> to vector<16x1xf32>
    %273 = arith.addf %269, %272 : vector<16x1xf32>
    %274 = arith.mulf %243, %243 : vector<16x64xf32>
    %cst_242 = arith.constant dense<0.000000e+00> : vector<16xf32>
    %275 = vector.multi_reduction <add>, %274, %cst_242 [1] : vector<16x64xf32> to vector<16xf32>
    %276 = vector.shape_cast %275 : vector<16xf32> to vector<16x1xf32>
    %277 = arith.addf %273, %276 : vector<16x1xf32>
    %c0_243 = arith.constant 0 : index
    %c0_244 = arith.constant 0 : index
    %c0_245 = arith.constant 0 : index
    %278 = vector.load %arg6[%c0_243, %c0_244, %c0_245] : memref<1x16x2xf32, #tpu.memory_space<vmem>>, vector<1x16x1xf32>
    %279 = vector.shape_cast %278 : vector<1x16x1xf32> to vector<16x1xf32>
    %280 = vector.shape_cast %260 : vector<16x1xf32> to vector<1x16x1xf32>
    tpu.vector_store %arg6[%c0_243, %c0_244, %c0_245], %280 {strides = array<i32>} : memref<1x16x2xf32, #tpu.memory_space<vmem>>, vector<1x16x1xf32>,
    %c0_246 = arith.constant 0 : index
    %c0_247 = arith.constant 0 : index
    %c1_248 = arith.constant 1 : index
    %281 = vector.load %arg6[%c0_246, %c0_247, %c1_248] : memref<1x16x2xf32, #tpu.memory_space<vmem>>, vector<1x16x1xf32>
    %282 = vector.shape_cast %281 : vector<1x16x1xf32> to vector<16x1xf32>
    %283 = vector.shape_cast %277 : vector<16x1xf32> to vector<1x16x1xf32>
    tpu.vector_store %arg6[%c0_246, %c0_247, %c1_248], %283 {strides = array<i32>} : memref<1x16x2xf32, #tpu.memory_space<vmem>>, vector<1x16x1xf32>,
    return
  }
  func.func @transform_0(%arg0: i32, %arg1: i32) -> (i32, i32) {
    %c0_i32 = arith.constant 0 : i32
    %c0_i32_0 = arith.constant 0 : i32
    return %arg1, %c0_i32 : i32, i32
  }
  func.func @transform_1(%arg0: i32, %arg1: i32) -> (i32, i32) {
    %c0_i32 = arith.constant 0 : i32
    %c0_i32_0 = arith.constant 0 : i32
    return %arg1, %c0_i32 : i32, i32
  }
  func.func @transform_2(%arg0: i32, %arg1: i32) -> (i32, i32, i32, i32) {
    %c0_i32 = arith.constant 0 : i32
    %c0_i32_0 = arith.constant 0 : i32
    %c0_i32_1 = arith.constant 0 : i32
    %c0_i32_2 = arith.constant 0 : i32
    return %arg0, %c0_i32, %c0_i32_0, %c0_i32_1 : i32, i32, i32, i32
  }
  func.func @transform_3(%arg0: i32, %arg1: i32) -> (i32, i32, i32, i32) {
    %c0_i32 = arith.constant 0 : i32
    %c0_i32_0 = arith.constant 0 : i32
    %c0_i32_1 = arith.constant 0 : i32
    return %arg0, %arg1, %c0_i32, %c0_i32_0 : i32, i32, i32, i32
  }
  func.func @transform_4(%arg0: i32, %arg1: i32) -> (i32, i32, i32) {
    %c0_i32 = arith.constant 0 : i32
    %c0_i32_0 = arith.constant 0 : i32
    return %arg0, %arg1, %c0_i32 : i32, i32, i32
  }
}

module attributes {stable_mosaic.version = 11 : i64} {
  func.func @_stage_kernel(%arg0: i32, %arg1: i32, %arg2: memref<32x16xbf16, #tpu.memory_space<vmem>>, %arg3: memref<32x32xbf16, #tpu.memory_space<vmem>>, %arg4: memref<1x32x16xbf16, #tpu.memory_space<vmem>>, %arg5: memref<1x32x16xbf16, #tpu.memory_space<vmem>>, %arg6: memref<1x16x1xf32, #tpu.memory_space<vmem>>, %arg7: memref<1x16x4xf32, #tpu.memory_space<vmem>>, %arg8: memref<1x16x256xbf16, #tpu.memory_space<vmem>>, %arg9: memref<1x16x256xbf16, #tpu.memory_space<vmem>>) attributes {dimension_semantics = [#tpu.dimension_semantics<parallel>, #tpu.dimension_semantics<parallel>], iteration_bounds = array<i64: 2, 1>, scalar_prefetch = 0 : i64, scratch_operands = 0 : i64, tpu.core_type = #tpu.core_type<tc>, window_params = [{pipeline_mode = #tpu.pipeline_mode<synchronous>, transform_indices = @transform_0, window_bounds = array<i64: 32, 16>}, {pipeline_mode = #tpu.pipeline_mode<synchronous>, transform_indices = @transform_1, window_bounds = array<i64: 32, 32>}, {transform_indices = @transform_2, window_bounds = array<i64: 1, 32, 16>}, {transform_indices = @transform_3, window_bounds = array<i64: 1, 32, 16>}, {transform_indices = @transform_4, window_bounds = array<i64: 1, 16, 1>}, {transform_indices = @transform_5, window_bounds = array<i64: 1, 16, 4>}, {transform_indices = @transform_6, window_bounds = array<i64: 1, 16, 256>}, {transform_indices = @transform_7, window_bounds = array<i64: 1, 16, 256>}]} {
    %c0 = arith.constant 0 : index
    %c0_0 = arith.constant 0 : index
    %c0_1 = arith.constant 0 : index
    %0 = vector.load %arg8[%c0, %c0_0, %c0_1] : memref<1x16x256xbf16, #tpu.memory_space<vmem>>, vector<1x16x256xbf16>
    %1 = vector.shape_cast %0 : vector<1x16x256xbf16> to vector<16x256xbf16>
    %2 = arith.extf %1 : vector<16x256xbf16> to vector<16x256xf32>
    %c0_2 = arith.constant 0 : index
    %c0_3 = arith.constant 0 : index
    %c0_4 = arith.constant 0 : index
    %3 = vector.load %arg7[%c0_2, %c0_3, %c0_4] : memref<1x16x4xf32, #tpu.memory_space<vmem>>, vector<1x16x4xf32>
    %4 = vector.shape_cast %3 : vector<1x16x4xf32> to vector<16x4xf32>
    %c0_5 = arith.constant 0 : index
    %c0_6 = arith.constant 0 : index
    %5 = vector.load %arg2[%c0_5, %c0_6] : memref<32x16xbf16, #tpu.memory_space<vmem>>, vector<32x16xbf16>
    %cst = arith.constant dense<0.000000e+00> : vector<32x256xf32>
    %6 = tpu.matmul %5, %1, %cst {dimension_numbers = #tpu.dot_dimension_numbers<[1], [0], [0], [1], [0, 0, 1, 1], [], []>} : vector<32x16xbf16>, vector<16x256xbf16>, vector<32x256xf32> -> vector<32x256xf32>
    %7 = arith.mulf %6, %6 : vector<32x256xf32>
    %cst_7 = arith.constant dense<0.000000e+00> : vector<256xf32>
    %8 = vector.multi_reduction <add>, %7, %cst_7 [0] : vector<32x256xf32> to vector<256xf32>
    %9 = vector.shape_cast %8 : vector<256xf32> to vector<1x256xf32>
    %cst_8 = arith.constant 1.000000e-24 : f32
    %10 = vector.broadcast %cst_8 : f32 to vector<1x256xf32>
    %11 = arith.maximumf %9, %10 : vector<1x256xf32>
    %12 = math.rsqrt %11 : vector<1x256xf32>
    %13 = vector.broadcast %12 : vector<1x256xf32> to vector<32x256xf32>
    %14 = arith.mulf %6, %13 : vector<32x256xf32>
    %c0_9 = arith.constant 0 : index
    %c0_10 = arith.constant 0 : index
    %c0_11 = arith.constant 0 : index
    %15 = vector.load %arg5[%c0_9, %c0_10, %c0_11] : memref<1x32x16xbf16, #tpu.memory_space<vmem>>, vector<1x32x16xbf16>
    %16 = vector.shape_cast %15 : vector<1x32x16xbf16> to vector<32x16xbf16>
    %17 = arith.truncf %14 : vector<32x256xf32> to vector<32x256xbf16>
    %cst_12 = arith.constant dense<0.000000e+00> : vector<16x256xf32>
    %18 = tpu.matmul %16, %17, %cst_12 {dimension_numbers = #tpu.dot_dimension_numbers<[0], [0], [1], [1], [0, 1, 1, 1], [], []>} : vector<32x16xbf16>, vector<32x256xbf16>, vector<16x256xf32> -> vector<16x256xf32>
    %c0_13 = arith.constant 0 : index
    %c0_14 = arith.constant 0 : index
    %c0_15 = arith.constant 0 : index
    %19 = vector.load %arg6[%c0_13, %c0_14, %c0_15] : memref<1x16x1xf32, #tpu.memory_space<vmem>>, vector<1x16x1xf32>
    %20 = vector.shape_cast %19 : vector<1x16x1xf32> to vector<16x1xf32>
    %21 = vector.broadcast %20 : vector<16x1xf32> to vector<16x256xf32>
    %22 = arith.addf %18, %21 : vector<16x256xf32>
    %cst_16 = arith.constant dense<0xFF800000> : vector<256xf32>
    %23 = vector.multi_reduction <maximumf>, %22, %cst_16 [0] : vector<16x256xf32> to vector<256xf32>
    %24 = vector.shape_cast %23 : vector<256xf32> to vector<1x256xf32>
    %25 = vector.broadcast %24 : vector<1x256xf32> to vector<16x256xf32>
    %26 = arith.subf %22, %25 : vector<16x256xf32>
    %27 = math.exp %26 : vector<16x256xf32>
    %cst_17 = arith.constant dense<0.000000e+00> : vector<256xf32>
    %28 = vector.multi_reduction <add>, %27, %cst_17 [0] : vector<16x256xf32> to vector<256xf32>
    %29 = vector.shape_cast %28 : vector<256xf32> to vector<1x256xf32>
    %30 = tpu.reciprocal %29 {approx = true} : vector<1x256xf32> -> vector<1x256xf32>
    %31 = vector.broadcast %30 : vector<1x256xf32> to vector<16x256xf32>
    %32 = arith.mulf %27, %31 : vector<16x256xf32>
    %33 = arith.truncf %32 : vector<16x256xf32> to vector<16x256xbf16>
    %c0_18 = arith.constant 0 : index
    %c0_19 = arith.constant 0 : index
    %c0_20 = arith.constant 0 : index
    %34 = vector.load %arg4[%c0_18, %c0_19, %c0_20] : memref<1x32x16xbf16, #tpu.memory_space<vmem>>, vector<1x32x16xbf16>
    %35 = vector.shape_cast %34 : vector<1x32x16xbf16> to vector<32x16xbf16>
    %cst_21 = arith.constant dense<0.000000e+00> : vector<32x256xf32>
    %36 = tpu.matmul %35, %33, %cst_21 {dimension_numbers = #tpu.dot_dimension_numbers<[1], [0], [0], [1], [0, 0, 1, 1], [], []>} : vector<32x16xbf16>, vector<16x256xbf16>, vector<32x256xf32> -> vector<32x256xf32>
    %c0_22 = arith.constant 0 : index
    %c0_23 = arith.constant 0 : index
    %37 = vector.load %arg3[%c0_22, %c0_23] : memref<32x32xbf16, #tpu.memory_space<vmem>>, vector<32x32xbf16>
    %38 = arith.truncf %36 : vector<32x256xf32> to vector<32x256xbf16>
    %cst_24 = arith.constant dense<0.000000e+00> : vector<32x256xf32>
    %39 = tpu.matmul %37, %38, %cst_24 {dimension_numbers = #tpu.dot_dimension_numbers<[1], [0], [0], [1], [0, 0, 1, 1], [], []>} : vector<32x32xbf16>, vector<32x256xbf16>, vector<32x256xf32> -> vector<32x256xf32>
    %40 = vector.extract_strided_slice %39 {offsets = [0, 0], sizes = [16, 256], strides = [1, 1]} : vector<32x256xf32> to vector<16x256xf32>
    %41 = vector.extract_strided_slice %4 {offsets = [0, 2], sizes = [16, 1], strides = [1, 1]} : vector<16x4xf32> to vector<16x1xf32>
    %42 = vector.broadcast %41 : vector<16x1xf32> to vector<16x256xf32>
    %43 = arith.addf %40, %42 : vector<16x256xf32>
    %44 = vector.extract_strided_slice %39 {offsets = [16, 0], sizes = [16, 256], strides = [1, 1]} : vector<32x256xf32> to vector<16x256xf32>
    %45 = vector.extract_strided_slice %4 {offsets = [0, 3], sizes = [16, 1], strides = [1, 1]} : vector<16x4xf32> to vector<16x1xf32>
    %46 = vector.broadcast %45 : vector<16x1xf32> to vector<16x256xf32>
    %47 = arith.addf %44, %46 : vector<16x256xf32>
    %48 = vector.extract_strided_slice %4 {offsets = [0, 0], sizes = [16, 1], strides = [1, 1]} : vector<16x4xf32> to vector<16x1xf32>
    %49 = vector.broadcast %48 : vector<16x1xf32> to vector<16x256xf32>
    %50 = arith.mulf %2, %49 : vector<16x256xf32>
    %51 = vector.extract_strided_slice %4 {offsets = [0, 1], sizes = [16, 1], strides = [1, 1]} : vector<16x4xf32> to vector<16x1xf32>
    %52 = vector.broadcast %51 : vector<16x1xf32> to vector<16x256xf32>
    %53 = arith.addf %50, %52 : vector<16x256xf32>
    %54 = arith.mulf %43, %53 : vector<16x256xf32>
    %55 = arith.addf %54, %47 : vector<16x256xf32>
    %cst_25 = arith.constant 0.000000e+00 : f32
    %56 = vector.broadcast %cst_25 : f32 to vector<16x256xf32>
    %57 = arith.maximumf %55, %56 : vector<16x256xf32>
    %58 = arith.truncf %57 : vector<16x256xf32> to vector<16x256xbf16>
    %c0_26 = arith.constant 0 : index
    %c0_27 = arith.constant 0 : index
    %c0_28 = arith.constant 0 : index
    %59 = vector.load %arg9[%c0_26, %c0_27, %c0_28] : memref<1x16x256xbf16, #tpu.memory_space<vmem>>, vector<1x16x256xbf16>
    %60 = vector.shape_cast %59 : vector<1x16x256xbf16> to vector<16x256xbf16>
    %61 = vector.shape_cast %58 : vector<16x256xbf16> to vector<1x16x256xbf16>
    tpu.vector_store %arg9[%c0_26, %c0_27, %c0_28], %61 {strides = array<i32>} : memref<1x16x256xbf16, #tpu.memory_space<vmem>>, vector<1x16x256xbf16>,
    return
  }
  func.func @transform_0(%arg0: i32, %arg1: i32) -> (i32, i32) {
    %c0_i32 = arith.constant 0 : i32
    %c0_i32_0 = arith.constant 0 : i32
    %c0_i32_1 = arith.constant 0 : i32
    return %c0_i32, %c0_i32_0 : i32, i32
  }
  func.func @transform_1(%arg0: i32, %arg1: i32) -> (i32, i32) {
    %c0_i32 = arith.constant 0 : i32
    %c0_i32_0 = arith.constant 0 : i32
    %c0_i32_1 = arith.constant 0 : i32
    return %c0_i32, %c0_i32_0 : i32, i32
  }
  func.func @transform_2(%arg0: i32, %arg1: i32) -> (i32, i32, i32) {
    %c0_i32 = arith.constant 0 : i32
    %c0_i32_0 = arith.constant 0 : i32
    %c0_i32_1 = arith.constant 0 : i32
    return %arg0, %c0_i32, %c0_i32_0 : i32, i32, i32
  }
  func.func @transform_3(%arg0: i32, %arg1: i32) -> (i32, i32, i32) {
    %c0_i32 = arith.constant 0 : i32
    %c0_i32_0 = arith.constant 0 : i32
    %c0_i32_1 = arith.constant 0 : i32
    return %arg0, %c0_i32, %c0_i32_0 : i32, i32, i32
  }
  func.func @transform_4(%arg0: i32, %arg1: i32) -> (i32, i32, i32) {
    %c0_i32 = arith.constant 0 : i32
    %c0_i32_0 = arith.constant 0 : i32
    %c0_i32_1 = arith.constant 0 : i32
    return %arg0, %c0_i32, %c0_i32_0 : i32, i32, i32
  }
  func.func @transform_5(%arg0: i32, %arg1: i32) -> (i32, i32, i32) {
    %c0_i32 = arith.constant 0 : i32
    %c0_i32_0 = arith.constant 0 : i32
    %c0_i32_1 = arith.constant 0 : i32
    return %arg0, %c0_i32, %c0_i32_0 : i32, i32, i32
  }
  func.func @transform_6(%arg0: i32, %arg1: i32) -> (i32, i32, i32) {
    %c0_i32 = arith.constant 0 : i32
    %c0_i32_0 = arith.constant 0 : i32
    return %arg0, %c0_i32, %arg1 : i32, i32, i32
  }
  func.func @transform_7(%arg0: i32, %arg1: i32) -> (i32, i32, i32) {
    %c0_i32 = arith.constant 0 : i32
    %c0_i32_0 = arith.constant 0 : i32
    return %arg0, %c0_i32, %arg1 : i32, i32, i32
  }
}

module attributes {stable_mosaic.version = 11 : i64} {
  func.func @_conv_out_sc_kernel(%arg0: i32, %arg1: i32, %arg2: memref<16x144xbf16, #tpu.memory_space<vmem>>, %arg3: memref<16x1xf32, #tpu.memory_space<vmem>>, %arg4: memref<16x8xbf16, #tpu.memory_space<vmem>>, %arg5: memref<1x16x4x64xbf16, #tpu.memory_space<vmem>>, %arg6: memref<1x8x64xf32, #tpu.memory_space<vmem>>, %arg7: memref<1x16x4x64xf32, #tpu.memory_space<vmem>>, %arg8: memref<4x16x320xf32, #tpu.memory_space<vmem>>, %arg9: memref<144x64xf32, #tpu.memory_space<vmem>>) attributes {dimension_semantics = [#tpu.dimension_semantics<parallel>, #tpu.dimension_semantics<parallel>], iteration_bounds = array<i64: 2, 1>, scalar_prefetch = 0 : i64, scratch_operands = 2 : i64, tpu.core_type = #tpu.core_type<tc>, window_params = [{transform_indices = @transform_0, window_bounds = array<i64: 16, 144>}, {transform_indices = @transform_1, window_bounds = array<i64: 16, 1>}, {transform_indices = @transform_2, window_bounds = array<i64: 16, 8>}, {transform_indices = @transform_3, window_bounds = array<i64: 1, 16, 4, 64>}, {transform_indices = @transform_4, window_bounds = array<i64: 1, 8, 64>}, {transform_indices = @transform_5, window_bounds = array<i64: 1, 16, 4, 64>}]} {
    %c0 = arith.constant 0 : index
    %c0_0 = arith.constant 0 : index
    %0 = vector.load %arg3[%c0, %c0_0] : memref<16x1xf32, #tpu.memory_space<vmem>>, vector<16x1xf32>
    %c0_1 = arith.constant 0 : index
    %c0_2 = arith.constant 0 : index
    %1 = vector.load %arg4[%c0_1, %c0_2] : memref<16x8xbf16, #tpu.memory_space<vmem>>, vector<16x8xbf16>
    %c0_3 = arith.constant 0 : index
    %c0_4 = arith.constant 0 : index
    %c0_5 = arith.constant 0 : index
    %2 = vector.load %arg6[%c0_3, %c0_4, %c0_5] : memref<1x8x64xf32, #tpu.memory_space<vmem>>, vector<1x8x64xf32>
    %3 = vector.shape_cast %2 : vector<1x8x64xf32> to vector<8x64xf32>
    %4 = arith.truncf %3 : vector<8x64xf32> to vector<8x64xbf16>
    %cst = arith.constant dense<0.000000e+00> : vector<16x64xf32>
    %5 = tpu.matmul %1, %4, %cst {dimension_numbers = #tpu.dot_dimension_numbers<[1], [0], [0], [1], [0, 0, 1, 1], [], []>} : vector<16x8xbf16>, vector<8x64xbf16>, vector<16x64xf32> -> vector<16x64xf32>
    %6 = vector.broadcast %0 : vector<16x1xf32> to vector<16x64xf32>
    %7 = arith.addf %6, %5 : vector<16x64xf32>
    %8 = tpu.iota {dimensions = array<i32: 1>} : vector<1x64xi32>
    %c8_i32 = arith.constant 8 : i32
    %c0_i32 = arith.constant 0 : i32
    %9 = arith.cmpi eq, %c8_i32, %c0_i32 : i32
    %c1_i32 = arith.constant 1 : i32
    %10 = arith.select %9, %c1_i32, %c8_i32 : i32
    %11 = vector.broadcast %10 : i32 to vector<1x64xi32>
    %12 = arith.remsi %8, %11 : vector<1x64xi32>
    %c0_i32_6 = arith.constant 0 : i32
    %13 = vector.broadcast %c0_i32_6 : i32 to vector<1x64xi32>
    %14 = arith.cmpi ne, %12, %13 : vector<1x64xi32>
    %c0_i32_7 = arith.constant 0 : i32
    %15 = vector.broadcast %c0_i32_7 : i32 to vector<1x64xi32>
    %16 = arith.cmpi slt, %12, %15 : vector<1x64xi32>
    %c0_i32_8 = arith.constant 0 : i32
    %17 = arith.cmpi slt, %10, %c0_i32_8 : i32
    %18 = vector.broadcast %17 : i1 to vector<1x64xi1>
    %19 = vector.broadcast %18 : vector<1x64xi1> to vector<1x64xi1>
    %20 = arith.xori %16, %19 : vector<1x64xi1>
    %21 = arith.andi %20, %14 : vector<1x64xi1>
    %22 = vector.broadcast %10 : i32 to vector<1x64xi32>
    %23 = arith.addi %12, %22 : vector<1x64xi32>
    %24 = arith.select %21, %23, %12 : vector<1x64xi1>, vector<1x64xi32>
    %cst_9 = arith.constant 0.000000e+00 : f32
    %25 = vector.broadcast %cst_9 : f32 to vector<16x320xf32>
    %c0_10 = arith.constant 0 : index
    %c0_11 = arith.constant 0 : index
    %c0_12 = arith.constant 0 : index
    %26 = vector.load %arg8[%c0_10, %c0_11, %c0_12] : memref<4x16x320xf32, #tpu.memory_space<vmem>>, vector<1x16x320xf32>
    %27 = vector.shape_cast %26 : vector<1x16x320xf32> to vector<16x320xf32>
    %28 = vector.shape_cast %25 : vector<16x320xf32> to vector<1x16x320xf32>
    tpu.vector_store %arg8[%c0_10, %c0_11, %c0_12], %28 {strides = array<i32>} : memref<4x16x320xf32, #tpu.memory_space<vmem>>, vector<1x16x320xf32>,
    %c0_13 = arith.constant 0 : index
    %c0_14 = arith.constant 0 : index
    %c0_15 = arith.constant 0 : index
    %c0_16 = arith.constant 0 : index
    %29 = vector.load %arg5[%c0_13, %c0_14, %c0_15, %c0_16] : memref<1x16x4x64xbf16, #tpu.memory_space<vmem>>, vector<1x16x1x64xbf16>
    %30 = vector.shape_cast %29 : vector<1x16x1x64xbf16> to vector<16x64xbf16>
    %31 = arith.extf %30 : vector<16x64xbf16> to vector<16x64xf32>
    %c0_17 = arith.constant 0 : index
    %c0_18 = arith.constant 0 : index
    %c128 = arith.constant 128 : index
    %32 = vector.load %arg8[%c0_17, %c0_18, %c128] : memref<4x16x320xf32, #tpu.memory_space<vmem>>, vector<1x16x64xf32>
    %33 = vector.shape_cast %32 : vector<1x16x64xf32> to vector<16x64xf32>
    %34 = vector.shape_cast %31 : vector<16x64xf32> to vector<1x16x64xf32>
    tpu.vector_store %arg8[%c0_17, %c0_18, %c128], %34 {strides = array<i32>} : memref<4x16x320xf32, #tpu.memory_space<vmem>>, vector<1x16x64xf32>,
    %cst_19 = arith.constant 0.000000e+00 : f32
    %35 = vector.broadcast %cst_19 : f32 to vector<16x320xf32>
    %c1 = arith.constant 1 : index
    %c0_20 = arith.constant 0 : index
    %c0_21 = arith.constant 0 : index
    %36 = vector.load %arg8[%c1, %c0_20, %c0_21] : memref<4x16x320xf32, #tpu.memory_space<vmem>>, vector<1x16x320xf32>
    %37 = vector.shape_cast %36 : vector<1x16x320xf32> to vector<16x320xf32>
    %38 = vector.shape_cast %35 : vector<16x320xf32> to vector<1x16x320xf32>
    tpu.vector_store %arg8[%c1, %c0_20, %c0_21], %38 {strides = array<i32>} : memref<4x16x320xf32, #tpu.memory_space<vmem>>, vector<1x16x320xf32>,
    %c0_22 = arith.constant 0 : index
    %c0_23 = arith.constant 0 : index
    %c1_24 = arith.constant 1 : index
    %c0_25 = arith.constant 0 : index
    %39 = vector.load %arg5[%c0_22, %c0_23, %c1_24, %c0_25] : memref<1x16x4x64xbf16, #tpu.memory_space<vmem>>, vector<1x16x1x64xbf16>
    %40 = vector.shape_cast %39 : vector<1x16x1x64xbf16> to vector<16x64xbf16>
    %41 = arith.extf %40 : vector<16x64xbf16> to vector<16x64xf32>
    %c1_26 = arith.constant 1 : index
    %c0_27 = arith.constant 0 : index
    %c128_28 = arith.constant 128 : index
    %42 = vector.load %arg8[%c1_26, %c0_27, %c128_28] : memref<4x16x320xf32, #tpu.memory_space<vmem>>, vector<1x16x64xf32>
    %43 = vector.shape_cast %42 : vector<1x16x64xf32> to vector<16x64xf32>
    %44 = vector.shape_cast %41 : vector<16x64xf32> to vector<1x16x64xf32>
    tpu.vector_store %arg8[%c1_26, %c0_27, %c128_28], %44 {strides = array<i32>} : memref<4x16x320xf32, #tpu.memory_space<vmem>>, vector<1x16x64xf32>,
    %cst_29 = arith.constant 0.000000e+00 : f32
    %45 = vector.broadcast %cst_29 : f32 to vector<16x320xf32>
    %c2 = arith.constant 2 : index
    %c0_30 = arith.constant 0 : index
    %c0_31 = arith.constant 0 : index
    %46 = vector.load %arg8[%c2, %c0_30, %c0_31] : memref<4x16x320xf32, #tpu.memory_space<vmem>>, vector<1x16x320xf32>
    %47 = vector.shape_cast %46 : vector<1x16x320xf32> to vector<16x320xf32>
    %48 = vector.shape_cast %45 : vector<16x320xf32> to vector<1x16x320xf32>
    tpu.vector_store %arg8[%c2, %c0_30, %c0_31], %48 {strides = array<i32>} : memref<4x16x320xf32, #tpu.memory_space<vmem>>, vector<1x16x320xf32>,
    %c0_32 = arith.constant 0 : index
    %c0_33 = arith.constant 0 : index
    %c2_34 = arith.constant 2 : index
    %c0_35 = arith.constant 0 : index
    %49 = vector.load %arg5[%c0_32, %c0_33, %c2_34, %c0_35] : memref<1x16x4x64xbf16, #tpu.memory_space<vmem>>, vector<1x16x1x64xbf16>
    %50 = vector.shape_cast %49 : vector<1x16x1x64xbf16> to vector<16x64xbf16>
    %51 = arith.extf %50 : vector<16x64xbf16> to vector<16x64xf32>
    %c2_36 = arith.constant 2 : index
    %c0_37 = arith.constant 0 : index
    %c128_38 = arith.constant 128 : index
    %52 = vector.load %arg8[%c2_36, %c0_37, %c128_38] : memref<4x16x320xf32, #tpu.memory_space<vmem>>, vector<1x16x64xf32>
    %53 = vector.shape_cast %52 : vector<1x16x64xf32> to vector<16x64xf32>
    %54 = vector.shape_cast %51 : vector<16x64xf32> to vector<1x16x64xf32>
    tpu.vector_store %arg8[%c2_36, %c0_37, %c128_38], %54 {strides = array<i32>} : memref<4x16x320xf32, #tpu.memory_space<vmem>>, vector<1x16x64xf32>,
    %cst_39 = arith.constant 0.000000e+00 : f32
    %55 = vector.broadcast %cst_39 : f32 to vector<16x320xf32>
    %c3 = arith.constant 3 : index
    %c0_40 = arith.constant 0 : index
    %c0_41 = arith.constant 0 : index
    %56 = vector.load %arg8[%c3, %c0_40, %c0_41] : memref<4x16x320xf32, #tpu.memory_space<vmem>>, vector<1x16x320xf32>
    %57 = vector.shape_cast %56 : vector<1x16x320xf32> to vector<16x320xf32>
    %58 = vector.shape_cast %55 : vector<16x320xf32> to vector<1x16x320xf32>
    tpu.vector_store %arg8[%c3, %c0_40, %c0_41], %58 {strides = array<i32>} : memref<4x16x320xf32, #tpu.memory_space<vmem>>, vector<1x16x320xf32>,
    %c0_42 = arith.constant 0 : index
    %c0_43 = arith.constant 0 : index
    %c3_44 = arith.constant 3 : index
    %c0_45 = arith.constant 0 : index
    %59 = vector.load %arg5[%c0_42, %c0_43, %c3_44, %c0_45] : memref<1x16x4x64xbf16, #tpu.memory_space<vmem>>, vector<1x16x1x64xbf16>
    %60 = vector.shape_cast %59 : vector<1x16x1x64xbf16> to vector<16x64xbf16>
    %61 = arith.extf %60 : vector<16x64xbf16> to vector<16x64xf32>
    %c3_46 = arith.constant 3 : index
    %c0_47 = arith.constant 0 : index
    %c128_48 = arith.constant 128 : index
    %62 = vector.load %arg8[%c3_46, %c0_47, %c128_48] : memref<4x16x320xf32, #tpu.memory_space<vmem>>, vector<1x16x64xf32>
    %63 = vector.shape_cast %62 : vector<1x16x64xf32> to vector<16x64xf32>
    %64 = vector.shape_cast %61 : vector<16x64xf32> to vector<1x16x64xf32>
    tpu.vector_store %arg8[%c3_46, %c0_47, %c128_48], %64 {strides = array<i32>} : memref<4x16x320xf32, #tpu.memory_space<vmem>>, vector<1x16x64xf32>,
    %c3_49 = arith.constant 3 : index
    %c0_50 = arith.constant 0 : index
    %c119 = arith.constant 119 : index
    %65 = vector.load %arg8[%c3_49, %c0_50, %c119] : memref<4x16x320xf32, #tpu.memory_space<vmem>>, vector<1x16x64xf32>
    %66 = vector.shape_cast %65 : vector<1x16x64xf32> to vector<16x64xf32>
    %c1_i32_51 = arith.constant 1 : i32
    %67 = vector.broadcast %c1_i32_51 : i32 to vector<1x64xi32>
    %68 = arith.cmpi sge, %24, %67 : vector<1x64xi32>
    %cst_52 = arith.constant 0.000000e+00 : f32
    %69 = vector.shape_cast %68 : vector<1x64xi1> to vector<1x64xi1>
    %70 = vector.broadcast %69 : vector<1x64xi1> to vector<16x64xi1>
    %71 = vector.broadcast %cst_52 : f32 to vector<16x64xf32>
    %72 = arith.select %70, %66, %71 : vector<16x64xi1>, vector<16x64xf32>
    %c0_53 = arith.constant 0 : index
    %c0_54 = arith.constant 0 : index
    %73 = vector.load %arg9[%c0_53, %c0_54] : memref<144x64xf32, #tpu.memory_space<vmem>>, vector<16x64xf32>
    tpu.vector_store %arg9[%c0_53, %c0_54], %72 {strides = array<i32>} : memref<144x64xf32, #tpu.memory_space<vmem>>, vector<16x64xf32>,
    %c2_55 = arith.constant 2 : index
    %c0_56 = arith.constant 0 : index
    %c120 = arith.constant 120 : index
    %74 = vector.load %arg8[%c2_55, %c0_56, %c120] : memref<4x16x320xf32, #tpu.memory_space<vmem>>, vector<1x16x64xf32>
    %75 = vector.shape_cast %74 : vector<1x16x64xf32> to vector<16x64xf32>
    %c16 = arith.constant 16 : index
    %c0_57 = arith.constant 0 : index
    %76 = vector.load %arg9[%c16, %c0_57] : memref<144x64xf32, #tpu.memory_space<vmem>>, vector<16x64xf32>
    tpu.vector_store %arg9[%c16, %c0_57], %75 {strides = array<i32>} : memref<144x64xf32, #tpu.memory_space<vmem>>, vector<16x64xf32>,
    %c3_58 = arith.constant 3 : index
    %c0_59 = arith.constant 0 : index
    %c120_60 = arith.constant 120 : index
    %77 = vector.load %arg8[%c3_58, %c0_59, %c120_60] : memref<4x16x320xf32, #tpu.memory_space<vmem>>, vector<1x16x64xf32>
    %78 = vector.shape_cast %77 : vector<1x16x64xf32> to vector<16x64xf32>
    %c32 = arith.constant 32 : index
    %c0_61 = arith.constant 0 : index
    %79 = vector.load %arg9[%c32, %c0_61] : memref<144x64xf32, #tpu.memory_space<vmem>>, vector<16x64xf32>
    tpu.vector_store %arg9[%c32, %c0_61], %78 {strides = array<i32>} : memref<144x64xf32, #tpu.memory_space<vmem>>, vector<16x64xf32>,
    %c1_62 = arith.constant 1 : index
    %c0_63 = arith.constant 0 : index
    %c127 = arith.constant 127 : index
    %80 = vector.load %arg8[%c1_62, %c0_63, %c127] : memref<4x16x320xf32, #tpu.memory_space<vmem>>, vector<1x16x64xf32>
    %81 = vector.shape_cast %80 : vector<1x16x64xf32> to vector<16x64xf32>
    %c1_i32_64 = arith.constant 1 : i32
    %82 = vector.broadcast %c1_i32_64 : i32 to vector<1x64xi32>
    %83 = arith.cmpi sge, %24, %82 : vector<1x64xi32>
    %cst_65 = arith.constant 0.000000e+00 : f32
    %84 = vector.shape_cast %83 : vector<1x64xi1> to vector<1x64xi1>
    %85 = vector.broadcast %84 : vector<1x64xi1> to vector<16x64xi1>
    %86 = vector.broadcast %cst_65 : f32 to vector<16x64xf32>
    %87 = arith.select %85, %81, %86 : vector<16x64xi1>, vector<16x64xf32>
    %c48 = arith.constant 48 : index
    %c0_66 = arith.constant 0 : index
    %88 = vector.load %arg9[%c48, %c0_66] : memref<144x64xf32, #tpu.memory_space<vmem>>, vector<16x64xf32>
    tpu.vector_store %arg9[%c48, %c0_66], %87 {strides = array<i32>} : memref<144x64xf32, #tpu.memory_space<vmem>>, vector<16x64xf32>,
    %c0_67 = arith.constant 0 : index
    %c0_68 = arith.constant 0 : index
    %c128_69 = arith.constant 128 : index
    %89 = vector.load %arg8[%c0_67, %c0_68, %c128_69] : memref<4x16x320xf32, #tpu.memory_space<vmem>>, vector<1x16x64xf32>
    %90 = vector.shape_cast %89 : vector<1x16x64xf32> to vector<16x64xf32>
    %c64 = arith.constant 64 : index
    %c0_70 = arith.constant 0 : index
    %91 = vector.load %arg9[%c64, %c0_70] : memref<144x64xf32, #tpu.memory_space<vmem>>, vector<16x64xf32>
    tpu.vector_store %arg9[%c64, %c0_70], %90 {strides = array<i32>} : memref<144x64xf32, #tpu.memory_space<vmem>>, vector<16x64xf32>,
    %c1_71 = arith.constant 1 : index
    %c0_72 = arith.constant 0 : index
    %c128_73 = arith.constant 128 : index
    %92 = vector.load %arg8[%c1_71, %c0_72, %c128_73] : memref<4x16x320xf32, #tpu.memory_space<vmem>>, vector<1x16x64xf32>
    %93 = vector.shape_cast %92 : vector<1x16x64xf32> to vector<16x64xf32>
    %c80 = arith.constant 80 : index
    %c0_74 = arith.constant 0 : index
    %94 = vector.load %arg9[%c80, %c0_74] : memref<144x64xf32, #tpu.memory_space<vmem>>, vector<16x64xf32>
    tpu.vector_store %arg9[%c80, %c0_74], %93 {strides = array<i32>} : memref<144x64xf32, #tpu.memory_space<vmem>>, vector<16x64xf32>,
    %c3_75 = arith.constant 3 : index
    %c0_76 = arith.constant 0 : index
    %c127_77 = arith.constant 127 : index
    %95 = vector.load %arg8[%c3_75, %c0_76, %c127_77] : memref<4x16x320xf32, #tpu.memory_space<vmem>>, vector<1x16x64xf32>
    %96 = vector.shape_cast %95 : vector<1x16x64xf32> to vector<16x64xf32>
    %c1_i32_78 = arith.constant 1 : i32
    %97 = vector.broadcast %c1_i32_78 : i32 to vector<1x64xi32>
    %98 = arith.cmpi sge, %24, %97 : vector<1x64xi32>
    %cst_79 = arith.constant 0.000000e+00 : f32
    %99 = vector.shape_cast %98 : vector<1x64xi1> to vector<1x64xi1>
    %100 = vector.broadcast %99 : vector<1x64xi1> to vector<16x64xi1>
    %101 = vector.broadcast %cst_79 : f32 to vector<16x64xf32>
    %102 = arith.select %100, %96, %101 : vector<16x64xi1>, vector<16x64xf32>
    %c96 = arith.constant 96 : index
    %c0_80 = arith.constant 0 : index
    %103 = vector.load %arg9[%c96, %c0_80] : memref<144x64xf32, #tpu.memory_space<vmem>>, vector<16x64xf32>
    tpu.vector_store %arg9[%c96, %c0_80], %102 {strides = array<i32>} : memref<144x64xf32, #tpu.memory_space<vmem>>, vector<16x64xf32>,
    %c2_81 = arith.constant 2 : index
    %c0_82 = arith.constant 0 : index
    %c128_83 = arith.constant 128 : index
    %104 = vector.load %arg8[%c2_81, %c0_82, %c128_83] : memref<4x16x320xf32, #tpu.memory_space<vmem>>, vector<1x16x64xf32>
    %105 = vector.shape_cast %104 : vector<1x16x64xf32> to vector<16x64xf32>
    %c112 = arith.constant 112 : index
    %c0_84 = arith.constant 0 : index
    %106 = vector.load %arg9[%c112, %c0_84] : memref<144x64xf32, #tpu.memory_space<vmem>>, vector<16x64xf32>
    tpu.vector_store %arg9[%c112, %c0_84], %105 {strides = array<i32>} : memref<144x64xf32, #tpu.memory_space<vmem>>, vector<16x64xf32>,
    %c3_85 = arith.constant 3 : index
    %c0_86 = arith.constant 0 : index
    %c128_87 = arith.constant 128 : index
    %107 = vector.load %arg8[%c3_85, %c0_86, %c128_87] : memref<4x16x320xf32, #tpu.memory_space<vmem>>, vector<1x16x64xf32>
    %108 = vector.shape_cast %107 : vector<1x16x64xf32> to vector<16x64xf32>
    %c128_88 = arith.constant 128 : index
    %c0_89 = arith.constant 0 : index
    %109 = vector.load %arg9[%c128_88, %c0_89] : memref<144x64xf32, #tpu.memory_space<vmem>>, vector<16x64xf32>
    tpu.vector_store %arg9[%c128_88, %c0_89], %108 {strides = array<i32>} : memref<144x64xf32, #tpu.memory_space<vmem>>, vector<16x64xf32>,
    %c0_90 = arith.constant 0 : index
    %c0_91 = arith.constant 0 : index
    %110 = vector.load %arg2[%c0_90, %c0_91] : memref<16x144xbf16, #tpu.memory_space<vmem>>, vector<16x144xbf16>
    %c0_92 = arith.constant 0 : index
    %c0_93 = arith.constant 0 : index
    %111 = vector.load %arg9[%c0_92, %c0_93] : memref<144x64xf32, #tpu.memory_space<vmem>>, vector<144x64xf32>
    %112 = arith.truncf %111 : vector<144x64xf32> to vector<144x64xbf16>
    %cst_94 = arith.constant dense<0.000000e+00> : vector<16x64xf32>
    %113 = tpu.matmul %110, %112, %cst_94 {dimension_numbers = #tpu.dot_dimension_numbers<[1], [0], [0], [1], [0, 0, 1, 1], [], []>} : vector<16x144xbf16>, vector<144x64xbf16>, vector<16x64xf32> -> vector<16x64xf32>
    %114 = arith.addf %113, %7 : vector<16x64xf32>
    %c0_95 = arith.constant 0 : index
    %c0_96 = arith.constant 0 : index
    %c0_97 = arith.constant 0 : index
    %c0_98 = arith.constant 0 : index
    %115 = vector.load %arg7[%c0_95, %c0_96, %c0_97, %c0_98] : memref<1x16x4x64xf32, #tpu.memory_space<vmem>>, vector<1x16x1x64xf32>
    %116 = vector.shape_cast %115 : vector<1x16x1x64xf32> to vector<16x64xf32>
    %117 = vector.shape_cast %114 : vector<16x64xf32> to vector<1x16x1x64xf32>
    tpu.vector_store %arg7[%c0_95, %c0_96, %c0_97, %c0_98], %117 {strides = array<i32>} : memref<1x16x4x64xf32, #tpu.memory_space<vmem>>, vector<1x16x1x64xf32>,
    %c2_99 = arith.constant 2 : index
    %c0_100 = arith.constant 0 : index
    %c120_101 = arith.constant 120 : index
    %118 = vector.load %arg8[%c2_99, %c0_100, %c120_101] : memref<4x16x320xf32, #tpu.memory_space<vmem>>, vector<1x16x64xf32>
    %119 = vector.shape_cast %118 : vector<1x16x64xf32> to vector<16x64xf32>
    %c0_102 = arith.constant 0 : index
    %c0_103 = arith.constant 0 : index
    %120 = vector.load %arg9[%c0_102, %c0_103] : memref<144x64xf32, #tpu.memory_space<vmem>>, vector<16x64xf32>
    tpu.vector_store %arg9[%c0_102, %c0_103], %119 {strides = array<i32>} : memref<144x64xf32, #tpu.memory_space<vmem>>, vector<16x64xf32>,
    %c3_104 = arith.constant 3 : index
    %c0_105 = arith.constant 0 : index
    %c120_106 = arith.constant 120 : index
    %121 = vector.load %arg8[%c3_104, %c0_105, %c120_106] : memref<4x16x320xf32, #tpu.memory_space<vmem>>, vector<1x16x64xf32>
    %122 = vector.shape_cast %121 : vector<1x16x64xf32> to vector<16x64xf32>
    %c16_107 = arith.constant 16 : index
    %c0_108 = arith.constant 0 : index
    %123 = vector.load %arg9[%c16_107, %c0_108] : memref<144x64xf32, #tpu.memory_space<vmem>>, vector<16x64xf32>
    tpu.vector_store %arg9[%c16_107, %c0_108], %122 {strides = array<i32>} : memref<144x64xf32, #tpu.memory_space<vmem>>, vector<16x64xf32>,
    %c2_109 = arith.constant 2 : index
    %c0_110 = arith.constant 0 : index
    %c121 = arith.constant 121 : index
    %124 = vector.load %arg8[%c2_109, %c0_110, %c121] : memref<4x16x320xf32, #tpu.memory_space<vmem>>, vector<1x16x64xf32>
    %125 = vector.shape_cast %124 : vector<1x16x64xf32> to vector<16x64xf32>
    %c7_i32 = arith.constant 7 : i32
    %126 = vector.broadcast %c7_i32 : i32 to vector<1x64xi32>
    %127 = arith.cmpi slt, %24, %126 : vector<1x64xi32>
    %cst_111 = arith.constant 0.000000e+00 : f32
    %128 = vector.shape_cast %127 : vector<1x64xi1> to vector<1x64xi1>
    %129 = vector.broadcast %128 : vector<1x64xi1> to vector<16x64xi1>
    %130 = vector.broadcast %cst_111 : f32 to vector<16x64xf32>
    %131 = arith.select %129, %125, %130 : vector<16x64xi1>, vector<16x64xf32>
    %c32_112 = arith.constant 32 : index
    %c0_113 = arith.constant 0 : index
    %132 = vector.load %arg9[%c32_112, %c0_113] : memref<144x64xf32, #tpu.memory_space<vmem>>, vector<16x64xf32>
    tpu.vector_store %arg9[%c32_112, %c0_113], %131 {strides = array<i32>} : memref<144x64xf32, #tpu.memory_space<vmem>>, vector<16x64xf32>,
    %c0_114 = arith.constant 0 : index
    %c0_115 = arith.constant 0 : index
    %c128_116 = arith.constant 128 : index
    %133 = vector.load %arg8[%c0_114, %c0_115, %c128_116] : memref<4x16x320xf32, #tpu.memory_space<vmem>>, vector<1x16x64xf32>
    %134 = vector.shape_cast %133 : vector<1x16x64xf32> to vector<16x64xf32>
    %c48_117 = arith.constant 48 : index
    %c0_118 = arith.constant 0 : index
    %135 = vector.load %arg9[%c48_117, %c0_118] : memref<144x64xf32, #tpu.memory_space<vmem>>, vector<16x64xf32>
    tpu.vector_store %arg9[%c48_117, %c0_118], %134 {strides = array<i32>} : memref<144x64xf32, #tpu.memory_space<vmem>>, vector<16x64xf32>,
    %c1_119 = arith.constant 1 : index
    %c0_120 = arith.constant 0 : index
    %c128_121 = arith.constant 128 : index
    %136 = vector.load %arg8[%c1_119, %c0_120, %c128_121] : memref<4x16x320xf32, #tpu.memory_space<vmem>>, vector<1x16x64xf32>
    %137 = vector.shape_cast %136 : vector<1x16x64xf32> to vector<16x64xf32>
    %c64_122 = arith.constant 64 : index
    %c0_123 = arith.constant 0 : index
    %138 = vector.load %arg9[%c64_122, %c0_123] : memref<144x64xf32, #tpu.memory_space<vmem>>, vector<16x64xf32>
    tpu.vector_store %arg9[%c64_122, %c0_123], %137 {strides = array<i32>} : memref<144x64xf32, #tpu.memory_space<vmem>>, vector<16x64xf32>,
    %c0_124 = arith.constant 0 : index
    %c0_125 = arith.constant 0 : index
    %c129 = arith.constant 129 : index
    %139 = vector.load %arg8[%c0_124, %c0_125, %c129] : memref<4x16x320xf32, #tpu.memory_space<vmem>>, vector<1x16x64xf32>
    %140 = vector.shape_cast %139 : vector<1x16x64xf32> to vector<16x64xf32>
    %c7_i32_126 = arith.constant 7 : i32
    %141 = vector.broadcast %c7_i32_126 : i32 to vector<1x64xi32>
    %142 = arith.cmpi slt, %24, %141 : vector<1x64xi32>
    %cst_127 = arith.constant 0.000000e+00 : f32
    %143 = vector.shape_cast %142 : vector<1x64xi1> to vector<1x64xi1>
    %144 = vector.broadcast %143 : vector<1x64xi1> to vector<16x64xi1>
    %145 = vector.broadcast %cst_127 : f32 to vector<16x64xf32>
    %146 = arith.select %144, %140, %145 : vector<16x64xi1>, vector<16x64xf32>
    %c80_128 = arith.constant 80 : index
    %c0_129 = arith.constant 0 : index
    %147 = vector.load %arg9[%c80_128, %c0_129] : memref<144x64xf32, #tpu.memory_space<vmem>>, vector<16x64xf32>
    tpu.vector_store %arg9[%c80_128, %c0_129], %146 {strides = array<i32>} : memref<144x64xf32, #tpu.memory_space<vmem>>, vector<16x64xf32>,
    %c2_130 = arith.constant 2 : index
    %c0_131 = arith.constant 0 : index
    %c128_132 = arith.constant 128 : index
    %148 = vector.load %arg8[%c2_130, %c0_131, %c128_132] : memref<4x16x320xf32, #tpu.memory_space<vmem>>, vector<1x16x64xf32>
    %149 = vector.shape_cast %148 : vector<1x16x64xf32> to vector<16x64xf32>
    %c96_133 = arith.constant 96 : index
    %c0_134 = arith.constant 0 : index
    %150 = vector.load %arg9[%c96_133, %c0_134] : memref<144x64xf32, #tpu.memory_space<vmem>>, vector<16x64xf32>
    tpu.vector_store %arg9[%c96_133, %c0_134], %149 {strides = array<i32>} : memref<144x64xf32, #tpu.memory_space<vmem>>, vector<16x64xf32>,
    %c3_135 = arith.constant 3 : index
    %c0_136 = arith.constant 0 : index
    %c128_137 = arith.constant 128 : index
    %151 = vector.load %arg8[%c3_135, %c0_136, %c128_137] : memref<4x16x320xf32, #tpu.memory_space<vmem>>, vector<1x16x64xf32>
    %152 = vector.shape_cast %151 : vector<1x16x64xf32> to vector<16x64xf32>
    %c112_138 = arith.constant 112 : index
    %c0_139 = arith.constant 0 : index
    %153 = vector.load %arg9[%c112_138, %c0_139] : memref<144x64xf32, #tpu.memory_space<vmem>>, vector<16x64xf32>
    tpu.vector_store %arg9[%c112_138, %c0_139], %152 {strides = array<i32>} : memref<144x64xf32, #tpu.memory_space<vmem>>, vector<16x64xf32>,
    %c2_140 = arith.constant 2 : index
    %c0_141 = arith.constant 0 : index
    %c129_142 = arith.constant 129 : index
    %154 = vector.load %arg8[%c2_140, %c0_141, %c129_142] : memref<4x16x320xf32, #tpu.memory_space<vmem>>, vector<1x16x64xf32>
    %155 = vector.shape_cast %154 : vector<1x16x64xf32> to vector<16x64xf32>
    %c7_i32_143 = arith.constant 7 : i32
    %156 = vector.broadcast %c7_i32_143 : i32 to vector<1x64xi32>
    %157 = arith.cmpi slt, %24, %156 : vector<1x64xi32>
    %cst_144 = arith.constant 0.000000e+00 : f32
    %158 = vector.shape_cast %157 : vector<1x64xi1> to vector<1x64xi1>
    %159 = vector.broadcast %158 : vector<1x64xi1> to vector<16x64xi1>
    %160 = vector.broadcast %cst_144 : f32 to vector<16x64xf32>
    %161 = arith.select %159, %155, %160 : vector<16x64xi1>, vector<16x64xf32>
    %c128_145 = arith.constant 128 : index
    %c0_146 = arith.constant 0 : index
    %162 = vector.load %arg9[%c128_145, %c0_146] : memref<144x64xf32, #tpu.memory_space<vmem>>, vector<16x64xf32>
    tpu.vector_store %arg9[%c128_145, %c0_146], %161 {strides = array<i32>} : memref<144x64xf32, #tpu.memory_space<vmem>>, vector<16x64xf32>,
    %c0_147 = arith.constant 0 : index
    %c0_148 = arith.constant 0 : index
    %163 = vector.load %arg2[%c0_147, %c0_148] : memref<16x144xbf16, #tpu.memory_space<vmem>>, vector<16x144xbf16>
    %c0_149 = arith.constant 0 : index
    %c0_150 = arith.constant 0 : index
    %164 = vector.load %arg9[%c0_149, %c0_150] : memref<144x64xf32, #tpu.memory_space<vmem>>, vector<144x64xf32>
    %165 = arith.truncf %164 : vector<144x64xf32> to vector<144x64xbf16>
    %cst_151 = arith.constant dense<0.000000e+00> : vector<16x64xf32>
    %166 = tpu.matmul %163, %165, %cst_151 {dimension_numbers = #tpu.dot_dimension_numbers<[1], [0], [0], [1], [0, 0, 1, 1], [], []>} : vector<16x144xbf16>, vector<144x64xbf16>, vector<16x64xf32> -> vector<16x64xf32>
    %167 = arith.addf %166, %7 : vector<16x64xf32>
    %c0_152 = arith.constant 0 : index
    %c0_153 = arith.constant 0 : index
    %c1_154 = arith.constant 1 : index
    %c0_155 = arith.constant 0 : index
    %168 = vector.load %arg7[%c0_152, %c0_153, %c1_154, %c0_155] : memref<1x16x4x64xf32, #tpu.memory_space<vmem>>, vector<1x16x1x64xf32>
    %169 = vector.shape_cast %168 : vector<1x16x1x64xf32> to vector<16x64xf32>
    %170 = vector.shape_cast %167 : vector<16x64xf32> to vector<1x16x1x64xf32>
    tpu.vector_store %arg7[%c0_152, %c0_153, %c1_154, %c0_155], %170 {strides = array<i32>} : memref<1x16x4x64xf32, #tpu.memory_space<vmem>>, vector<1x16x1x64xf32>,
    %c1_156 = arith.constant 1 : index
    %c0_157 = arith.constant 0 : index
    %c127_158 = arith.constant 127 : index
    %171 = vector.load %arg8[%c1_156, %c0_157, %c127_158] : memref<4x16x320xf32, #tpu.memory_space<vmem>>, vector<1x16x64xf32>
    %172 = vector.shape_cast %171 : vector<1x16x64xf32> to vector<16x64xf32>
    %c1_i32_159 = arith.constant 1 : i32
    %173 = vector.broadcast %c1_i32_159 : i32 to vector<1x64xi32>
    %174 = arith.cmpi sge, %24, %173 : vector<1x64xi32>
    %cst_160 = arith.constant 0.000000e+00 : f32
    %175 = vector.shape_cast %174 : vector<1x64xi1> to vector<1x64xi1>
    %176 = vector.broadcast %175 : vector<1x64xi1> to vector<16x64xi1>
    %177 = vector.broadcast %cst_160 : f32 to vector<16x64xf32>
    %178 = arith.select %176, %172, %177 : vector<16x64xi1>, vector<16x64xf32>
    %c0_161 = arith.constant 0 : index
    %c0_162 = arith.constant 0 : index
    %179 = vector.load %arg9[%c0_161, %c0_162] : memref<144x64xf32, #tpu.memory_space<vmem>>, vector<16x64xf32>
    tpu.vector_store %arg9[%c0_161, %c0_162], %178 {strides = array<i32>} : memref<144x64xf32, #tpu.memory_space<vmem>>, vector<16x64xf32>,
    %c0_163 = arith.constant 0 : index
    %c0_164 = arith.constant 0 : index
    %c128_165 = arith.constant 128 : index
    %180 = vector.load %arg8[%c0_163, %c0_164, %c128_165] : memref<4x16x320xf32, #tpu.memory_space<vmem>>, vector<1x16x64xf32>
    %181 = vector.shape_cast %180 : vector<1x16x64xf32> to vector<16x64xf32>
    %c16_166 = arith.constant 16 : index
    %c0_167 = arith.constant 0 : index
    %182 = vector.load %arg9[%c16_166, %c0_167] : memref<144x64xf32, #tpu.memory_space<vmem>>, vector<16x64xf32>
    tpu.vector_store %arg9[%c16_166, %c0_167], %181 {strides = array<i32>} : memref<144x64xf32, #tpu.memory_space<vmem>>, vector<16x64xf32>,
    %c1_168 = arith.constant 1 : index
    %c0_169 = arith.constant 0 : index
    %c128_170 = arith.constant 128 : index
    %183 = vector.load %arg8[%c1_168, %c0_169, %c128_170] : memref<4x16x320xf32, #tpu.memory_space<vmem>>, vector<1x16x64xf32>
    %184 = vector.shape_cast %183 : vector<1x16x64xf32> to vector<16x64xf32>
    %c32_171 = arith.constant 32 : index
    %c0_172 = arith.constant 0 : index
    %185 = vector.load %arg9[%c32_171, %c0_172] : memref<144x64xf32, #tpu.memory_space<vmem>>, vector<16x64xf32>
    tpu.vector_store %arg9[%c32_171, %c0_172], %184 {strides = array<i32>} : memref<144x64xf32, #tpu.memory_space<vmem>>, vector<16x64xf32>,
    %c3_173 = arith.constant 3 : index
    %c0_174 = arith.constant 0 : index
    %c127_175 = arith.constant 127 : index
    %186 = vector.load %arg8[%c3_173, %c0_174, %c127_175] : memref<4x16x320xf32, #tpu.memory_space<vmem>>, vector<1x16x64xf32>
    %187 = vector.shape_cast %186 : vector<1x16x64xf32> to vector<16x64xf32>
    %c1_i32_176 = arith.constant 1 : i32
    %188 = vector.broadcast %c1_i32_176 : i32 to vector<1x64xi32>
    %189 = arith.cmpi sge, %24, %188 : vector<1x64xi32>
    %cst_177 = arith.constant 0.000000e+00 : f32
    %190 = vector.shape_cast %189 : vector<1x64xi1> to vector<1x64xi1>
    %191 = vector.broadcast %190 : vector<1x64xi1> to vector<16x64xi1>
    %192 = vector.broadcast %cst_177 : f32 to vector<16x64xf32>
    %193 = arith.select %191, %187, %192 : vector<16x64xi1>, vector<16x64xf32>
    %c48_178 = arith.constant 48 : index
    %c0_179 = arith.constant 0 : index
    %194 = vector.load %arg9[%c48_178, %c0_179] : memref<144x64xf32, #tpu.memory_space<vmem>>, vector<16x64xf32>
    tpu.vector_store %arg9[%c48_178, %c0_179], %193 {strides = array<i32>} : memref<144x64xf32, #tpu.memory_space<vmem>>, vector<16x64xf32>,
    %c2_180 = arith.constant 2 : index
    %c0_181 = arith.constant 0 : index
    %c128_182 = arith.constant 128 : index
    %195 = vector.load %arg8[%c2_180, %c0_181, %c128_182] : memref<4x16x320xf32, #tpu.memory_space<vmem>>, vector<1x16x64xf32>
    %196 = vector.shape_cast %195 : vector<1x16x64xf32> to vector<16x64xf32>
    %c64_183 = arith.constant 64 : index
    %c0_184 = arith.constant 0 : index
    %197 = vector.load %arg9[%c64_183, %c0_184] : memref<144x64xf32, #tpu.memory_space<vmem>>, vector<16x64xf32>
    tpu.vector_store %arg9[%c64_183, %c0_184], %196 {strides = array<i32>} : memref<144x64xf32, #tpu.memory_space<vmem>>, vector<16x64xf32>,
    %c3_185 = arith.constant 3 : index
    %c0_186 = arith.constant 0 : index
    %c128_187 = arith.constant 128 : index
    %198 = vector.load %arg8[%c3_185, %c0_186, %c128_187] : memref<4x16x320xf32, #tpu.memory_space<vmem>>, vector<1x16x64xf32>
    %199 = vector.shape_cast %198 : vector<1x16x64xf32> to vector<16x64xf32>
    %c80_188 = arith.constant 80 : index
    %c0_189 = arith.constant 0 : index
    %200 = vector.load %arg9[%c80_188, %c0_189] : memref<144x64xf32, #tpu.memory_space<vmem>>, vector<16x64xf32>
    tpu.vector_store %arg9[%c80_188, %c0_189], %199 {strides = array<i32>} : memref<144x64xf32, #tpu.memory_space<vmem>>, vector<16x64xf32>,
    %c1_190 = arith.constant 1 : index
    %c0_191 = arith.constant 0 : index
    %c135 = arith.constant 135 : index
    %201 = vector.load %arg8[%c1_190, %c0_191, %c135] : memref<4x16x320xf32, #tpu.memory_space<vmem>>, vector<1x16x64xf32>
    %202 = vector.shape_cast %201 : vector<1x16x64xf32> to vector<16x64xf32>
    %c1_i32_192 = arith.constant 1 : i32
    %203 = vector.broadcast %c1_i32_192 : i32 to vector<1x64xi32>
    %204 = arith.cmpi sge, %24, %203 : vector<1x64xi32>
    %cst_193 = arith.constant 0.000000e+00 : f32
    %205 = vector.shape_cast %204 : vector<1x64xi1> to vector<1x64xi1>
    %206 = vector.broadcast %205 : vector<1x64xi1> to vector<16x64xi1>
    %207 = vector.broadcast %cst_193 : f32 to vector<16x64xf32>
    %208 = arith.select %206, %202, %207 : vector<16x64xi1>, vector<16x64xf32>
    %c96_194 = arith.constant 96 : index
    %c0_195 = arith.constant 0 : index
    %209 = vector.load %arg9[%c96_194, %c0_195] : memref<144x64xf32, #tpu.memory_space<vmem>>, vector<16x64xf32>
    tpu.vector_store %arg9[%c96_194, %c0_195], %208 {strides = array<i32>} : memref<144x64xf32, #tpu.memory_space<vmem>>, vector<16x64xf32>,
    %c0_196 = arith.constant 0 : index
    %c0_197 = arith.constant 0 : index
    %c136 = arith.constant 136 : index
    %210 = vector.load %arg8[%c0_196, %c0_197, %c136] : memref<4x16x320xf32, #tpu.memory_space<vmem>>, vector<1x16x64xf32>
    %211 = vector.shape_cast %210 : vector<1x16x64xf32> to vector<16x64xf32>
    %c112_198 = arith.constant 112 : index
    %c0_199 = arith.constant 0 : index
    %212 = vector.load %arg9[%c112_198, %c0_199] : memref<144x64xf32, #tpu.memory_space<vmem>>, vector<16x64xf32>
    tpu.vector_store %arg9[%c112_198, %c0_199], %211 {strides = array<i32>} : memref<144x64xf32, #tpu.memory_space<vmem>>, vector<16x64xf32>,
    %c1_200 = arith.constant 1 : index
    %c0_201 = arith.constant 0 : index
    %c136_202 = arith.constant 136 : index
    %213 = vector.load %arg8[%c1_200, %c0_201, %c136_202] : memref<4x16x320xf32, #tpu.memory_space<vmem>>, vector<1x16x64xf32>
    %214 = vector.shape_cast %213 : vector<1x16x64xf32> to vector<16x64xf32>
    %c128_203 = arith.constant 128 : index
    %c0_204 = arith.constant 0 : index
    %215 = vector.load %arg9[%c128_203, %c0_204] : memref<144x64xf32, #tpu.memory_space<vmem>>, vector<16x64xf32>
    tpu.vector_store %arg9[%c128_203, %c0_204], %214 {strides = array<i32>} : memref<144x64xf32, #tpu.memory_space<vmem>>, vector<16x64xf32>,
    %c0_205 = arith.constant 0 : index
    %c0_206 = arith.constant 0 : index
    %216 = vector.load %arg2[%c0_205, %c0_206] : memref<16x144xbf16, #tpu.memory_space<vmem>>, vector<16x144xbf16>
    %c0_207 = arith.constant 0 : index
    %c0_208 = arith.constant 0 : index
    %217 = vector.load %arg9[%c0_207, %c0_208] : memref<144x64xf32, #tpu.memory_space<vmem>>, vector<144x64xf32>
    %218 = arith.truncf %217 : vector<144x64xf32> to vector<144x64xbf16>
    %cst_209 = arith.constant dense<0.000000e+00> : vector<16x64xf32>
    %219 = tpu.matmul %216, %218, %cst_209 {dimension_numbers = #tpu.dot_dimension_numbers<[1], [0], [0], [1], [0, 0, 1, 1], [], []>} : vector<16x144xbf16>, vector<144x64xbf16>, vector<16x64xf32> -> vector<16x64xf32>
    %220 = arith.addf %219, %7 : vector<16x64xf32>
    %c0_210 = arith.constant 0 : index
    %c0_211 = arith.constant 0 : index
    %c2_212 = arith.constant 2 : index
    %c0_213 = arith.constant 0 : index
    %221 = vector.load %arg7[%c0_210, %c0_211, %c2_212, %c0_213] : memref<1x16x4x64xf32, #tpu.memory_space<vmem>>, vector<1x16x1x64xf32>
    %222 = vector.shape_cast %221 : vector<1x16x1x64xf32> to vector<16x64xf32>
    %223 = vector.shape_cast %220 : vector<16x64xf32> to vector<1x16x1x64xf32>
    tpu.vector_store %arg7[%c0_210, %c0_211, %c2_212, %c0_213], %223 {strides = array<i32>} : memref<1x16x4x64xf32, #tpu.memory_space<vmem>>, vector<1x16x1x64xf32>,
    %c0_214 = arith.constant 0 : index
    %c0_215 = arith.constant 0 : index
    %c128_216 = arith.constant 128 : index
    %224 = vector.load %arg8[%c0_214, %c0_215, %c128_216] : memref<4x16x320xf32, #tpu.memory_space<vmem>>, vector<1x16x64xf32>
    %225 = vector.shape_cast %224 : vector<1x16x64xf32> to vector<16x64xf32>
    %c0_217 = arith.constant 0 : index
    %c0_218 = arith.constant 0 : index
    %226 = vector.load %arg9[%c0_217, %c0_218] : memref<144x64xf32, #tpu.memory_space<vmem>>, vector<16x64xf32>
    tpu.vector_store %arg9[%c0_217, %c0_218], %225 {strides = array<i32>} : memref<144x64xf32, #tpu.memory_space<vmem>>, vector<16x64xf32>,
    %c1_219 = arith.constant 1 : index
    %c0_220 = arith.constant 0 : index
    %c128_221 = arith.constant 128 : index
    %227 = vector.load %arg8[%c1_219, %c0_220, %c128_221] : memref<4x16x320xf32, #tpu.memory_space<vmem>>, vector<1x16x64xf32>
    %228 = vector.shape_cast %227 : vector<1x16x64xf32> to vector<16x64xf32>
    %c16_222 = arith.constant 16 : index
    %c0_223 = arith.constant 0 : index
    %229 = vector.load %arg9[%c16_222, %c0_223] : memref<144x64xf32, #tpu.memory_space<vmem>>, vector<16x64xf32>
    tpu.vector_store %arg9[%c16_222, %c0_223], %228 {strides = array<i32>} : memref<144x64xf32, #tpu.memory_space<vmem>>, vector<16x64xf32>,
    %c0_224 = arith.constant 0 : index
    %c0_225 = arith.constant 0 : index
    %c129_226 = arith.constant 129 : index
    %230 = vector.load %arg8[%c0_224, %c0_225, %c129_226] : memref<4x16x320xf32, #tpu.memory_space<vmem>>, vector<1x16x64xf32>
    %231 = vector.shape_cast %230 : vector<1x16x64xf32> to vector<16x64xf32>
    %c7_i32_227 = arith.constant 7 : i32
    %232 = vector.broadcast %c7_i32_227 : i32 to vector<1x64xi32>
    %233 = arith.cmpi slt, %24, %232 : vector<1x64xi32>
    %cst_228 = arith.constant 0.000000e+00 : f32
    %234 = vector.shape_cast %233 : vector<1x64xi1> to vector<1x64xi1>
    %235 = vector.broadcast %234 : vector<1x64xi1> to vector<16x64xi1>
    %236 = vector.broadcast %cst_228 : f32 to vector<16x64xf32>
    %237 = arith.select %235, %231, %236 : vector<16x64xi1>, vector<16x64xf32>
    %c32_229 = arith.constant 32 : index
    %c0_230 = arith.constant 0 : index
    %238 = vector.load %arg9[%c32_229, %c0_230] : memref<144x64xf32, #tpu.memory_space<vmem>>, vector<16x64xf32>
    tpu.vector_store %arg9[%c32_229, %c0_230], %237 {strides = array<i32>} : memref<144x64xf32, #tpu.memory_space<vmem>>, vector<16x64xf32>,
    %c2_231 = arith.constant 2 : index
    %c0_232 = arith.constant 0 : index
    %c128_233 = arith.constant 128 : index
    %239 = vector.load %arg8[%c2_231, %c0_232, %c128_233] : memref<4x16x320xf32, #tpu.memory_space<vmem>>, vector<1x16x64xf32>
    %240 = vector.shape_cast %239 : vector<1x16x64xf32> to vector<16x64xf32>
    %c48_234 = arith.constant 48 : index
    %c0_235 = arith.constant 0 : index
    %241 = vector.load %arg9[%c48_234, %c0_235] : memref<144x64xf32, #tpu.memory_space<vmem>>, vector<16x64xf32>
    tpu.vector_store %arg9[%c48_234, %c0_235], %240 {strides = array<i32>} : memref<144x64xf32, #tpu.memory_space<vmem>>, vector<16x64xf32>,
    %c3_236 = arith.constant 3 : index
    %c0_237 = arith.constant 0 : index
    %c128_238 = arith.constant 128 : index
    %242 = vector.load %arg8[%c3_236, %c0_237, %c128_238] : memref<4x16x320xf32, #tpu.memory_space<vmem>>, vector<1x16x64xf32>
    %243 = vector.shape_cast %242 : vector<1x16x64xf32> to vector<16x64xf32>
    %c64_239 = arith.constant 64 : index
    %c0_240 = arith.constant 0 : index
    %244 = vector.load %arg9[%c64_239, %c0_240] : memref<144x64xf32, #tpu.memory_space<vmem>>, vector<16x64xf32>
    tpu.vector_store %arg9[%c64_239, %c0_240], %243 {strides = array<i32>} : memref<144x64xf32, #tpu.memory_space<vmem>>, vector<16x64xf32>,
    %c2_241 = arith.constant 2 : index
    %c0_242 = arith.constant 0 : index
    %c129_243 = arith.constant 129 : index
    %245 = vector.load %arg8[%c2_241, %c0_242, %c129_243] : memref<4x16x320xf32, #tpu.memory_space<vmem>>, vector<1x16x64xf32>
    %246 = vector.shape_cast %245 : vector<1x16x64xf32> to vector<16x64xf32>
    %c7_i32_244 = arith.constant 7 : i32
    %247 = vector.broadcast %c7_i32_244 : i32 to vector<1x64xi32>
    %248 = arith.cmpi slt, %24, %247 : vector<1x64xi32>
    %cst_245 = arith.constant 0.000000e+00 : f32
    %249 = vector.shape_cast %248 : vector<1x64xi1> to vector<1x64xi1>
    %250 = vector.broadcast %249 : vector<1x64xi1> to vector<16x64xi1>
    %251 = vector.broadcast %cst_245 : f32 to vector<16x64xf32>
    %252 = arith.select %250, %246, %251 : vector<16x64xi1>, vector<16x64xf32>
    %c80_246 = arith.constant 80 : index
    %c0_247 = arith.constant 0 : index
    %253 = vector.load %arg9[%c80_246, %c0_247] : memref<144x64xf32, #tpu.memory_space<vmem>>, vector<16x64xf32>
    tpu.vector_store %arg9[%c80_246, %c0_247], %252 {strides = array<i32>} : memref<144x64xf32, #tpu.memory_space<vmem>>, vector<16x64xf32>,
    %c0_248 = arith.constant 0 : index
    %c0_249 = arith.constant 0 : index
    %c136_250 = arith.constant 136 : index
    %254 = vector.load %arg8[%c0_248, %c0_249, %c136_250] : memref<4x16x320xf32, #tpu.memory_space<vmem>>, vector<1x16x64xf32>
    %255 = vector.shape_cast %254 : vector<1x16x64xf32> to vector<16x64xf32>
    %c96_251 = arith.constant 96 : index
    %c0_252 = arith.constant 0 : index
    %256 = vector.load %arg9[%c96_251, %c0_252] : memref<144x64xf32, #tpu.memory_space<vmem>>, vector<16x64xf32>
    tpu.vector_store %arg9[%c96_251, %c0_252], %255 {strides = array<i32>} : memref<144x64xf32, #tpu.memory_space<vmem>>, vector<16x64xf32>,
    %c1_253 = arith.constant 1 : index
    %c0_254 = arith.constant 0 : index
    %c136_255 = arith.constant 136 : index
    %257 = vector.load %arg8[%c1_253, %c0_254, %c136_255] : memref<4x16x320xf32, #tpu.memory_space<vmem>>, vector<1x16x64xf32>
    %258 = vector.shape_cast %257 : vector<1x16x64xf32> to vector<16x64xf32>
    %c112_256 = arith.constant 112 : index
    %c0_257 = arith.constant 0 : index
    %259 = vector.load %arg9[%c112_256, %c0_257] : memref<144x64xf32, #tpu.memory_space<vmem>>, vector<16x64xf32>
    tpu.vector_store %arg9[%c112_256, %c0_257], %258 {strides = array<i32>} : memref<144x64xf32, #tpu.memory_space<vmem>>, vector<16x64xf32>,
    %c0_258 = arith.constant 0 : index
    %c0_259 = arith.constant 0 : index
    %c137 = arith.constant 137 : index
    %260 = vector.load %arg8[%c0_258, %c0_259, %c137] : memref<4x16x320xf32, #tpu.memory_space<vmem>>, vector<1x16x64xf32>
    %261 = vector.shape_cast %260 : vector<1x16x64xf32> to vector<16x64xf32>
    %c7_i32_260 = arith.constant 7 : i32
    %262 = vector.broadcast %c7_i32_260 : i32 to vector<1x64xi32>
    %263 = arith.cmpi slt, %24, %262 : vector<1x64xi32>
    %cst_261 = arith.constant 0.000000e+00 : f32
    %264 = vector.shape_cast %263 : vector<1x64xi1> to vector<1x64xi1>
    %265 = vector.broadcast %264 : vector<1x64xi1> to vector<16x64xi1>
    %266 = vector.broadcast %cst_261 : f32 to vector<16x64xf32>
    %267 = arith.select %265, %261, %266 : vector<16x64xi1>, vector<16x64xf32>
    %c128_262 = arith.constant 128 : index
    %c0_263 = arith.constant 0 : index
    %268 = vector.load %arg9[%c128_262, %c0_263] : memref<144x64xf32, #tpu.memory_space<vmem>>, vector<16x64xf32>
    tpu.vector_store %arg9[%c128_262, %c0_263], %267 {strides = array<i32>} : memref<144x64xf32, #tpu.memory_space<vmem>>, vector<16x64xf32>,
    %c0_264 = arith.constant 0 : index
    %c0_265 = arith.constant 0 : index
    %269 = vector.load %arg2[%c0_264, %c0_265] : memref<16x144xbf16, #tpu.memory_space<vmem>>, vector<16x144xbf16>
    %c0_266 = arith.constant 0 : index
    %c0_267 = arith.constant 0 : index
    %270 = vector.load %arg9[%c0_266, %c0_267] : memref<144x64xf32, #tpu.memory_space<vmem>>, vector<144x64xf32>
    %271 = arith.truncf %270 : vector<144x64xf32> to vector<144x64xbf16>
    %cst_268 = arith.constant dense<0.000000e+00> : vector<16x64xf32>
    %272 = tpu.matmul %269, %271, %cst_268 {dimension_numbers = #tpu.dot_dimension_numbers<[1], [0], [0], [1], [0, 0, 1, 1], [], []>} : vector<16x144xbf16>, vector<144x64xbf16>, vector<16x64xf32> -> vector<16x64xf32>
    %273 = arith.addf %272, %7 : vector<16x64xf32>
    %c0_269 = arith.constant 0 : index
    %c0_270 = arith.constant 0 : index
    %c3_271 = arith.constant 3 : index
    %c0_272 = arith.constant 0 : index
    %274 = vector.load %arg7[%c0_269, %c0_270, %c3_271, %c0_272] : memref<1x16x4x64xf32, #tpu.memory_space<vmem>>, vector<1x16x1x64xf32>
    %275 = vector.shape_cast %274 : vector<1x16x1x64xf32> to vector<16x64xf32>
    %276 = vector.shape_cast %273 : vector<16x64xf32> to vector<1x16x1x64xf32>
    tpu.vector_store %arg7[%c0_269, %c0_270, %c3_271, %c0_272], %276 {strides = array<i32>} : memref<1x16x4x64xf32, #tpu.memory_space<vmem>>, vector<1x16x1x64xf32>,
    return
  }
  func.func @transform_0(%arg0: i32, %arg1: i32) -> (i32, i32) {
    %c0_i32 = arith.constant 0 : i32
    %c0_i32_0 = arith.constant 0 : i32
    return %arg1, %c0_i32 : i32, i32
  }
  func.func @transform_1(%arg0: i32, %arg1: i32) -> (i32, i32) {
    %c0_i32 = arith.constant 0 : i32
    %c0_i32_0 = arith.constant 0 : i32
    return %arg1, %c0_i32 : i32, i32
  }
  func.func @transform_2(%arg0: i32, %arg1: i32) -> (i32, i32) {
    %c0_i32 = arith.constant 0 : i32
    %c0_i32_0 = arith.constant 0 : i32
    return %arg1, %c0_i32 : i32, i32
  }
  func.func @transform_3(%arg0: i32, %arg1: i32) -> (i32, i32, i32, i32) {
    %c0_i32 = arith.constant 0 : i32
    %c0_i32_0 = arith.constant 0 : i32
    %c0_i32_1 = arith.constant 0 : i32
    %c0_i32_2 = arith.constant 0 : i32
    return %arg0, %c0_i32, %c0_i32_0, %c0_i32_1 : i32, i32, i32, i32
  }
  func.func @transform_4(%arg0: i32, %arg1: i32) -> (i32, i32, i32) {
    %c0_i32 = arith.constant 0 : i32
    %c0_i32_0 = arith.constant 0 : i32
    %c0_i32_1 = arith.constant 0 : i32
    return %arg0, %c0_i32, %c0_i32_0 : i32, i32, i32
  }
  func.func @transform_5(%arg0: i32, %arg1: i32) -> (i32, i32, i32, i32) {
    %c0_i32 = arith.constant 0 : i32
    %c0_i32_0 = arith.constant 0 : i32
    %c0_i32_1 = arith.constant 0 : i32
    return %arg0, %arg1, %c0_i32, %c0_i32_0 : i32, i32, i32, i32
  }
}

</mosaic_0001>

<llo_original>
// kernel: attn_res_block_up.6
$region0: #{attn_res_block_up.6}
  #allocation0 [shape = 'u32[]', space=smem, size = 0x4, offset = 0x4, fixed_abs, tag = 'smem constant byte address 0x4 - core index']
  #allocation1 [shape = 'u32[144,128]{1,0:T(1,128)}', space=vmem, size = 0x12000, scoped, tag = 'internal scratch']
  %s0 = inlined_call_operand.hbm [shape: bf16[32,16], index: 0, kind: input, shape index: {}]
  %s1 = inlined_call_operand.hbm [shape: bf16[32,32], index: 1, kind: input, shape index: {}]
  %s2 = inlined_call_operand.hbm [shape: bf16[2,32,16], index: 2, kind: input, shape index: {}]
  %s3 = inlined_call_operand.hbm [shape: bf16[2,32,16], index: 3, kind: input, shape index: {}]
  %s4 = inlined_call_operand.hbm [shape: f32[2,16,1], index: 4, kind: input, shape index: {}]
  %s5 = inlined_call_operand.hbm [shape: f32[2,16,4], index: 5, kind: input, shape index: {}]
  %s6 = inlined_call_operand.hbm [shape: bf16[2,16,256], index: 6, kind: input, shape index: {}]
  %s7 = inlined_call_operand.hbm [shape: bf16[2,16,256], index: 7, kind: output, shape index: {}]
  %s8 = sld [smem:[#allocation0]]
  $region89: #{attn_res_block_up.6} parent=0
    _
  %s10 = ssub.s32 1, %s8
  %s11 = scalar_select 0, %s10, %s8
  $region1: #{attn_res_block_up.6} parent=0
    #allocation2 [shape = 'u8[8192]{0}', space=vmem, size = 0x2000, scoped, tag = 'input window, operand 0, single buffered']
    #allocation3 [shape = 's32[2]{0}', space=sflag, size = 0x8, scoped, tag = 'scoped memory for attn_res_block_up.6']
    #allocation4 [shape = 's32[2]{0}', space=sflag, size = 0x8, scoped, tag = 'scoped memory for attn_res_block_up.6']
    #allocation5 [shape = 'u8[8192]{0}', space=vmem, size = 0x2000, scoped, tag = 'input window, operand 1, single buffered']
    #allocation6 [shape = 's32[1]{0}', space=sflag, size = 0x4, scoped, tag = 'scoped memory for attn_res_block_up.6']
    #allocation7 [shape = 'u8[16384]{0}', space=vmem, size = 0x4000, scoped, tag = 'input window, operand 2']
    #allocation8 [shape = 'u8[16384]{0}', space=vmem, size = 0x4000, scoped, tag = 'input window, operand 3']
    #allocation9 [shape = 'u8[16384]{0}', space=vmem, size = 0x4000, scoped, tag = 'input window, operand 4']
    #allocation10 [shape = 'u8[16384]{0}', space=vmem, size = 0x4000, scoped, tag = 'input window, operand 5']
    #allocation11 [shape = 'u8[16384]{0}', space=vmem, size = 0x4000, scoped, tag = 'input window, operand 6']
    #allocation12 [shape = 'u8[16384]{0}', space=vmem, size = 0x4000, scoped, tag = 'output window, operand 0']
    %12 = vsyncpa [#allocation3], 0
    %13 = vsyncpa [#allocation6], 0
    %14 = vsyncpa [#allocation4], 0
    %s15 = scalar_lea.sflag [#allocation4], 1
    %16 = vsyncpa %s15, 0
    loop: start=0, step=1, limit=4
    $region2: #{attn_res_block_up.6} parent=1 // loop_pre_header
      _
    $region3: #{attn_res_block_up.6} parent=1 // loop_header
      %s18 = sphi 0, %s22
      %p19 = scmp.ge.s32.totalorder %s18, 4
      %s25 = sphi 0, %s37
      %s26 = sphi 0, %s33
      %s27 = sphi 0, %s25
      %s28 = sphi 0, %s26
      %s29 = sphi 0, %s27
      %s30 = sphi 0, %s28
      %s38 = sphi 0, %s38
      %s40 = sphi 0, %s38
      %s41 = sphi 0, %s40
      %s55 = sphi 0, %s41
      %s59 = sphi 0, %s59
      %s61 = sphi 0, %s59
      %s62 = sphi 0, %s61
      %s76 = sphi 0, %s62
      %s82 = sphi 0, %s84
      %s85 = sphi 0, %s82
      %s86 = sphi 0, %s85
      %s102 = sphi 0, %s86
      %s108 = sphi 0, %s110
      %s111 = sphi 0, %s108
      %s112 = sphi 0, %s111
      %s128 = sphi 0, %s112
      %s134 = sphi 0, %s136
      %s137 = sphi 0, %s134
      %s138 = sphi 0, %s137
      %s154 = sphi 0, %s138
      %s160 = sphi 0, %s162
      %s163 = sphi 0, %s160
      %s164 = sphi 0, %s163
      %s180 = sphi 0, %s164
      %s188 = sphi 0, %s190
      %s191 = sphi 0, %s188
      %s192 = sphi 0, %s191
      %s208 = sphi 0, %s192
      %s216 = sphi 0, %s218
      %s219 = sphi 0, %s216
      %s220 = sphi 0, %s219
      %s236 = sphi 0, %s220
    $region4: #{attn_res_block_up.6} parent=1 // loop_header_branch
      %21 = sbr.rel (%p19) target = $region8
    $region5: #{attn_res_block_up.6} parent=1 // loop_body
      %s23 = ssub.s32 %s18, 1
      %s24 = ssub.s32 %s18, 2
      %s31 = sadd.s32 1, %s26
      %p32 = scmp.ge.s32.totalorder %s31, 1
      %s33 = scalar_select %p32, 0, %s31
      %s34 = sadd.s32 1, %s25
      %s35 = scalar_select %p32, %s34, %s25
      %p36 = scmp.ge.s32.totalorder %s35, 2
      %s37 = scalar_select %p36, 0, %s35
      %s39 = sadd.s32 %s38, 1
      %p42 = scmp.eq.s32.totalorder %s18, 1
      %p43 = scmp.ne.s32.totalorder %s38, %s40
      %p44 = scmp.eq.s32.totalorder %s18, 0
      %p45 = por %p43, %p44
      %p46 = scmp.ne.s32.totalorder %s38, %s40
      %p47 = scmp.eq.s32.totalorder %s23, 1
      %p48 = por %p46, %p47
      %p49 = scmp.ne.s32.totalorder %s40, %s41
      %p50 = scmp.eq.s32.totalorder %s23, 0
      %p51 = por %p49, %p50
      %p52 = scmp.ne.s32.totalorder %s40, %s41
      %p53 = scmp.eq.s32.totalorder %s24, 1
      %p54 = por %p52, %p53
      %p56 = scmp.ne.s32.totalorder %s41, %s55
      %p57 = scmp.eq.s32.totalorder %s24, 0
      %p58 = por %p56, %p57
      %s60 = sadd.s32 %s59, 1
      %p63 = scmp.eq.s32.totalorder %s18, 1
      %p64 = scmp.ne.s32.totalorder %s59, %s61
      %p65 = scmp.eq.s32.totalorder %s18, 0
      %p66 = por %p64, %p65
      %p67 = scmp.ne.s32.totalorder %s59, %s61
      %p68 = scmp.eq.s32.totalorder %s23, 1
      %p69 = por %p67, %p68
      %p70 = scmp.ne.s32.totalorder %s61, %s62
      %p71 = scmp.eq.s32.totalorder %s23, 0
      %p72 = por %p70, %p71
      %p73 = scmp.ne.s32.totalorder %s61, %s62
      %p74 = scmp.eq.s32.totalorder %s24, 1
      %p75 = por %p73, %p74
      %p77 = scmp.ne.s32.totalorder %s62, %s76
      %p78 = scmp.eq.s32.totalorder %s24, 0
      %p79 = por %p77, %p78
      %s80 = ssub.s32 %s25, %s37
      %p81 = scmp.eq.s32.totalorder %s80, 0
      %s83 = sadd.s32 %s82, 1
      %s84 = scalar_select %p81, %s82, %s83
      %p87 = pneg %p81
      %p88 = scmp.eq.s32.totalorder %s18, 1
      %p89 = por %p87, %p88
      %p90 = scmp.ne.s32.totalorder %s82, %s85
      %p91 = scmp.eq.s32.totalorder %s18, 0
      %p92 = por %p90, %p91
      %p93 = scmp.ne.s32.totalorder %s82, %s85
      %p94 = scmp.eq.s32.totalorder %s23, 1
      %p95 = por %p93, %p94
      %p96 = scmp.ne.s32.totalorder %s85, %s86
      %p97 = scmp.eq.s32.totalorder %s23, 0
      %p98 = por %p96, %p97
      %p99 = scmp.ne.s32.totalorder %s85, %s86
      %p100 = scmp.eq.s32.totalorder %s24, 1
      %p101 = por %p99, %p100
      %p103 = scmp.ne.s32.totalorder %s86, %s102
      %p104 = scmp.eq.s32.totalorder %s24, 0
      %p105 = por %p103, %p104
      %s106 = ssub.s32 %s25, %s37
      %p107 = scmp.eq.s32.totalorder %s106, 0
      %s109 = sadd.s32 %s108, 1
      %s110 = scalar_select %p107, %s108, %s109
      %p113 = pneg %p107
      %p114 = scmp.eq.s32.totalorder %s18, 1
      %p115 = por %p113, %p114
      %p116 = scmp.ne.s32.totalorder %s108, %s111
      %p117 = scmp.eq.s32.totalorder %s18, 0
      %p118 = por %p116, %p117
      %p119 = scmp.ne.s32.totalorder %s108, %s111
      %p120 = scmp.eq.s32.totalorder %s23, 1
      %p121 = por %p119, %p120
      %p122 = scmp.ne.s32.totalorder %s111, %s112
      %p123 = scmp.eq.s32.totalorder %s23, 0
      %p124 = por %p122, %p123
      %p125 = scmp.ne.s32.totalorder %s111, %s112
      %p126 = scmp.eq.s32.totalorder %s24, 1
      %p127 = por %p125, %p126
      %p129 = scmp.ne.s32.totalorder %s112, %s128
      %p130 = scmp.eq.s32.totalorder %s24, 0
      %p131 = por %p129, %p130
      %s132 = ssub.s32 %s25, %s37
      %p133 = scmp.eq.s32.totalorder %s132, 0
      %s135 = sadd.s32 %s134, 1
      %s136 = scalar_select %p133, %s134, %s135
      %p139 = pneg %p133
      %p140 = scmp.eq.s32.totalorder %s18, 1
      %p141 = por %p139, %p140
      %p142 = scmp.ne.s32.totalorder %s134, %s137
      %p143 = scmp.eq.s32.totalorder %s18, 0
      %p144 = por %p142, %p143
      %p145 = scmp.ne.s32.totalorder %s134, %s137
      %p146 = scmp.eq.s32.totalorder %s23, 1
      %p147 = por %p145, %p146
      %p148 = scmp.ne.s32.totalorder %s137, %s138
      %p149 = scmp.eq.s32.totalorder %s23, 0
      %p150 = por %p148, %p149
      %p151 = scmp.ne.s32.totalorder %s137, %s138
      %p152 = scmp.eq.s32.totalorder %s24, 1
      %p153 = por %p151, %p152
      %p155 = scmp.ne.s32.totalorder %s138, %s154
      %p156 = scmp.eq.s32.totalorder %s24, 0
      %p157 = por %p155, %p156
      %s158 = ssub.s32 %s25, %s37
      %p159 = scmp.eq.s32.totalorder %s158, 0
      %s161 = sadd.s32 %s160, 1
      %s162 = scalar_select %p159, %s160, %s161
      %p165 = pneg %p159
      %p166 = scmp.eq.s32.totalorder %s18, 1
      %p167 = por %p165, %p166
      %p168 = scmp.ne.s32.totalorder %s160, %s163
      %p169 = scmp.eq.s32.totalorder %s18, 0
      %p170 = por %p168, %p169
      %p171 = scmp.ne.s32.totalorder %s160, %s163
      %p172 = scmp.eq.s32.totalorder %s23, 1
      %p173 = por %p171, %p172
      %p174 = scmp.ne.s32.totalorder %s163, %s164
      %p175 = scmp.eq.s32.totalorder %s23, 0
      %p176 = por %p174, %p175
      %p177 = scmp.ne.s32.totalorder %s163, %s164
      %p178 = scmp.eq.s32.totalorder %s24, 1
      %p179 = por %p177, %p178
      %p181 = scmp.ne.s32.totalorder %s164, %s180
      %p182 = scmp.eq.s32.totalorder %s24, 0
      %p183 = por %p181, %p182
      %s184 = ssub.s32 %s25, %s37
      %s185 = ssub.s32 %s26, %s33
      %s186 = sor.u32 %s184, %s185
      %p187 = scmp.eq.s32.totalorder %s186, 0
      %s189 = sadd.s32 %s188, 1
      %s190 = scalar_select %p187, %s188, %s189
      %p193 = pneg %p187
      %p194 = scmp.eq.s32.totalorder %s18, 1
      %p195 = por %p193, %p194
      %p196 = scmp.ne.s32.totalorder %s188, %s191
      %p197 = scmp.eq.s32.totalorder %s18, 0
      %p198 = por %p196, %p197
      %p199 = scmp.ne.s32.totalorder %s188, %s191
      %p200 = scmp.eq.s32.totalorder %s23, 1
      %p201 = por %p199, %p200
      %p202 = scmp.ne.s32.totalorder %s191, %s192
      %p203 = scmp.eq.s32.totalorder %s23, 0
      %p204 = por %p202, %p203
      %p205 = scmp.ne.s32.totalorder %s191, %s192
      %p206 = scmp.eq.s32.totalorder %s24, 1
      %p207 = por %p205, %p206
      %p209 = scmp.ne.s32.totalorder %s192, %s208
      %p210 = scmp.eq.s32.totalorder %s24, 0
      %p211 = por %p209, %p210
      %s212 = ssub.s32 %s25, %s37
      %s213 = ssub.s32 %s26, %s33
      %s214 = sor.u32 %s212, %s213
      %p215 = scmp.eq.s32.totalorder %s214, 0
      %s217 = sadd.s32 %s216, 1
      %s218 = scalar_select %p215, %s216, %s217
      %p221 = pneg %p215
      %p222 = scmp.eq.s32.totalorder %s18, 1
      %p223 = por %p221, %p222
      %p224 = scmp.ne.s32.totalorder %s216, %s219
      %p225 = scmp.eq.s32.totalorder %s18, 0
      %p226 = por %p224, %p225
      %p227 = scmp.ne.s32.totalorder %s216, %s219
      %p228 = scmp.eq.s32.totalorder %s23, 1
      %p229 = por %p227, %p228
      %p230 = scmp.ne.s32.totalorder %s219, %s220
      %p231 = scmp.eq.s32.totalorder %s23, 0
      %p232 = por %p230, %p231
      %p233 = scmp.ne.s32.totalorder %s219, %s220
      %p234 = scmp.eq.s32.totalorder %s24, 1
      %p235 = por %p233, %p234
      %p237 = scmp.ne.s32.totalorder %s220, %s236
      %p238 = scmp.eq.s32.totalorder %s24, 0
      %p239 = por %p237, %p238
      %p240 = scmp.le.s32.totalorder 1, %s18
      %p241 = scmp.lt.s32.totalorder %s18, 3
      %p242 = pnand %p240, %p241
      %p243 = pneg %p242
      // Predicated region
      $region9: #{attn_res_block_up.6} parent=5 // pred_check
        _
      $region10: #{attn_res_block_up.6} parent=5 // pred_check_branch
        %245 = sbr.rel (%p242) target = $region12
      $region11: #{attn_res_block_up.6} parent=5 // pred_region
        %s246 = ssub.s32 %s18, 1
        // Predicated region
        $region13: #{attn_res_block_up.6} parent=11 // pred_check
          %p247 = pneg %p51
        $region14: #{attn_res_block_up.6} parent=11 // pred_check_branch
          %249 = sbr.rel (%p247) target = $region16
        $region15: #{attn_res_block_up.6} parent=11 // pred_region
          %s251 = ssub.s32 256, 256
          %252 = vsyncadd [#allocation3], %s251
          %s253 = sshll.u32 [#allocation2], 4
          %s254 = int_to_ptr.vmem [resolvable:$true] %s253
          %259 = dma.hbm_to_vmem [thread:$0]  %s0, 256, %s254, [#allocation3], 64, 64, 4
        $region16: #{attn_res_block_up.6} parent=11 // pred_fallthru
          _
        // Predicated region
        $region17: #{attn_res_block_up.6} parent=11 // pred_check
          %p260 = pneg %p72
        $region18: #{attn_res_block_up.6} parent=11 // pred_check_branch
          %262 = sbr.rel (%p260) target = $region20
        $region19: #{attn_res_block_up.6} parent=11 // pred_region
          %s264 = ssub.s32 256, 256
          %265 = vsyncadd [#allocation6], %s264
          %s266 = sshll.u32 [#allocation5], 4
          %s267 = int_to_ptr.vmem [resolvable:$true] %s266
          %272 = dma.hbm_to_vmem [thread:$0]  %s1, 256, %s267, [#allocation6], 64, 64, 4
        $region20: #{attn_res_block_up.6} parent=11 // pred_fallthru
          _
      $region12: #{attn_res_block_up.6} parent=5 // pred_fallthru
        _
      %p273 = scmp.lt.s32.totalorder %s18, 2
      // Predicated region
      $region21: #{attn_res_block_up.6} parent=5 // pred_check
        %p274 = pneg %p273
      $region22: #{attn_res_block_up.6} parent=5 // pred_check_branch
        %276 = sbr.rel (%p274) target = $region24
      $region23: #{attn_res_block_up.6} parent=5 // pred_region
        // Predicated region
        $region25: #{attn_res_block_up.6} parent=23 // pred_check
          %p277 = pneg %p92
        $region26: #{attn_res_block_up.6} parent=23 // pred_check_branch
          %279 = sbr.rel (%p277) target = $region28
        $region27: #{attn_res_block_up.6} parent=23 // pred_region
          %s280 = sand.u32 %s18, 1
          %s281 = scalar_lea.sflag [#allocation3], %s280
          %s282 = sand.u32 %s82, 1
          %s283 = smul.addr %s282, 16
          %s284 = scalar_lea.vmem [#allocation7], %s283
          %s286 = ssub.s32 256, 256
          %287 = vsyncadd %s281, %s286
          %s288 = smul.addr %s25, 4
          %s289 = smul.addr %s288, 64
          %s290 = scalar_lea.hbm %s2, %s289
          %s291 = sshll.u32 %s284, 4
          %s292 = int_to_ptr.vmem [resolvable:$true] %s291
          %297 = dma.hbm_to_vmem [thread:$0]  %s290, 256, %s292, %s281, 64, 64, 4
        $region28: #{attn_res_block_up.6} parent=23 // pred_fallthru
          _
        // Predicated region
        $region29: #{attn_res_block_up.6} parent=23 // pred_check
          %p298 = pneg %p118
        $region30: #{attn_res_block_up.6} parent=23 // pred_check_branch
          %300 = sbr.rel (%p298) target = $region32
        $region31: #{attn_res_block_up.6} parent=23 // pred_region
          %s301 = sand.u32 %s18, 1
          %s302 = scalar_lea.sflag [#allocation3], %s301
          %s303 = sand.u32 %s108, 1
          %s304 = smul.addr %s303, 16
          %s305 = scalar_lea.vmem [#allocation8], %s304
          %s307 = ssub.s32 256, 256
          %308 = vsyncadd %s302, %s307
          %s309 = smul.addr %s25, 4
          %s310 = smul.addr %s309, 64
          %s311 = scalar_lea.hbm %s3, %s310
          %s312 = sshll.u32 %s305, 4
          %s313 = int_to_ptr.vmem [resolvable:$true] %s312
          %318 = dma.hbm_to_vmem [thread:$0]  %s311, 256, %s313, %s302, 64, 64, 4
        $region32: #{attn_res_block_up.6} parent=23 // pred_fallthru
          _
        // Predicated region
        $region33: #{attn_res_block_up.6} parent=23 // pred_check
          %p319 = pneg %p144
        $region34: #{attn_res_block_up.6} parent=23 // pred_check_branch
          %321 = sbr.rel (%p319) target = $region36
        $region35: #{attn_res_block_up.6} parent=23 // pred_region
          %s322 = sand.u32 %s18, 1
          %s323 = scalar_lea.sflag [#allocation3], %s322
          %s324 = sand.u32 %s134, 1
          %s325 = smul.addr %s324, 16
          %s326 = scalar_lea.vmem [#allocation9], %s325
          %s328 = ssub.s32 256, 256
          %329 = vsyncadd %s323, %s328
          %s330 = smul.addr %s25, 2
          %s331 = smul.addr %s330, 128
          %s332 = scalar_lea.hbm %s4, %s331
          %s333 = sshll.u32 %s326, 4
          %s334 = int_to_ptr.vmem [resolvable:$true] %s333
          %339 = dma.hbm_to_vmem [thread:$0]  %s332, 256, %s334, %s323, 128, 128, 8
        $region36: #{attn_res_block_up.6} parent=23 // pred_fallthru
          _
        // Predicated region
        $region37: #{attn_res_block_up.6} parent=23 // pred_check
          %p340 = pneg %p170
        $region38: #{attn_res_block_up.6} parent=23 // pred_check_branch
          %342 = sbr.rel (%p340) target = $region40
        $region39: #{attn_res_block_up.6} parent=23 // pred_region
          %s343 = sand.u32 %s18, 1
          %s344 = scalar_lea.sflag [#allocation3], %s343
          %s345 = sand.u32 %s160, 1
          %s346 = smul.addr %s345, 16
          %s347 = scalar_lea.vmem [#allocation10], %s346
          %s349 = ssub.s32 256, 256
          %350 = vsyncadd %s344, %s349
          %s351 = smul.addr %s25, 2
          %s352 = smul.addr %s351, 128
          %s353 = scalar_lea.hbm %s5, %s352
          %s354 = sshll.u32 %s347, 4
          %s355 = int_to_ptr.vmem [resolvable:$true] %s354
          %360 = dma.hbm_to_vmem [thread:$0]  %s353, 256, %s355, %s344, 128, 128, 8
        $region40: #{attn_res_block_up.6} parent=23 // pred_fallthru
          _
        // Predicated region
        $region41: #{attn_res_block_up.6} parent=23 // pred_check
          %p361 = pneg %p198
        $region42: #{attn_res_block_up.6} parent=23 // pred_check_branch
          %363 = sbr.rel (%p361) target = $region44
        $region43: #{attn_res_block_up.6} parent=23 // pred_region
          %s364 = sand.u32 %s18, 1
          %s365 = scalar_lea.sflag [#allocation3], %s364
          %s366 = sand.u32 %s188, 1
          %s367 = smul.addr %s366, 16
          %s368 = scalar_lea.vmem [#allocation11], %s367
          %s369 = smul.u32 2, %s26
          %s371 = ssub.s32 256, 256
          %372 = vsyncadd %s365, %s371
          %s373 = smul.addr %s25, 4
          %s374 = sadd.s32 %s369, %s373
          %s375 = smul.addr %s374, 64
          %s376 = scalar_lea.hbm %s6, %s375
          %s377 = sshll.u32 %s368, 4
          %s378 = int_to_ptr.vmem [resolvable:$true] %s377
          %383 = dma.hbm_to_vmem [thread:$0]  %s376, 256, %s378, %s365, 128, 128, 8
        $region44: #{attn_res_block_up.6} parent=23 // pred_fallthru
          _
      $region24: #{attn_res_block_up.6} parent=5 // pred_fallthru
        _
      %p384 = scmp.le.s32.totalorder 1, %s18
      %p385 = scmp.lt.s32.totalorder %s18, 3
      %p386 = pnand %p384, %p385
      %p387 = pneg %p386
      // Predicated region
      $region45: #{attn_res_block_up.6} parent=5 // pred_check
        _
      $region46: #{attn_res_block_up.6} parent=5 // pred_check_branch
        %389 = sbr.rel (%p386) target = $region48
      $region47: #{attn_res_block_up.6} parent=5 // pred_region
        %s390 = ssub.s32 %s18, 1
        // Predicated region
        $region49: #{attn_res_block_up.6} parent=47 // pred_check
          %p391 = pneg %p51
        $region50: #{attn_res_block_up.6} parent=47 // pred_check_branch
          %393 = sbr.rel (%p391) target = $region52
        $region51: #{attn_res_block_up.6} parent=47 // pred_region
          %394 = dma.done [#allocation3], 256
        $region52: #{attn_res_block_up.6} parent=47 // pred_fallthru
          _
        // Predicated region
        $region53: #{attn_res_block_up.6} parent=47 // pred_check
          %p395 = pneg %p72
        $region54: #{attn_res_block_up.6} parent=47 // pred_check_branch
          %397 = sbr.rel (%p395) target = $region56
        $region55: #{attn_res_block_up.6} parent=47 // pred_region
          %398 = dma.done [#allocation6], 256
        $region56: #{attn_res_block_up.6} parent=47 // pred_fallthru
          _
        %s399 = sand.u32 %s23, 1
        %s400 = scalar_lea.sflag [#allocation3], %s399
        %s401 = sand.u32 %s85, 1
        %s402 = smul.addr %s401, 16
        %s403 = scalar_lea.vmem [#allocation7], %s402
        // Predicated region
        $region57: #{attn_res_block_up.6} parent=47 // pred_check
          %p404 = pneg %p98
        $region58: #{attn_res_block_up.6} parent=47 // pred_check_branch
          %406 = sbr.rel (%p404) target = $region60
        $region59: #{attn_res_block_up.6} parent=47 // pred_region
          %407 = dma.done %s400, 256
        $region60: #{attn_res_block_up.6} parent=47 // pred_fallthru
          _
        %s408 = sand.u32 %s23, 1
        %s409 = scalar_lea.sflag [#allocation3], %s408
        %s410 = sand.u32 %s111, 1
        %s411 = smul.addr %s410, 16
        %s412 = scalar_lea.vmem [#allocation8], %s411
        // Predicated region
        $region61: #{attn_res_block_up.6} parent=47 // pred_check
          %p413 = pneg %p124
        $region62: #{attn_res_block_up.6} parent=47 // pred_check_branch
          %415 = sbr.rel (%p413) target = $region64
        $region63: #{attn_res_block_up.6} parent=47 // pred_region
          %416 = dma.done %s409, 256
        $region64: #{attn_res_block_up.6} parent=47 // pred_fallthru
          _
        %s417 = sand.u32 %s23, 1
        %s418 = scalar_lea.sflag [#allocation3], %s417
        %s419 = sand.u32 %s137, 1
        %s420 = smul.addr %s419, 16
        %s421 = scalar_lea.vmem [#allocation9], %s420
        // Predicated region
        $region65: #{attn_res_block_up.6} parent=47 // pred_check
          %p422 = pneg %p150
        $region66: #{attn_res_block_up.6} parent=47 // pred_check_branch
          %424 = sbr.rel (%p422) target = $region68
        $region67: #{attn_res_block_up.6} parent=47 // pred_region
          %425 = dma.done %s418, 256
        $region68: #{attn_res_block_up.6} parent=47 // pred_fallthru
          _
        %s426 = sand.u32 %s23, 1
        %s427 = scalar_lea.sflag [#allocation3], %s426
        %s428 = sand.u32 %s163, 1
        %s429 = smul.addr %s428, 16
        %s430 = scalar_lea.vmem [#allocation10], %s429
        // Predicated region
        $region69: #{attn_res_block_up.6} parent=47 // pred_check
          %p431 = pneg %p176
        $region70: #{attn_res_block_up.6} parent=47 // pred_check_branch
          %433 = sbr.rel (%p431) target = $region72
        $region71: #{attn_res_block_up.6} parent=47 // pred_region
          %434 = dma.done %s427, 256
        $region72: #{attn_res_block_up.6} parent=47 // pred_fallthru
          _
        %s435 = sand.u32 %s23, 1
        %s436 = scalar_lea.sflag [#allocation3], %s435
        %s437 = sand.u32 %s191, 1
        %s438 = smul.addr %s437, 16
        %s439 = scalar_lea.vmem [#allocation11], %s438
        // Predicated region
        $region73: #{attn_res_block_up.6} parent=47 // pred_check
          %p440 = pneg %p204
        $region74: #{attn_res_block_up.6} parent=47 // pred_check_branch
          %442 = sbr.rel (%p440) target = $region76
        $region75: #{attn_res_block_up.6} parent=47 // pred_region
          %443 = dma.done %s436, 256
        $region76: #{attn_res_block_up.6} parent=47 // pred_fallthru
          _
        %p444 = pneg %p51
        %p445 = pneg %p48
        %p446 = pneg %p72
        %p447 = pneg %p69
        %s448 = sand.u32 %s23, 1
        %s449 = scalar_lea.sflag [#allocation3], %s448
        %s450 = sand.u32 %s85, 1
        %s451 = smul.addr %s450, 16
        %s452 = scalar_lea.vmem [#allocation7], %s451
        %p453 = pneg %p98
        %p454 = pneg %p95
        %s455 = sand.u32 %s23, 1
        %s456 = scalar_lea.sflag [#allocation3], %s455
        %s457 = sand.u32 %s111, 1
        %s458 = smul.addr %s457, 16
        %s459 = scalar_lea.vmem [#allocation8], %s458
        %p460 = pneg %p124
        %p461 = pneg %p121
        %s462 = sand.u32 %s23, 1
        %s463 = scalar_lea.sflag [#allocation3], %s462
        %s464 = sand.u32 %s137, 1
        %s465 = smul.addr %s464, 16
        %s466 = scalar_lea.vmem [#allocation9], %s465
        %p467 = pneg %p150
        %p468 = pneg %p147
        %s469 = sand.u32 %s23, 1
        %s470 = scalar_lea.sflag [#allocation3], %s469
        %s471 = sand.u32 %s163, 1
        %s472 = smul.addr %s471, 16
        %s473 = scalar_lea.vmem [#allocation10], %s472
        %p474 = pneg %p176
        %p475 = pneg %p173
        %s476 = sand.u32 %s23, 1
        %s477 = scalar_lea.sflag [#allocation3], %s476
        %s478 = sand.u32 %s191, 1
        %s479 = smul.addr %s478, 16
        %s480 = scalar_lea.vmem [#allocation11], %s479
        %p481 = pneg %p204
        %p482 = pneg %p201
        %p483 = pneg %p232
        %p484 = pneg %p229
        %s485 = sand.u32 %s219, 1
        %s486 = scalar_lea.sflag [#allocation4], %s485
        %s487 = sand.u32 %s219, 1
        %s488 = smul.addr %s487, 16
        %s489 = scalar_lea.vmem [#allocation12], %s488
        %s490 = smul.u32 2, %s28
        %s491 = smul.u32 2, %s28
        %v493 = vld [vmem:[%s439] sm:$0xff]
        %v494 = vld [vmem:[%s439 + $0x8] sm:$0xff]
        %v495 = vunpack.c.l.bf16 %v493
        %v496 = vunpack.c.h.bf16 %v493
        %v497 = vunpack.c.l.bf16 %v494
        %v498 = vunpack.c.h.bf16 %v494
        %v499 = vld [vmem:[%s430] sm:$0xff]
        %v500 = vld [vmem:[%s430 + $0x8] sm:$0xff]
        %v501 = vld [vmem:[#allocation2] sm:$0xf]
        %v502 = vld [vmem:[#allocation2 + $0x4] sm:$0xf]
        %v503 = vld [vmem:[#allocation2 + $0x8] sm:$0xf]
        %v504 = vld [vmem:[#allocation2 + $0xc] sm:$0xf]
        %v509 = vunpack.c.l.b16 %v501
        %v510 = vunpack.c.l.b16 %v502
        %v511 = vunpack.c.l.b16 %v503
        %v512 = vunpack.c.l.b16 %v504
        %v513 = vpack.c.b16 %v510, %v509
        %v514 = vpack.c.b16 %v512, %v511
        %v517 = vunpack.c.l.b16 %v493
        %v518 = vunpack.c.h.b16 %v493
        %v519 = vunpack.c.l.b16 %v494
        %v520 = vunpack.c.h.b16 %v494
        %v521 = vpack.c.b16 %v519, %v517
        %v522 = vpack.c.b16 %v520, %v518
        %vm525 = vcmask 130048
        %v527 = vsel %vm525, %v513, 0
        %v530 = vsel %vm525, %v514, 0
        %532 = vmatprep.subr.bf16.mxu0 %v522
        %533 = vmatpush1.bf16.msra.mxu0 %v521
        %534 = vmatprep.subr.bf16.mxu0 0
        %535 = vmatpush1.bf16.msra.mxu0 0
        %536 = vmatprep.subr.bf16.mxu0 0
        %537 = vmatpush1.bf16.msra.mxu0 0
        %538 = vmatprep.subr.bf16.mxu0 0
        %539 = vmatpush1.bf16.msra.mxu0 0
        %540 = vmatprep.subr.bf16.mxu0 0
        %541 = vmatpush1.bf16.msra.mxu0 0
        %542 = vmatprep.subr.bf16.mxu0 0
        %543 = vmatpush1.bf16.msra.mxu0 0
        %544 = vmatprep.subr.bf16.mxu0 0
        %545 = vmatpush1.bf16.msra.mxu0 0
        %546 = vmatprep.subr.bf16.mxu0 0
        %547 = vmatpush1.bf16.msra.mxu0 0
        %548 = vmatprep.subr.bf16.mxu0 0
        %549 = vmatpush1.bf16.msra.mxu0 0
        %550 = vmatprep.subr.bf16.mxu0 0
        %551 = vmatpush1.bf16.msra.mxu0 0
        %552 = vmatprep.subr.bf16.mxu0 0
        %553 = vmatpush1.bf16.msra.mxu0 0
        %554 = vmatprep.subr.bf16.mxu0 0
        %555 = vmatpush1.bf16.msra.mxu0 0
        %556 = vmatprep.subr.bf16.mxu0 0
        %557 = vmatpush1.bf16.msra.mxu0 0
        %558 = vmatprep.subr.bf16.mxu0 0
        %559 = vmatpush1.bf16.msra.mxu0 0
        %560 = vmatprep.subr.bf16.mxu0 0
        %561 = vmatpush1.bf16.msra.mxu0 0
        %562 = vmatprep.subr.bf16.mxu0 0
        %563 = vmatpush1.bf16.msra.mxu0 0
        %564 = vmatprep.mubr.bf16.mxu0 0
        %565 = vmatmul.mubr.bf16.gmra.mrb[0].mxu0 %v527
        %v566 = vpop.f32.mrb[0].mxu0
        %v567 = vadd.f32 0.0, %v566
        %v568 = vpop.f32.mrb[0].mxu0
        %v569 = vadd.f32 0.0, %v568
        %v570 = vpop.f32.mrb[0].mxu0
        %v571 = vadd.f32 0.0, %v570
        %v572 = vpop.f32.mrb[0].mxu0
        %v573 = vadd.f32 0.0, %v572
        %574 = vmatprep.mubr.bf16.mxu0 0
        %575 = vmatmul.mubr.bf16.gmra.mrb[0].mxu0 %v530
        %v576 = vpop.f32.mrb[0].mxu0
        %v577 = vadd.f32 0.0, %v576
        %v578 = vpop.f32.mrb[0].mxu0
        %v579 = vadd.f32 0.0, %v578
        %v580 = vpop.f32.mrb[0].mxu0
        %v581 = vadd.f32 0.0, %v580
        %v582 = vpop.f32.mrb[0].mxu0
        %v583 = vadd.f32 0.0, %v582
        %584 = vdwg.mxu0
        %v585 = vmul.f32 %v567, %v567
        %v586 = vmul.f32 %v569, %v569
        %v587 = vmul.f32 %v571, %v571
        %v588 = vmul.f32 %v573, %v573
        %v589 = vmul.f32 %v577, %v577
        %v590 = vmul.f32 %v579, %v579
        %v591 = vmul.f32 %v581, %v581
        %v592 = vmul.f32 %v583, %v583
        %v593 = vadd.f32 %v585, %v587
        %v594 = vadd.f32 %v593, %v589
        %v595 = vadd.f32 %v594, %v591
        %v596 = vrot.slane %v595, 4
        %v597 = vadd.f32 %v595, %v596
        %v598 = vrot.slane %v597, 2
        %v599 = vadd.f32 %v597, %v598
        %v600 = vrot.slane %v599, 1
        %v601 = vadd.f32 %v599, %v600
        %v602 = vadd.f32 %v586, %v588
        %v603 = vadd.f32 %v602, %v590
        %v604 = vadd.f32 %v603, %v592
        %v605 = vrot.slane %v604, 4
        %v606 = vadd.f32 %v604, %v605
        %v607 = vrot.slane %v606, 2
        %v608 = vadd.f32 %v606, %v607
        %v609 = vrot.slane %v608, 1
        %v610 = vadd.f32 %v608, %v609
        %v611 = vmax.f32 %v601, 1e-24
        %v612 = vmax.f32 %v610, 1e-24
        %v613 = vrsqrt.pop %v611
        %v614 = vrsqrt.pop %v612
        %v615 = vmul.f32 %v567, %v613
        %v616 = vmul.f32 %v569, %v614
        %v617 = vmul.f32 %v571, %v613
        %v618 = vmul.f32 %v573, %v614
        %v619 = vmul.f32 %v577, %v613
        %v620 = vmul.f32 %v579, %v614
        %v621 = vmul.f32 %v581, %v613
        %v622 = vmul.f32 %v583, %v614
        %v623 = vld [vmem:[%s412] sm:$0xf]
        %v624 = vld [vmem:[%s412 + $0x4] sm:$0xf]
        %v625 = vld [vmem:[%s412 + $0x8] sm:$0xf]
        %v626 = vld [vmem:[%s412 + $0xc] sm:$0xf]
        %v627 = vpack.c.bf16 %v617, %v615
        %v628 = vpack.c.bf16 %v618, %v616
        %v629 = vpack.c.bf16 %v621, %v619
        %v630 = vpack.c.bf16 %v622, %v620
        %v631 = vld [vmem:[%s421] sm:$0xff]
        %v632 = vld [vmem:[%s421 + $0x8] sm:$0xff]
        %634 = vset.pattern.permute.xlu0 0
        %635 = vperm.xlu0 %634, %v631
        %v636 = vpop.permute.xlu0 %635
        %639 = vset.pattern.permute.xlu0 0
        %640 = vperm.xlu0 %639, %v632
        %v641 = vpop.permute.xlu0 %640
        %v647 = vunpack.c.l.b16 %v623
        %v648 = vunpack.c.l.b16 %v624
        %v649 = vunpack.c.l.b16 %v625
        %v650 = vunpack.c.l.b16 %v626
        %v651 = vpack.c.b16 %v648, %v647
        %v652 = vpack.c.b16 %v650, %v649
        %655 = vxpose.xlu0.c.b16.start [1/8] %v651, 128
        %656 = vxpose.xlu0.c.b16.cont [2/8] %v652, 128
        %657 = vxpose.xlu0.c.b16.cont [3/8] 0, 128
        %658 = vxpose.xlu0.c.b16.cont [4/8] 0, 128
        %659 = vxpose.xlu0.c.b16.cont [5/8] 0, 128
        %660 = vxpose.xlu0.c.b16.cont [6/8] 0, 128
        %661 = vxpose.xlu0.c.b16.cont [7/8] 0, 128
        %662 = vxpose.xlu0.c.b16.end [8/8] 0, 128
        %v663 = vpop.trf.xlu0
        %v664 = vpop.trf.xlu0
        %v665 = vpop.trf.xlu0
        %v666 = vpop.trf.xlu0
        %v667 = vpop.trf.xlu0
        %v668 = vpop.trf.xlu0
        %v669 = vpop.trf.xlu0
        %v670 = vpop.trf.xlu0
        %vm671 = vcmask 261120
        %v673 = vsel %vm671, %v663, 0
        %675 = vmatprep.subr.bf16.mxu0 %v628
        %676 = vmatpush1.bf16.msra.mxu0 %v627
        %677 = vmatprep.subr.bf16.mxu0 %v630
        %678 = vmatpush1.bf16.msra.mxu0 %v629
        %679 = vmatprep.subr.bf16.mxu0 0
        %680 = vmatpush1.bf16.msra.mxu0 0
        %681 = vmatprep.subr.bf16.mxu0 0
        %682 = vmatpush1.bf16.msra.mxu0 0
        %683 = vmatprep.subr.bf16.mxu0 0
        %684 = vmatpush1.bf16.msra.mxu0 0
        %685 = vmatprep.subr.bf16.mxu0 0
        %686 = vmatpush1.bf16.msra.mxu0 0
        %687 = vmatprep.subr.bf16.mxu0 0
        %688 = vmatpush1.bf16.msra.mxu0 0
        %689 = vmatprep.subr.bf16.mxu0 0
        %690 = vmatpush1.bf16.msra.mxu0 0
        %691 = vmatprep.subr.bf16.mxu0 0
        %692 = vmatpush1.bf16.msra.mxu0 0
        %693 = vmatprep.subr.bf16.mxu0 0
        %694 = vmatpush1.bf16.msra.mxu0 0
        %695 = vmatprep.subr.bf16.mxu0 0
        %696 = vmatpush1.bf16.msra.mxu0 0
        %697 = vmatprep.subr.bf16.mxu0 0
        %698 = vmatpush1.bf16.msra.mxu0 0
        %699 = vmatprep.subr.bf16.mxu0 0
        %700 = vmatpush1.bf16.msra.mxu0 0
        %701 = vmatprep.subr.bf16.mxu0 0
        %702 = vmatpush1.bf16.msra.mxu0 0
        %703 = vmatprep.subr.bf16.mxu0 0
        %704 = vmatpush1.bf16.msra.mxu0 0
        %705 = vmatprep.subr.bf16.mxu0 0
        %706 = vmatpush1.bf16.msra.mxu0 0
        %707 = vmatprep.mubr.bf16.mxu0 0
        %708 = vmatmul.mubr.bf16.gmra.mrb[0].mxu0 %v673
        %v709 = vpop.f32.mrb[0].mxu0
        %v710 = vadd.f32 %v636, %v709
        %v711 = vpop.f32.mrb[0].mxu0
        %v712 = vadd.f32 %v636, %v711
        %v713 = vpop.f32.mrb[0].mxu0
        %v714 = vadd.f32 %v641, %v713
        %v715 = vpop.f32.mrb[0].mxu0
        %v716 = vadd.f32 %v641, %v715
        %717 = vdwg.mxu0
        %v718 = vmax.f32 %v710, %v714
        %v719 = vrot.slane %v718, 4
        %v720 = vmax.f32 %v718, %v719
        %v721 = vrot.slane %v720, 2
        %v722 = vmax.f32 %v720, %v721
        %v723 = vrot.slane %v722, 1
        %v724 = vmax.f32 %v722, %v723
        %v725 = vmax.f32 %v712, %v716
        %v726 = vrot.slane %v725, 4
        %v727 = vmax.f32 %v725, %v726
        %v728 = vrot.slane %v727, 2
        %v729 = vmax.f32 %v727, %v728
        %v730 = vrot.slane %v729, 1
        %v731 = vmax.f32 %v729, %v730
        %v732 = vsub.f32 %v710, %v724
        %v733 = vsub.f32 %v712, %v731
        %v734 = vsub.f32 %v714, %v724
        %v735 = vsub.f32 %v716, %v731
        %v736 = vmul.f32 %v732, 1.442695
        %v737 = vpow.pop %v736
        %v738 = vmul.f32 %v733, 1.442695
        %v739 = vpow.pop %v738
        %v740 = vmul.f32 %v734, 1.442695
        %v741 = vpow.pop %v740
        %v742 = vmul.f32 %v735, 1.442695
        %v743 = vpow.pop %v742
        %v744 = vadd.f32 %v737, %v741
        %v745 = vrot.slane %v744, 4
        %v746 = vadd.f32 %v744, %v745
        %v747 = vrot.slane %v746, 2
        %v748 = vadd.f32 %v746, %v747
        %v749 = vrot.slane %v748, 1
        %v750 = vadd.f32 %v748, %v749
        %v751 = vadd.f32 %v739, %v743
        %v752 = vrot.slane %v751, 4
        %v753 = vadd.f32 %v751, %v752
        %v754 = vrot.slane %v753, 2
        %v755 = vadd.f32 %v753, %v754
        %v756 = vrot.slane %v755, 1
        %v757 = vadd.f32 %v755, %v756
        %v758 = vrcp.pop %v750
        %v759 = vrcp.pop %v757
        %v760 = vmul.f32 %v737, %v758
        %v761 = vmul.f32 %v739, %v759
        %v762 = vmul.f32 %v741, %v758
        %v763 = vmul.f32 %v743, %v759
        %v764 = vpack.c.bf16 %v762, %v760
        %v765 = vpack.c.bf16 %v763, %v761
        %v766 = vld [vmem:[%s403] sm:$0xf]
        %v767 = vld [vmem:[%s403 + $0x4] sm:$0xf]
        %v768 = vld [vmem:[%s403 + $0x8] sm:$0xf]
        %v769 = vld [vmem:[%s403 + $0xc] sm:$0xf]
        %v774 = vunpack.c.l.b16 %v766
        %v775 = vunpack.c.l.b16 %v767
        %v776 = vunpack.c.l.b16 %v768
        %v777 = vunpack.c.l.b16 %v769
        %v778 = vpack.c.b16 %v775, %v774
        %v779 = vpack.c.b16 %v777, %v776
        %v781 = vsel %vm525, %v778, 0
        %v784 = vsel %vm525, %v779, 0
        %786 = vmatprep.subr.bf16.mxu0 %v765
        %787 = vmatpush1.bf16.msra.mxu0 %v764
        %788 = vmatprep.subr.bf16.mxu0 0
        %789 = vmatpush1.bf16.msra.mxu0 0
        %790 = vmatprep.subr.bf16.mxu0 0
        %791 = vmatpush1.bf16.msra.mxu0 0
        %792 = vmatprep.subr.bf16.mxu0 0
        %793 = vmatpush1.bf16.msra.mxu0 0
        %794 = vmatprep.subr.bf16.mxu0 0
        %795 = vmatpush1.bf16.msra.mxu0 0
        %796 = vmatprep.subr.bf16.mxu0 0
        %797 = vmatpush1.bf16.msra.mxu0 0
        %798 = vmatprep.subr.bf16.mxu0 0
        %799 = vmatpush1.bf16.msra.mxu0 0
        %800 = vmatprep.subr.bf16.mxu0 0
        %801 = vmatpush1.bf16.msra.mxu0 0
        %802 = vmatprep.subr.bf16.mxu0 0
        %803 = vmatpush1.bf16.msra.mxu0 0
        %804 = vmatprep.subr.bf16.mxu0 0
        %805 = vmatpush1.bf16.msra.mxu0 0
        %806 = vmatprep.subr.bf16.mxu0 0
        %807 = vmatpush1.bf16.msra.mxu0 0
        %808 = vmatprep.subr.bf16.mxu0 0
        %809 = vmatpush1.bf16.msra.mxu0 0
        %810 = vmatprep.subr.bf16.mxu0 0
        %811 = vmatpush1.bf16.msra.mxu0 0
        %812 = vmatprep.subr.bf16.mxu0 0
        %813 = vmatpush1.bf16.msra.mxu0 0
        %814 = vmatprep.subr.bf16.mxu0 0
        %815 = vmatpush1.bf16.msra.mxu0 0
        %816 = vmatprep.subr.bf16.mxu0 0
        %817 = vmatpush1.bf16.msra.mxu0 0
        %818 = vmatprep.mubr.bf16.mxu0 0
        %819 = vmatmul.mubr.bf16.gmra.mrb[0].mxu0 %v781
        %v820 = vpop.f32.mrb[0].mxu0
        %v821 = vadd.f32 0.0, %v820
        %v822 = vpop.f32.mrb[0].mxu0
        %v823 = vadd.f32 0.0, %v822
        %v824 = vpop.f32.mrb[0].mxu0
        %v825 = vadd.f32 0.0, %v824
        %v826 = vpop.f32.mrb[0].mxu0
        %v827 = vadd.f32 0.0, %v826
        %828 = vmatprep.mubr.bf16.mxu0 0
        %829 = vmatmul.mubr.bf16.gmra.mrb[0].mxu0 %v784
        %v830 = vpop.f32.mrb[0].mxu0
        %v831 = vadd.f32 0.0, %v830
        %v832 = vpop.f32.mrb[0].mxu0
        %v833 = vadd.f32 0.0, %v832
        %v834 = vpop.f32.mrb[0].mxu0
        %v835 = vadd.f32 0.0, %v834
        %v836 = vpop.f32.mrb[0].mxu0
        %v837 = vadd.f32 0.0, %v836
        %838 = vdwg.mxu0
        %v839 = vld [vmem:[#allocation5] sm:$0xf]
        %v840 = vld [vmem:[#allocation5 + $0x4] sm:$0xf]
        %v841 = vld [vmem:[#allocation5 + $0x8] sm:$0xf]
        %v842 = vld [vmem:[#allocation5 + $0xc] sm:$0xf]
        %v843 = vpack.c.bf16 %v825, %v821
        %v844 = vpack.c.bf16 %v827, %v823
        %v845 = vpack.c.bf16 %v835, %v831
        %v846 = vpack.c.bf16 %v837, %v833
        %v851 = vunpack.c.l.b16 %v839
        %v852 = vunpack.c.l.b16 %v840
        %v853 = vunpack.c.l.b16 %v841
        %v854 = vunpack.c.l.b16 %v842
        %v855 = vpack.c.b16 %v852, %v851
        %v856 = vpack.c.b16 %v854, %v853
        %v858 = vsel %vm671, %v855, 0
        %v861 = vsel %vm671, %v856, 0
        %863 = vmatprep.subr.bf16.mxu0 %v844
        %864 = vmatpush1.bf16.msra.mxu0 %v843
        %865 = vmatprep.subr.bf16.mxu0 %v846
        %866 = vmatpush1.bf16.msra.mxu0 %v845
        %867 = vmatprep.subr.bf16.mxu0 0
        %868 = vmatpush1.bf16.msra.mxu0 0
        %869 = vmatprep.subr.bf16.mxu0 0
        %870 = vmatpush1.bf16.msra.mxu0 0
        %871 = vmatprep.subr.bf16.mxu0 0
        %872 = vmatpush1.bf16.msra.mxu0 0
        %873 = vmatprep.subr.bf16.mxu0 0
        %874 = vmatpush1.bf16.msra.mxu0 0
        %875 = vmatprep.subr.bf16.mxu0 0
        %876 = vmatpush1.bf16.msra.mxu0 0
        %877 = vmatprep.subr.bf16.mxu0 0
        %878 = vmatpush1.bf16.msra.mxu0 0
        %879 = vmatprep.subr.bf16.mxu0 0
        %880 = vmatpush1.bf16.msra.mxu0 0
        %881 = vmatprep.subr.bf16.mxu0 0
        %882 = vmatpush1.bf16.msra.mxu0 0
        %883 = vmatprep.subr.bf16.mxu0 0
        %884 = vmatpush1.bf16.msra.mxu0 0
        %885 = vmatprep.subr.bf16.mxu0 0
        %886 = vmatpush1.bf16.msra.mxu0 0
        %887 = vmatprep.subr.bf16.mxu0 0
        %888 = vmatpush1.bf16.msra.mxu0 0
        %889 = vmatprep.subr.bf16.mxu0 0
        %890 = vmatpush1.bf16.msra.mxu0 0
        %891 = vmatprep.subr.bf16.mxu0 0
        %892 = vmatpush1.bf16.msra.mxu0 0
        %893 = vmatprep.subr.bf16.mxu0 0
        %894 = vmatpush1.bf16.msra.mxu0 0
        %895 = vmatprep.mubr.bf16.mxu0 0
        %896 = vmatmul.mubr.bf16.gmra.mrb[0].mxu0 %v858
        %v897 = vpop.f32.mrb[0].mxu0
        %v898 = vadd.f32 0.0, %v897
        %v899 = vpop.f32.mrb[0].mxu0
        %v900 = vadd.f32 0.0, %v899
        %v901 = vpop.f32.mrb[0].mxu0
        %v902 = vadd.f32 0.0, %v901
        %v903 = vpop.f32.mrb[0].mxu0
        %v904 = vadd.f32 0.0, %v903
        %905 = vmatprep.mubr.bf16.mxu0 0
        %906 = vmatmul.mubr.bf16.gmra.mrb[0].mxu0 %v861
        %v907 = vpop.f32.mrb[0].mxu0
        %v908 = vadd.f32 0.0, %v907
        %v909 = vpop.f32.mrb[0].mxu0
        %v910 = vadd.f32 0.0, %v909
        %v911 = vpop.f32.mrb[0].mxu0
        %v912 = vadd.f32 0.0, %v911
        %v913 = vpop.f32.mrb[0].mxu0
        %v914 = vadd.f32 0.0, %v913
        %915 = vdwg.mxu0
        %917 = vset.pattern.permute.xlu0 2
        %918 = vperm.xlu0 %917, %v499
        %v919 = vpop.permute.xlu0 %918
        %922 = vset.pattern.permute.xlu0 2
        %923 = vperm.xlu0 %922, %v500
        %v924 = vpop.permute.xlu0 %923
        %v926 = vadd.f32 %v898, %v919
        %v927 = vadd.f32 %v900, %v919
        %v928 = vadd.f32 %v902, %v924
        %v929 = vadd.f32 %v904, %v924
        %930 = vset.pattern.permute.xlu0 3
        %931 = vperm.xlu0 %930, %v499
        %v932 = vpop.permute.xlu0 %931
        %934 = vset.pattern.permute.xlu0 3
        %935 = vperm.xlu0 %934, %v500
        %v936 = vpop.permute.xlu0 %935
        %v938 = vadd.f32 %v908, %v932
        %v939 = vadd.f32 %v910, %v932
        %v940 = vadd.f32 %v912, %v936
        %v941 = vadd.f32 %v914, %v936
        %942 = vset.pattern.permute.xlu0 0
        %943 = vperm.xlu0 %942, %v499
        %v944 = vpop.permute.xlu0 %943
        %946 = vset.pattern.permute.xlu0 0
        %947 = vperm.xlu0 %946, %v500
        %v948 = vpop.permute.xlu0 %947
        %v950 = vmul.f32 %v495, %v944
        %v951 = vmul.f32 %v496, %v944
        %v952 = vmul.f32 %v497, %v948
        %v953 = vmul.f32 %v498, %v948
        %954 = vset.pattern.permute.xlu0 1
        %955 = vperm.xlu0 %954, %v499
        %v956 = vpop.permute.xlu0 %955
        %958 = vset.pattern.permute.xlu0 1
        %959 = vperm.xlu0 %958, %v500
        %v960 = vpop.permute.xlu0 %959
        %v962 = vadd.f32 %v950, %v956
        %v963 = vadd.f32 %v951, %v956
        %v964 = vadd.f32 %v952, %v960
        %v965 = vadd.f32 %v953, %v960
        %v966 = vmul.f32 %v926, %v962
        %v967 = vmul.f32 %v927, %v963
        %v968 = vmul.f32 %v928, %v964
        %v969 = vmul.f32 %v929, %v965
        %v970 = vadd.f32 %v966, %v938
        %v971 = vadd.f32 %v967, %v939
        %v972 = vadd.f32 %v968, %v940
        %v973 = vadd.f32 %v969, %v941
        %v974 = vmax.f32 %v970, 0.0
        %v975 = vmax.f32 %v971, 0.0
        %v976 = vmax.f32 %v972, 0.0
        %v977 = vmax.f32 %v973, 0.0
        %v978 = vpack.c.bf16 %v976, %v974
        %v979 = vpack.c.bf16 %v977, %v975
        %v982 = vunpack.c.l.b16 %v978
        %v983 = vunpack.c.l.b16 %v979
        %v984 = vunpack.c.h.b16 %v978
        %v985 = vunpack.c.h.b16 %v979
        %v986 = vpack.c.b16 %v983, %v982
        %v987 = vpack.c.b16 %v985, %v984
        %990 = vst [vmem:[%s489] sm:$0xff] %v986
        %991 = vst [vmem:[%s489 + $0x8] sm:$0xff] %v987
        %s992 = sand.u32 %s219, 1
        %s993 = scalar_lea.sflag [#allocation4], %s992
        %s994 = sand.u32 %s219, 1
        %s995 = smul.addr %s994, 16
        %s996 = scalar_lea.vmem [#allocation12], %s995
        // Predicated region
        $region77: #{attn_res_block_up.6} parent=47 // pred_check
          %p997 = pneg %p229
        $region78: #{attn_res_block_up.6} parent=47 // pred_check_branch
          %999 = sbr.rel (%p997) target = $region80
        $region79: #{attn_res_block_up.6} parent=47 // pred_region
          %s1000 = smul.u32 2, %s28
          %s1002 = ssub.s32 256, 256
          %1003 = vsyncadd %s993, %s1002
          %s1004 = smul.addr %s27, 4
          %s1005 = sadd.s32 %s1000, %s1004
          %s1006 = smul.addr %s1005, 64
          %s1007 = scalar_lea.hbm %s7, %s1006
          %s1008 = sshll.u32 %s996, 4
          %s1009 = int_to_ptr.vmem [resolvable:$true] %s1008
          %1014 = dma.vmem_to_hbm [thread:$0]  %s1009, 256, %s1007, %s993, 128, 128, 8
        $region80: #{attn_res_block_up.6} parent=47 // pred_fallthru
          _
      $region48: #{attn_res_block_up.6} parent=5 // pred_fallthru
        _
      %p1015 = scmp.le.s32.totalorder 2, %s18
      // Predicated region
      $region81: #{attn_res_block_up.6} parent=5 // pred_check
        %p1016 = pneg %p1015
      $region82: #{attn_res_block_up.6} parent=5 // pred_check_branch
        %1018 = sbr.rel (%p1016) target = $region84
      $region83: #{attn_res_block_up.6} parent=5 // pred_region
        %s1019 = ssub.s32 %s18, 2
        // Predicated region
        $region85: #{attn_res_block_up.6} parent=83 // pred_check
          %p1020 = pneg %p235
        $region86: #{attn_res_block_up.6} parent=83 // pred_check_branch
          %1022 = sbr.rel (%p1020) target = $region88
        $region87: #{attn_res_block_up.6} parent=83 // pred_region
          %s1023 = sand.u32 %s220, 1
          %s1024 = scalar_lea.sflag [#allocation4], %s1023
          %s1025 = sand.u32 %s220, 1
          %s1026 = smul.addr %s1025, 16
          %s1027 = scalar_lea.vmem [#allocation12], %s1026
          %1028 = dma.done %s1024, 256
        $region88: #{attn_res_block_up.6} parent=83 // pred_fallthru
          _
      $region84: #{attn_res_block_up.6} parent=5 // pred_fallthru
        _
    $region6: #{attn_res_block_up.6} parent=1 // loop_footer
      %s22 = sadd.s32 1, %s18
    $region7: #{attn_res_block_up.6} parent=1 // loop_footer_branch
      %17 = sbr.rel target = $region3
    $region8: #{attn_res_block_up.6} parent=1 // loop_exit
      _
    %1029 = vsyncpa [#allocation3], 1
    %s1030 = scalar_lea.sflag [#allocation3], 1
    %1031 = vsyncpa %s1030, 1
    %1032 = vsyncpa [#allocation6], 1
    %1033 = vsyncpa [#allocation4], 1
    %s1034 = scalar_lea.sflag [#allocation4], 1
    %1035 = vsyncpa %s1034, 1

// kernel: attn_res_block_up.4
$region0: #{attn_res_block_up.4}
  #allocation0 [shape = 'u32[]', space=smem, size = 0x4, offset = 0x4, fixed_abs, tag = 'smem constant byte address 0x4 - core index']
  #allocation1 [shape = 'u32[144,128]{1,0:T(1,128)}', space=vmem, size = 0x12000, scoped, tag = 'internal scratch']
  %s0 = inlined_call_operand.hbm [shape: bf16[32,8], index: 0, kind: input, shape index: {}]
  %s1 = inlined_call_operand.hbm [shape: bf16[16,32], index: 1, kind: input, shape index: {}]
  %s2 = inlined_call_operand.hbm [shape: bf16[2,32,16], index: 2, kind: input, shape index: {}]
  %s3 = inlined_call_operand.hbm [shape: bf16[2,32,16], index: 3, kind: input, shape index: {}]
  %s4 = inlined_call_operand.hbm [shape: f32[2,16,1], index: 4, kind: input, shape index: {}]
  %s5 = inlined_call_operand.hbm [shape: f32[2,8,4], index: 5, kind: input, shape index: {}]
  %s6 = inlined_call_operand.hbm [shape: f32[2,8,64], index: 6, kind: input, shape index: {}]
  %s7 = inlined_call_operand.hbm [shape: bf16[2,8,64], index: 7, kind: output, shape index: {}]
  %s8 = sld [smem:[#allocation0]]
  $region89: #{attn_res_block_up.4} parent=0
    _
  %s10 = ssub.s32 1, %s8
  %s11 = scalar_select 0, %s10, %s8
  $region1: #{attn_res_block_up.4} parent=0
    #allocation2 [shape = 'u8[8192]{0}', space=vmem, size = 0x2000, scoped, tag = 'input window, operand 0, single buffered']
    #allocation3 [shape = 's32[2]{0}', space=sflag, size = 0x8, scoped, tag = 'scoped memory for attn_res_block_up.4']
    #allocation4 [shape = 's32[2]{0}', space=sflag, size = 0x8, scoped, tag = 'scoped memory for attn_res_block_up.4']
    #allocation5 [shape = 'u8[4096]{0}', space=vmem, size = 0x1000, scoped, tag = 'input window, operand 1, single buffered']
    #allocation6 [shape = 's32[1]{0}', space=sflag, size = 0x4, scoped, tag = 'scoped memory for attn_res_block_up.4']
    #allocation7 [shape = 'u8[16384]{0}', space=vmem, size = 0x4000, scoped, tag = 'input window, operand 2']
    #allocation8 [shape = 'u8[16384]{0}', space=vmem, size = 0x4000, scoped, tag = 'input window, operand 3']
    #allocation9 [shape = 'u8[16384]{0}', space=vmem, size = 0x4000, scoped, tag = 'input window, operand 4']
    #allocation10 [shape = 'u8[8192]{0}', space=vmem, size = 0x2000, scoped, tag = 'input window, operand 5']
    #allocation11 [shape = 'u8[8192]{0}', space=vmem, size = 0x2000, scoped, tag = 'input window, operand 6']
    #allocation12 [shape = 'u8[4096]{0}', space=vmem, size = 0x1000, scoped, tag = 'output window, operand 0']
    %12 = vsyncpa [#allocation3], 0
    %13 = vsyncpa [#allocation6], 0
    %14 = vsyncpa [#allocation4], 0
    %s15 = scalar_lea.sflag [#allocation4], 1
    %16 = vsyncpa %s15, 0
    loop: start=0, step=1, limit=4
    $region2: #{attn_res_block_up.4} parent=1 // loop_pre_header
      _
    $region3: #{attn_res_block_up.4} parent=1 // loop_header
      %s18 = sphi 0, %s22
      %p19 = scmp.ge.s32.totalorder %s18, 4
      %s25 = sphi 0, %s37
      %s26 = sphi 0, %s33
      %s27 = sphi 0, %s25
      %s28 = sphi 0, %s26
      %s29 = sphi 0, %s27
      %s30 = sphi 0, %s28
      %s38 = sphi 0, %s38
      %s40 = sphi 0, %s38
      %s41 = sphi 0, %s40
      %s55 = sphi 0, %s41
      %s59 = sphi 0, %s59
      %s61 = sphi 0, %s59
      %s62 = sphi 0, %s61
      %s76 = sphi 0, %s62
      %s82 = sphi 0, %s84
      %s85 = sphi 0, %s82
      %s86 = sphi 0, %s85
      %s102 = sphi 0, %s86
      %s108 = sphi 0, %s110
      %s111 = sphi 0, %s108
      %s112 = sphi 0, %s111
      %s128 = sphi 0, %s112
      %s134 = sphi 0, %s136
      %s137 = sphi 0, %s134
      %s138 = sphi 0, %s137
      %s154 = sphi 0, %s138
      %s160 = sphi 0, %s162
      %s163 = sphi 0, %s160
      %s164 = sphi 0, %s163
      %s180 = sphi 0, %s164
      %s188 = sphi 0, %s190
      %s191 = sphi 0, %s188
      %s192 = sphi 0, %s191
      %s208 = sphi 0, %s192
      %s216 = sphi 0, %s218
      %s219 = sphi 0, %s216
      %s220 = sphi 0, %s219
      %s236 = sphi 0, %s220
    $region4: #{attn_res_block_up.4} parent=1 // loop_header_branch
      %21 = sbr.rel (%p19) target = $region8
    $region5: #{attn_res_block_up.4} parent=1 // loop_body
      %s23 = ssub.s32 %s18, 1
      %s24 = ssub.s32 %s18, 2
      %s31 = sadd.s32 1, %s26
      %p32 = scmp.ge.s32.totalorder %s31, 1
      %s33 = scalar_select %p32, 0, %s31
      %s34 = sadd.s32 1, %s25
      %s35 = scalar_select %p32, %s34, %s25
      %p36 = scmp.ge.s32.totalorder %s35, 2
      %s37 = scalar_select %p36, 0, %s35
      %s39 = sadd.s32 %s38, 1
      %p42 = scmp.eq.s32.totalorder %s18, 1
      %p43 = scmp.ne.s32.totalorder %s38, %s40
      %p44 = scmp.eq.s32.totalorder %s18, 0
      %p45 = por %p43, %p44
      %p46 = scmp.ne.s32.totalorder %s38, %s40
      %p47 = scmp.eq.s32.totalorder %s23, 1
      %p48 = por %p46, %p47
      %p49 = scmp.ne.s32.totalorder %s40, %s41
      %p50 = scmp.eq.s32.totalorder %s23, 0
      %p51 = por %p49, %p50
      %p52 = scmp.ne.s32.totalorder %s40, %s41
      %p53 = scmp.eq.s32.totalorder %s24, 1
      %p54 = por %p52, %p53
      %p56 = scmp.ne.s32.totalorder %s41, %s55
      %p57 = scmp.eq.s32.totalorder %s24, 0
      %p58 = por %p56, %p57
      %s60 = sadd.s32 %s59, 1
      %p63 = scmp.eq.s32.totalorder %s18, 1
      %p64 = scmp.ne.s32.totalorder %s59, %s61
      %p65 = scmp.eq.s32.totalorder %s18, 0
      %p66 = por %p64, %p65
      %p67 = scmp.ne.s32.totalorder %s59, %s61
      %p68 = scmp.eq.s32.totalorder %s23, 1
      %p69 = por %p67, %p68
      %p70 = scmp.ne.s32.totalorder %s61, %s62
      %p71 = scmp.eq.s32.totalorder %s23, 0
      %p72 = por %p70, %p71
      %p73 = scmp.ne.s32.totalorder %s61, %s62
      %p74 = scmp.eq.s32.totalorder %s24, 1
      %p75 = por %p73, %p74
      %p77 = scmp.ne.s32.totalorder %s62, %s76
      %p78 = scmp.eq.s32.totalorder %s24, 0
      %p79 = por %p77, %p78
      %s80 = ssub.s32 %s25, %s37
      %p81 = scmp.eq.s32.totalorder %s80, 0
      %s83 = sadd.s32 %s82, 1
      %s84 = scalar_select %p81, %s82, %s83
      %p87 = pneg %p81
      %p88 = scmp.eq.s32.totalorder %s18, 1
      %p89 = por %p87, %p88
      %p90 = scmp.ne.s32.totalorder %s82, %s85
      %p91 = scmp.eq.s32.totalorder %s18, 0
      %p92 = por %p90, %p91
      %p93 = scmp.ne.s32.totalorder %s82, %s85
      %p94 = scmp.eq.s32.totalorder %s23, 1
      %p95 = por %p93, %p94
      %p96 = scmp.ne.s32.totalorder %s85, %s86
      %p97 = scmp.eq.s32.totalorder %s23, 0
      %p98 = por %p96, %p97
      %p99 = scmp.ne.s32.totalorder %s85, %s86
      %p100 = scmp.eq.s32.totalorder %s24, 1
      %p101 = por %p99, %p100
      %p103 = scmp.ne.s32.totalorder %s86, %s102
      %p104 = scmp.eq.s32.totalorder %s24, 0
      %p105 = por %p103, %p104
      %s106 = ssub.s32 %s25, %s37
      %p107 = scmp.eq.s32.totalorder %s106, 0
      %s109 = sadd.s32 %s108, 1
      %s110 = scalar_select %p107, %s108, %s109
      %p113 = pneg %p107
      %p114 = scmp.eq.s32.totalorder %s18, 1
      %p115 = por %p113, %p114
      %p116 = scmp.ne.s32.totalorder %s108, %s111
      %p117 = scmp.eq.s32.totalorder %s18, 0
      %p118 = por %p116, %p117
      %p119 = scmp.ne.s32.totalorder %s108, %s111
      %p120 = scmp.eq.s32.totalorder %s23, 1
      %p121 = por %p119, %p120
      %p122 = scmp.ne.s32.totalorder %s111, %s112
      %p123 = scmp.eq.s32.totalorder %s23, 0
      %p124 = por %p122, %p123
      %p125 = scmp.ne.s32.totalorder %s111, %s112
      %p126 = scmp.eq.s32.totalorder %s24, 1
      %p127 = por %p125, %p126
      %p129 = scmp.ne.s32.totalorder %s112, %s128
      %p130 = scmp.eq.s32.totalorder %s24, 0
      %p131 = por %p129, %p130
      %s132 = ssub.s32 %s25, %s37
      %p133 = scmp.eq.s32.totalorder %s132, 0
      %s135 = sadd.s32 %s134, 1
      %s136 = scalar_select %p133, %s134, %s135
      %p139 = pneg %p133
      %p140 = scmp.eq.s32.totalorder %s18, 1
      %p141 = por %p139, %p140
      %p142 = scmp.ne.s32.totalorder %s134, %s137
      %p143 = scmp.eq.s32.totalorder %s18, 0
      %p144 = por %p142, %p143
      %p145 = scmp.ne.s32.totalorder %s134, %s137
      %p146 = scmp.eq.s32.totalorder %s23, 1
      %p147 = por %p145, %p146
      %p148 = scmp.ne.s32.totalorder %s137, %s138
      %p149 = scmp.eq.s32.totalorder %s23, 0
      %p150 = por %p148, %p149
      %p151 = scmp.ne.s32.totalorder %s137, %s138
      %p152 = scmp.eq.s32.totalorder %s24, 1
      %p153 = por %p151, %p152
      %p155 = scmp.ne.s32.totalorder %s138, %s154
      %p156 = scmp.eq.s32.totalorder %s24, 0
      %p157 = por %p155, %p156
      %s158 = ssub.s32 %s25, %s37
      %p159 = scmp.eq.s32.totalorder %s158, 0
      %s161 = sadd.s32 %s160, 1
      %s162 = scalar_select %p159, %s160, %s161
      %p165 = pneg %p159
      %p166 = scmp.eq.s32.totalorder %s18, 1
      %p167 = por %p165, %p166
      %p168 = scmp.ne.s32.totalorder %s160, %s163
      %p169 = scmp.eq.s32.totalorder %s18, 0
      %p170 = por %p168, %p169
      %p171 = scmp.ne.s32.totalorder %s160, %s163
      %p172 = scmp.eq.s32.totalorder %s23, 1
      %p173 = por %p171, %p172
      %p174 = scmp.ne.s32.totalorder %s163, %s164
      %p175 = scmp.eq.s32.totalorder %s23, 0
      %p176 = por %p174, %p175
      %p177 = scmp.ne.s32.totalorder %s163, %s164
      %p178 = scmp.eq.s32.totalorder %s24, 1
      %p179 = por %p177, %p178
      %p181 = scmp.ne.s32.totalorder %s164, %s180
      %p182 = scmp.eq.s32.totalorder %s24, 0
      %p183 = por %p181, %p182
      %s184 = ssub.s32 %s25, %s37
      %s185 = ssub.s32 %s26, %s33
      %s186 = sor.u32 %s184, %s185
      %p187 = scmp.eq.s32.totalorder %s186, 0
      %s189 = sadd.s32 %s188, 1
      %s190 = scalar_select %p187, %s188, %s189
      %p193 = pneg %p187
      %p194 = scmp.eq.s32.totalorder %s18, 1
      %p195 = por %p193, %p194
      %p196 = scmp.ne.s32.totalorder %s188, %s191
      %p197 = scmp.eq.s32.totalorder %s18, 0
      %p198 = por %p196, %p197
      %p199 = scmp.ne.s32.totalorder %s188, %s191
      %p200 = scmp.eq.s32.totalorder %s23, 1
      %p201 = por %p199, %p200
      %p202 = scmp.ne.s32.totalorder %s191, %s192
      %p203 = scmp.eq.s32.totalorder %s23, 0
      %p204 = por %p202, %p203
      %p205 = scmp.ne.s32.totalorder %s191, %s192
      %p206 = scmp.eq.s32.totalorder %s24, 1
      %p207 = por %p205, %p206
      %p209 = scmp.ne.s32.totalorder %s192, %s208
      %p210 = scmp.eq.s32.totalorder %s24, 0
      %p211 = por %p209, %p210
      %s212 = ssub.s32 %s25, %s37
      %s213 = ssub.s32 %s26, %s33
      %s214 = sor.u32 %s212, %s213
      %p215 = scmp.eq.s32.totalorder %s214, 0
      %s217 = sadd.s32 %s216, 1
      %s218 = scalar_select %p215, %s216, %s217
      %p221 = pneg %p215
      %p222 = scmp.eq.s32.totalorder %s18, 1
      %p223 = por %p221, %p222
      %p224 = scmp.ne.s32.totalorder %s216, %s219
      %p225 = scmp.eq.s32.totalorder %s18, 0
      %p226 = por %p224, %p225
      %p227 = scmp.ne.s32.totalorder %s216, %s219
      %p228 = scmp.eq.s32.totalorder %s23, 1
      %p229 = por %p227, %p228
      %p230 = scmp.ne.s32.totalorder %s219, %s220
      %p231 = scmp.eq.s32.totalorder %s23, 0
      %p232 = por %p230, %p231
      %p233 = scmp.ne.s32.totalorder %s219, %s220
      %p234 = scmp.eq.s32.totalorder %s24, 1
      %p235 = por %p233, %p234
      %p237 = scmp.ne.s32.totalorder %s220, %s236
      %p238 = scmp.eq.s32.totalorder %s24, 0
      %p239 = por %p237, %p238
      %p240 = scmp.le.s32.totalorder 1, %s18
      %p241 = scmp.lt.s32.totalorder %s18, 3
      %p242 = pnand %p240, %p241
      %p243 = pneg %p242
      // Predicated region
      $region9: #{attn_res_block_up.4} parent=5 // pred_check
        _
      $region10: #{attn_res_block_up.4} parent=5 // pred_check_branch
        %245 = sbr.rel (%p242) target = $region12
      $region11: #{attn_res_block_up.4} parent=5 // pred_region
        %s246 = ssub.s32 %s18, 1
        // Predicated region
        $region13: #{attn_res_block_up.4} parent=11 // pred_check
          %p247 = pneg %p51
        $region14: #{attn_res_block_up.4} parent=11 // pred_check_branch
          %249 = sbr.rel (%p247) target = $region16
        $region15: #{attn_res_block_up.4} parent=11 // pred_region
          %s251 = ssub.s32 256, 256
          %252 = vsyncadd [#allocation3], %s251
          %s253 = sshll.u32 [#allocation2], 4
          %s254 = int_to_ptr.vmem [resolvable:$true] %s253
          %259 = dma.hbm_to_vmem [thread:$0]  %s0, 256, %s254, [#allocation3], 64, 64, 4
        $region16: #{attn_res_block_up.4} parent=11 // pred_fallthru
          _
        // Predicated region
        $region17: #{attn_res_block_up.4} parent=11 // pred_check
          %p260 = pneg %p72
        $region18: #{attn_res_block_up.4} parent=11 // pred_check_branch
          %262 = sbr.rel (%p260) target = $region20
        $region19: #{attn_res_block_up.4} parent=11 // pred_region
          %s264 = ssub.s32 128, 128
          %265 = vsyncadd [#allocation6], %s264
          %s266 = sshll.u32 [#allocation5], 4
          %s267 = int_to_ptr.vmem [resolvable:$true] %s266
          %272 = dma.hbm_to_vmem [thread:$0]  %s1, 128, %s267, [#allocation6], 64, 64, 4
        $region20: #{attn_res_block_up.4} parent=11 // pred_fallthru
          _
      $region12: #{attn_res_block_up.4} parent=5 // pred_fallthru
        _
      %p273 = scmp.lt.s32.totalorder %s18, 2
      // Predicated region
      $region21: #{attn_res_block_up.4} parent=5 // pred_check
        %p274 = pneg %p273
      $region22: #{attn_res_block_up.4} parent=5 // pred_check_branch
        %276 = sbr.rel (%p274) target = $region24
      $region23: #{attn_res_block_up.4} parent=5 // pred_region
        // Predicated region
        $region25: #{attn_res_block_up.4} parent=23 // pred_check
          %p277 = pneg %p92
        $region26: #{attn_res_block_up.4} parent=23 // pred_check_branch
          %279 = sbr.rel (%p277) target = $region28
        $region27: #{attn_res_block_up.4} parent=23 // pred_region
          %s280 = sand.u32 %s18, 1
          %s281 = scalar_lea.sflag [#allocation3], %s280
          %s282 = sand.u32 %s82, 1
          %s283 = smul.addr %s282, 16
          %s284 = scalar_lea.vmem [#allocation7], %s283
          %s286 = ssub.s32 256, 256
          %287 = vsyncadd %s281, %s286
          %s288 = smul.addr %s25, 4
          %s289 = smul.addr %s288, 64
          %s290 = scalar_lea.hbm %s2, %s289
          %s291 = sshll.u32 %s284, 4
          %s292 = int_to_ptr.vmem [resolvable:$true] %s291
          %297 = dma.hbm_to_vmem [thread:$0]  %s290, 256, %s292, %s281, 64, 64, 4
        $region28: #{attn_res_block_up.4} parent=23 // pred_fallthru
          _
        // Predicated region
        $region29: #{attn_res_block_up.4} parent=23 // pred_check
          %p298 = pneg %p118
        $region30: #{attn_res_block_up.4} parent=23 // pred_check_branch
          %300 = sbr.rel (%p298) target = $region32
        $region31: #{attn_res_block_up.4} parent=23 // pred_region
          %s301 = sand.u32 %s18, 1
          %s302 = scalar_lea.sflag [#allocation3], %s301
          %s303 = sand.u32 %s108, 1
          %s304 = smul.addr %s303, 16
          %s305 = scalar_lea.vmem [#allocation8], %s304
          %s307 = ssub.s32 256, 256
          %308 = vsyncadd %s302, %s307
          %s309 = smul.addr %s25, 4
          %s310 = smul.addr %s309, 64
          %s311 = scalar_lea.hbm %s3, %s310
          %s312 = sshll.u32 %s305, 4
          %s313 = int_to_ptr.vmem [resolvable:$true] %s312
          %318 = dma.hbm_to_vmem [thread:$0]  %s311, 256, %s313, %s302, 64, 64, 4
        $region32: #{attn_res_block_up.4} parent=23 // pred_fallthru
          _
        // Predicated region
        $region33: #{attn_res_block_up.4} parent=23 // pred_check
          %p319 = pneg %p144
        $region34: #{attn_res_block_up.4} parent=23 // pred_check_branch
          %321 = sbr.rel (%p319) target = $region36
        $region35: #{attn_res_block_up.4} parent=23 // pred_region
          %s322 = sand.u32 %s18, 1
          %s323 = scalar_lea.sflag [#allocation3], %s322
          %s324 = sand.u32 %s134, 1
          %s325 = smul.addr %s324, 16
          %s326 = scalar_lea.vmem [#allocation9], %s325
          %s328 = ssub.s32 256, 256
          %329 = vsyncadd %s323, %s328
          %s330 = smul.addr %s25, 2
          %s331 = smul.addr %s330, 128
          %s332 = scalar_lea.hbm %s4, %s331
          %s333 = sshll.u32 %s326, 4
          %s334 = int_to_ptr.vmem [resolvable:$true] %s333
          %339 = dma.hbm_to_vmem [thread:$0]  %s332, 256, %s334, %s323, 128, 128, 8
        $region36: #{attn_res_block_up.4} parent=23 // pred_fallthru
          _
        // Predicated region
        $region37: #{attn_res_block_up.4} parent=23 // pred_check
          %p340 = pneg %p170
        $region38: #{attn_res_block_up.4} parent=23 // pred_check_branch
          %342 = sbr.rel (%p340) target = $region40
        $region39: #{attn_res_block_up.4} parent=23 // pred_region
          %s343 = sand.u32 %s18, 1
          %s344 = scalar_lea.sflag [#allocation3], %s343
          %s345 = sand.u32 %s160, 1
          %s346 = smul.addr %s345, 8
          %s347 = scalar_lea.vmem [#allocation10], %s346
          %s349 = ssub.s32 128, 128
          %350 = vsyncadd %s344, %s349
          %s351 = smul.addr %s25, 128
          %s352 = scalar_lea.hbm %s5, %s351
          %s354 = sshll.u32 %s347, 4
          %s355 = int_to_ptr.vmem [resolvable:$true] %s354
          %357 = dma.hbm_to_vmem [thread:$0]  %s352, 128, %s355, %s344
        $region40: #{attn_res_block_up.4} parent=23 // pred_fallthru
          _
        // Predicated region
        $region41: #{attn_res_block_up.4} parent=23 // pred_check
          %p358 = pneg %p198
        $region42: #{attn_res_block_up.4} parent=23 // pred_check_branch
          %360 = sbr.rel (%p358) target = $region44
        $region43: #{attn_res_block_up.4} parent=23 // pred_region
          %s361 = sand.u32 %s18, 1
          %s362 = scalar_lea.sflag [#allocation3], %s361
          %s363 = sand.u32 %s188, 1
          %s364 = smul.addr %s363, 8
          %s365 = scalar_lea.vmem [#allocation11], %s364
          %s367 = ssub.s32 128, 128
          %368 = vsyncadd %s362, %s367
          %s369 = sadd.s32 %s26, %s25
          %s370 = smul.addr %s369, 128
          %s371 = scalar_lea.hbm %s6, %s370
          %s373 = sshll.u32 %s365, 4
          %s374 = int_to_ptr.vmem [resolvable:$true] %s373
          %376 = dma.hbm_to_vmem [thread:$0]  %s371, 128, %s374, %s362
        $region44: #{attn_res_block_up.4} parent=23 // pred_fallthru
          _
      $region24: #{attn_res_block_up.4} parent=5 // pred_fallthru
        _
      %p377 = scmp.le.s32.totalorder 1, %s18
      %p378 = scmp.lt.s32.totalorder %s18, 3
      %p379 = pnand %p377, %p378
      %p380 = pneg %p379
      // Predicated region
      $region45: #{attn_res_block_up.4} parent=5 // pred_check
        _
      $region46: #{attn_res_block_up.4} parent=5 // pred_check_branch
        %382 = sbr.rel (%p379) target = $region48
      $region47: #{attn_res_block_up.4} parent=5 // pred_region
        %s383 = ssub.s32 %s18, 1
        // Predicated region
        $region49: #{attn_res_block_up.4} parent=47 // pred_check
          %p384 = pneg %p51
        $region50: #{attn_res_block_up.4} parent=47 // pred_check_branch
          %386 = sbr.rel (%p384) target = $region52
        $region51: #{attn_res_block_up.4} parent=47 // pred_region
          %387 = dma.done [#allocation3], 256
        $region52: #{attn_res_block_up.4} parent=47 // pred_fallthru
          _
        // Predicated region
        $region53: #{attn_res_block_up.4} parent=47 // pred_check
          %p388 = pneg %p72
        $region54: #{attn_res_block_up.4} parent=47 // pred_check_branch
          %390 = sbr.rel (%p388) target = $region56
        $region55: #{attn_res_block_up.4} parent=47 // pred_region
          %391 = dma.done [#allocation6], 128
        $region56: #{attn_res_block_up.4} parent=47 // pred_fallthru
          _
        %s392 = sand.u32 %s23, 1
        %s393 = scalar_lea.sflag [#allocation3], %s392
        %s394 = sand.u32 %s85, 1
        %s395 = smul.addr %s394, 16
        %s396 = scalar_lea.vmem [#allocation7], %s395
        // Predicated region
        $region57: #{attn_res_block_up.4} parent=47 // pred_check
          %p397 = pneg %p98
        $region58: #{attn_res_block_up.4} parent=47 // pred_check_branch
          %399 = sbr.rel (%p397) target = $region60
        $region59: #{attn_res_block_up.4} parent=47 // pred_region
          %400 = dma.done %s393, 256
        $region60: #{attn_res_block_up.4} parent=47 // pred_fallthru
          _
        %s401 = sand.u32 %s23, 1
        %s402 = scalar_lea.sflag [#allocation3], %s401
        %s403 = sand.u32 %s111, 1
        %s404 = smul.addr %s403, 16
        %s405 = scalar_lea.vmem [#allocation8], %s404
        // Predicated region
        $region61: #{attn_res_block_up.4} parent=47 // pred_check
          %p406 = pneg %p124
        $region62: #{attn_res_block_up.4} parent=47 // pred_check_branch
          %408 = sbr.rel (%p406) target = $region64
        $region63: #{attn_res_block_up.4} parent=47 // pred_region
          %409 = dma.done %s402, 256
        $region64: #{attn_res_block_up.4} parent=47 // pred_fallthru
          _
        %s410 = sand.u32 %s23, 1
        %s411 = scalar_lea.sflag [#allocation3], %s410
        %s412 = sand.u32 %s137, 1
        %s413 = smul.addr %s412, 16
        %s414 = scalar_lea.vmem [#allocation9], %s413
        // Predicated region
        $region65: #{attn_res_block_up.4} parent=47 // pred_check
          %p415 = pneg %p150
        $region66: #{attn_res_block_up.4} parent=47 // pred_check_branch
          %417 = sbr.rel (%p415) target = $region68
        $region67: #{attn_res_block_up.4} parent=47 // pred_region
          %418 = dma.done %s411, 256
        $region68: #{attn_res_block_up.4} parent=47 // pred_fallthru
          _
        %s419 = sand.u32 %s23, 1
        %s420 = scalar_lea.sflag [#allocation3], %s419
        %s421 = sand.u32 %s163, 1
        %s422 = smul.addr %s421, 8
        %s423 = scalar_lea.vmem [#allocation10], %s422
        // Predicated region
        $region69: #{attn_res_block_up.4} parent=47 // pred_check
          %p424 = pneg %p176
        $region70: #{attn_res_block_up.4} parent=47 // pred_check_branch
          %426 = sbr.rel (%p424) target = $region72
        $region71: #{attn_res_block_up.4} parent=47 // pred_region
          %427 = dma.done %s420, 128
        $region72: #{attn_res_block_up.4} parent=47 // pred_fallthru
          _
        %s428 = sand.u32 %s23, 1
        %s429 = scalar_lea.sflag [#allocation3], %s428
        %s430 = sand.u32 %s191, 1
        %s431 = smul.addr %s430, 8
        %s432 = scalar_lea.vmem [#allocation11], %s431
        // Predicated region
        $region73: #{attn_res_block_up.4} parent=47 // pred_check
          %p433 = pneg %p204
        $region74: #{attn_res_block_up.4} parent=47 // pred_check_branch
          %435 = sbr.rel (%p433) target = $region76
        $region75: #{attn_res_block_up.4} parent=47 // pred_region
          %436 = dma.done %s429, 128
        $region76: #{attn_res_block_up.4} parent=47 // pred_fallthru
          _
        %p437 = pneg %p51
        %p438 = pneg %p48
        %p439 = pneg %p72
        %p440 = pneg %p69
        %s441 = sand.u32 %s23, 1
        %s442 = scalar_lea.sflag [#allocation3], %s441
        %s443 = sand.u32 %s85, 1
        %s444 = smul.addr %s443, 16
        %s445 = scalar_lea.vmem [#allocation7], %s444
        %p446 = pneg %p98
        %p447 = pneg %p95
        %s448 = sand.u32 %s23, 1
        %s449 = scalar_lea.sflag [#allocation3], %s448
        %s450 = sand.u32 %s111, 1
        %s451 = smul.addr %s450, 16
        %s452 = scalar_lea.vmem [#allocation8], %s451
        %p453 = pneg %p124
        %p454 = pneg %p121
        %s455 = sand.u32 %s23, 1
        %s456 = scalar_lea.sflag [#allocation3], %s455
        %s457 = sand.u32 %s137, 1
        %s458 = smul.addr %s457, 16
        %s459 = scalar_lea.vmem [#allocation9], %s458
        %p460 = pneg %p150
        %p461 = pneg %p147
        %s462 = sand.u32 %s23, 1
        %s463 = scalar_lea.sflag [#allocation3], %s462
        %s464 = sand.u32 %s163, 1
        %s465 = smul.addr %s464, 8
        %s466 = scalar_lea.vmem [#allocation10], %s465
        %p467 = pneg %p176
        %p468 = pneg %p173
        %s469 = sand.u32 %s23, 1
        %s470 = scalar_lea.sflag [#allocation3], %s469
        %s471 = sand.u32 %s191, 1
        %s472 = smul.addr %s471, 8
        %s473 = scalar_lea.vmem [#allocation11], %s472
        %p474 = pneg %p204
        %p475 = pneg %p201
        %p476 = pneg %p232
        %p477 = pneg %p229
        %s478 = sand.u32 %s219, 1
        %s479 = scalar_lea.sflag [#allocation4], %s478
        %s480 = sand.u32 %s219, 1
        %s481 = smul.addr %s480, 4
        %s482 = scalar_lea.vmem [#allocation12], %s481
        %v484 = vld [vmem:[%s432] sm:$0xff]
        %v485 = vpack.c.bf16 %v484, %v484
        %v486 = vld [vmem:[%s423] sm:$0xff]
        %v487 = vld [vmem:[#allocation2] sm:$0xf]
        %v488 = vld [vmem:[#allocation2 + $0x4] sm:$0xf]
        %v489 = vld [vmem:[#allocation2 + $0x8] sm:$0xf]
        %v490 = vld [vmem:[#allocation2 + $0xc] sm:$0xf]
        %v495 = vunpack.c.l.b16 %v487
        %v496 = vunpack.c.l.b16 %v488
        %v497 = vunpack.c.l.b16 %v489
        %v498 = vunpack.c.l.b16 %v490
        %v499 = vpack.c.b16 %v496, %v495
        %v500 = vpack.c.b16 %v498, %v497
        %vm501 = vcmask 64512
        %v503 = vsel %vm501, %v499, 0
        %v506 = vsel %vm501, %v500, 0
        %vm508 = vcmask 1043456
        %v510 = vsel %vm508, %v485, 0
        %512 = vmatprep.subr.bf16.mxu0 0
        %513 = vmatpush1.bf16.msra.mxu0 %v510
        %514 = vmatprep.subr.bf16.mxu0 0
        %515 = vmatpush1.bf16.msra.mxu0 0
        %516 = vmatprep.subr.bf16.mxu0 0
        %517 = vmatpush1.bf16.msra.mxu0 0
        %518 = vmatprep.subr.bf16.mxu0 0
        %519 = vmatpush1.bf16.msra.mxu0 0
        %520 = vmatprep.subr.bf16.mxu0 0
        %521 = vmatpush1.bf16.msra.mxu0 0
        %522 = vmatprep.subr.bf16.mxu0 0
        %523 = vmatpush1.bf16.msra.mxu0 0
        %524 = vmatprep.subr.bf16.mxu0 0
        %525 = vmatpush1.bf16.msra.mxu0 0
        %526 = vmatprep.subr.bf16.mxu0 0
        %527 = vmatpush1.bf16.msra.mxu0 0
        %528 = vmatprep.subr.bf16.mxu0 0
        %529 = vmatpush1.bf16.msra.mxu0 0
        %530 = vmatprep.subr.bf16.mxu0 0
        %531 = vmatpush1.bf16.msra.mxu0 0
        %532 = vmatprep.subr.bf16.mxu0 0
        %533 = vmatpush1.bf16.msra.mxu0 0
        %534 = vmatprep.subr.bf16.mxu0 0
        %535 = vmatpush1.bf16.msra.mxu0 0
        %536 = vmatprep.subr.bf16.mxu0 0
        %537 = vmatpush1.bf16.msra.mxu0 0
        %538 = vmatprep.subr.bf16.mxu0 0
        %539 = vmatpush1.bf16.msra.mxu0 0
        %540 = vmatprep.subr.bf16.mxu0 0
        %541 = vmatpush1.bf16.msra.mxu0 0
        %542 = vmatprep.subr.bf16.mxu0 0
        %543 = vmatpush1.bf16.msra.mxu0 0
        %544 = vmatprep.mubr.bf16.mxu0 0
        %545 = vmatmul.mubr.bf16.gmra.mrb[0].mxu0 %v503
        %v546 = vpop.f32.mrb[0].mxu0
        %v547 = vadd.f32 0.0, %v546
        %v548 = vpop.f32.mrb[0].mxu0
        %v549 = vpop.f32.mrb[0].mxu0
        %v550 = vadd.f32 0.0, %v549
        %v551 = vpop.f32.mrb[0].mxu0
        %552 = vmatprep.mubr.bf16.mxu0 0
        %553 = vmatmul.mubr.bf16.gmra.mrb[0].mxu0 %v506
        %v554 = vpop.f32.mrb[0].mxu0
        %v555 = vadd.f32 0.0, %v554
        %v556 = vpop.f32.mrb[0].mxu0
        %v557 = vpop.f32.mrb[0].mxu0
        %v558 = vadd.f32 0.0, %v557
        %v559 = vpop.f32.mrb[0].mxu0
        %560 = vdwg.mxu0
        %v561 = vmul.f32 %v547, %v547
        %v562 = vmul.f32 %v550, %v550
        %v563 = vmul.f32 %v555, %v555
        %v564 = vmul.f32 %v558, %v558
        %vm565 = vcmask 523264
        %v566 = vsel %vm565, %v561, 0.0
        %v567 = vsel %vm565, %v562, 0.0
        %v568 = vadd.f32 %v566, %v567
        %v569 = vsel %vm565, %v563, 0.0
        %v570 = vadd.f32 %v568, %v569
        %v571 = vsel %vm565, %v564, 0.0
        %v572 = vadd.f32 %v570, %v571
        %v573 = vrot.slane %v572, 4
        %v574 = vadd.f32 %v572, %v573
        %v575 = vrot.slane %v574, 2
        %v576 = vadd.f32 %v574, %v575
        %v577 = vrot.slane %v576, 1
        %v578 = vadd.f32 %v576, %v577
        %v579 = vmax.f32 %v578, 1e-24
        %v580 = vrsqrt.pop %v579
        %v581 = vmul.f32 %v547, %v580
        %v582 = vmul.f32 %v550, %v580
        %v583 = vmul.f32 %v555, %v580
        %v584 = vmul.f32 %v558, %v580
        %v585 = vld [vmem:[%s405] sm:$0xf]
        %v586 = vld [vmem:[%s405 + $0x4] sm:$0xf]
        %v587 = vld [vmem:[%s405 + $0x8] sm:$0xf]
        %v588 = vld [vmem:[%s405 + $0xc] sm:$0xf]
        %v589 = vpack.c.bf16 %v582, %v581
        %v590 = vpack.c.bf16 %v584, %v583
        %v591 = vld [vmem:[%s414] sm:$0xff]
        %v592 = vld [vmem:[%s414 + $0x8] sm:$0xff]
        %594 = vset.pattern.permute.xlu0 0
        %595 = vperm.xlu0 %594, %v591
        %v596 = vpop.permute.xlu0 %595
        %599 = vset.pattern.permute.xlu0 0
        %600 = vperm.xlu0 %599, %v592
        %v601 = vpop.permute.xlu0 %600
        %v607 = vunpack.c.l.b16 %v585
        %v608 = vunpack.c.l.b16 %v586
        %v609 = vunpack.c.l.b16 %v587
        %v610 = vunpack.c.l.b16 %v588
        %v611 = vpack.c.b16 %v608, %v607
        %v612 = vpack.c.b16 %v610, %v609
        %615 = vxpose.xlu0.c.b16.start [1/8] %v611, 128
        %616 = vxpose.xlu0.c.b16.cont [2/8] %v612, 128
        %617 = vxpose.xlu0.c.b16.cont [3/8] 0, 128
        %618 = vxpose.xlu0.c.b16.cont [4/8] 0, 128
        %619 = vxpose.xlu0.c.b16.cont [5/8] 0, 128
        %620 = vxpose.xlu0.c.b16.cont [6/8] 0, 128
        %621 = vxpose.xlu0.c.b16.cont [7/8] 0, 128
        %622 = vxpose.xlu0.c.b16.end [8/8] 0, 128
        %v623 = vpop.trf.xlu0
        %v624 = vpop.trf.xlu0
        %v625 = vpop.trf.xlu0
        %v626 = vpop.trf.xlu0
        %v627 = vpop.trf.xlu0
        %v628 = vpop.trf.xlu0
        %v629 = vpop.trf.xlu0
        %v630 = vpop.trf.xlu0
        %vm631 = vcmask 261120
        %v633 = vsel %vm631, %v623, 0
        %635 = vmatprep.subr.bf16.mxu0 0
        %636 = vmatpush1.bf16.msra.mxu0 %v589
        %637 = vmatprep.subr.bf16.mxu0 0
        %638 = vmatpush1.bf16.msra.mxu0 %v590
        %639 = vmatprep.subr.bf16.mxu0 0
        %640 = vmatpush1.bf16.msra.mxu0 0
        %641 = vmatprep.subr.bf16.mxu0 0
        %642 = vmatpush1.bf16.msra.mxu0 0
        %643 = vmatprep.subr.bf16.mxu0 0
        %644 = vmatpush1.bf16.msra.mxu0 0
        %645 = vmatprep.subr.bf16.mxu0 0
        %646 = vmatpush1.bf16.msra.mxu0 0
        %647 = vmatprep.subr.bf16.mxu0 0
        %648 = vmatpush1.bf16.msra.mxu0 0
        %649 = vmatprep.subr.bf16.mxu0 0
        %650 = vmatpush1.bf16.msra.mxu0 0
        %651 = vmatprep.subr.bf16.mxu0 0
        %652 = vmatpush1.bf16.msra.mxu0 0
        %653 = vmatprep.subr.bf16.mxu0 0
        %654 = vmatpush1.bf16.msra.mxu0 0
        %655 = vmatprep.subr.bf16.mxu0 0
        %656 = vmatpush1.bf16.msra.mxu0 0
        %657 = vmatprep.subr.bf16.mxu0 0
        %658 = vmatpush1.bf16.msra.mxu0 0
        %659 = vmatprep.subr.bf16.mxu0 0
        %660 = vmatpush1.bf16.msra.mxu0 0
        %661 = vmatprep.subr.bf16.mxu0 0
        %662 = vmatpush1.bf16.msra.mxu0 0
        %663 = vmatprep.subr.bf16.mxu0 0
        %664 = vmatpush1.bf16.msra.mxu0 0
        %665 = vmatprep.subr.bf16.mxu0 0
        %666 = vmatpush1.bf16.msra.mxu0 0
        %667 = vmatprep.mubr.bf16.mxu0 0
        %668 = vmatmul.mubr.bf16.gmra.mrb[0].mxu0 %v633
        %v669 = vpop.f32.mrb[0].mxu0
        %v670 = vadd.f32 %v596, %v669
        %v671 = vpop.f32.mrb[0].mxu0
        %v672 = vpop.f32.mrb[0].mxu0
        %v673 = vadd.f32 %v601, %v672
        %v674 = vpop.f32.mrb[0].mxu0
        %675 = vdwg.mxu0
        %v676 = vsel %vm565, %v670, -inf
        %v677 = vsel %vm565, %v673, -inf
        %v678 = vmax.f32 %v676, %v677
        %v679 = vrot.slane %v678, 4
        %v680 = vmax.f32 %v678, %v679
        %v681 = vrot.slane %v680, 2
        %v682 = vmax.f32 %v680, %v681
        %v683 = vrot.slane %v682, 1
        %v684 = vmax.f32 %v682, %v683
        %v685 = vsub.f32 %v670, %v684
        %v686 = vsub.f32 %v673, %v684
        %v687 = vmul.f32 %v685, 1.442695
        %v688 = vpow.pop %v687
        %v689 = vmul.f32 %v686, 1.442695
        %v690 = vpow.pop %v689
        %v691 = vsel %vm565, %v688, 0.0
        %v692 = vsel %vm565, %v690, 0.0
        %v693 = vadd.f32 %v691, %v692
        %v694 = vrot.slane %v693, 4
        %v695 = vadd.f32 %v693, %v694
        %v696 = vrot.slane %v695, 2
        %v697 = vadd.f32 %v695, %v696
        %v698 = vrot.slane %v697, 1
        %v699 = vadd.f32 %v697, %v698
        %v700 = vrcp.pop %v699
        %v701 = vmul.f32 %v688, %v700
        %v702 = vmul.f32 %v690, %v700
        %v703 = vpack.c.bf16 %v702, %v701
        %v704 = vld [vmem:[%s396] sm:$0xf]
        %v705 = vld [vmem:[%s396 + $0x4] sm:$0xf]
        %v706 = vld [vmem:[%s396 + $0x8] sm:$0xf]
        %v707 = vld [vmem:[%s396 + $0xc] sm:$0xf]
        %v712 = vunpack.c.l.b16 %v704
        %v713 = vunpack.c.l.b16 %v705
        %v714 = vunpack.c.l.b16 %v706
        %v715 = vunpack.c.l.b16 %v707
        %v716 = vpack.c.b16 %v713, %v712
        %v717 = vpack.c.b16 %v715, %v714
        %vm718 = vcmask 130048
        %v720 = vsel %vm718, %v716, 0
        %v723 = vsel %vm718, %v717, 0
        %725 = vmatprep.subr.bf16.mxu0 0
        %726 = vmatpush1.bf16.msra.mxu0 %v703
        %727 = vmatprep.subr.bf16.mxu0 0
        %728 = vmatpush1.bf16.msra.mxu0 0
        %729 = vmatprep.subr.bf16.mxu0 0
        %730 = vmatpush1.bf16.msra.mxu0 0
        %731 = vmatprep.subr.bf16.mxu0 0
        %732 = vmatpush1.bf16.msra.mxu0 0
        %733 = vmatprep.subr.bf16.mxu0 0
        %734 = vmatpush1.bf16.msra.mxu0 0
        %735 = vmatprep.subr.bf16.mxu0 0
        %736 = vmatpush1.bf16.msra.mxu0 0
        %737 = vmatprep.subr.bf16.mxu0 0
        %738 = vmatpush1.bf16.msra.mxu0 0
        %739 = vmatprep.subr.bf16.mxu0 0
        %740 = vmatpush1.bf16.msra.mxu0 0
        %741 = vmatprep.subr.bf16.mxu0 0
        %742 = vmatpush1.bf16.msra.mxu0 0
        %743 = vmatprep.subr.bf16.mxu0 0
        %744 = vmatpush1.bf16.msra.mxu0 0
        %745 = vmatprep.subr.bf16.mxu0 0
        %746 = vmatpush1.bf16.msra.mxu0 0
        %747 = vmatprep.subr.bf16.mxu0 0
        %748 = vmatpush1.bf16.msra.mxu0 0
        %749 = vmatprep.subr.bf16.mxu0 0
        %750 = vmatpush1.bf16.msra.mxu0 0
        %751 = vmatprep.subr.bf16.mxu0 0
        %752 = vmatpush1.bf16.msra.mxu0 0
        %753 = vmatprep.subr.bf16.mxu0 0
        %754 = vmatpush1.bf16.msra.mxu0 0
        %755 = vmatprep.subr.bf16.mxu0 0
        %756 = vmatpush1.bf16.msra.mxu0 0
        %757 = vmatprep.mubr.bf16.mxu0 0
        %758 = vmatmul.mubr.bf16.gmra.mrb[0].mxu0 %v720
        %v759 = vpop.f32.mrb[0].mxu0
        %v760 = vadd.f32 0.0, %v759
        %v761 = vpop.f32.mrb[0].mxu0
        %v762 = vpop.f32.mrb[0].mxu0
        %v763 = vadd.f32 0.0, %v762
        %v764 = vpop.f32.mrb[0].mxu0
        %765 = vmatprep.mubr.bf16.mxu0 0
        %766 = vmatmul.mubr.bf16.gmra.mrb[0].mxu0 %v723
        %v767 = vpop.f32.mrb[0].mxu0
        %v768 = vadd.f32 0.0, %v767
        %v769 = vpop.f32.mrb[0].mxu0
        %v770 = vpop.f32.mrb[0].mxu0
        %v771 = vadd.f32 0.0, %v770
        %v772 = vpop.f32.mrb[0].mxu0
        %773 = vdwg.mxu0
        %v774 = vld [vmem:[#allocation5] sm:$0xf]
        %v775 = vld [vmem:[#allocation5 + $0x4] sm:$0xf]
        %v776 = vpack.c.bf16 %v763, %v760
        %v777 = vpack.c.bf16 %v771, %v768
        %v780 = vunpack.c.l.b16 %v774
        %v781 = vunpack.c.l.b16 %v775
        %v782 = vpack.c.b16 %v781, %v780
        %v784 = vsel %vm631, %v782, 0
        %786 = vmatprep.subr.bf16.mxu0 0
        %787 = vmatpush1.bf16.msra.mxu0 %v776
        %788 = vmatprep.subr.bf16.mxu0 0
        %789 = vmatpush1.bf16.msra.mxu0 %v777
        %790 = vmatprep.subr.bf16.mxu0 0
        %791 = vmatpush1.bf16.msra.mxu0 0
        %792 = vmatprep.subr.bf16.mxu0 0
        %793 = vmatpush1.bf16.msra.mxu0 0
        %794 = vmatprep.subr.bf16.mxu0 0
        %795 = vmatpush1.bf16.msra.mxu0 0
        %796 = vmatprep.subr.bf16.mxu0 0
        %797 = vmatpush1.bf16.msra.mxu0 0
        %798 = vmatprep.subr.bf16.mxu0 0
        %799 = vmatpush1.bf16.msra.mxu0 0
        %800 = vmatprep.subr.bf16.mxu0 0
        %801 = vmatpush1.bf16.msra.mxu0 0
        %802 = vmatprep.subr.bf16.mxu0 0
        %803 = vmatpush1.bf16.msra.mxu0 0
        %804 = vmatprep.subr.bf16.mxu0 0
        %805 = vmatpush1.bf16.msra.mxu0 0
        %806 = vmatprep.subr.bf16.mxu0 0
        %807 = vmatpush1.bf16.msra.mxu0 0
        %808 = vmatprep.subr.bf16.mxu0 0
        %809 = vmatpush1.bf16.msra.mxu0 0
        %810 = vmatprep.subr.bf16.mxu0 0
        %811 = vmatpush1.bf16.msra.mxu0 0
        %812 = vmatprep.subr.bf16.mxu0 0
        %813 = vmatpush1.bf16.msra.mxu0 0
        %814 = vmatprep.subr.bf16.mxu0 0
        %815 = vmatpush1.bf16.msra.mxu0 0
        %816 = vmatprep.subr.bf16.mxu0 0
        %817 = vmatpush1.bf16.msra.mxu0 0
        %818 = vmatprep.mubr.bf16.mxu0 0
        %819 = vmatmul.mubr.bf16.gmra.mrb[0].mxu0 %v784
        %v820 = vpop.f32.mrb[0].mxu0
        %v821 = vadd.f32 0.0, %v820
        %v822 = vpop.f32.mrb[0].mxu0
        %v823 = vpop.f32.mrb[0].mxu0
        %v824 = vadd.f32 0.0, %v823
        %v825 = vpop.f32.mrb[0].mxu0
        %826 = vdwg.mxu0
        %828 = vset.pattern.permute.xlu0 2
        %829 = vperm.xlu0 %828, %v486
        %v830 = vpop.permute.xlu0 %829
        %v832 = vadd.f32 %v821, %v830
        %833 = vset.pattern.permute.xlu0 3
        %834 = vperm.xlu0 %833, %v486
        %v835 = vpop.permute.xlu0 %834
        %v837 = vadd.f32 %v824, %v835
        %838 = vset.pattern.permute.xlu0 0
        %839 = vperm.xlu0 %838, %v486
        %v840 = vpop.permute.xlu0 %839
        %v842 = vmul.f32 %v484, %v840
        %843 = vset.pattern.permute.xlu0 1
        %844 = vperm.xlu0 %843, %v486
        %v845 = vpop.permute.xlu0 %844
        %v847 = vadd.f32 %v842, %v845
        %v848 = vmul.f32 %v832, %v847
        %v849 = vadd.f32 %v848, %v837
        %v850 = vmax.f32 %v849, 0.0
        %v851 = vpack.c.bf16 %v850, %v850
        %vm852 = vcmask 519168
        %853 = vst.msk [vmem:[%s482] sm:$0xf] %vm852, %v851
        %s854 = sand.u32 %s219, 1
        %s855 = scalar_lea.sflag [#allocation4], %s854
        %s856 = sand.u32 %s219, 1
        %s857 = smul.addr %s856, 4
        %s858 = scalar_lea.vmem [#allocation12], %s857
        // Predicated region
        $region77: #{attn_res_block_up.4} parent=47 // pred_check
          %p859 = pneg %p229
        $region78: #{attn_res_block_up.4} parent=47 // pred_check_branch
          %861 = sbr.rel (%p859) target = $region80
        $region79: #{attn_res_block_up.4} parent=47 // pred_region
          %s863 = ssub.s32 64, 64
          %864 = vsyncadd %s855, %s863
          %s865 = sadd.s32 %s28, %s27
          %s866 = smul.addr %s865, 64
          %s867 = scalar_lea.hbm %s7, %s866
          %s869 = sshll.u32 %s858, 4
          %s870 = int_to_ptr.vmem [resolvable:$true] %s869
          %872 = dma.vmem_to_hbm [thread:$0]  %s870, 64, %s867, %s855
        $region80: #{attn_res_block_up.4} parent=47 // pred_fallthru
          _
      $region48: #{attn_res_block_up.4} parent=5 // pred_fallthru
        _
      %p873 = scmp.le.s32.totalorder 2, %s18
      // Predicated region
      $region81: #{attn_res_block_up.4} parent=5 // pred_check
        %p874 = pneg %p873
      $region82: #{attn_res_block_up.4} parent=5 // pred_check_branch
        %876 = sbr.rel (%p874) target = $region84
      $region83: #{attn_res_block_up.4} parent=5 // pred_region
        %s877 = ssub.s32 %s18, 2
        // Predicated region
        $region85: #{attn_res_block_up.4} parent=83 // pred_check
          %p878 = pneg %p235
        $region86: #{attn_res_block_up.4} parent=83 // pred_check_branch
          %880 = sbr.rel (%p878) target = $region88
        $region87: #{attn_res_block_up.4} parent=83 // pred_region
          %s881 = sand.u32 %s220, 1
          %s882 = scalar_lea.sflag [#allocation4], %s881
          %s883 = sand.u32 %s220, 1
          %s884 = smul.addr %s883, 4
          %s885 = scalar_lea.vmem [#allocation12], %s884
          %886 = dma.done %s882, 64
        $region88: #{attn_res_block_up.4} parent=83 // pred_fallthru
          _
      $region84: #{attn_res_block_up.4} parent=5 // pred_fallthru
        _
    $region6: #{attn_res_block_up.4} parent=1 // loop_footer
      %s22 = sadd.s32 1, %s18
    $region7: #{attn_res_block_up.4} parent=1 // loop_footer_branch
      %17 = sbr.rel target = $region3
    $region8: #{attn_res_block_up.4} parent=1 // loop_exit
      _
    %887 = vsyncpa [#allocation3], 1
    %s888 = scalar_lea.sflag [#allocation3], 1
    %889 = vsyncpa %s888, 1
    %890 = vsyncpa [#allocation6], 1
    %891 = vsyncpa [#allocation4], 1
    %s892 = scalar_lea.sflag [#allocation4], 1
    %893 = vsyncpa %s892, 1

// kernel: attn_res_block_up.5
$region0: #{attn_res_block_up.5}
  #allocation0 [shape = 'u32[]', space=smem, size = 0x4, offset = 0x4, fixed_abs, tag = 'smem constant byte address 0x4 - core index']
  #allocation1 [shape = 'u32[144,128]{1,0:T(1,128)}', space=vmem, size = 0x12000, scoped, tag = 'internal scratch']
  #allocation2 [shape = 'f32[1,8,320]{2,1,0:T(8,128)}', space=vmem, size = 0x3000, scoped, tag = 'scratch operand']
  #allocation3 [shape = 'f32[72,64]{1,0:T(8,128)}', space=vmem, size = 0x9000, scoped, tag = 'scratch operand']
  %s0 = inlined_call_operand.hbm [shape: bf16[16,72], index: 0, kind: input, shape index: {}]
  %s1 = inlined_call_operand.hbm [shape: f32[16,1], index: 1, kind: input, shape index: {}]
  %s2 = inlined_call_operand.hbm [shape: bf16[2,8,1,64], index: 2, kind: input, shape index: {}]
  %s3 = inlined_call_operand.hbm [shape: bf16[2,16,4,64], index: 3, kind: output, shape index: {0}]
  %s4 = inlined_call_operand.hbm [shape: f32[2,16,2], index: 4, kind: output, shape index: {1}]
  %5 = xla_tuple %s3, %s4
  %s6 = sld [smem:[#allocation0]]
  $region65: #{attn_res_block_up.5} parent=0
    _
  %s8 = ssub.s32 1, %s6
  %s9 = scalar_select 0, %s8, %s6
  $region1: #{attn_res_block_up.5} parent=0
    #allocation4 [shape = 'u8[4096]{0}', space=vmem, size = 0x1000, scoped, tag = 'input window, operand 0, single buffered']
    #allocation5 [shape = 's32[2]{0}', space=sflag, size = 0x8, scoped, tag = 'scoped memory for attn_res_block_up.5']
    #allocation6 [shape = 's32[2]{0}', space=sflag, size = 0x8, scoped, tag = 'scoped memory for attn_res_block_up.5']
    #allocation7 [shape = 'u8[8192]{0}', space=vmem, size = 0x2000, scoped, tag = 'input window, operand 1, single buffered']
    #allocation8 [shape = 's32[1]{0}', space=sflag, size = 0x4, scoped, tag = 'scoped memory for attn_res_block_up.5']
    #allocation9 [shape = 'u8[8192]{0}', space=vmem, size = 0x2000, scoped, tag = 'input window, operand 2']
    #allocation10 [shape = 'u8[32768]{0}', space=vmem, size = 0x8000, scoped, tag = 'output window, operand 0']
    #allocation11 [shape = 'u8[16384]{0}', space=vmem, size = 0x4000, scoped, tag = 'output window, operand 1']
    #allocation12 [shape = 's32[2]{0}', space=sflag, size = 0x8, scoped, tag = 'scoped memory for attn_res_block_up.5']
    %10 = vsyncpa [#allocation5], 0
    %11 = vsyncpa [#allocation8], 0
    %12 = vsyncpa [#allocation6], 0
    %s13 = scalar_lea.sflag [#allocation6], 1
    %14 = vsyncpa %s13, 0
    %15 = vsyncpa [#allocation12], 0
    %s16 = scalar_lea.sflag [#allocation12], 1
    %17 = vsyncpa %s16, 0
    loop: start=0, step=1, limit=4
    $region2: #{attn_res_block_up.5} parent=1 // loop_pre_header
      _
    $region3: #{attn_res_block_up.5} parent=1 // loop_header
      %s19 = sphi 0, %s23
      %p20 = scmp.ge.s32.totalorder %s19, 4
      %s26 = sphi 0, %s38
      %s27 = sphi 0, %s34
      %s28 = sphi 0, %s26
      %s29 = sphi 0, %s27
      %s30 = sphi 0, %s28
      %s31 = sphi 0, %s29
      %s41 = sphi 0, %s43
      %s44 = sphi 0, %s41
      %s45 = sphi 0, %s44
      %s61 = sphi 0, %s45
      %s67 = sphi 0, %s69
      %s70 = sphi 0, %s67
      %s71 = sphi 0, %s70
      %s87 = sphi 0, %s71
      %s93 = sphi 0, %s95
      %s96 = sphi 0, %s93
      %s97 = sphi 0, %s96
      %s113 = sphi 0, %s97
      %s121 = sphi 0, %s123
      %s124 = sphi 0, %s121
      %s125 = sphi 0, %s124
      %s141 = sphi 0, %s125
      %s149 = sphi 0, %s151
      %s152 = sphi 0, %s149
      %s153 = sphi 0, %s152
      %s169 = sphi 0, %s153
    $region4: #{attn_res_block_up.5} parent=1 // loop_header_branch
      %22 = sbr.rel (%p20) target = $region8
    $region5: #{attn_res_block_up.5} parent=1 // loop_body
      %s24 = ssub.s32 %s19, 1
      %s25 = ssub.s32 %s19, 2
      %s32 = sadd.s32 1, %s27
      %p33 = scmp.ge.s32.totalorder %s32, 1
      %s34 = scalar_select %p33, 0, %s32
      %s35 = sadd.s32 1, %s26
      %s36 = scalar_select %p33, %s35, %s26
      %p37 = scmp.ge.s32.totalorder %s36, 2
      %s38 = scalar_select %p37, 0, %s36
      %s39 = ssub.s32 %s27, %s34
      %p40 = scmp.eq.s32.totalorder %s39, 0
      %s42 = sadd.s32 %s41, 1
      %s43 = scalar_select %p40, %s41, %s42
      %p46 = pneg %p40
      %p47 = scmp.eq.s32.totalorder %s19, 1
      %p48 = por %p46, %p47
      %p49 = scmp.ne.s32.totalorder %s41, %s44
      %p50 = scmp.eq.s32.totalorder %s19, 0
      %p51 = por %p49, %p50
      %p52 = scmp.ne.s32.totalorder %s41, %s44
      %p53 = scmp.eq.s32.totalorder %s24, 1
      %p54 = por %p52, %p53
      %p55 = scmp.ne.s32.totalorder %s44, %s45
      %p56 = scmp.eq.s32.totalorder %s24, 0
      %p57 = por %p55, %p56
      %p58 = scmp.ne.s32.totalorder %s44, %s45
      %p59 = scmp.eq.s32.totalorder %s25, 1
      %p60 = por %p58, %p59
      %p62 = scmp.ne.s32.totalorder %s45, %s61
      %p63 = scmp.eq.s32.totalorder %s25, 0
      %p64 = por %p62, %p63
      %s65 = ssub.s32 %s27, %s34
      %p66 = scmp.eq.s32.totalorder %s65, 0
      %s68 = sadd.s32 %s67, 1
      %s69 = scalar_select %p66, %s67, %s68
      %p72 = pneg %p66
      %p73 = scmp.eq.s32.totalorder %s19, 1
      %p74 = por %p72, %p73
      %p75 = scmp.ne.s32.totalorder %s67, %s70
      %p76 = scmp.eq.s32.totalorder %s19, 0
      %p77 = por %p75, %p76
      %p78 = scmp.ne.s32.totalorder %s67, %s70
      %p79 = scmp.eq.s32.totalorder %s24, 1
      %p80 = por %p78, %p79
      %p81 = scmp.ne.s32.totalorder %s70, %s71
      %p82 = scmp.eq.s32.totalorder %s24, 0
      %p83 = por %p81, %p82
      %p84 = scmp.ne.s32.totalorder %s70, %s71
      %p85 = scmp.eq.s32.totalorder %s25, 1
      %p86 = por %p84, %p85
      %p88 = scmp.ne.s32.totalorder %s71, %s87
      %p89 = scmp.eq.s32.totalorder %s25, 0
      %p90 = por %p88, %p89
      %s91 = ssub.s32 %s26, %s38
      %p92 = scmp.eq.s32.totalorder %s91, 0
      %s94 = sadd.s32 %s93, 1
      %s95 = scalar_select %p92, %s93, %s94
      %p98 = pneg %p92
      %p99 = scmp.eq.s32.totalorder %s19, 1
      %p100 = por %p98, %p99
      %p101 = scmp.ne.s32.totalorder %s93, %s96
      %p102 = scmp.eq.s32.totalorder %s19, 0
      %p103 = por %p101, %p102
      %p104 = scmp.ne.s32.totalorder %s93, %s96
      %p105 = scmp.eq.s32.totalorder %s24, 1
      %p106 = por %p104, %p105
      %p107 = scmp.ne.s32.totalorder %s96, %s97
      %p108 = scmp.eq.s32.totalorder %s24, 0
      %p109 = por %p107, %p108
      %p110 = scmp.ne.s32.totalorder %s96, %s97
      %p111 = scmp.eq.s32.totalorder %s25, 1
      %p112 = por %p110, %p111
      %p114 = scmp.ne.s32.totalorder %s97, %s113
      %p115 = scmp.eq.s32.totalorder %s25, 0
      %p116 = por %p114, %p115
      %s117 = ssub.s32 %s26, %s38
      %s118 = ssub.s32 %s27, %s34
      %s119 = sor.u32 %s117, %s118
      %p120 = scmp.eq.s32.totalorder %s119, 0
      %s122 = sadd.s32 %s121, 1
      %s123 = scalar_select %p120, %s121, %s122
      %p126 = pneg %p120
      %p127 = scmp.eq.s32.totalorder %s19, 1
      %p128 = por %p126, %p127
      %p129 = scmp.ne.s32.totalorder %s121, %s124
      %p130 = scmp.eq.s32.totalorder %s19, 0
      %p131 = por %p129, %p130
      %p132 = scmp.ne.s32.totalorder %s121, %s124
      %p133 = scmp.eq.s32.totalorder %s24, 1
      %p134 = por %p132, %p133
      %p135 = scmp.ne.s32.totalorder %s124, %s125
      %p136 = scmp.eq.s32.totalorder %s24, 0
      %p137 = por %p135, %p136
      %p138 = scmp.ne.s32.totalorder %s124, %s125
      %p139 = scmp.eq.s32.totalorder %s25, 1
      %p140 = por %p138, %p139
      %p142 = scmp.ne.s32.totalorder %s125, %s141
      %p143 = scmp.eq.s32.totalorder %s25, 0
      %p144 = por %p142, %p143
      %s145 = ssub.s32 %s26, %s38
      %s146 = ssub.s32 %s27, %s34
      %s147 = sor.u32 %s145, %s146
      %p148 = scmp.eq.s32.totalorder %s147, 0
      %s150 = sadd.s32 %s149, 1
      %s151 = scalar_select %p148, %s149, %s150
      %p154 = pneg %p148
      %p155 = scmp.eq.s32.totalorder %s19, 1
      %p156 = por %p154, %p155
      %p157 = scmp.ne.s32.totalorder %s149, %s152
      %p158 = scmp.eq.s32.totalorder %s19, 0
      %p159 = por %p157, %p158
      %p160 = scmp.ne.s32.totalorder %s149, %s152
      %p161 = scmp.eq.s32.totalorder %s24, 1
      %p162 = por %p160, %p161
      %p163 = scmp.ne.s32.totalorder %s152, %s153
      %p164 = scmp.eq.s32.totalorder %s24, 0
      %p165 = por %p163, %p164
      %p166 = scmp.ne.s32.totalorder %s152, %s153
      %p167 = scmp.eq.s32.totalorder %s25, 1
      %p168 = por %p166, %p167
      %p170 = scmp.ne.s32.totalorder %s153, %s169
      %p171 = scmp.eq.s32.totalorder %s25, 0
      %p172 = por %p170, %p171
      %p173 = scmp.le.s32.totalorder 1, %s19
      %p174 = scmp.lt.s32.totalorder %s19, 3
      %p175 = pnand %p173, %p174
      %p176 = pneg %p175
      // Predicated region
      $region9: #{attn_res_block_up.5} parent=5 // pred_check
        _
      $region10: #{attn_res_block_up.5} parent=5 // pred_check_branch
        %178 = sbr.rel (%p175) target = $region12
      $region11: #{attn_res_block_up.5} parent=5 // pred_region
        %s179 = ssub.s32 %s19, 1
        // Predicated region
        $region13: #{attn_res_block_up.5} parent=11 // pred_check
          %p180 = pneg %p57
        $region14: #{attn_res_block_up.5} parent=11 // pred_check_branch
          %182 = sbr.rel (%p180) target = $region16
        $region15: #{attn_res_block_up.5} parent=11 // pred_region
          %s183 = smul.u32 2, %s29
          %s185 = ssub.s32 128, 128
          %186 = vsyncadd [#allocation5], %s185
          %s187 = smul.addr %s183, 64
          %s188 = scalar_lea.hbm %s0, %s187
          %s189 = sshll.u32 [#allocation4], 4
          %s190 = int_to_ptr.vmem [resolvable:$true] %s189
          %195 = dma.hbm_to_vmem [thread:$0]  %s188, 128, %s190, [#allocation5], 64, 64, 4
        $region16: #{attn_res_block_up.5} parent=11 // pred_fallthru
          _
        // Predicated region
        $region17: #{attn_res_block_up.5} parent=11 // pred_check
          %p196 = pneg %p83
        $region18: #{attn_res_block_up.5} parent=11 // pred_check_branch
          %198 = sbr.rel (%p196) target = $region20
        $region19: #{attn_res_block_up.5} parent=11 // pred_region
          %s199 = smul.u32 2, %s29
          %s201 = ssub.s32 256, 256
          %202 = vsyncadd [#allocation8], %s201
          %s203 = smul.addr %s199, 128
          %s204 = scalar_lea.hbm %s1, %s203
          %s205 = sshll.u32 [#allocation7], 4
          %s206 = int_to_ptr.vmem [resolvable:$true] %s205
          %211 = dma.hbm_to_vmem [thread:$0]  %s204, 256, %s206, [#allocation8], 128, 128, 8
        $region20: #{attn_res_block_up.5} parent=11 // pred_fallthru
          _
      $region12: #{attn_res_block_up.5} parent=5 // pred_fallthru
        _
      %p212 = scmp.lt.s32.totalorder %s19, 2
      // Predicated region
      $region21: #{attn_res_block_up.5} parent=5 // pred_check
        %p213 = pneg %p212
      $region22: #{attn_res_block_up.5} parent=5 // pred_check_branch
        %215 = sbr.rel (%p213) target = $region24
      $region23: #{attn_res_block_up.5} parent=5 // pred_region
        // Predicated region
        $region25: #{attn_res_block_up.5} parent=23 // pred_check
          %p216 = pneg %p103
        $region26: #{attn_res_block_up.5} parent=23 // pred_check_branch
          %218 = sbr.rel (%p216) target = $region28
        $region27: #{attn_res_block_up.5} parent=23 // pred_region
          %s219 = sand.u32 %s19, 1
          %s220 = scalar_lea.sflag [#allocation5], %s219
          %s221 = sand.u32 %s93, 1
          %s222 = smul.addr %s221, 8
          %s223 = scalar_lea.vmem [#allocation9], %s222
          %s225 = ssub.s32 128, 128
          %226 = vsyncadd %s220, %s225
          %s227 = smul.addr %s26, 8
          %s228 = smul.addr %s227, 16
          %s229 = scalar_lea.hbm %s2, %s228
          %s230 = sshll.u32 %s223, 4
          %s231 = int_to_ptr.vmem [resolvable:$true] %s230
          %236 = dma.hbm_to_vmem [thread:$0]  %s229, 128, %s231, %s220, 16, 16, 1
        $region28: #{attn_res_block_up.5} parent=23 // pred_fallthru
          _
      $region24: #{attn_res_block_up.5} parent=5 // pred_fallthru
        _
      %p237 = scmp.le.s32.totalorder 1, %s19
      %p238 = scmp.lt.s32.totalorder %s19, 3
      %p239 = pnand %p237, %p238
      %p240 = pneg %p239
      // Predicated region
      $region29: #{attn_res_block_up.5} parent=5 // pred_check
        _
      $region30: #{attn_res_block_up.5} parent=5 // pred_check_branch
        %242 = sbr.rel (%p239) target = $region32
      $region31: #{attn_res_block_up.5} parent=5 // pred_region
        %s243 = ssub.s32 %s19, 1
        // Predicated region
        $region33: #{attn_res_block_up.5} parent=31 // pred_check
          %p244 = pneg %p57
        $region34: #{attn_res_block_up.5} parent=31 // pred_check_branch
          %246 = sbr.rel (%p244) target = $region36
        $region35: #{attn_res_block_up.5} parent=31 // pred_region
          %247 = dma.done [#allocation5], 128
        $region36: #{attn_res_block_up.5} parent=31 // pred_fallthru
          _
        // Predicated region
        $region37: #{attn_res_block_up.5} parent=31 // pred_check
          %p248 = pneg %p83
        $region38: #{attn_res_block_up.5} parent=31 // pred_check_branch
          %250 = sbr.rel (%p248) target = $region40
        $region39: #{attn_res_block_up.5} parent=31 // pred_region
          %251 = dma.done [#allocation8], 256
        $region40: #{attn_res_block_up.5} parent=31 // pred_fallthru
          _
        %s252 = sand.u32 %s24, 1
        %s253 = scalar_lea.sflag [#allocation5], %s252
        %s254 = sand.u32 %s96, 1
        %s255 = smul.addr %s254, 8
        %s256 = scalar_lea.vmem [#allocation9], %s255
        // Predicated region
        $region41: #{attn_res_block_up.5} parent=31 // pred_check
          %p257 = pneg %p109
        $region42: #{attn_res_block_up.5} parent=31 // pred_check_branch
          %259 = sbr.rel (%p257) target = $region44
        $region43: #{attn_res_block_up.5} parent=31 // pred_region
          %260 = dma.done %s253, 128
        $region44: #{attn_res_block_up.5} parent=31 // pred_fallthru
          _
        %p261 = pneg %p57
        %p262 = pneg %p54
        %p263 = pneg %p83
        %p264 = pneg %p80
        %s265 = sand.u32 %s24, 1
        %s266 = scalar_lea.sflag [#allocation5], %s265
        %s267 = sand.u32 %s96, 1
        %s268 = smul.addr %s267, 8
        %s269 = scalar_lea.vmem [#allocation9], %s268
        %p270 = pneg %p109
        %p271 = pneg %p106
        %p272 = pneg %p137
        %p273 = pneg %p134
        %s274 = sand.u32 %s124, 1
        %s275 = scalar_lea.sflag [#allocation6], %s274
        %s276 = sand.u32 %s124, 1
        %s277 = smul.addr %s276, 32
        %s278 = scalar_lea.vmem [#allocation10], %s277
        %p279 = pneg %p165
        %p280 = pneg %p162
        %s281 = sand.u32 %s152, 1
        %s282 = scalar_lea.sflag [#allocation12], %s281
        %s283 = sand.u32 %s152, 1
        %s284 = smul.addr %s283, 16
        %s285 = scalar_lea.vmem [#allocation11], %s284
        %s286 = smul.u32 2, %s29
        %s287 = smul.u32 2, %s29
        %s288 = smul.u32 16, %s29
        %s289 = smul.u32 2, %s29
        %v291 = vld [vmem:[#allocation7] sm:$0xff]
        %v292 = vld [vmem:[#allocation7 + $0x8] sm:$0xff]
        %v293 = vlaneseq
        %v294 = vand.u32 %v293, 127
        %vm295 = vcmp.lt.s32.totalorder %v294, 0
        %v296 = vsub.s32 0, %v294
        %v297 = vsel %vm295, %v296, %v294
        %v298 = vshrl.u32 %v297, 3
        %v299 = vand.u32 %v297, 7
        %v300 = vsub.s32 0, %v299
        %v301 = vsel %vm295, %v300, %v299
        %vm302 = vcmp.ne.s32.totalorder %v301, 0
        %vm303 = vcmp.lt.s32.totalorder %v301, 0
        %vm304 = vmand %vm303, %vm302
        %v305 = vadd.s32 %v301, 8
        %v306 = vsel %vm304, %v305, %v301
        %307 = vst [vmem:[#allocation2] sm:$0xff] 0.0
        %308 = vst [vmem:[#allocation2 + $0x8] sm:$0xff] 0.0
        %vm309 = vcmask 523264
        %310 = vst.msk [vmem:[#allocation2 + $0x10] sm:$0xff] %vm309, 0.0
        %v311 = vld [vmem:[%s256] sm:$0x1]
        %v312 = vld [vmem:[%s256 + $0x1] sm:$0x1]
        %v313 = vld [vmem:[%s256 + $0x2] sm:$0x1]
        %v314 = vld [vmem:[%s256 + $0x3] sm:$0x1]
        %v315 = vld [vmem:[%s256 + $0x4] sm:$0x1]
        %v316 = vld [vmem:[%s256 + $0x5] sm:$0x1]
        %v317 = vld [vmem:[%s256 + $0x6] sm:$0x1]
        %v318 = vld [vmem:[%s256 + $0x7] sm:$0x1]
        %v319 = vunpack.c.l.bf16 %v311
        %v320 = vunpack.c.l.bf16 %v312
        %v321 = vunpack.c.l.bf16 %v313
        %v322 = vunpack.c.l.bf16 %v314
        %v323 = vunpack.c.l.bf16 %v315
        %v324 = vunpack.c.l.bf16 %v316
        %v325 = vunpack.c.l.bf16 %v317
        %v326 = vunpack.c.l.bf16 %v318
        %v335 = vlaneseq
        %v336 = vshrl.u32 %v335, 7
        %v337 = vsub.s32 0, %v336
        %v338 = vrot.slane %v319, %v337
        %v339 = vlaneseq
        %v340 = vshrl.u32 %v339, 7
        %v341 = vsub.s32 0, %v340
        %v342 = vrot.slane %v320, %v341
        %v343 = vlaneseq
        %v344 = vshrl.u32 %v343, 7
        %v345 = vsub.s32 0, %v344
        %v346 = vrot.slane %v321, %v345
        %v347 = vlaneseq
        %v348 = vshrl.u32 %v347, 7
        %v349 = vsub.s32 0, %v348
        %v350 = vrot.slane %v322, %v349
        %v351 = vlaneseq
        %v352 = vshrl.u32 %v351, 7
        %v353 = vsub.s32 0, %v352
        %v354 = vrot.slane %v323, %v353
        %v355 = vlaneseq
        %v356 = vshrl.u32 %v355, 7
        %v357 = vsub.s32 0, %v356
        %v358 = vrot.slane %v324, %v357
        %v359 = vlaneseq
        %v360 = vshrl.u32 %v359, 7
        %v361 = vsub.s32 0, %v360
        %v362 = vrot.slane %v325, %v361
        %v363 = vlaneseq
        %v364 = vshrl.u32 %v363, 7
        %v365 = vsub.s32 0, %v364
        %v366 = vrot.slane %v326, %v365
        %vm367 = vcmask 1041409
        %v368 = vsel %vm367, %v342, %v338
        %vm369 = vcmask 1042434
        %v370 = vsel %vm369, %v346, %v368
        %vm371 = vcmask 1043459
        %v372 = vsel %vm371, %v350, %v370
        %vm373 = vcmask 1044484
        %v374 = vsel %vm373, %v354, %v372
        %vm375 = vcmask 1045509
        %v376 = vsel %vm375, %v358, %v374
        %vm377 = vcmask 1046534
        %v378 = vsel %vm377, %v362, %v376
        %vm379 = vcmask 1047559
        %v380 = vsel %vm379, %v366, %v378
        %382 = vst.msk [vmem:[#allocation2 + $0x8] sm:$0xff] %vm309, %v380
        %v383 = vld [vmem:[#allocation2] sm:$0xff]
        %v384 = vld [vmem:[#allocation2 + $0x8] sm:$0xff]
        %vm385 = vcmp.ge.s32.totalorder %v306, 1
        %v386 = vsel %vm385, 1, 0
        %vm387 = vcmp.eq.s32.totalorder %v386, 1
        %390 = vrot.lane.b32.xlu0 %v383, 9
        %v391 = vpop.permute.xlu0 %390
        %392 = vrot.lane.b32.xlu0 %v384, 9
        %v393 = vpop.permute.xlu0 %392
        %vm394 = vcmask 72704
        %v395 = vsel %vm394, %v391, %v393
        %v397 = vsel %vm387, %v395, 0.0
        %398 = vst.msk [vmem:[#allocation3] sm:$0xff] %vm309, %v397
        %v399 = vld [vmem:[#allocation2] sm:$0xff]
        %v400 = vld [vmem:[#allocation2 + $0x8] sm:$0xff]
        %403 = vrot.lane.b32.xlu0 %v399, 8
        %v404 = vpop.permute.xlu0 %403
        %405 = vrot.lane.b32.xlu0 %v400, 8
        %v406 = vpop.permute.xlu0 %405
        %vm407 = vcmask 64512
        %v408 = vsel %vm407, %v404, %v406
        %410 = vst.msk [vmem:[#allocation3 + $0x8] sm:$0xff] %vm309, %v408
        %v411 = vld [vmem:[#allocation2] sm:$0xff]
        %v412 = vld [vmem:[#allocation2 + $0x8] sm:$0xff]
        %415 = vrot.lane.b32.xlu0 %v411, 8
        %v416 = vpop.permute.xlu0 %415
        %417 = vrot.lane.b32.xlu0 %v412, 8
        %v418 = vpop.permute.xlu0 %417
        %v419 = vsel %vm407, %v416, %v418
        %421 = vst.msk [vmem:[#allocation3 + $0x10] sm:$0xff] %vm309, %v419
        %v422 = vld [vmem:[#allocation2] sm:$0xff]
        %v423 = vld [vmem:[#allocation2 + $0x8] sm:$0xff]
        %426 = vrot.lane.b32.xlu0 %v422, 1
        %v427 = vpop.permute.xlu0 %426
        %428 = vrot.lane.b32.xlu0 %v423, 1
        %v429 = vpop.permute.xlu0 %428
        %vm430 = vcmask 7168
        %v431 = vsel %vm430, %v427, %v429
        %v433 = vsel %vm387, %v431, 0.0
        %434 = vst.msk [vmem:[#allocation3 + $0x18] sm:$0xff] %vm309, %v433
        %v435 = vld [vmem:[#allocation2 + $0x8] sm:$0xff]
        %436 = vst.msk [vmem:[#allocation3 + $0x20] sm:$0xff] %vm309, %v435
        %v437 = vld [vmem:[#allocation2 + $0x8] sm:$0xff]
        %438 = vst.msk [vmem:[#allocation3 + $0x28] sm:$0xff] %vm309, %v437
        %v439 = vld [vmem:[#allocation2] sm:$0xff]
        %v440 = vld [vmem:[#allocation2 + $0x8] sm:$0xff]
        %443 = vrot.lane.b32.xlu0 %v439, 1
        %v444 = vpop.permute.xlu0 %443
        %445 = vrot.lane.b32.xlu0 %v440, 1
        %v446 = vpop.permute.xlu0 %445
        %v447 = vsel %vm430, %v444, %v446
        %v449 = vsel %vm387, %v447, 0.0
        %450 = vst.msk [vmem:[#allocation3 + $0x30] sm:$0xff] %vm309, %v449
        %v451 = vld [vmem:[#allocation2 + $0x8] sm:$0xff]
        %452 = vst.msk [vmem:[#allocation3 + $0x38] sm:$0xff] %vm309, %v451
        %v453 = vld [vmem:[#allocation2 + $0x8] sm:$0xff]
        %454 = vst.msk [vmem:[#allocation3 + $0x40] sm:$0xff] %vm309, %v453
        %v455 = vld [vmem:[#allocation4] sm:$0xf]
        %v456 = vld [vmem:[#allocation4 + $0x4] sm:$0xf]
        %v457 = vld [vmem:[#allocation3] sm:$0xff]
        %v458 = vld [vmem:[#allocation3 + $0x8] sm:$0xff]
        %v459 = vld [vmem:[#allocation3 + $0x10] sm:$0xff]
        %v460 = vld [vmem:[#allocation3 + $0x18] sm:$0xff]
        %v461 = vld [vmem:[#allocation3 + $0x20] sm:$0xff]
        %v462 = vld [vmem:[#allocation3 + $0x28] sm:$0xff]
        %v463 = vld [vmem:[#allocation3 + $0x30] sm:$0xff]
        %v464 = vld [vmem:[#allocation3 + $0x38] sm:$0xff]
        %v465 = vld [vmem:[#allocation3 + $0x40] sm:$0xff]
        %v466 = vpack.c.bf16 %v458, %v457
        %v467 = vpack.c.bf16 %v460, %v459
        %v468 = vpack.c.bf16 %v462, %v461
        %v469 = vpack.c.bf16 %v464, %v463
        %v470 = vpack.c.bf16 %v465, %v465
        %472 = vset.pattern.permute.xlu0 0
        %473 = vperm.xlu0 %472, %v291
        %v474 = vpop.permute.xlu0 %473
        %477 = vset.pattern.permute.xlu0 0
        %478 = vperm.xlu0 %477, %v292
        %v479 = vpop.permute.xlu0 %478
        %v483 = vunpack.c.l.b16 %v455
        %v484 = vunpack.c.l.b16 %v456
        %v485 = vpack.c.b16 %v484, %v483
        %vm486 = vcmask 588800
        %v488 = vsel %vm486, %v485, 0
        %vm490 = vcmask 1043456
        %v492 = vsel %vm490, %v470, 0
        %494 = vmatprep.subr.bf16.mxu0 0
        %495 = vmatpush1.bf16.msra.mxu0 %v466
        %496 = vmatprep.subr.bf16.mxu0 0
        %497 = vmatpush1.bf16.msra.mxu0 %v467
        %498 = vmatprep.subr.bf16.mxu0 0
        %499 = vmatpush1.bf16.msra.mxu0 %v468
        %500 = vmatprep.subr.bf16.mxu0 0
        %501 = vmatpush1.bf16.msra.mxu0 %v469
        %502 = vmatprep.subr.bf16.mxu0 0
        %503 = vmatpush1.bf16.msra.mxu0 %v492
        %504 = vmatprep.subr.bf16.mxu0 0
        %505 = vmatpush1.bf16.msra.mxu0 0
        %506 = vmatprep.subr.bf16.mxu0 0
        %507 = vmatpush1.bf16.msra.mxu0 0
        %508 = vmatprep.subr.bf16.mxu0 0
        %509 = vmatpush1.bf16.msra.mxu0 0
        %510 = vmatprep.subr.bf16.mxu0 0
        %511 = vmatpush1.bf16.msra.mxu0 0
        %512 = vmatprep.subr.bf16.mxu0 0
        %513 = vmatpush1.bf16.msra.mxu0 0
        %514 = vmatprep.subr.bf16.mxu0 0
        %515 = vmatpush1.bf16.msra.mxu0 0
        %516 = vmatprep.subr.bf16.mxu0 0
        %517 = vmatpush1.bf16.msra.mxu0 0
        %518 = vmatprep.subr.bf16.mxu0 0
        %519 = vmatpush1.bf16.msra.mxu0 0
        %520 = vmatprep.subr.bf16.mxu0 0
        %521 = vmatpush1.bf16.msra.mxu0 0
        %522 = vmatprep.subr.bf16.mxu0 0
        %523 = vmatpush1.bf16.msra.mxu0 0
        %524 = vmatprep.subr.bf16.mxu0 0
        %525 = vmatpush1.bf16.msra.mxu0 0
        %526 = vmatprep.mubr.bf16.mxu0 0
        %527 = vmatmul.mubr.bf16.gmra.mrb[0].mxu0 %v488
        %v528 = vpop.f32.mrb[0].mxu0
        %v529 = vadd.f32 %v474, %v528
        %v530 = vpop.f32.mrb[0].mxu0
        %v531 = vpop.f32.mrb[0].mxu0
        %v532 = vadd.f32 %v479, %v531
        %v533 = vpop.f32.mrb[0].mxu0
        %534 = vdwg.mxu0
        %v535 = vpack.c.bf16 %v532, %v529
        %v537 = vcombine.high %v535, %v535
        %v539 = vunpack.c.l.s4 1966171168
        %v540 = vunpack.c.0.s8 %v539
        %v541 = vlaneseq
        %v542 = vshrl.u32 %v541, 7
        %v543 = vsub.s32 %v540, %v542
        %v544 = vrot.slane %v535, %v543
        %v546 = vunpack.c.l.s4 1966171168
        %v547 = vunpack.c.0.s8 %v546
        %v548 = vlaneseq
        %v549 = vshrl.u32 %v548, 7
        %v550 = vsub.s32 %v547, %v549
        %v551 = vrot.slane %v537, %v550
        %v552 = vcombine.high %v544, %v544
        %v553 = vcombine.high %v551, %v551
        %v555 = vunpack.c.l.s4 1966171168
        %v556 = vunpack.c.0.s8 %v555
        %v557 = vlaneseq
        %v558 = vshrl.u32 %v557, 7
        %v559 = vsub.s32 %v556, %v558
        %v560 = vrot.slane %v544, %v559
        %v562 = vunpack.c.l.s4 1966171168
        %v563 = vunpack.c.0.s8 %v562
        %v564 = vlaneseq
        %v565 = vshrl.u32 %v564, 7
        %v566 = vsub.s32 %v563, %v565
        %v567 = vrot.slane %v551, %v566
        %v569 = vunpack.c.l.s4 1966171168
        %v570 = vunpack.c.0.s8 %v569
        %v571 = vlaneseq
        %v572 = vshrl.u32 %v571, 7
        %v573 = vsub.s32 %v570, %v572
        %v574 = vrot.slane %v552, %v573
        %v576 = vunpack.c.l.s4 1966171168
        %v577 = vunpack.c.0.s8 %v576
        %v578 = vlaneseq
        %v579 = vshrl.u32 %v578, 7
        %v580 = vsub.s32 %v577, %v579
        %v581 = vrot.slane %v553, %v580
        %v582 = vcombine.high %v560, %v560
        %v583 = vcombine.high %v567, %v567
        %v584 = vcombine.high %v574, %v574
        %v585 = vcombine.high %v581, %v581
        %v586 = vunpack.i.l.s16 %v560
        %v587 = vunpack.i.h.s16 %v560
        %v588 = vunpack.i.l.s16 %v574
        %v589 = vunpack.i.h.s16 %v574
        %v590 = vunpack.i.l.s16 %v582
        %v591 = vunpack.i.h.s16 %v582
        %v592 = vunpack.i.l.s16 %v584
        %v593 = vunpack.i.h.s16 %v584
        %v594 = vunpack.i.l.s16 %v567
        %v595 = vunpack.i.h.s16 %v567
        %v596 = vunpack.i.l.s16 %v581
        %v597 = vunpack.i.h.s16 %v581
        %v598 = vunpack.i.l.s16 %v583
        %v599 = vunpack.i.h.s16 %v583
        %v600 = vunpack.i.l.s16 %v585
        %v601 = vunpack.i.h.s16 %v585
        %v602 = vpack.i.b16 %v586, %v586
        %v603 = vpack.i.b16 %v587, %v587
        %v604 = vpack.i.b16 %v588, %v588
        %v605 = vpack.i.b16 %v589, %v589
        %v606 = vpack.i.b16 %v590, %v590
        %v607 = vpack.i.b16 %v591, %v591
        %v608 = vpack.i.b16 %v592, %v592
        %v609 = vpack.i.b16 %v593, %v593
        %v610 = vpack.i.b16 %v594, %v594
        %v611 = vpack.i.b16 %v595, %v595
        %v612 = vpack.i.b16 %v596, %v596
        %v613 = vpack.i.b16 %v597, %v597
        %v614 = vpack.i.b16 %v598, %v598
        %v615 = vpack.i.b16 %v599, %v599
        %v616 = vpack.i.b16 %v600, %v600
        %v617 = vpack.i.b16 %v601, %v601
        %v619 = vunpack.c.l.s4 857870592
        %v620 = vunpack.c.0.s8 %v619
        %v621 = vlaneseq
        %v622 = vshrl.u32 %v621, 7
        %v623 = vsub.s32 %v620, %v622
        %v624 = vrot.slane %v602, %v623
        %v626 = vunpack.c.l.s4 857870592
        %v627 = vunpack.c.0.s8 %v626
        %v628 = vlaneseq
        %v629 = vshrl.u32 %v628, 7
        %v630 = vsub.s32 %v627, %v629
        %v631 = vrot.slane %v603, %v630
        %v633 = vunpack.c.l.s4 857870592
        %v634 = vunpack.c.0.s8 %v633
        %v635 = vlaneseq
        %v636 = vshrl.u32 %v635, 7
        %v637 = vsub.s32 %v634, %v636
        %v638 = vrot.slane %v604, %v637
        %v640 = vunpack.c.l.s4 857870592
        %v641 = vunpack.c.0.s8 %v640
        %v642 = vlaneseq
        %v643 = vshrl.u32 %v642, 7
        %v644 = vsub.s32 %v641, %v643
        %v645 = vrot.slane %v605, %v644
        %v647 = vunpack.c.l.s4 857870592
        %v648 = vunpack.c.0.s8 %v647
        %v649 = vlaneseq
        %v650 = vshrl.u32 %v649, 7
        %v651 = vsub.s32 %v648, %v650
        %v652 = vrot.slane %v606, %v651
        %v654 = vunpack.c.l.s4 857870592
        %v655 = vunpack.c.0.s8 %v654
        %v656 = vlaneseq
        %v657 = vshrl.u32 %v656, 7
        %v658 = vsub.s32 %v655, %v657
        %v659 = vrot.slane %v607, %v658
        %v661 = vunpack.c.l.s4 857870592
        %v662 = vunpack.c.0.s8 %v661
        %v663 = vlaneseq
        %v664 = vshrl.u32 %v663, 7
        %v665 = vsub.s32 %v662, %v664
        %v666 = vrot.slane %v608, %v665
        %v668 = vunpack.c.l.s4 857870592
        %v669 = vunpack.c.0.s8 %v668
        %v670 = vlaneseq
        %v671 = vshrl.u32 %v670, 7
        %v672 = vsub.s32 %v669, %v671
        %v673 = vrot.slane %v609, %v672
        %v675 = vunpack.c.l.s4 857870592
        %v676 = vunpack.c.0.s8 %v675
        %v677 = vlaneseq
        %v678 = vshrl.u32 %v677, 7
        %v679 = vsub.s32 %v676, %v678
        %v680 = vrot.slane %v610, %v679
        %v682 = vunpack.c.l.s4 857870592
        %v683 = vunpack.c.0.s8 %v682
        %v684 = vlaneseq
        %v685 = vshrl.u32 %v684, 7
        %v686 = vsub.s32 %v683, %v685
        %v687 = vrot.slane %v611, %v686
        %v689 = vunpack.c.l.s4 857870592
        %v690 = vunpack.c.0.s8 %v689
        %v691 = vlaneseq
        %v692 = vshrl.u32 %v691, 7
        %v693 = vsub.s32 %v690, %v692
        %v694 = vrot.slane %v612, %v693
        %v696 = vunpack.c.l.s4 857870592
        %v697 = vunpack.c.0.s8 %v696
        %v698 = vlaneseq
        %v699 = vshrl.u32 %v698, 7
        %v700 = vsub.s32 %v697, %v699
        %v701 = vrot.slane %v613, %v700
        %v703 = vunpack.c.l.s4 857870592
        %v704 = vunpack.c.0.s8 %v703
        %v705 = vlaneseq
        %v706 = vshrl.u32 %v705, 7
        %v707 = vsub.s32 %v704, %v706
        %v708 = vrot.slane %v614, %v707
        %v710 = vunpack.c.l.s4 857870592
        %v711 = vunpack.c.0.s8 %v710
        %v712 = vlaneseq
        %v713 = vshrl.u32 %v712, 7
        %v714 = vsub.s32 %v711, %v713
        %v715 = vrot.slane %v615, %v714
        %v717 = vunpack.c.l.s4 857870592
        %v718 = vunpack.c.0.s8 %v717
        %v719 = vlaneseq
        %v720 = vshrl.u32 %v719, 7
        %v721 = vsub.s32 %v718, %v720
        %v722 = vrot.slane %v616, %v721
        %v724 = vunpack.c.l.s4 857870592
        %v725 = vunpack.c.0.s8 %v724
        %v726 = vlaneseq
        %v727 = vshrl.u32 %v726, 7
        %v728 = vsub.s32 %v725, %v727
        %v729 = vrot.slane %v617, %v728
        %vm746 = vcmask 516096
        %vm747 = vsmask.f32 256
        %vm748 = vmand %vm746, %vm747
        %v749 = vld [vmem:[%s278] sm:$0x1]
        %v750 = vsel %vm748, %v624, %v749
        %751 = vst [vmem:[%s278] sm:$0x1] %v750
        %v752 = vld [vmem:[%s278 + $0x2] sm:$0x1]
        %v753 = vsel %vm748, %v631, %v752
        %754 = vst [vmem:[%s278 + $0x2] sm:$0x1] %v753
        %v755 = vld [vmem:[%s278 + $0x4] sm:$0x1]
        %v756 = vsel %vm748, %v638, %v755
        %757 = vst [vmem:[%s278 + $0x4] sm:$0x1] %v756
        %v758 = vld [vmem:[%s278 + $0x6] sm:$0x1]
        %v759 = vsel %vm748, %v645, %v758
        %760 = vst [vmem:[%s278 + $0x6] sm:$0x1] %v759
        %v761 = vld [vmem:[%s278 + $0x8] sm:$0x1]
        %v762 = vsel %vm748, %v652, %v761
        %763 = vst [vmem:[%s278 + $0x8] sm:$0x1] %v762
        %v764 = vld [vmem:[%s278 + $0xa] sm:$0x1]
        %v765 = vsel %vm748, %v659, %v764
        %766 = vst [vmem:[%s278 + $0xa] sm:$0x1] %v765
        %v767 = vld [vmem:[%s278 + $0xc] sm:$0x1]
        %v768 = vsel %vm748, %v666, %v767
        %769 = vst [vmem:[%s278 + $0xc] sm:$0x1] %v768
        %v770 = vld [vmem:[%s278 + $0xe] sm:$0x1]
        %v771 = vsel %vm748, %v673, %v770
        %772 = vst [vmem:[%s278 + $0xe] sm:$0x1] %v771
        %v773 = vld [vmem:[%s278 + $0x10] sm:$0x1]
        %v774 = vsel %vm748, %v680, %v773
        %775 = vst [vmem:[%s278 + $0x10] sm:$0x1] %v774
        %v776 = vld [vmem:[%s278 + $0x12] sm:$0x1]
        %v777 = vsel %vm748, %v687, %v776
        %778 = vst [vmem:[%s278 + $0x12] sm:$0x1] %v777
        %v779 = vld [vmem:[%s278 + $0x14] sm:$0x1]
        %v780 = vsel %vm748, %v694, %v779
        %781 = vst [vmem:[%s278 + $0x14] sm:$0x1] %v780
        %v782 = vld [vmem:[%s278 + $0x16] sm:$0x1]
        %v783 = vsel %vm748, %v701, %v782
        %784 = vst [vmem:[%s278 + $0x16] sm:$0x1] %v783
        %v785 = vld [vmem:[%s278 + $0x18] sm:$0x1]
        %v786 = vsel %vm748, %v708, %v785
        %787 = vst [vmem:[%s278 + $0x18] sm:$0x1] %v786
        %v788 = vld [vmem:[%s278 + $0x1a] sm:$0x1]
        %v789 = vsel %vm748, %v715, %v788
        %790 = vst [vmem:[%s278 + $0x1a] sm:$0x1] %v789
        %v791 = vld [vmem:[%s278 + $0x1c] sm:$0x1]
        %v792 = vsel %vm748, %v722, %v791
        %793 = vst [vmem:[%s278 + $0x1c] sm:$0x1] %v792
        %v794 = vld [vmem:[%s278 + $0x1e] sm:$0x1]
        %v795 = vsel %vm748, %v729, %v794
        %796 = vst [vmem:[%s278 + $0x1e] sm:$0x1] %v795
        %v797 = vld [vmem:[#allocation2] sm:$0xff]
        %v798 = vld [vmem:[#allocation2 + $0x8] sm:$0xff]
        %801 = vrot.lane.b32.xlu0 %v797, 8
        %v802 = vpop.permute.xlu0 %801
        %803 = vrot.lane.b32.xlu0 %v798, 8
        %v804 = vpop.permute.xlu0 %803
        %v805 = vsel %vm407, %v802, %v804
        %807 = vst.msk [vmem:[#allocation3] sm:$0xff] %vm309, %v805
        %v808 = vld [vmem:[#allocation2] sm:$0xff]
        %v809 = vld [vmem:[#allocation2 + $0x8] sm:$0xff]
        %812 = vrot.lane.b32.xlu0 %v808, 8
        %v813 = vpop.permute.xlu0 %812
        %814 = vrot.lane.b32.xlu0 %v809, 8
        %v815 = vpop.permute.xlu0 %814
        %v816 = vsel %vm407, %v813, %v815
        %818 = vst.msk [vmem:[#allocation3 + $0x8] sm:$0xff] %vm309, %v816
        %v819 = vld [vmem:[#allocation2] sm:$0xff]
        %v820 = vld [vmem:[#allocation2 + $0x8] sm:$0xff]
        %vm821 = vcmp.lt.s32.totalorder %v306, 7
        %v822 = vsel %vm821, 1, 0
        %vm823 = vcmp.eq.s32.totalorder %v822, 1
        %826 = vrot.lane.b32.xlu0 %v819, 7
        %v827 = vpop.permute.xlu0 %826
        %828 = vrot.lane.b32.xlu0 %v820, 7
        %v829 = vpop.permute.xlu0 %828
        %vm830 = vcmask 56320
        %v831 = vsel %vm830, %v827, %v829
        %v833 = vsel %vm823, %v831, 0.0
        %834 = vst.msk [vmem:[#allocation3 + $0x10] sm:$0xff] %vm309, %v833
        %v835 = vld [vmem:[#allocation2 + $0x8] sm:$0xff]
        %836 = vst.msk [vmem:[#allocation3 + $0x18] sm:$0xff] %vm309, %v835
        %v837 = vld [vmem:[#allocation2 + $0x8] sm:$0xff]
        %838 = vst.msk [vmem:[#allocation3 + $0x20] sm:$0xff] %vm309, %v837
        %v839 = vld [vmem:[#allocation2 + $0x8] sm:$0xff]
        %841 = vrot.lane.b32.xlu0 %v839, 127
        %v842 = vpop.permute.xlu0 %841
        %v844 = vsel %vm823, %v842, 0.0
        %845 = vst.msk [vmem:[#allocation3 + $0x28] sm:$0xff] %vm309, %v844
        %v846 = vld [vmem:[#allocation2 + $0x8] sm:$0xff]
        %847 = vst.msk [vmem:[#allocation3 + $0x30] sm:$0xff] %vm309, %v846
        %v848 = vld [vmem:[#allocation2 + $0x8] sm:$0xff]
        %849 = vst.msk [vmem:[#allocation3 + $0x38] sm:$0xff] %vm309, %v848
        %v850 = vld [vmem:[#allocation2 + $0x8] sm:$0xff]
        %852 = vrot.lane.b32.xlu0 %v850, 127
        %v853 = vpop.permute.xlu0 %852
        %v855 = vsel %vm823, %v853, 0.0
        %856 = vst.msk [vmem:[#allocation3 + $0x40] sm:$0xff] %vm309, %v855
        %v857 = vld [vmem:[#allocation4] sm:$0xf]
        %v858 = vld [vmem:[#allocation4 + $0x4] sm:$0xf]
        %v859 = vld [vmem:[#allocation3] sm:$0xff]
        %v860 = vld [vmem:[#allocation3 + $0x8] sm:$0xff]
        %v861 = vld [vmem:[#allocation3 + $0x10] sm:$0xff]
        %v862 = vld [vmem:[#allocation3 + $0x18] sm:$0xff]
        %v863 = vld [vmem:[#allocation3 + $0x20] sm:$0xff]
        %v864 = vld [vmem:[#allocation3 + $0x28] sm:$0xff]
        %v865 = vld [vmem:[#allocation3 + $0x30] sm:$0xff]
        %v866 = vld [vmem:[#allocation3 + $0x38] sm:$0xff]
        %v867 = vld [vmem:[#allocation3 + $0x40] sm:$0xff]
        %v868 = vpack.c.bf16 %v860, %v859
        %v869 = vpack.c.bf16 %v862, %v861
        %v870 = vpack.c.bf16 %v864, %v863
        %v871 = vpack.c.bf16 %v866, %v865
        %v872 = vpack.c.bf16 %v867, %v867
        %v875 = vunpack.c.l.b16 %v857
        %v876 = vunpack.c.l.b16 %v858
        %v877 = vpack.c.b16 %v876, %v875
        %v879 = vsel %vm486, %v877, 0
        %v882 = vsel %vm490, %v872, 0
        %884 = vmatprep.subr.bf16.mxu0 0
        %885 = vmatpush1.bf16.msra.mxu0 %v868
        %886 = vmatprep.subr.bf16.mxu0 0
        %887 = vmatpush1.bf16.msra.mxu0 %v869
        %888 = vmatprep.subr.bf16.mxu0 0
        %889 = vmatpush1.bf16.msra.mxu0 %v870
        %890 = vmatprep.subr.bf16.mxu0 0
        %891 = vmatpush1.bf16.msra.mxu0 %v871
        %892 = vmatprep.subr.bf16.mxu0 0
        %893 = vmatpush1.bf16.msra.mxu0 %v882
        %894 = vmatprep.subr.bf16.mxu0 0
        %895 = vmatpush1.bf16.msra.mxu0 0
        %896 = vmatprep.subr.bf16.mxu0 0
        %897 = vmatpush1.bf16.msra.mxu0 0
        %898 = vmatprep.subr.bf16.mxu0 0
        %899 = vmatpush1.bf16.msra.mxu0 0
        %900 = vmatprep.subr.bf16.mxu0 0
        %901 = vmatpush1.bf16.msra.mxu0 0
        %902 = vmatprep.subr.bf16.mxu0 0
        %903 = vmatpush1.bf16.msra.mxu0 0
        %904 = vmatprep.subr.bf16.mxu0 0
        %905 = vmatpush1.bf16.msra.mxu0 0
        %906 = vmatprep.subr.bf16.mxu0 0
        %907 = vmatpush1.bf16.msra.mxu0 0
        %908 = vmatprep.subr.bf16.mxu0 0
        %909 = vmatpush1.bf16.msra.mxu0 0
        %910 = vmatprep.subr.bf16.mxu0 0
        %911 = vmatpush1.bf16.msra.mxu0 0
        %912 = vmatprep.subr.bf16.mxu0 0
        %913 = vmatpush1.bf16.msra.mxu0 0
        %914 = vmatprep.subr.bf16.mxu0 0
        %915 = vmatpush1.bf16.msra.mxu0 0
        %916 = vmatprep.mubr.bf16.mxu0 0
        %917 = vmatmul.mubr.bf16.gmra.mrb[0].mxu0 %v879
        %v918 = vpop.f32.mrb[0].mxu0
        %v919 = vadd.f32 %v474, %v918
        %v920 = vpop.f32.mrb[0].mxu0
        %v921 = vpop.f32.mrb[0].mxu0
        %v922 = vadd.f32 %v479, %v921
        %v923 = vpop.f32.mrb[0].mxu0
        %924 = vdwg.mxu0
        %v925 = vpack.c.bf16 %v922, %v919
        %v927 = vcombine.high %v925, %v925
        %v929 = vunpack.c.l.s4 1966171168
        %v930 = vunpack.c.0.s8 %v929
        %v931 = vlaneseq
        %v932 = vshrl.u32 %v931, 7
        %v933 = vsub.s32 %v930, %v932
        %v934 = vrot.slane %v925, %v933
        %v936 = vunpack.c.l.s4 1966171168
        %v937 = vunpack.c.0.s8 %v936
        %v938 = vlaneseq
        %v939 = vshrl.u32 %v938, 7
        %v940 = vsub.s32 %v937, %v939
        %v941 = vrot.slane %v927, %v940
        %v942 = vcombine.high %v934, %v934
        %v943 = vcombine.high %v941, %v941
        %v945 = vunpack.c.l.s4 1966171168
        %v946 = vunpack.c.0.s8 %v945
        %v947 = vlaneseq
        %v948 = vshrl.u32 %v947, 7
        %v949 = vsub.s32 %v946, %v948
        %v950 = vrot.slane %v934, %v949
        %v952 = vunpack.c.l.s4 1966171168
        %v953 = vunpack.c.0.s8 %v952
        %v954 = vlaneseq
        %v955 = vshrl.u32 %v954, 7
        %v956 = vsub.s32 %v953, %v955
        %v957 = vrot.slane %v941, %v956
        %v959 = vunpack.c.l.s4 1966171168
        %v960 = vunpack.c.0.s8 %v959
        %v961 = vlaneseq
        %v962 = vshrl.u32 %v961, 7
        %v963 = vsub.s32 %v960, %v962
        %v964 = vrot.slane %v942, %v963
        %v966 = vunpack.c.l.s4 1966171168
        %v967 = vunpack.c.0.s8 %v966
        %v968 = vlaneseq
        %v969 = vshrl.u32 %v968, 7
        %v970 = vsub.s32 %v967, %v969
        %v971 = vrot.slane %v943, %v970
        %v972 = vcombine.high %v950, %v950
        %v973 = vcombine.high %v957, %v957
        %v974 = vcombine.high %v964, %v964
        %v975 = vcombine.high %v971, %v971
        %v976 = vunpack.i.l.s16 %v950
        %v977 = vunpack.i.h.s16 %v950
        %v978 = vunpack.i.l.s16 %v964
        %v979 = vunpack.i.h.s16 %v964
        %v980 = vunpack.i.l.s16 %v972
        %v981 = vunpack.i.h.s16 %v972
        %v982 = vunpack.i.l.s16 %v974
        %v983 = vunpack.i.h.s16 %v974
        %v984 = vunpack.i.l.s16 %v957
        %v985 = vunpack.i.h.s16 %v957
        %v986 = vunpack.i.l.s16 %v971
        %v987 = vunpack.i.h.s16 %v971
        %v988 = vunpack.i.l.s16 %v973
        %v989 = vunpack.i.h.s16 %v973
        %v990 = vunpack.i.l.s16 %v975
        %v991 = vunpack.i.h.s16 %v975
        %v992 = vpack.i.b16 %v976, %v976
        %v993 = vpack.i.b16 %v977, %v977
        %v994 = vpack.i.b16 %v978, %v978
        %v995 = vpack.i.b16 %v979, %v979
        %v996 = vpack.i.b16 %v980, %v980
        %v997 = vpack.i.b16 %v981, %v981
        %v998 = vpack.i.b16 %v982, %v982
        %v999 = vpack.i.b16 %v983, %v983
        %v1000 = vpack.i.b16 %v984, %v984
        %v1001 = vpack.i.b16 %v985, %v985
        %v1002 = vpack.i.b16 %v986, %v986
        %v1003 = vpack.i.b16 %v987, %v987
        %v1004 = vpack.i.b16 %v988, %v988
        %v1005 = vpack.i.b16 %v989, %v989
        %v1006 = vpack.i.b16 %v990, %v990
        %v1007 = vpack.i.b16 %v991, %v991
        %v1009 = vunpack.c.l.s4 857870592
        %v1010 = vunpack.c.0.s8 %v1009
        %v1011 = vlaneseq
        %v1012 = vshrl.u32 %v1011, 7
        %v1013 = vsub.s32 %v1010, %v1012
        %v1014 = vrot.slane %v992, %v1013
        %v1016 = vunpack.c.l.s4 857870592
        %v1017 = vunpack.c.0.s8 %v1016
        %v1018 = vlaneseq
        %v1019 = vshrl.u32 %v1018, 7
        %v1020 = vsub.s32 %v1017, %v1019
        %v1021 = vrot.slane %v993, %v1020
        %v1023 = vunpack.c.l.s4 857870592
        %v1024 = vunpack.c.0.s8 %v1023
        %v1025 = vlaneseq
        %v1026 = vshrl.u32 %v1025, 7
        %v1027 = vsub.s32 %v1024, %v1026
        %v1028 = vrot.slane %v994, %v1027
        %v1030 = vunpack.c.l.s4 857870592
        %v1031 = vunpack.c.0.s8 %v1030
        %v1032 = vlaneseq
        %v1033 = vshrl.u32 %v1032, 7
        %v1034 = vsub.s32 %v1031, %v1033
        %v1035 = vrot.slane %v995, %v1034
        %v1037 = vunpack.c.l.s4 857870592
        %v1038 = vunpack.c.0.s8 %v1037
        %v1039 = vlaneseq
        %v1040 = vshrl.u32 %v1039, 7
        %v1041 = vsub.s32 %v1038, %v1040
        %v1042 = vrot.slane %v996, %v1041
        %v1044 = vunpack.c.l.s4 857870592
        %v1045 = vunpack.c.0.s8 %v1044
        %v1046 = vlaneseq
        %v1047 = vshrl.u32 %v1046, 7
        %v1048 = vsub.s32 %v1045, %v1047
        %v1049 = vrot.slane %v997, %v1048
        %v1051 = vunpack.c.l.s4 857870592
        %v1052 = vunpack.c.0.s8 %v1051
        %v1053 = vlaneseq
        %v1054 = vshrl.u32 %v1053, 7
        %v1055 = vsub.s32 %v1052, %v1054
        %v1056 = vrot.slane %v998, %v1055
        %v1058 = vunpack.c.l.s4 857870592
        %v1059 = vunpack.c.0.s8 %v1058
        %v1060 = vlaneseq
        %v1061 = vshrl.u32 %v1060, 7
        %v1062 = vsub.s32 %v1059, %v1061
        %v1063 = vrot.slane %v999, %v1062
        %v1065 = vunpack.c.l.s4 857870592
        %v1066 = vunpack.c.0.s8 %v1065
        %v1067 = vlaneseq
        %v1068 = vshrl.u32 %v1067, 7
        %v1069 = vsub.s32 %v1066, %v1068
        %v1070 = vrot.slane %v1000, %v1069
        %v1072 = vunpack.c.l.s4 857870592
        %v1073 = vunpack.c.0.s8 %v1072
        %v1074 = vlaneseq
        %v1075 = vshrl.u32 %v1074, 7
        %v1076 = vsub.s32 %v1073, %v1075
        %v1077 = vrot.slane %v1001, %v1076
        %v1079 = vunpack.c.l.s4 857870592
        %v1080 = vunpack.c.0.s8 %v1079
        %v1081 = vlaneseq
        %v1082 = vshrl.u32 %v1081, 7
        %v1083 = vsub.s32 %v1080, %v1082
        %v1084 = vrot.slane %v1002, %v1083
        %v1086 = vunpack.c.l.s4 857870592
        %v1087 = vunpack.c.0.s8 %v1086
        %v1088 = vlaneseq
        %v1089 = vshrl.u32 %v1088, 7
        %v1090 = vsub.s32 %v1087, %v1089
        %v1091 = vrot.slane %v1003, %v1090
        %v1093 = vunpack.c.l.s4 857870592
        %v1094 = vunpack.c.0.s8 %v1093
        %v1095 = vlaneseq
        %v1096 = vshrl.u32 %v1095, 7
        %v1097 = vsub.s32 %v1094, %v1096
        %v1098 = vrot.slane %v1004, %v1097
        %v1100 = vunpack.c.l.s4 857870592
        %v1101 = vunpack.c.0.s8 %v1100
        %v1102 = vlaneseq
        %v1103 = vshrl.u32 %v1102, 7
        %v1104 = vsub.s32 %v1101, %v1103
        %v1105 = vrot.slane %v1005, %v1104
        %v1107 = vunpack.c.l.s4 857870592
        %v1108 = vunpack.c.0.s8 %v1107
        %v1109 = vlaneseq
        %v1110 = vshrl.u32 %v1109, 7
        %v1111 = vsub.s32 %v1108, %v1110
        %v1112 = vrot.slane %v1006, %v1111
        %v1114 = vunpack.c.l.s4 857870592
        %v1115 = vunpack.c.0.s8 %v1114
        %v1116 = vlaneseq
        %v1117 = vshrl.u32 %v1116, 7
        %v1118 = vsub.s32 %v1115, %v1117
        %v1119 = vrot.slane %v1007, %v1118
        %vm1136 = vsmask.f32 7938
        %vm1137 = vmand %vm746, %vm1136
        %v1138 = vld [vmem:[%s278] sm:$0x1]
        %v1139 = vsel %vm1137, %v1014, %v1138
        %1140 = vst [vmem:[%s278] sm:$0x1] %v1139
        %v1141 = vld [vmem:[%s278 + $0x2] sm:$0x1]
        %v1142 = vsel %vm1137, %v1021, %v1141
        %1143 = vst [vmem:[%s278 + $0x2] sm:$0x1] %v1142
        %v1144 = vld [vmem:[%s278 + $0x4] sm:$0x1]
        %v1145 = vsel %vm1137, %v1028, %v1144
        %1146 = vst [vmem:[%s278 + $0x4] sm:$0x1] %v1145
        %v1147 = vld [vmem:[%s278 + $0x6] sm:$0x1]
        %v1148 = vsel %vm1137, %v1035, %v1147
        %1149 = vst [vmem:[%s278 + $0x6] sm:$0x1] %v1148
        %v1150 = vld [vmem:[%s278 + $0x8] sm:$0x1]
        %v1151 = vsel %vm1137, %v1042, %v1150
        %1152 = vst [vmem:[%s278 + $0x8] sm:$0x1] %v1151
        %v1153 = vld [vmem:[%s278 + $0xa] sm:$0x1]
        %v1154 = vsel %vm1137, %v1049, %v1153
        %1155 = vst [vmem:[%s278 + $0xa] sm:$0x1] %v1154
        %v1156 = vld [vmem:[%s278 + $0xc] sm:$0x1]
        %v1157 = vsel %vm1137, %v1056, %v1156
        %1158 = vst [vmem:[%s278 + $0xc] sm:$0x1] %v1157
        %v1159 = vld [vmem:[%s278 + $0xe] sm:$0x1]
        %v1160 = vsel %vm1137, %v1063, %v1159
        %1161 = vst [vmem:[%s278 + $0xe] sm:$0x1] %v1160
        %v1162 = vld [vmem:[%s278 + $0x10] sm:$0x1]
        %v1163 = vsel %vm1137, %v1070, %v1162
        %1164 = vst [vmem:[%s278 + $0x10] sm:$0x1] %v1163
        %v1165 = vld [vmem:[%s278 + $0x12] sm:$0x1]
        %v1166 = vsel %vm1137, %v1077, %v1165
        %1167 = vst [vmem:[%s278 + $0x12] sm:$0x1] %v1166
        %v1168 = vld [vmem:[%s278 + $0x14] sm:$0x1]
        %v1169 = vsel %vm1137, %v1084, %v1168
        %1170 = vst [vmem:[%s278 + $0x14] sm:$0x1] %v1169
        %v1171 = vld [vmem:[%s278 + $0x16] sm:$0x1]
        %v1172 = vsel %vm1137, %v1091, %v1171
        %1173 = vst [vmem:[%s278 + $0x16] sm:$0x1] %v1172
        %v1174 = vld [vmem:[%s278 + $0x18] sm:$0x1]
        %v1175 = vsel %vm1137, %v1098, %v1174
        %1176 = vst [vmem:[%s278 + $0x18] sm:$0x1] %v1175
        %v1177 = vld [vmem:[%s278 + $0x1a] sm:$0x1]
        %v1178 = vsel %vm1137, %v1105, %v1177
        %1179 = vst [vmem:[%s278 + $0x1a] sm:$0x1] %v1178
        %v1180 = vld [vmem:[%s278 + $0x1c] sm:$0x1]
        %v1181 = vsel %vm1137, %v1112, %v1180
        %1182 = vst [vmem:[%s278 + $0x1c] sm:$0x1] %v1181
        %v1183 = vld [vmem:[%s278 + $0x1e] sm:$0x1]
        %v1184 = vsel %vm1137, %v1119, %v1183
        %1185 = vst [vmem:[%s278 + $0x1e] sm:$0x1] %v1184
        %v1186 = vld [vmem:[#allocation2] sm:$0xff]
        %v1187 = vld [vmem:[#allocation2 + $0x8] sm:$0xff]
        %1190 = vrot.lane.b32.xlu0 %v1186, 1
        %v1191 = vpop.permute.xlu0 %1190
        %1192 = vrot.lane.b32.xlu0 %v1187, 1
        %v1193 = vpop.permute.xlu0 %1192
        %v1194 = vsel %vm430, %v1191, %v1193
        %v1196 = vsel %vm387, %v1194, 0.0
        %1197 = vst.msk [vmem:[#allocation3] sm:$0xff] %vm309, %v1196
        %v1198 = vld [vmem:[#allocation2 + $0x8] sm:$0xff]
        %1199 = vst.msk [vmem:[#allocation3 + $0x8] sm:$0xff] %vm309, %v1198
        %v1200 = vld [vmem:[#allocation2 + $0x8] sm:$0xff]
        %1201 = vst.msk [vmem:[#allocation3 + $0x10] sm:$0xff] %vm309, %v1200
        %v1202 = vld [vmem:[#allocation2] sm:$0xff]
        %v1203 = vld [vmem:[#allocation2 + $0x8] sm:$0xff]
        %1206 = vrot.lane.b32.xlu0 %v1202, 1
        %v1207 = vpop.permute.xlu0 %1206
        %1208 = vrot.lane.b32.xlu0 %v1203, 1
        %v1209 = vpop.permute.xlu0 %1208
        %v1210 = vsel %vm430, %v1207, %v1209
        %v1212 = vsel %vm387, %v1210, 0.0
        %1213 = vst.msk [vmem:[#allocation3 + $0x18] sm:$0xff] %vm309, %v1212
        %v1214 = vld [vmem:[#allocation2 + $0x8] sm:$0xff]
        %1215 = vst.msk [vmem:[#allocation3 + $0x20] sm:$0xff] %vm309, %v1214
        %v1216 = vld [vmem:[#allocation2 + $0x8] sm:$0xff]
        %1217 = vst.msk [vmem:[#allocation3 + $0x28] sm:$0xff] %vm309, %v1216
        %v1218 = vld [vmem:[#allocation2 + $0x8] sm:$0xff]
        %1220 = vrot.lane.b32.xlu0 %v1218, 121
        %v1221 = vpop.permute.xlu0 %1220
        %v1223 = vsel %vm387, %v1221, 0.0
        %1224 = vst.msk [vmem:[#allocation3 + $0x30] sm:$0xff] %vm309, %v1223
        %v1225 = vld [vmem:[#allocation2 + $0x8] sm:$0xff]
        %1227 = vrot.lane.b32.xlu0 %v1225, 120
        %v1228 = vpop.permute.xlu0 %1227
        %1230 = vst.msk [vmem:[#allocation3 + $0x38] sm:$0xff] %vm309, %v1228
        %v1231 = vld [vmem:[#allocation2 + $0x8] sm:$0xff]
        %1233 = vrot.lane.b32.xlu0 %v1231, 120
        %v1234 = vpop.permute.xlu0 %1233
        %1236 = vst.msk [vmem:[#allocation3 + $0x40] sm:$0xff] %vm309, %v1234
        %v1237 = vld [vmem:[#allocation4] sm:$0xf]
        %v1238 = vld [vmem:[#allocation4 + $0x4] sm:$0xf]
        %v1239 = vld [vmem:[#allocation3] sm:$0xff]
        %v1240 = vld [vmem:[#allocation3 + $0x8] sm:$0xff]
        %v1241 = vld [vmem:[#allocation3 + $0x10] sm:$0xff]
        %v1242 = vld [vmem:[#allocation3 + $0x18] sm:$0xff]
        %v1243 = vld [vmem:[#allocation3 + $0x20] sm:$0xff]
        %v1244 = vld [vmem:[#allocation3 + $0x28] sm:$0xff]
        %v1245 = vld [vmem:[#allocation3 + $0x30] sm:$0xff]
        %v1246 = vld [vmem:[#allocation3 + $0x38] sm:$0xff]
        %v1247 = vld [vmem:[#allocation3 + $0x40] sm:$0xff]
        %v1248 = vpack.c.bf16 %v1240, %v1239
        %v1249 = vpack.c.bf16 %v1242, %v1241
        %v1250 = vpack.c.bf16 %v1244, %v1243
        %v1251 = vpack.c.bf16 %v1246, %v1245
        %v1252 = vpack.c.bf16 %v1247, %v1247
        %v1255 = vunpack.c.l.b16 %v1237
        %v1256 = vunpack.c.l.b16 %v1238
        %v1257 = vpack.c.b16 %v1256, %v1255
        %v1259 = vsel %vm486, %v1257, 0
        %v1262 = vsel %vm490, %v1252, 0
        %1264 = vmatprep.subr.bf16.mxu0 0
        %1265 = vmatpush1.bf16.msra.mxu0 %v1248
        %1266 = vmatprep.subr.bf16.mxu0 0
        %1267 = vmatpush1.bf16.msra.mxu0 %v1249
        %1268 = vmatprep.subr.bf16.mxu0 0
        %1269 = vmatpush1.bf16.msra.mxu0 %v1250
        %1270 = vmatprep.subr.bf16.mxu0 0
        %1271 = vmatpush1.bf16.msra.mxu0 %v1251
        %1272 = vmatprep.subr.bf16.mxu0 0
        %1273 = vmatpush1.bf16.msra.mxu0 %v1262
        %1274 = vmatprep.subr.bf16.mxu0 0
        %1275 = vmatpush1.bf16.msra.mxu0 0
        %1276 = vmatprep.subr.bf16.mxu0 0
        %1277 = vmatpush1.bf16.msra.mxu0 0
        %1278 = vmatprep.subr.bf16.mxu0 0
        %1279 = vmatpush1.bf16.msra.mxu0 0
        %1280 = vmatprep.subr.bf16.mxu0 0
        %1281 = vmatpush1.bf16.msra.mxu0 0
        %1282 = vmatprep.subr.bf16.mxu0 0
        %1283 = vmatpush1.bf16.msra.mxu0 0
        %1284 = vmatprep.subr.bf16.mxu0 0
        %1285 = vmatpush1.bf16.msra.mxu0 0
        %1286 = vmatprep.subr.bf16.mxu0 0
        %1287 = vmatpush1.bf16.msra.mxu0 0
        %1288 = vmatprep.subr.bf16.mxu0 0
        %1289 = vmatpush1.bf16.msra.mxu0 0
        %1290 = vmatprep.subr.bf16.mxu0 0
        %1291 = vmatpush1.bf16.msra.mxu0 0
        %1292 = vmatprep.subr.bf16.mxu0 0
        %1293 = vmatpush1.bf16.msra.mxu0 0
        %1294 = vmatprep.subr.bf16.mxu0 0
        %1295 = vmatpush1.bf16.msra.mxu0 0
        %1296 = vmatprep.mubr.bf16.mxu0 0
        %1297 = vmatmul.mubr.bf16.gmra.mrb[0].mxu0 %v1259
        %v1298 = vpop.f32.mrb[0].mxu0
        %v1299 = vadd.f32 %v474, %v1298
        %v1300 = vpop.f32.mrb[0].mxu0
        %v1301 = vpop.f32.mrb[0].mxu0
        %v1302 = vadd.f32 %v479, %v1301
        %v1303 = vpop.f32.mrb[0].mxu0
        %1304 = vdwg.mxu0
        %v1305 = vpack.c.bf16 %v1302, %v1299
        %v1307 = vcombine.high %v1305, %v1305
        %v1309 = vunpack.c.l.s4 1966171168
        %v1310 = vunpack.c.0.s8 %v1309
        %v1311 = vlaneseq
        %v1312 = vshrl.u32 %v1311, 7
        %v1313 = vsub.s32 %v1310, %v1312
        %v1314 = vrot.slane %v1305, %v1313
        %v1316 = vunpack.c.l.s4 1966171168
        %v1317 = vunpack.c.0.s8 %v1316
        %v1318 = vlaneseq
        %v1319 = vshrl.u32 %v1318, 7
        %v1320 = vsub.s32 %v1317, %v1319
        %v1321 = vrot.slane %v1307, %v1320
        %v1322 = vcombine.high %v1314, %v1314
        %v1323 = vcombine.high %v1321, %v1321
        %v1325 = vunpack.c.l.s4 1966171168
        %v1326 = vunpack.c.0.s8 %v1325
        %v1327 = vlaneseq
        %v1328 = vshrl.u32 %v1327, 7
        %v1329 = vsub.s32 %v1326, %v1328
        %v1330 = vrot.slane %v1314, %v1329
        %v1332 = vunpack.c.l.s4 1966171168
        %v1333 = vunpack.c.0.s8 %v1332
        %v1334 = vlaneseq
        %v1335 = vshrl.u32 %v1334, 7
        %v1336 = vsub.s32 %v1333, %v1335
        %v1337 = vrot.slane %v1321, %v1336
        %v1339 = vunpack.c.l.s4 1966171168
        %v1340 = vunpack.c.0.s8 %v1339
        %v1341 = vlaneseq
        %v1342 = vshrl.u32 %v1341, 7
        %v1343 = vsub.s32 %v1340, %v1342
        %v1344 = vrot.slane %v1322, %v1343
        %v1346 = vunpack.c.l.s4 1966171168
        %v1347 = vunpack.c.0.s8 %v1346
        %v1348 = vlaneseq
        %v1349 = vshrl.u32 %v1348, 7
        %v1350 = vsub.s32 %v1347, %v1349
        %v1351 = vrot.slane %v1323, %v1350
        %v1352 = vcombine.high %v1330, %v1330
        %v1353 = vcombine.high %v1337, %v1337
        %v1354 = vcombine.high %v1344, %v1344
        %v1355 = vcombine.high %v1351, %v1351
        %v1356 = vunpack.i.l.s16 %v1330
        %v1357 = vunpack.i.h.s16 %v1330
        %v1358 = vunpack.i.l.s16 %v1344
        %v1359 = vunpack.i.h.s16 %v1344
        %v1360 = vunpack.i.l.s16 %v1352
        %v1361 = vunpack.i.h.s16 %v1352
        %v1362 = vunpack.i.l.s16 %v1354
        %v1363 = vunpack.i.h.s16 %v1354
        %v1364 = vunpack.i.l.s16 %v1337
        %v1365 = vunpack.i.h.s16 %v1337
        %v1366 = vunpack.i.l.s16 %v1351
        %v1367 = vunpack.i.h.s16 %v1351
        %v1368 = vunpack.i.l.s16 %v1353
        %v1369 = vunpack.i.h.s16 %v1353
        %v1370 = vunpack.i.l.s16 %v1355
        %v1371 = vunpack.i.h.s16 %v1355
        %v1372 = vpack.i.b16 %v1356, %v1356
        %v1373 = vpack.i.b16 %v1357, %v1357
        %v1374 = vpack.i.b16 %v1358, %v1358
        %v1375 = vpack.i.b16 %v1359, %v1359
        %v1376 = vpack.i.b16 %v1360, %v1360
        %v1377 = vpack.i.b16 %v1361, %v1361
        %v1378 = vpack.i.b16 %v1362, %v1362
        %v1379 = vpack.i.b16 %v1363, %v1363
        %v1380 = vpack.i.b16 %v1364, %v1364
        %v1381 = vpack.i.b16 %v1365, %v1365
        %v1382 = vpack.i.b16 %v1366, %v1366
        %v1383 = vpack.i.b16 %v1367, %v1367
        %v1384 = vpack.i.b16 %v1368, %v1368
        %v1385 = vpack.i.b16 %v1369, %v1369
        %v1386 = vpack.i.b16 %v1370, %v1370
        %v1387 = vpack.i.b16 %v1371, %v1371
        %v1389 = vunpack.c.l.s4 857870592
        %v1390 = vunpack.c.0.s8 %v1389
        %v1391 = vlaneseq
        %v1392 = vshrl.u32 %v1391, 7
        %v1393 = vsub.s32 %v1390, %v1392
        %v1394 = vrot.slane %v1372, %v1393
        %v1396 = vunpack.c.l.s4 857870592
        %v1397 = vunpack.c.0.s8 %v1396
        %v1398 = vlaneseq
        %v1399 = vshrl.u32 %v1398, 7
        %v1400 = vsub.s32 %v1397, %v1399
        %v1401 = vrot.slane %v1373, %v1400
        %v1403 = vunpack.c.l.s4 857870592
        %v1404 = vunpack.c.0.s8 %v1403
        %v1405 = vlaneseq
        %v1406 = vshrl.u32 %v1405, 7
        %v1407 = vsub.s32 %v1404, %v1406
        %v1408 = vrot.slane %v1374, %v1407
        %v1410 = vunpack.c.l.s4 857870592
        %v1411 = vunpack.c.0.s8 %v1410
        %v1412 = vlaneseq
        %v1413 = vshrl.u32 %v1412, 7
        %v1414 = vsub.s32 %v1411, %v1413
        %v1415 = vrot.slane %v1375, %v1414
        %v1417 = vunpack.c.l.s4 857870592
        %v1418 = vunpack.c.0.s8 %v1417
        %v1419 = vlaneseq
        %v1420 = vshrl.u32 %v1419, 7
        %v1421 = vsub.s32 %v1418, %v1420
        %v1422 = vrot.slane %v1376, %v1421
        %v1424 = vunpack.c.l.s4 857870592
        %v1425 = vunpack.c.0.s8 %v1424
        %v1426 = vlaneseq
        %v1427 = vshrl.u32 %v1426, 7
        %v1428 = vsub.s32 %v1425, %v1427
        %v1429 = vrot.slane %v1377, %v1428
        %v1431 = vunpack.c.l.s4 857870592
        %v1432 = vunpack.c.0.s8 %v1431
        %v1433 = vlaneseq
        %v1434 = vshrl.u32 %v1433, 7
        %v1435 = vsub.s32 %v1432, %v1434
        %v1436 = vrot.slane %v1378, %v1435
        %v1438 = vunpack.c.l.s4 857870592
        %v1439 = vunpack.c.0.s8 %v1438
        %v1440 = vlaneseq
        %v1441 = vshrl.u32 %v1440, 7
        %v1442 = vsub.s32 %v1439, %v1441
        %v1443 = vrot.slane %v1379, %v1442
        %v1445 = vunpack.c.l.s4 857870592
        %v1446 = vunpack.c.0.s8 %v1445
        %v1447 = vlaneseq
        %v1448 = vshrl.u32 %v1447, 7
        %v1449 = vsub.s32 %v1446, %v1448
        %v1450 = vrot.slane %v1380, %v1449
        %v1452 = vunpack.c.l.s4 857870592
        %v1453 = vunpack.c.0.s8 %v1452
        %v1454 = vlaneseq
        %v1455 = vshrl.u32 %v1454, 7
        %v1456 = vsub.s32 %v1453, %v1455
        %v1457 = vrot.slane %v1381, %v1456
        %v1459 = vunpack.c.l.s4 857870592
        %v1460 = vunpack.c.0.s8 %v1459
        %v1461 = vlaneseq
        %v1462 = vshrl.u32 %v1461, 7
        %v1463 = vsub.s32 %v1460, %v1462
        %v1464 = vrot.slane %v1382, %v1463
        %v1466 = vunpack.c.l.s4 857870592
        %v1467 = vunpack.c.0.s8 %v1466
        %v1468 = vlaneseq
        %v1469 = vshrl.u32 %v1468, 7
        %v1470 = vsub.s32 %v1467, %v1469
        %v1471 = vrot.slane %v1383, %v1470
        %v1473 = vunpack.c.l.s4 857870592
        %v1474 = vunpack.c.0.s8 %v1473
        %v1475 = vlaneseq
        %v1476 = vshrl.u32 %v1475, 7
        %v1477 = vsub.s32 %v1474, %v1476
        %v1478 = vrot.slane %v1384, %v1477
        %v1480 = vunpack.c.l.s4 857870592
        %v1481 = vunpack.c.0.s8 %v1480
        %v1482 = vlaneseq
        %v1483 = vshrl.u32 %v1482, 7
        %v1484 = vsub.s32 %v1481, %v1483
        %v1485 = vrot.slane %v1385, %v1484
        %v1487 = vunpack.c.l.s4 857870592
        %v1488 = vunpack.c.0.s8 %v1487
        %v1489 = vlaneseq
        %v1490 = vshrl.u32 %v1489, 7
        %v1491 = vsub.s32 %v1488, %v1490
        %v1492 = vrot.slane %v1386, %v1491
        %v1494 = vunpack.c.l.s4 857870592
        %v1495 = vunpack.c.0.s8 %v1494
        %v1496 = vlaneseq
        %v1497 = vshrl.u32 %v1496, 7
        %v1498 = vsub.s32 %v1495, %v1497
        %v1499 = vrot.slane %v1387, %v1498
        %vm1516 = vcmask 517121
        %vm1517 = vsmask.f32 1280
        %vm1518 = vmand %vm1516, %vm1517
        %v1519 = vld [vmem:[%s278] sm:$0x2]
        %v1520 = vsel %vm1518, %v1394, %v1519
        %1521 = vst [vmem:[%s278] sm:$0x2] %v1520
        %v1522 = vld [vmem:[%s278 + $0x2] sm:$0x2]
        %v1523 = vsel %vm1518, %v1401, %v1522
        %1524 = vst [vmem:[%s278 + $0x2] sm:$0x2] %v1523
        %v1525 = vld [vmem:[%s278 + $0x4] sm:$0x2]
        %v1526 = vsel %vm1518, %v1408, %v1525
        %1527 = vst [vmem:[%s278 + $0x4] sm:$0x2] %v1526
        %v1528 = vld [vmem:[%s278 + $0x6] sm:$0x2]
        %v1529 = vsel %vm1518, %v1415, %v1528
        %1530 = vst [vmem:[%s278 + $0x6] sm:$0x2] %v1529
        %v1531 = vld [vmem:[%s278 + $0x8] sm:$0x2]
        %v1532 = vsel %vm1518, %v1422, %v1531
        %1533 = vst [vmem:[%s278 + $0x8] sm:$0x2] %v1532
        %v1534 = vld [vmem:[%s278 + $0xa] sm:$0x2]
        %v1535 = vsel %vm1518, %v1429, %v1534
        %1536 = vst [vmem:[%s278 + $0xa] sm:$0x2] %v1535
        %v1537 = vld [vmem:[%s278 + $0xc] sm:$0x2]
        %v1538 = vsel %vm1518, %v1436, %v1537
        %1539 = vst [vmem:[%s278 + $0xc] sm:$0x2] %v1538
        %v1540 = vld [vmem:[%s278 + $0xe] sm:$0x2]
        %v1541 = vsel %vm1518, %v1443, %v1540
        %1542 = vst [vmem:[%s278 + $0xe] sm:$0x2] %v1541
        %v1543 = vld [vmem:[%s278 + $0x10] sm:$0x2]
        %v1544 = vsel %vm1518, %v1450, %v1543
        %1545 = vst [vmem:[%s278 + $0x10] sm:$0x2] %v1544
        %v1546 = vld [vmem:[%s278 + $0x12] sm:$0x2]
        %v1547 = vsel %vm1518, %v1457, %v1546
        %1548 = vst [vmem:[%s278 + $0x12] sm:$0x2] %v1547
        %v1549 = vld [vmem:[%s278 + $0x14] sm:$0x2]
        %v1550 = vsel %vm1518, %v1464, %v1549
        %1551 = vst [vmem:[%s278 + $0x14] sm:$0x2] %v1550
        %v1552 = vld [vmem:[%s278 + $0x16] sm:$0x2]
        %v1553 = vsel %vm1518, %v1471, %v1552
        %1554 = vst [vmem:[%s278 + $0x16] sm:$0x2] %v1553
        %v1555 = vld [vmem:[%s278 + $0x18] sm:$0x2]
        %v1556 = vsel %vm1518, %v1478, %v1555
        %1557 = vst [vmem:[%s278 + $0x18] sm:$0x2] %v1556
        %v1558 = vld [vmem:[%s278 + $0x1a] sm:$0x2]
        %v1559 = vsel %vm1518, %v1485, %v1558
        %1560 = vst [vmem:[%s278 + $0x1a] sm:$0x2] %v1559
        %v1561 = vld [vmem:[%s278 + $0x1c] sm:$0x2]
        %v1562 = vsel %vm1518, %v1492, %v1561
        %1563 = vst [vmem:[%s278 + $0x1c] sm:$0x2] %v1562
        %v1564 = vld [vmem:[%s278 + $0x1e] sm:$0x2]
        %v1565 = vsel %vm1518, %v1499, %v1564
        %1566 = vst [vmem:[%s278 + $0x1e] sm:$0x2] %v1565
        %v1567 = vld [vmem:[#allocation2 + $0x8] sm:$0xff]
        %1568 = vst.msk [vmem:[#allocation3] sm:$0xff] %vm309, %v1567
        %v1569 = vld [vmem:[#allocation2 + $0x8] sm:$0xff]
        %1570 = vst.msk [vmem:[#allocation3 + $0x8] sm:$0xff] %vm309, %v1569
        %v1571 = vld [vmem:[#allocation2 + $0x8] sm:$0xff]
        %1573 = vrot.lane.b32.xlu0 %v1571, 127
        %v1574 = vpop.permute.xlu0 %1573
        %v1576 = vsel %vm823, %v1574, 0.0
        %1577 = vst.msk [vmem:[#allocation3 + $0x10] sm:$0xff] %vm309, %v1576
        %v1578 = vld [vmem:[#allocation2 + $0x8] sm:$0xff]
        %1579 = vst.msk [vmem:[#allocation3 + $0x18] sm:$0xff] %vm309, %v1578
        %v1580 = vld [vmem:[#allocation2 + $0x8] sm:$0xff]
        %1581 = vst.msk [vmem:[#allocation3 + $0x20] sm:$0xff] %vm309, %v1580
        %v1582 = vld [vmem:[#allocation2 + $0x8] sm:$0xff]
        %1584 = vrot.lane.b32.xlu0 %v1582, 127
        %v1585 = vpop.permute.xlu0 %1584
        %v1587 = vsel %vm823, %v1585, 0.0
        %1588 = vst.msk [vmem:[#allocation3 + $0x28] sm:$0xff] %vm309, %v1587
        %v1589 = vld [vmem:[#allocation2 + $0x8] sm:$0xff]
        %1591 = vrot.lane.b32.xlu0 %v1589, 120
        %v1592 = vpop.permute.xlu0 %1591
        %1594 = vst.msk [vmem:[#allocation3 + $0x30] sm:$0xff] %vm309, %v1592
        %v1595 = vld [vmem:[#allocation2 + $0x8] sm:$0xff]
        %1597 = vrot.lane.b32.xlu0 %v1595, 120
        %v1598 = vpop.permute.xlu0 %1597
        %1600 = vst.msk [vmem:[#allocation3 + $0x38] sm:$0xff] %vm309, %v1598
        %v1601 = vld [vmem:[#allocation2 + $0x8] sm:$0xff]
        %1603 = vrot.lane.b32.xlu0 %v1601, 119
        %v1604 = vpop.permute.xlu0 %1603
        %v1606 = vsel %vm823, %v1604, 0.0
        %1607 = vst.msk [vmem:[#allocation3 + $0x40] sm:$0xff] %vm309, %v1606
        %v1608 = vld [vmem:[#allocation4] sm:$0xf]
        %v1609 = vld [vmem:[#allocation4 + $0x4] sm:$0xf]
        %v1610 = vld [vmem:[#allocation3] sm:$0xff]
        %v1611 = vld [vmem:[#allocation3 + $0x8] sm:$0xff]
        %v1612 = vld [vmem:[#allocation3 + $0x10] sm:$0xff]
        %v1613 = vld [vmem:[#allocation3 + $0x18] sm:$0xff]
        %v1614 = vld [vmem:[#allocation3 + $0x20] sm:$0xff]
        %v1615 = vld [vmem:[#allocation3 + $0x28] sm:$0xff]
        %v1616 = vld [vmem:[#allocation3 + $0x30] sm:$0xff]
        %v1617 = vld [vmem:[#allocation3 + $0x38] sm:$0xff]
        %v1618 = vld [vmem:[#allocation3 + $0x40] sm:$0xff]
        %v1619 = vpack.c.bf16 %v1611, %v1610
        %v1620 = vpack.c.bf16 %v1613, %v1612
        %v1621 = vpack.c.bf16 %v1615, %v1614
        %v1622 = vpack.c.bf16 %v1617, %v1616
        %v1623 = vpack.c.bf16 %v1618, %v1618
        %v1626 = vunpack.c.l.b16 %v1608
        %v1627 = vunpack.c.l.b16 %v1609
        %v1628 = vpack.c.b16 %v1627, %v1626
        %v1630 = vsel %vm486, %v1628, 0
        %v1633 = vsel %vm490, %v1623, 0
        %1635 = vmatprep.subr.bf16.mxu0 0
        %1636 = vmatpush1.bf16.msra.mxu0 %v1619
        %1637 = vmatprep.subr.bf16.mxu0 0
        %1638 = vmatpush1.bf16.msra.mxu0 %v1620
        %1639 = vmatprep.subr.bf16.mxu0 0
        %1640 = vmatpush1.bf16.msra.mxu0 %v1621
        %1641 = vmatprep.subr.bf16.mxu0 0
        %1642 = vmatpush1.bf16.msra.mxu0 %v1622
        %1643 = vmatprep.subr.bf16.mxu0 0
        %1644 = vmatpush1.bf16.msra.mxu0 %v1633
        %1645 = vmatprep.subr.bf16.mxu0 0
        %1646 = vmatpush1.bf16.msra.mxu0 0
        %1647 = vmatprep.subr.bf16.mxu0 0
        %1648 = vmatpush1.bf16.msra.mxu0 0
        %1649 = vmatprep.subr.bf16.mxu0 0
        %1650 = vmatpush1.bf16.msra.mxu0 0
        %1651 = vmatprep.subr.bf16.mxu0 0
        %1652 = vmatpush1.bf16.msra.mxu0 0
        %1653 = vmatprep.subr.bf16.mxu0 0
        %1654 = vmatpush1.bf16.msra.mxu0 0
        %1655 = vmatprep.subr.bf16.mxu0 0
        %1656 = vmatpush1.bf16.msra.mxu0 0
        %1657 = vmatprep.subr.bf16.mxu0 0
        %1658 = vmatpush1.bf16.msra.mxu0 0
        %1659 = vmatprep.subr.bf16.mxu0 0
        %1660 = vmatpush1.bf16.msra.mxu0 0
        %1661 = vmatprep.subr.bf16.mxu0 0
        %1662 = vmatpush1.bf16.msra.mxu0 0
        %1663 = vmatprep.subr.bf16.mxu0 0
        %1664 = vmatpush1.bf16.msra.mxu0 0
        %1665 = vmatprep.subr.bf16.mxu0 0
        %1666 = vmatpush1.bf16.msra.mxu0 0
        %1667 = vmatprep.mubr.bf16.mxu0 0
        %1668 = vmatmul.mubr.bf16.gmra.mrb[0].mxu0 %v1630
        %v1669 = vpop.f32.mrb[0].mxu0
        %v1670 = vadd.f32 %v474, %v1669
        %v1671 = vpop.f32.mrb[0].mxu0
        %v1672 = vpop.f32.mrb[0].mxu0
        %v1673 = vadd.f32 %v479, %v1672
        %v1674 = vpop.f32.mrb[0].mxu0
        %1675 = vdwg.mxu0
        %v1676 = vpack.c.bf16 %v1673, %v1670
        %v1678 = vcombine.high %v1676, %v1676
        %v1680 = vunpack.c.l.s4 1966171168
        %v1681 = vunpack.c.0.s8 %v1680
        %v1682 = vlaneseq
        %v1683 = vshrl.u32 %v1682, 7
        %v1684 = vsub.s32 %v1681, %v1683
        %v1685 = vrot.slane %v1676, %v1684
        %v1687 = vunpack.c.l.s4 1966171168
        %v1688 = vunpack.c.0.s8 %v1687
        %v1689 = vlaneseq
        %v1690 = vshrl.u32 %v1689, 7
        %v1691 = vsub.s32 %v1688, %v1690
        %v1692 = vrot.slane %v1678, %v1691
        %v1693 = vcombine.high %v1685, %v1685
        %v1694 = vcombine.high %v1692, %v1692
        %v1696 = vunpack.c.l.s4 1966171168
        %v1697 = vunpack.c.0.s8 %v1696
        %v1698 = vlaneseq
        %v1699 = vshrl.u32 %v1698, 7
        %v1700 = vsub.s32 %v1697, %v1699
        %v1701 = vrot.slane %v1685, %v1700
        %v1703 = vunpack.c.l.s4 1966171168
        %v1704 = vunpack.c.0.s8 %v1703
        %v1705 = vlaneseq
        %v1706 = vshrl.u32 %v1705, 7
        %v1707 = vsub.s32 %v1704, %v1706
        %v1708 = vrot.slane %v1692, %v1707
        %v1710 = vunpack.c.l.s4 1966171168
        %v1711 = vunpack.c.0.s8 %v1710
        %v1712 = vlaneseq
        %v1713 = vshrl.u32 %v1712, 7
        %v1714 = vsub.s32 %v1711, %v1713
        %v1715 = vrot.slane %v1693, %v1714
        %v1717 = vunpack.c.l.s4 1966171168
        %v1718 = vunpack.c.0.s8 %v1717
        %v1719 = vlaneseq
        %v1720 = vshrl.u32 %v1719, 7
        %v1721 = vsub.s32 %v1718, %v1720
        %v1722 = vrot.slane %v1694, %v1721
        %v1723 = vcombine.high %v1701, %v1701
        %v1724 = vcombine.high %v1708, %v1708
        %v1725 = vcombine.high %v1715, %v1715
        %v1726 = vcombine.high %v1722, %v1722
        %v1727 = vunpack.i.l.s16 %v1701
        %v1728 = vunpack.i.h.s16 %v1701
        %v1729 = vunpack.i.l.s16 %v1715
        %v1730 = vunpack.i.h.s16 %v1715
        %v1731 = vunpack.i.l.s16 %v1723
        %v1732 = vunpack.i.h.s16 %v1723
        %v1733 = vunpack.i.l.s16 %v1725
        %v1734 = vunpack.i.h.s16 %v1725
        %v1735 = vunpack.i.l.s16 %v1708
        %v1736 = vunpack.i.h.s16 %v1708
        %v1737 = vunpack.i.l.s16 %v1722
        %v1738 = vunpack.i.h.s16 %v1722
        %v1739 = vunpack.i.l.s16 %v1724
        %v1740 = vunpack.i.h.s16 %v1724
        %v1741 = vunpack.i.l.s16 %v1726
        %v1742 = vunpack.i.h.s16 %v1726
        %v1743 = vpack.i.b16 %v1727, %v1727
        %v1744 = vpack.i.b16 %v1728, %v1728
        %v1745 = vpack.i.b16 %v1729, %v1729
        %v1746 = vpack.i.b16 %v1730, %v1730
        %v1747 = vpack.i.b16 %v1731, %v1731
        %v1748 = vpack.i.b16 %v1732, %v1732
        %v1749 = vpack.i.b16 %v1733, %v1733
        %v1750 = vpack.i.b16 %v1734, %v1734
        %v1751 = vpack.i.b16 %v1735, %v1735
        %v1752 = vpack.i.b16 %v1736, %v1736
        %v1753 = vpack.i.b16 %v1737, %v1737
        %v1754 = vpack.i.b16 %v1738, %v1738
        %v1755 = vpack.i.b16 %v1739, %v1739
        %v1756 = vpack.i.b16 %v1740, %v1740
        %v1757 = vpack.i.b16 %v1741, %v1741
        %v1758 = vpack.i.b16 %v1742, %v1742
        %v1760 = vunpack.c.l.s4 857870592
        %v1761 = vunpack.c.0.s8 %v1760
        %v1762 = vlaneseq
        %v1763 = vshrl.u32 %v1762, 7
        %v1764 = vsub.s32 %v1761, %v1763
        %v1765 = vrot.slane %v1743, %v1764
        %v1767 = vunpack.c.l.s4 857870592
        %v1768 = vunpack.c.0.s8 %v1767
        %v1769 = vlaneseq
        %v1770 = vshrl.u32 %v1769, 7
        %v1771 = vsub.s32 %v1768, %v1770
        %v1772 = vrot.slane %v1744, %v1771
        %v1774 = vunpack.c.l.s4 857870592
        %v1775 = vunpack.c.0.s8 %v1774
        %v1776 = vlaneseq
        %v1777 = vshrl.u32 %v1776, 7
        %v1778 = vsub.s32 %v1775, %v1777
        %v1779 = vrot.slane %v1745, %v1778
        %v1781 = vunpack.c.l.s4 857870592
        %v1782 = vunpack.c.0.s8 %v1781
        %v1783 = vlaneseq
        %v1784 = vshrl.u32 %v1783, 7
        %v1785 = vsub.s32 %v1782, %v1784
        %v1786 = vrot.slane %v1746, %v1785
        %v1788 = vunpack.c.l.s4 857870592
        %v1789 = vunpack.c.0.s8 %v1788
        %v1790 = vlaneseq
        %v1791 = vshrl.u32 %v1790, 7
        %v1792 = vsub.s32 %v1789, %v1791
        %v1793 = vrot.slane %v1747, %v1792
        %v1795 = vunpack.c.l.s4 857870592
        %v1796 = vunpack.c.0.s8 %v1795
        %v1797 = vlaneseq
        %v1798 = vshrl.u32 %v1797, 7
        %v1799 = vsub.s32 %v1796, %v1798
        %v1800 = vrot.slane %v1748, %v1799
        %v1802 = vunpack.c.l.s4 857870592
        %v1803 = vunpack.c.0.s8 %v1802
        %v1804 = vlaneseq
        %v1805 = vshrl.u32 %v1804, 7
        %v1806 = vsub.s32 %v1803, %v1805
        %v1807 = vrot.slane %v1749, %v1806
        %v1809 = vunpack.c.l.s4 857870592
        %v1810 = vunpack.c.0.s8 %v1809
        %v1811 = vlaneseq
        %v1812 = vshrl.u32 %v1811, 7
        %v1813 = vsub.s32 %v1810, %v1812
        %v1814 = vrot.slane %v1750, %v1813
        %v1816 = vunpack.c.l.s4 857870592
        %v1817 = vunpack.c.0.s8 %v1816
        %v1818 = vlaneseq
        %v1819 = vshrl.u32 %v1818, 7
        %v1820 = vsub.s32 %v1817, %v1819
        %v1821 = vrot.slane %v1751, %v1820
        %v1823 = vunpack.c.l.s4 857870592
        %v1824 = vunpack.c.0.s8 %v1823
        %v1825 = vlaneseq
        %v1826 = vshrl.u32 %v1825, 7
        %v1827 = vsub.s32 %v1824, %v1826
        %v1828 = vrot.slane %v1752, %v1827
        %v1830 = vunpack.c.l.s4 857870592
        %v1831 = vunpack.c.0.s8 %v1830
        %v1832 = vlaneseq
        %v1833 = vshrl.u32 %v1832, 7
        %v1834 = vsub.s32 %v1831, %v1833
        %v1835 = vrot.slane %v1753, %v1834
        %v1837 = vunpack.c.l.s4 857870592
        %v1838 = vunpack.c.0.s8 %v1837
        %v1839 = vlaneseq
        %v1840 = vshrl.u32 %v1839, 7
        %v1841 = vsub.s32 %v1838, %v1840
        %v1842 = vrot.slane %v1754, %v1841
        %v1844 = vunpack.c.l.s4 857870592
        %v1845 = vunpack.c.0.s8 %v1844
        %v1846 = vlaneseq
        %v1847 = vshrl.u32 %v1846, 7
        %v1848 = vsub.s32 %v1845, %v1847
        %v1849 = vrot.slane %v1755, %v1848
        %v1851 = vunpack.c.l.s4 857870592
        %v1852 = vunpack.c.0.s8 %v1851
        %v1853 = vlaneseq
        %v1854 = vshrl.u32 %v1853, 7
        %v1855 = vsub.s32 %v1852, %v1854
        %v1856 = vrot.slane %v1756, %v1855
        %v1858 = vunpack.c.l.s4 857870592
        %v1859 = vunpack.c.0.s8 %v1858
        %v1860 = vlaneseq
        %v1861 = vshrl.u32 %v1860, 7
        %v1862 = vsub.s32 %v1859, %v1861
        %v1863 = vrot.slane %v1757, %v1862
        %v1865 = vunpack.c.l.s4 857870592
        %v1866 = vunpack.c.0.s8 %v1865
        %v1867 = vlaneseq
        %v1868 = vshrl.u32 %v1867, 7
        %v1869 = vsub.s32 %v1866, %v1868
        %v1870 = vrot.slane %v1758, %v1869
        %vm1887 = vsmask.f32 7942
        %vm1888 = vmand %vm1516, %vm1887
        %v1889 = vld [vmem:[%s278] sm:$0x2]
        %v1890 = vsel %vm1888, %v1765, %v1889
        %1891 = vst [vmem:[%s278] sm:$0x2] %v1890
        %v1892 = vld [vmem:[%s278 + $0x2] sm:$0x2]
        %v1893 = vsel %vm1888, %v1772, %v1892
        %1894 = vst [vmem:[%s278 + $0x2] sm:$0x2] %v1893
        %v1895 = vld [vmem:[%s278 + $0x4] sm:$0x2]
        %v1896 = vsel %vm1888, %v1779, %v1895
        %1897 = vst [vmem:[%s278 + $0x4] sm:$0x2] %v1896
        %v1898 = vld [vmem:[%s278 + $0x6] sm:$0x2]
        %v1899 = vsel %vm1888, %v1786, %v1898
        %1900 = vst [vmem:[%s278 + $0x6] sm:$0x2] %v1899
        %v1901 = vld [vmem:[%s278 + $0x8] sm:$0x2]
        %v1902 = vsel %vm1888, %v1793, %v1901
        %1903 = vst [vmem:[%s278 + $0x8] sm:$0x2] %v1902
        %v1904 = vld [vmem:[%s278 + $0xa] sm:$0x2]
        %v1905 = vsel %vm1888, %v1800, %v1904
        %1906 = vst [vmem:[%s278 + $0xa] sm:$0x2] %v1905
        %v1907 = vld [vmem:[%s278 + $0xc] sm:$0x2]
        %v1908 = vsel %vm1888, %v1807, %v1907
        %1909 = vst [vmem:[%s278 + $0xc] sm:$0x2] %v1908
        %v1910 = vld [vmem:[%s278 + $0xe] sm:$0x2]
        %v1911 = vsel %vm1888, %v1814, %v1910
        %1912 = vst [vmem:[%s278 + $0xe] sm:$0x2] %v1911
        %v1913 = vld [vmem:[%s278 + $0x10] sm:$0x2]
        %v1914 = vsel %vm1888, %v1821, %v1913
        %1915 = vst [vmem:[%s278 + $0x10] sm:$0x2] %v1914
        %v1916 = vld [vmem:[%s278 + $0x12] sm:$0x2]
        %v1917 = vsel %vm1888, %v1828, %v1916
        %1918 = vst [vmem:[%s278 + $0x12] sm:$0x2] %v1917
        %v1919 = vld [vmem:[%s278 + $0x14] sm:$0x2]
        %v1920 = vsel %vm1888, %v1835, %v1919
        %1921 = vst [vmem:[%s278 + $0x14] sm:$0x2] %v1920
        %v1922 = vld [vmem:[%s278 + $0x16] sm:$0x2]
        %v1923 = vsel %vm1888, %v1842, %v1922
        %1924 = vst [vmem:[%s278 + $0x16] sm:$0x2] %v1923
        %v1925 = vld [vmem:[%s278 + $0x18] sm:$0x2]
        %v1926 = vsel %vm1888, %v1849, %v1925
        %1927 = vst [vmem:[%s278 + $0x18] sm:$0x2] %v1926
        %v1928 = vld [vmem:[%s278 + $0x1a] sm:$0x2]
        %v1929 = vsel %vm1888, %v1856, %v1928
        %1930 = vst [vmem:[%s278 + $0x1a] sm:$0x2] %v1929
        %v1931 = vld [vmem:[%s278 + $0x1c] sm:$0x2]
        %v1932 = vsel %vm1888, %v1863, %v1931
        %1933 = vst [vmem:[%s278 + $0x1c] sm:$0x2] %v1932
        %v1934 = vld [vmem:[%s278 + $0x1e] sm:$0x2]
        %v1935 = vsel %vm1888, %v1870, %v1934
        %1936 = vst [vmem:[%s278 + $0x1e] sm:$0x2] %v1935
        %v1937 = vsel %vm309, %v529, 0.0
        %1938 = vadd.xlane.f32.xlu0 %v1937
        %v1939 = vpop.xlane.xlu0 %1938
        %v1940 = vsel %vm309, %v532, 0.0
        %1941 = vadd.xlane.f32.xlu0 %v1940
        %v1942 = vpop.xlane.xlu0 %1941
        %v1943 = vadd.f32 %v1939, 0.0
        %v1944 = vadd.f32 %v1942, 0.0
        %v1945 = vsel %vm309, %v919, 0.0
        %1946 = vadd.xlane.f32.xlu0 %v1945
        %v1947 = vpop.xlane.xlu0 %1946
        %v1948 = vsel %vm309, %v922, 0.0
        %1949 = vadd.xlane.f32.xlu0 %v1948
        %v1950 = vpop.xlane.xlu0 %1949
        %v1951 = vadd.f32 %v1943, %v1947
        %v1952 = vadd.f32 %v1944, %v1950
        %v1953 = vsel %vm309, %v1299, 0.0
        %1954 = vadd.xlane.f32.xlu0 %v1953
        %v1955 = vpop.xlane.xlu0 %1954
        %v1956 = vsel %vm309, %v1302, 0.0
        %1957 = vadd.xlane.f32.xlu0 %v1956
        %v1958 = vpop.xlane.xlu0 %1957
        %v1959 = vadd.f32 %v1951, %v1955
        %v1960 = vadd.f32 %v1952, %v1958
        %v1961 = vsel %vm309, %v1670, 0.0
        %1962 = vadd.xlane.f32.xlu0 %v1961
        %v1963 = vpop.xlane.xlu0 %1962
        %v1964 = vsel %vm309, %v1673, 0.0
        %1965 = vadd.xlane.f32.xlu0 %v1964
        %v1966 = vpop.xlane.xlu0 %1965
        %v1967 = vadd.f32 %v1959, %v1963
        %v1968 = vadd.f32 %v1960, %v1966
        %v1969 = vmul.f32 %v529, %v529
        %v1970 = vmul.f32 %v532, %v532
        %v1971 = vsel %vm309, %v1969, 0.0
        %1972 = vadd.xlane.f32.xlu0 %v1971
        %v1973 = vpop.xlane.xlu0 %1972
        %v1974 = vsel %vm309, %v1970, 0.0
        %1975 = vadd.xlane.f32.xlu0 %v1974
        %v1976 = vpop.xlane.xlu0 %1975
        %v1977 = vadd.f32 %v1973, 0.0
        %v1978 = vadd.f32 %v1976, 0.0
        %v1979 = vmul.f32 %v919, %v919
        %v1980 = vmul.f32 %v922, %v922
        %v1981 = vsel %vm309, %v1979, 0.0
        %1982 = vadd.xlane.f32.xlu0 %v1981
        %v1983 = vpop.xlane.xlu0 %1982
        %v1984 = vsel %vm309, %v1980, 0.0
        %1985 = vadd.xlane.f32.xlu0 %v1984
        %v1986 = vpop.xlane.xlu0 %1985
        %v1987 = vadd.f32 %v1977, %v1983
        %v1988 = vadd.f32 %v1978, %v1986
        %v1989 = vmul.f32 %v1299, %v1299
        %v1990 = vmul.f32 %v1302, %v1302
        %v1991 = vsel %vm309, %v1989, 0.0
        %1992 = vadd.xlane.f32.xlu0 %v1991
        %v1993 = vpop.xlane.xlu0 %1992
        %v1994 = vsel %vm309, %v1990, 0.0
        %1995 = vadd.xlane.f32.xlu0 %v1994
        %v1996 = vpop.xlane.xlu0 %1995
        %v1997 = vadd.f32 %v1987, %v1993
        %v1998 = vadd.f32 %v1988, %v1996
        %v1999 = vmul.f32 %v1670, %v1670
        %v2000 = vmul.f32 %v1673, %v1673
        %v2001 = vsel %vm309, %v1999, 0.0
        %2002 = vadd.xlane.f32.xlu0 %v2001
        %v2003 = vpop.xlane.xlu0 %2002
        %v2004 = vsel %vm309, %v2000, 0.0
        %2005 = vadd.xlane.f32.xlu0 %v2004
        %v2006 = vpop.xlane.xlu0 %2005
        %v2007 = vadd.f32 %v1997, %v2003
        %v2008 = vadd.f32 %v1998, %v2006
        %2009 = vst.msk [vmem:[%s285] sm:$0xff] %vm430, %v1967
        %2010 = vst.msk [vmem:[%s285 + $0x8] sm:$0xff] %vm430, %v1968
        %vm2011 = vcmask 15368
        %2012 = vst.msk [vmem:[%s285] sm:$0xff] %vm2011, %v2007
        %2013 = vst.msk [vmem:[%s285 + $0x8] sm:$0xff] %vm2011, %v2008
        %s2014 = sand.u32 %s124, 1
        %s2015 = scalar_lea.sflag [#allocation6], %s2014
        %s2016 = sand.u32 %s124, 1
        %s2017 = smul.addr %s2016, 32
        %s2018 = scalar_lea.vmem [#allocation10], %s2017
        %s2019 = sand.u32 %s152, 1
        %s2020 = scalar_lea.sflag [#allocation12], %s2019
        %s2021 = sand.u32 %s152, 1
        %s2022 = smul.addr %s2021, 16
        %s2023 = scalar_lea.vmem [#allocation11], %s2022
        // Predicated region
        $region45: #{attn_res_block_up.5} parent=31 // pred_check
          %p2024 = pneg %p134
        $region46: #{attn_res_block_up.5} parent=31 // pred_check_branch
          %2026 = sbr.rel (%p2024) target = $region48
        $region47: #{attn_res_block_up.5} parent=31 // pred_region
          %s2027 = smul.u32 16, %s29
          %s2029 = ssub.s32 512, 512
          %2030 = vsyncadd %s2015, %s2029
          %s2031 = smul.addr %s28, 16
          %s2032 = sadd.s32 %s2027, %s2031
          %s2033 = smul.addr %s2032, 32
          %s2034 = scalar_lea.hbm %s3, %s2033
          %s2035 = sshll.u32 %s2018, 4
          %s2036 = int_to_ptr.vmem [resolvable:$true] %s2035
          %2041 = dma.vmem_to_hbm [thread:$0]  %s2036, 512, %s2034, %s2015, 32, 32, 2
        $region48: #{attn_res_block_up.5} parent=31 // pred_fallthru
          _
        // Predicated region
        $region49: #{attn_res_block_up.5} parent=31 // pred_check
          %p2042 = pneg %p162
        $region50: #{attn_res_block_up.5} parent=31 // pred_check_branch
          %2044 = sbr.rel (%p2042) target = $region52
        $region51: #{attn_res_block_up.5} parent=31 // pred_region
          %s2045 = smul.u32 2, %s29
          %s2047 = ssub.s32 256, 256
          %2048 = vsyncadd %s2020, %s2047
          %s2049 = smul.addr %s28, 2
          %s2050 = sadd.s32 %s2045, %s2049
          %s2051 = smul.addr %s2050, 128
          %s2052 = scalar_lea.hbm %s4, %s2051
          %s2053 = sshll.u32 %s2023, 4
          %s2054 = int_to_ptr.vmem [resolvable:$true] %s2053
          %2059 = dma.vmem_to_hbm [thread:$0]  %s2054, 256, %s2052, %s2020, 128, 128, 8
        $region52: #{attn_res_block_up.5} parent=31 // pred_fallthru
          _
      $region32: #{attn_res_block_up.5} parent=5 // pred_fallthru
        _
      %p2060 = scmp.le.s32.totalorder 2, %s19
      // Predicated region
      $region53: #{attn_res_block_up.5} parent=5 // pred_check
        %p2061 = pneg %p2060
      $region54: #{attn_res_block_up.5} parent=5 // pred_check_branch
        %2063 = sbr.rel (%p2061) target = $region56
      $region55: #{attn_res_block_up.5} parent=5 // pred_region
        %s2064 = ssub.s32 %s19, 2
        // Predicated region
        $region57: #{attn_res_block_up.5} parent=55 // pred_check
          %p2065 = pneg %p140
        $region58: #{attn_res_block_up.5} parent=55 // pred_check_branch
          %2067 = sbr.rel (%p2065) target = $region60
        $region59: #{attn_res_block_up.5} parent=55 // pred_region
          %s2068 = sand.u32 %s125, 1
          %s2069 = scalar_lea.sflag [#allocation6], %s2068
          %s2070 = sand.u32 %s125, 1
          %s2071 = smul.addr %s2070, 32
          %s2072 = scalar_lea.vmem [#allocation10], %s2071
          %2073 = dma.done %s2069, 512
        $region60: #{attn_res_block_up.5} parent=55 // pred_fallthru
          _
        // Predicated region
        $region61: #{attn_res_block_up.5} parent=55 // pred_check
          %p2074 = pneg %p168
        $region62: #{attn_res_block_up.5} parent=55 // pred_check_branch
          %2076 = sbr.rel (%p2074) target = $region64
        $region63: #{attn_res_block_up.5} parent=55 // pred_region
          %s2077 = sand.u32 %s153, 1
          %s2078 = scalar_lea.sflag [#allocation12], %s2077
          %s2079 = sand.u32 %s153, 1
          %s2080 = smul.addr %s2079, 16
          %s2081 = scalar_lea.vmem [#allocation11], %s2080
          %2082 = dma.done %s2078, 256
        $region64: #{attn_res_block_up.5} parent=55 // pred_fallthru
          _
      $region56: #{attn_res_block_up.5} parent=5 // pred_fallthru
        _
    $region6: #{attn_res_block_up.5} parent=1 // loop_footer
      %s23 = sadd.s32 1, %s19
    $region7: #{attn_res_block_up.5} parent=1 // loop_footer_branch
      %18 = sbr.rel target = $region3
    $region8: #{attn_res_block_up.5} parent=1 // loop_exit
      _
    %2083 = vsyncpa [#allocation5], 1
    %s2084 = scalar_lea.sflag [#allocation5], 1
    %2085 = vsyncpa %s2084, 1
    %2086 = vsyncpa [#allocation8], 1
    %2087 = vsyncpa [#allocation6], 1
    %s2088 = scalar_lea.sflag [#allocation6], 1
    %2089 = vsyncpa %s2088, 1
    %2090 = vsyncpa [#allocation12], 1
    %s2091 = scalar_lea.sflag [#allocation12], 1
    %2092 = vsyncpa %s2091, 1

// kernel: attn_res_block_up.7
$region0: #{attn_res_block_up.7}
  #allocation0 [shape = 'u32[]', space=smem, size = 0x4, offset = 0x4, fixed_abs, tag = 'smem constant byte address 0x4 - core index']
  #allocation1 [shape = 'u32[144,128]{1,0:T(1,128)}', space=vmem, size = 0x12000, scoped, tag = 'internal scratch']
  #allocation2 [shape = 'f32[4,16,320]{2,1,0:T(8,128)}', space=vmem, size = 0x18000, scoped, tag = 'scratch operand']
  #allocation3 [shape = 'f32[144,64]{1,0:T(8,128)}', space=vmem, size = 0x12000, scoped, tag = 'scratch operand']
  %s0 = inlined_call_operand.hbm [shape: bf16[16,144], index: 0, kind: input, shape index: {}]
  %s1 = inlined_call_operand.hbm [shape: f32[16,1], index: 1, kind: input, shape index: {}]
  %s2 = inlined_call_operand.hbm [shape: bf16[16,8], index: 2, kind: input, shape index: {}]
  %s3 = inlined_call_operand.hbm [shape: bf16[2,16,4,64], index: 3, kind: input, shape index: {}]
  %s4 = inlined_call_operand.hbm [shape: f32[2,8,64], index: 4, kind: input, shape index: {}]
  %s5 = inlined_call_operand.hbm [shape: f32[2,16,4,64], index: 5, kind: output, shape index: {}]
  %s6 = sld [smem:[#allocation0]]
  $region73: #{attn_res_block_up.7} parent=0
    _
  %s8 = ssub.s32 1, %s6
  %s9 = scalar_select 0, %s8, %s6
  $region1: #{attn_res_block_up.7} parent=0
    #allocation4 [shape = 'u8[8192]{0}', space=vmem, size = 0x2000, scoped, tag = 'input window, operand 0, single buffered']
    #allocation5 [shape = 's32[2]{0}', space=sflag, size = 0x8, scoped, tag = 'scoped memory for attn_res_block_up.7']
    #allocation6 [shape = 's32[2]{0}', space=sflag, size = 0x8, scoped, tag = 'scoped memory for attn_res_block_up.7']
    #allocation7 [shape = 'u8[8192]{0}', space=vmem, size = 0x2000, scoped, tag = 'input window, operand 1, single buffered']
    #allocation8 [shape = 's32[1]{0}', space=sflag, size = 0x4, scoped, tag = 'scoped memory for attn_res_block_up.7']
    #allocation9 [shape = 'u8[4096]{0}', space=vmem, size = 0x1000, scoped, tag = 'input window, operand 2, single buffered']
    #allocation10 [shape = 'u8[32768]{0}', space=vmem, size = 0x8000, scoped, tag = 'input window, operand 3']
    #allocation11 [shape = 's32[2]{0}', space=sflag, size = 0x8, scoped, tag = 'scoped memory for attn_res_block_up.7']
    #allocation12 [shape = 'u8[8192]{0}', space=vmem, size = 0x2000, scoped, tag = 'input window, operand 4']
    #allocation13 [shape = 'u8[65536]{0}', space=vmem, size = 0x10000, scoped, tag = 'output window, operand 0']
    %10 = vsyncpa [#allocation5], 0
    %11 = vsyncpa [#allocation8], 0
    %12 = vsyncpa [#allocation11], 0
    %s13 = scalar_lea.sflag [#allocation11], 1
    %14 = vsyncpa %s13, 0
    %15 = vsyncpa [#allocation6], 0
    %s16 = scalar_lea.sflag [#allocation6], 1
    %17 = vsyncpa %s16, 0
    loop: start=0, step=1, limit=4
    $region2: #{attn_res_block_up.7} parent=1 // loop_pre_header
      _
    $region3: #{attn_res_block_up.7} parent=1 // loop_header
      %s19 = sphi 0, %s23
      %p20 = scmp.ge.s32.totalorder %s19, 4
      %s26 = sphi 0, %s38
      %s27 = sphi 0, %s34
      %s28 = sphi 0, %s26
      %s29 = sphi 0, %s27
      %s30 = sphi 0, %s28
      %s31 = sphi 0, %s29
      %s41 = sphi 0, %s43
      %s44 = sphi 0, %s41
      %s45 = sphi 0, %s44
      %s61 = sphi 0, %s45
      %s67 = sphi 0, %s69
      %s70 = sphi 0, %s67
      %s71 = sphi 0, %s70
      %s87 = sphi 0, %s71
      %s93 = sphi 0, %s95
      %s96 = sphi 0, %s93
      %s97 = sphi 0, %s96
      %s113 = sphi 0, %s97
      %s119 = sphi 0, %s121
      %s122 = sphi 0, %s119
      %s123 = sphi 0, %s122
      %s139 = sphi 0, %s123
      %s145 = sphi 0, %s147
      %s148 = sphi 0, %s145
      %s149 = sphi 0, %s148
      %s165 = sphi 0, %s149
      %s173 = sphi 0, %s175
      %s176 = sphi 0, %s173
      %s177 = sphi 0, %s176
      %s193 = sphi 0, %s177
    $region4: #{attn_res_block_up.7} parent=1 // loop_header_branch
      %22 = sbr.rel (%p20) target = $region8
    $region5: #{attn_res_block_up.7} parent=1 // loop_body
      %s24 = ssub.s32 %s19, 1
      %s25 = ssub.s32 %s19, 2
      %s32 = sadd.s32 1, %s27
      %p33 = scmp.ge.s32.totalorder %s32, 1
      %s34 = scalar_select %p33, 0, %s32
      %s35 = sadd.s32 1, %s26
      %s36 = scalar_select %p33, %s35, %s26
      %p37 = scmp.ge.s32.totalorder %s36, 2
      %s38 = scalar_select %p37, 0, %s36
      %s39 = ssub.s32 %s27, %s34
      %p40 = scmp.eq.s32.totalorder %s39, 0
      %s42 = sadd.s32 %s41, 1
      %s43 = scalar_select %p40, %s41, %s42
      %p46 = pneg %p40
      %p47 = scmp.eq.s32.totalorder %s19, 1
      %p48 = por %p46, %p47
      %p49 = scmp.ne.s32.totalorder %s41, %s44
      %p50 = scmp.eq.s32.totalorder %s19, 0
      %p51 = por %p49, %p50
      %p52 = scmp.ne.s32.totalorder %s41, %s44
      %p53 = scmp.eq.s32.totalorder %s24, 1
      %p54 = por %p52, %p53
      %p55 = scmp.ne.s32.totalorder %s44, %s45
      %p56 = scmp.eq.s32.totalorder %s24, 0
      %p57 = por %p55, %p56
      %p58 = scmp.ne.s32.totalorder %s44, %s45
      %p59 = scmp.eq.s32.totalorder %s25, 1
      %p60 = por %p58, %p59
      %p62 = scmp.ne.s32.totalorder %s45, %s61
      %p63 = scmp.eq.s32.totalorder %s25, 0
      %p64 = por %p62, %p63
      %s65 = ssub.s32 %s27, %s34
      %p66 = scmp.eq.s32.totalorder %s65, 0
      %s68 = sadd.s32 %s67, 1
      %s69 = scalar_select %p66, %s67, %s68
      %p72 = pneg %p66
      %p73 = scmp.eq.s32.totalorder %s19, 1
      %p74 = por %p72, %p73
      %p75 = scmp.ne.s32.totalorder %s67, %s70
      %p76 = scmp.eq.s32.totalorder %s19, 0
      %p77 = por %p75, %p76
      %p78 = scmp.ne.s32.totalorder %s67, %s70
      %p79 = scmp.eq.s32.totalorder %s24, 1
      %p80 = por %p78, %p79
      %p81 = scmp.ne.s32.totalorder %s70, %s71
      %p82 = scmp.eq.s32.totalorder %s24, 0
      %p83 = por %p81, %p82
      %p84 = scmp.ne.s32.totalorder %s70, %s71
      %p85 = scmp.eq.s32.totalorder %s25, 1
      %p86 = por %p84, %p85
      %p88 = scmp.ne.s32.totalorder %s71, %s87
      %p89 = scmp.eq.s32.totalorder %s25, 0
      %p90 = por %p88, %p89
      %s91 = ssub.s32 %s27, %s34
      %p92 = scmp.eq.s32.totalorder %s91, 0
      %s94 = sadd.s32 %s93, 1
      %s95 = scalar_select %p92, %s93, %s94
      %p98 = pneg %p92
      %p99 = scmp.eq.s32.totalorder %s19, 1
      %p100 = por %p98, %p99
      %p101 = scmp.ne.s32.totalorder %s93, %s96
      %p102 = scmp.eq.s32.totalorder %s19, 0
      %p103 = por %p101, %p102
      %p104 = scmp.ne.s32.totalorder %s93, %s96
      %p105 = scmp.eq.s32.totalorder %s24, 1
      %p106 = por %p104, %p105
      %p107 = scmp.ne.s32.totalorder %s96, %s97
      %p108 = scmp.eq.s32.totalorder %s24, 0
      %p109 = por %p107, %p108
      %p110 = scmp.ne.s32.totalorder %s96, %s97
      %p111 = scmp.eq.s32.totalorder %s25, 1
      %p112 = por %p110, %p111
      %p114 = scmp.ne.s32.totalorder %s97, %s113
      %p115 = scmp.eq.s32.totalorder %s25, 0
      %p116 = por %p114, %p115
      %s117 = ssub.s32 %s26, %s38
      %p118 = scmp.eq.s32.totalorder %s117, 0
      %s120 = sadd.s32 %s119, 1
      %s121 = scalar_select %p118, %s119, %s120
      %p124 = pneg %p118
      %p125 = scmp.eq.s32.totalorder %s19, 1
      %p126 = por %p124, %p125
      %p127 = scmp.ne.s32.totalorder %s119, %s122
      %p128 = scmp.eq.s32.totalorder %s19, 0
      %p129 = por %p127, %p128
      %p130 = scmp.ne.s32.totalorder %s119, %s122
      %p131 = scmp.eq.s32.totalorder %s24, 1
      %p132 = por %p130, %p131
      %p133 = scmp.ne.s32.totalorder %s122, %s123
      %p134 = scmp.eq.s32.totalorder %s24, 0
      %p135 = por %p133, %p134
      %p136 = scmp.ne.s32.totalorder %s122, %s123
      %p137 = scmp.eq.s32.totalorder %s25, 1
      %p138 = por %p136, %p137
      %p140 = scmp.ne.s32.totalorder %s123, %s139
      %p141 = scmp.eq.s32.totalorder %s25, 0
      %p142 = por %p140, %p141
      %s143 = ssub.s32 %s26, %s38
      %p144 = scmp.eq.s32.totalorder %s143, 0
      %s146 = sadd.s32 %s145, 1
      %s147 = scalar_select %p144, %s145, %s146
      %p150 = pneg %p144
      %p151 = scmp.eq.s32.totalorder %s19, 1
      %p152 = por %p150, %p151
      %p153 = scmp.ne.s32.totalorder %s145, %s148
      %p154 = scmp.eq.s32.totalorder %s19, 0
      %p155 = por %p153, %p154
      %p156 = scmp.ne.s32.totalorder %s145, %s148
      %p157 = scmp.eq.s32.totalorder %s24, 1
      %p158 = por %p156, %p157
      %p159 = scmp.ne.s32.totalorder %s148, %s149
      %p160 = scmp.eq.s32.totalorder %s24, 0
      %p161 = por %p159, %p160
      %p162 = scmp.ne.s32.totalorder %s148, %s149
      %p163 = scmp.eq.s32.totalorder %s25, 1
      %p164 = por %p162, %p163
      %p166 = scmp.ne.s32.totalorder %s149, %s165
      %p167 = scmp.eq.s32.totalorder %s25, 0
      %p168 = por %p166, %p167
      %s169 = ssub.s32 %s26, %s38
      %s170 = ssub.s32 %s27, %s34
      %s171 = sor.u32 %s169, %s170
      %p172 = scmp.eq.s32.totalorder %s171, 0
      %s174 = sadd.s32 %s173, 1
      %s175 = scalar_select %p172, %s173, %s174
      %p178 = pneg %p172
      %p179 = scmp.eq.s32.totalorder %s19, 1
      %p180 = por %p178, %p179
      %p181 = scmp.ne.s32.totalorder %s173, %s176
      %p182 = scmp.eq.s32.totalorder %s19, 0
      %p183 = por %p181, %p182
      %p184 = scmp.ne.s32.totalorder %s173, %s176
      %p185 = scmp.eq.s32.totalorder %s24, 1
      %p186 = por %p184, %p185
      %p187 = scmp.ne.s32.totalorder %s176, %s177
      %p188 = scmp.eq.s32.totalorder %s24, 0
      %p189 = por %p187, %p188
      %p190 = scmp.ne.s32.totalorder %s176, %s177
      %p191 = scmp.eq.s32.totalorder %s25, 1
      %p192 = por %p190, %p191
      %p194 = scmp.ne.s32.totalorder %s177, %s193
      %p195 = scmp.eq.s32.totalorder %s25, 0
      %p196 = por %p194, %p195
      %p197 = scmp.le.s32.totalorder 1, %s19
      %p198 = scmp.lt.s32.totalorder %s19, 3
      %p199 = pnand %p197, %p198
      %p200 = pneg %p199
      // Predicated region
      $region9: #{attn_res_block_up.7} parent=5 // pred_check
        _
      $region10: #{attn_res_block_up.7} parent=5 // pred_check_branch
        %202 = sbr.rel (%p199) target = $region12
      $region11: #{attn_res_block_up.7} parent=5 // pred_region
        %s203 = ssub.s32 %s19, 1
        // Predicated region
        $region13: #{attn_res_block_up.7} parent=11 // pred_check
          %p204 = pneg %p57
        $region14: #{attn_res_block_up.7} parent=11 // pred_check_branch
          %206 = sbr.rel (%p204) target = $region16
        $region15: #{attn_res_block_up.7} parent=11 // pred_region
          %s207 = smul.u32 2, %s29
          %s209 = ssub.s32 256, 256
          %210 = vsyncadd [#allocation5], %s209
          %s211 = smul.addr %s207, 2
          %s212 = smul.addr %s211, 64
          %s213 = scalar_lea.hbm %s0, %s212
          %s214 = sshll.u32 [#allocation4], 4
          %s215 = int_to_ptr.vmem [resolvable:$true] %s214
          %220 = dma.hbm_to_vmem [thread:$0]  %s213, 256, %s215, [#allocation5], 128, 128, 8
        $region16: #{attn_res_block_up.7} parent=11 // pred_fallthru
          _
        // Predicated region
        $region17: #{attn_res_block_up.7} parent=11 // pred_check
          %p221 = pneg %p83
        $region18: #{attn_res_block_up.7} parent=11 // pred_check_branch
          %223 = sbr.rel (%p221) target = $region20
        $region19: #{attn_res_block_up.7} parent=11 // pred_region
          %s224 = smul.u32 2, %s29
          %s226 = ssub.s32 256, 256
          %227 = vsyncadd [#allocation8], %s226
          %s228 = smul.addr %s224, 128
          %s229 = scalar_lea.hbm %s1, %s228
          %s230 = sshll.u32 [#allocation7], 4
          %s231 = int_to_ptr.vmem [resolvable:$true] %s230
          %236 = dma.hbm_to_vmem [thread:$0]  %s229, 256, %s231, [#allocation8], 128, 128, 8
        $region20: #{attn_res_block_up.7} parent=11 // pred_fallthru
          _
        // Predicated region
        $region21: #{attn_res_block_up.7} parent=11 // pred_check
          %p237 = pneg %p109
        $region22: #{attn_res_block_up.7} parent=11 // pred_check_branch
          %239 = sbr.rel (%p237) target = $region24
        $region23: #{attn_res_block_up.7} parent=11 // pred_region
          %s240 = smul.u32 2, %s29
          %s242 = ssub.s32 128, 128
          %243 = vsyncadd [#allocation8], %s242
          %s244 = smul.addr %s240, 64
          %s245 = scalar_lea.hbm %s2, %s244
          %s246 = sshll.u32 [#allocation9], 4
          %s247 = int_to_ptr.vmem [resolvable:$true] %s246
          %252 = dma.hbm_to_vmem [thread:$0]  %s245, 128, %s247, [#allocation8], 64, 64, 4
        $region24: #{attn_res_block_up.7} parent=11 // pred_fallthru
          _
      $region12: #{attn_res_block_up.7} parent=5 // pred_fallthru
        _
      %p253 = scmp.lt.s32.totalorder %s19, 2
      // Predicated region
      $region25: #{attn_res_block_up.7} parent=5 // pred_check
        %p254 = pneg %p253
      $region26: #{attn_res_block_up.7} parent=5 // pred_check_branch
        %256 = sbr.rel (%p254) target = $region28
      $region27: #{attn_res_block_up.7} parent=5 // pred_region
        // Predicated region
        $region29: #{attn_res_block_up.7} parent=27 // pred_check
          %p257 = pneg %p129
        $region30: #{attn_res_block_up.7} parent=27 // pred_check_branch
          %259 = sbr.rel (%p257) target = $region32
        $region31: #{attn_res_block_up.7} parent=27 // pred_region
          %s260 = sand.u32 %s19, 1
          %s261 = scalar_lea.sflag [#allocation11], %s260
          %s262 = sand.u32 %s119, 1
          %s263 = smul.addr %s262, 32
          %s264 = scalar_lea.vmem [#allocation10], %s263
          %s266 = ssub.s32 512, 512
          %267 = vsyncadd %s261, %s266
          %s268 = smul.addr %s26, 16
          %s269 = smul.addr %s268, 32
          %s270 = scalar_lea.hbm %s3, %s269
          %s271 = sshll.u32 %s264, 4
          %s272 = int_to_ptr.vmem [resolvable:$true] %s271
          %277 = dma.hbm_to_vmem [thread:$0]  %s270, 512, %s272, %s261, 32, 32, 2
        $region32: #{attn_res_block_up.7} parent=27 // pred_fallthru
          _
        // Predicated region
        $region33: #{attn_res_block_up.7} parent=27 // pred_check
          %p278 = pneg %p155
        $region34: #{attn_res_block_up.7} parent=27 // pred_check_branch
          %280 = sbr.rel (%p278) target = $region36
        $region35: #{attn_res_block_up.7} parent=27 // pred_region
          %s281 = sand.u32 %s19, 1
          %s282 = scalar_lea.sflag [#allocation11], %s281
          %s283 = sand.u32 %s145, 1
          %s284 = smul.addr %s283, 8
          %s285 = scalar_lea.vmem [#allocation12], %s284
          %s287 = ssub.s32 128, 128
          %288 = vsyncadd %s282, %s287
          %s289 = smul.addr %s26, 128
          %s290 = scalar_lea.hbm %s4, %s289
          %s292 = sshll.u32 %s285, 4
          %s293 = int_to_ptr.vmem [resolvable:$true] %s292
          %295 = dma.hbm_to_vmem [thread:$0]  %s290, 128, %s293, %s282
        $region36: #{attn_res_block_up.7} parent=27 // pred_fallthru
          _
      $region28: #{attn_res_block_up.7} parent=5 // pred_fallthru
        _
      %p296 = scmp.le.s32.totalorder 1, %s19
      %p297 = scmp.lt.s32.totalorder %s19, 3
      %p298 = pnand %p296, %p297
      %p299 = pneg %p298
      // Predicated region
      $region37: #{attn_res_block_up.7} parent=5 // pred_check
        _
      $region38: #{attn_res_block_up.7} parent=5 // pred_check_branch
        %301 = sbr.rel (%p298) target = $region40
      $region39: #{attn_res_block_up.7} parent=5 // pred_region
        %s302 = ssub.s32 %s19, 1
        // Predicated region
        $region41: #{attn_res_block_up.7} parent=39 // pred_check
          %p303 = pneg %p57
        $region42: #{attn_res_block_up.7} parent=39 // pred_check_branch
          %305 = sbr.rel (%p303) target = $region44
        $region43: #{attn_res_block_up.7} parent=39 // pred_region
          %306 = dma.done [#allocation5], 256
        $region44: #{attn_res_block_up.7} parent=39 // pred_fallthru
          _
        // Predicated region
        $region45: #{attn_res_block_up.7} parent=39 // pred_check
          %p307 = pneg %p83
        $region46: #{attn_res_block_up.7} parent=39 // pred_check_branch
          %309 = sbr.rel (%p307) target = $region48
        $region47: #{attn_res_block_up.7} parent=39 // pred_region
          %310 = dma.done [#allocation8], 256
        $region48: #{attn_res_block_up.7} parent=39 // pred_fallthru
          _
        // Predicated region
        $region49: #{attn_res_block_up.7} parent=39 // pred_check
          %p311 = pneg %p109
        $region50: #{attn_res_block_up.7} parent=39 // pred_check_branch
          %313 = sbr.rel (%p311) target = $region52
        $region51: #{attn_res_block_up.7} parent=39 // pred_region
          %314 = dma.done [#allocation8], 128
        $region52: #{attn_res_block_up.7} parent=39 // pred_fallthru
          _
        %s315 = sand.u32 %s24, 1
        %s316 = scalar_lea.sflag [#allocation11], %s315
        %s317 = sand.u32 %s122, 1
        %s318 = smul.addr %s317, 32
        %s319 = scalar_lea.vmem [#allocation10], %s318
        // Predicated region
        $region53: #{attn_res_block_up.7} parent=39 // pred_check
          %p320 = pneg %p135
        $region54: #{attn_res_block_up.7} parent=39 // pred_check_branch
          %322 = sbr.rel (%p320) target = $region56
        $region55: #{attn_res_block_up.7} parent=39 // pred_region
          %323 = dma.done %s316, 512
        $region56: #{attn_res_block_up.7} parent=39 // pred_fallthru
          _
        %s324 = sand.u32 %s24, 1
        %s325 = scalar_lea.sflag [#allocation11], %s324
        %s326 = sand.u32 %s148, 1
        %s327 = smul.addr %s326, 8
        %s328 = scalar_lea.vmem [#allocation12], %s327
        // Predicated region
        $region57: #{attn_res_block_up.7} parent=39 // pred_check
          %p329 = pneg %p161
        $region58: #{attn_res_block_up.7} parent=39 // pred_check_branch
          %331 = sbr.rel (%p329) target = $region60
        $region59: #{attn_res_block_up.7} parent=39 // pred_region
          %332 = dma.done %s325, 128
        $region60: #{attn_res_block_up.7} parent=39 // pred_fallthru
          _
        %p333 = pneg %p57
        %p334 = pneg %p54
        %p335 = pneg %p83
        %p336 = pneg %p80
        %p337 = pneg %p109
        %p338 = pneg %p106
        %s339 = sand.u32 %s24, 1
        %s340 = scalar_lea.sflag [#allocation11], %s339
        %s341 = sand.u32 %s122, 1
        %s342 = smul.addr %s341, 32
        %s343 = scalar_lea.vmem [#allocation10], %s342
        %p344 = pneg %p135
        %p345 = pneg %p132
        %s346 = sand.u32 %s24, 1
        %s347 = scalar_lea.sflag [#allocation11], %s346
        %s348 = sand.u32 %s148, 1
        %s349 = smul.addr %s348, 8
        %s350 = scalar_lea.vmem [#allocation12], %s349
        %p351 = pneg %p161
        %p352 = pneg %p158
        %p353 = pneg %p189
        %p354 = pneg %p186
        %s355 = sand.u32 %s176, 1
        %s356 = scalar_lea.sflag [#allocation6], %s355
        %s357 = sand.u32 %s176, 1
        %s358 = smul.addr %s357, 64
        %s359 = scalar_lea.vmem [#allocation13], %s358
        %s360 = smul.u32 2, %s29
        %s361 = smul.u32 2, %s29
        %s362 = smul.u32 2, %s29
        %s363 = smul.u32 16, %s29
        %v365 = vld [vmem:[#allocation7] sm:$0xff]
        %v366 = vld [vmem:[#allocation7 + $0x8] sm:$0xff]
        %v367 = vld [vmem:[#allocation9] sm:$0xf]
        %v368 = vld [vmem:[#allocation9 + $0x4] sm:$0xf]
        %v369 = vld [vmem:[%s328] sm:$0xff]
        %v370 = vpack.c.bf16 %v369, %v369
        %v373 = vunpack.c.l.b16 %v367
        %v374 = vunpack.c.l.b16 %v368
        %v375 = vpack.c.b16 %v374, %v373
        %vm376 = vcmask 64512
        %v378 = vsel %vm376, %v375, 0
        %vm380 = vcmask 1043456
        %v382 = vsel %vm380, %v370, 0
        %384 = vmatprep.subr.bf16.mxu0 0
        %385 = vmatpush1.bf16.msra.mxu0 %v382
        %386 = vmatprep.subr.bf16.mxu0 0
        %387 = vmatpush1.bf16.msra.mxu0 0
        %388 = vmatprep.subr.bf16.mxu0 0
        %389 = vmatpush1.bf16.msra.mxu0 0
        %390 = vmatprep.subr.bf16.mxu0 0
        %391 = vmatpush1.bf16.msra.mxu0 0
        %392 = vmatprep.subr.bf16.mxu0 0
        %393 = vmatpush1.bf16.msra.mxu0 0
        %394 = vmatprep.subr.bf16.mxu0 0
        %395 = vmatpush1.bf16.msra.mxu0 0
        %396 = vmatprep.subr.bf16.mxu0 0
        %397 = vmatpush1.bf16.msra.mxu0 0
        %398 = vmatprep.subr.bf16.mxu0 0
        %399 = vmatpush1.bf16.msra.mxu0 0
        %400 = vmatprep.subr.bf16.mxu0 0
        %401 = vmatpush1.bf16.msra.mxu0 0
        %402 = vmatprep.subr.bf16.mxu0 0
        %403 = vmatpush1.bf16.msra.mxu0 0
        %404 = vmatprep.subr.bf16.mxu0 0
        %405 = vmatpush1.bf16.msra.mxu0 0
        %406 = vmatprep.subr.bf16.mxu0 0
        %407 = vmatpush1.bf16.msra.mxu0 0
        %408 = vmatprep.subr.bf16.mxu0 0
        %409 = vmatpush1.bf16.msra.mxu0 0
        %410 = vmatprep.subr.bf16.mxu0 0
        %411 = vmatpush1.bf16.msra.mxu0 0
        %412 = vmatprep.subr.bf16.mxu0 0
        %413 = vmatpush1.bf16.msra.mxu0 0
        %414 = vmatprep.subr.bf16.mxu0 0
        %415 = vmatpush1.bf16.msra.mxu0 0
        %416 = vmatprep.mubr.bf16.mxu0 0
        %417 = vmatmul.mubr.bf16.gmra.mrb[0].mxu0 %v378
        %v418 = vpop.f32.mrb[0].mxu0
        %v419 = vadd.f32 0.0, %v418
        %v420 = vpop.f32.mrb[0].mxu0
        %v421 = vpop.f32.mrb[0].mxu0
        %v422 = vadd.f32 0.0, %v421
        %v423 = vpop.f32.mrb[0].mxu0
        %424 = vdwg.mxu0
        %426 = vset.pattern.permute.xlu0 0
        %427 = vperm.xlu0 %426, %v365
        %v428 = vpop.permute.xlu0 %427
        %431 = vset.pattern.permute.xlu0 0
        %432 = vperm.xlu0 %431, %v366
        %v433 = vpop.permute.xlu0 %432
        %v435 = vadd.f32 %v428, %v419
        %v436 = vadd.f32 %v433, %v422
        %v437 = vlaneseq
        %v438 = vand.u32 %v437, 127
        %vm439 = vcmp.lt.s32.totalorder %v438, 0
        %v440 = vsub.s32 0, %v438
        %v441 = vsel %vm439, %v440, %v438
        %v442 = vshrl.u32 %v441, 3
        %v443 = vand.u32 %v441, 7
        %v444 = vsub.s32 0, %v443
        %v445 = vsel %vm439, %v444, %v443
        %vm446 = vcmp.ne.s32.totalorder %v445, 0
        %vm447 = vcmp.lt.s32.totalorder %v445, 0
        %vm448 = vmand %vm447, %vm446
        %v449 = vadd.s32 %v445, 8
        %v450 = vsel %vm448, %v449, %v445
        %451 = vst [vmem:[#allocation2] sm:$0xff] 0.0
        %452 = vst [vmem:[#allocation2 + $0x8] sm:$0xff] 0.0
        %vm453 = vcmask 523264
        %454 = vst.msk [vmem:[#allocation2 + $0x10] sm:$0xff] %vm453, 0.0
        %455 = vst [vmem:[#allocation2 + $0x18] sm:$0xff] 0.0
        %456 = vst [vmem:[#allocation2 + $0x20] sm:$0xff] 0.0
        %457 = vst.msk [vmem:[#allocation2 + $0x28] sm:$0xff] %vm453, 0.0
        %v458 = vld [vmem:[%s319] sm:$0x1]
        %v459 = vld [vmem:[%s319 + $0x2] sm:$0x1]
        %v460 = vld [vmem:[%s319 + $0x4] sm:$0x1]
        %v461 = vld [vmem:[%s319 + $0x6] sm:$0x1]
        %v462 = vld [vmem:[%s319 + $0x8] sm:$0x1]
        %v463 = vld [vmem:[%s319 + $0xa] sm:$0x1]
        %v464 = vld [vmem:[%s319 + $0xc] sm:$0x1]
        %v465 = vld [vmem:[%s319 + $0xe] sm:$0x1]
        %v466 = vld [vmem:[%s319 + $0x10] sm:$0x1]
        %v467 = vld [vmem:[%s319 + $0x12] sm:$0x1]
        %v468 = vld [vmem:[%s319 + $0x14] sm:$0x1]
        %v469 = vld [vmem:[%s319 + $0x16] sm:$0x1]
        %v470 = vld [vmem:[%s319 + $0x18] sm:$0x1]
        %v471 = vld [vmem:[%s319 + $0x1a] sm:$0x1]
        %v472 = vld [vmem:[%s319 + $0x1c] sm:$0x1]
        %v473 = vld [vmem:[%s319 + $0x1e] sm:$0x1]
        %v474 = vunpack.c.l.bf16 %v458
        %v475 = vunpack.c.l.bf16 %v459
        %v476 = vunpack.c.l.bf16 %v460
        %v477 = vunpack.c.l.bf16 %v461
        %v478 = vunpack.c.l.bf16 %v462
        %v479 = vunpack.c.l.bf16 %v463
        %v480 = vunpack.c.l.bf16 %v464
        %v481 = vunpack.c.l.bf16 %v465
        %v482 = vunpack.c.l.bf16 %v466
        %v483 = vunpack.c.l.bf16 %v467
        %v484 = vunpack.c.l.bf16 %v468
        %v485 = vunpack.c.l.bf16 %v469
        %v486 = vunpack.c.l.bf16 %v470
        %v487 = vunpack.c.l.bf16 %v471
        %v488 = vunpack.c.l.bf16 %v472
        %v489 = vunpack.c.l.bf16 %v473
        %v506 = vlaneseq
        %v507 = vshrl.u32 %v506, 7
        %v508 = vsub.s32 0, %v507
        %v509 = vrot.slane %v474, %v508
        %v510 = vlaneseq
        %v511 = vshrl.u32 %v510, 7
        %v512 = vsub.s32 0, %v511
        %v513 = vrot.slane %v475, %v512
        %v514 = vlaneseq
        %v515 = vshrl.u32 %v514, 7
        %v516 = vsub.s32 0, %v515
        %v517 = vrot.slane %v476, %v516
        %v518 = vlaneseq
        %v519 = vshrl.u32 %v518, 7
        %v520 = vsub.s32 0, %v519
        %v521 = vrot.slane %v477, %v520
        %v522 = vlaneseq
        %v523 = vshrl.u32 %v522, 7
        %v524 = vsub.s32 0, %v523
        %v525 = vrot.slane %v478, %v524
        %v526 = vlaneseq
        %v527 = vshrl.u32 %v526, 7
        %v528 = vsub.s32 0, %v527
        %v529 = vrot.slane %v479, %v528
        %v530 = vlaneseq
        %v531 = vshrl.u32 %v530, 7
        %v532 = vsub.s32 0, %v531
        %v533 = vrot.slane %v480, %v532
        %v534 = vlaneseq
        %v535 = vshrl.u32 %v534, 7
        %v536 = vsub.s32 0, %v535
        %v537 = vrot.slane %v481, %v536
        %v538 = vlaneseq
        %v539 = vshrl.u32 %v538, 7
        %v540 = vsub.s32 0, %v539
        %v541 = vrot.slane %v482, %v540
        %v542 = vlaneseq
        %v543 = vshrl.u32 %v542, 7
        %v544 = vsub.s32 0, %v543
        %v545 = vrot.slane %v483, %v544
        %v546 = vlaneseq
        %v547 = vshrl.u32 %v546, 7
        %v548 = vsub.s32 0, %v547
        %v549 = vrot.slane %v484, %v548
        %v550 = vlaneseq
        %v551 = vshrl.u32 %v550, 7
        %v552 = vsub.s32 0, %v551
        %v553 = vrot.slane %v485, %v552
        %v554 = vlaneseq
        %v555 = vshrl.u32 %v554, 7
        %v556 = vsub.s32 0, %v555
        %v557 = vrot.slane %v486, %v556
        %v558 = vlaneseq
        %v559 = vshrl.u32 %v558, 7
        %v560 = vsub.s32 0, %v559
        %v561 = vrot.slane %v487, %v560
        %v562 = vlaneseq
        %v563 = vshrl.u32 %v562, 7
        %v564 = vsub.s32 0, %v563
        %v565 = vrot.slane %v488, %v564
        %v566 = vlaneseq
        %v567 = vshrl.u32 %v566, 7
        %v568 = vsub.s32 0, %v567
        %v569 = vrot.slane %v489, %v568
        %vm570 = vcmask 1041409
        %v571 = vsel %vm570, %v513, %v509
        %vm572 = vcmask 1042434
        %v573 = vsel %vm572, %v517, %v571
        %vm574 = vcmask 1043459
        %v575 = vsel %vm574, %v521, %v573
        %vm576 = vcmask 1044484
        %v577 = vsel %vm576, %v525, %v575
        %vm578 = vcmask 1045509
        %v579 = vsel %vm578, %v529, %v577
        %vm580 = vcmask 1046534
        %v581 = vsel %vm580, %v533, %v579
        %vm582 = vcmask 1047559
        %v583 = vsel %vm582, %v537, %v581
        %v584 = vsel %vm570, %v545, %v541
        %v585 = vsel %vm572, %v549, %v584
        %v586 = vsel %vm574, %v553, %v585
        %v587 = vsel %vm576, %v557, %v586
        %v588 = vsel %vm578, %v561, %v587
        %v589 = vsel %vm580, %v565, %v588
        %v590 = vsel %vm582, %v569, %v589
        %593 = vst.msk [vmem:[#allocation2 + $0x8] sm:$0xff] %vm453, %v583
        %594 = vst.msk [vmem:[#allocation2 + $0x20] sm:$0xff] %vm453, %v590
        %s595 = scalar_lea.vmem [#allocation2], 48
        %596 = vst [vmem:[%s595] sm:$0xff] 0.0
        %597 = vst [vmem:[%s595 + $0x8] sm:$0xff] 0.0
        %598 = vst.msk [vmem:[%s595 + $0x10] sm:$0xff] %vm453, 0.0
        %599 = vst [vmem:[%s595 + $0x18] sm:$0xff] 0.0
        %600 = vst [vmem:[%s595 + $0x20] sm:$0xff] 0.0
        %601 = vst.msk [vmem:[%s595 + $0x28] sm:$0xff] %vm453, 0.0
        %v602 = vld [vmem:[%s319] sm:$0x1]
        %v603 = vld [vmem:[%s319 + $0x2] sm:$0x1]
        %v604 = vld [vmem:[%s319 + $0x4] sm:$0x1]
        %v605 = vld [vmem:[%s319 + $0x6] sm:$0x1]
        %v606 = vld [vmem:[%s319 + $0x8] sm:$0x1]
        %v607 = vld [vmem:[%s319 + $0xa] sm:$0x1]
        %v608 = vld [vmem:[%s319 + $0xc] sm:$0x1]
        %v609 = vld [vmem:[%s319 + $0xe] sm:$0x1]
        %v610 = vld [vmem:[%s319 + $0x10] sm:$0x1]
        %v611 = vld [vmem:[%s319 + $0x12] sm:$0x1]
        %v612 = vld [vmem:[%s319 + $0x14] sm:$0x1]
        %v613 = vld [vmem:[%s319 + $0x16] sm:$0x1]
        %v614 = vld [vmem:[%s319 + $0x18] sm:$0x1]
        %v615 = vld [vmem:[%s319 + $0x1a] sm:$0x1]
        %v616 = vld [vmem:[%s319 + $0x1c] sm:$0x1]
        %v617 = vld [vmem:[%s319 + $0x1e] sm:$0x1]
        %v618 = vunpack.c.l.bf16 %v602
        %v619 = vunpack.c.l.bf16 %v603
        %v620 = vunpack.c.l.bf16 %v604
        %v621 = vunpack.c.l.bf16 %v605
        %v622 = vunpack.c.l.bf16 %v606
        %v623 = vunpack.c.l.bf16 %v607
        %v624 = vunpack.c.l.bf16 %v608
        %v625 = vunpack.c.l.bf16 %v609
        %v626 = vunpack.c.l.bf16 %v610
        %v627 = vunpack.c.l.bf16 %v611
        %v628 = vunpack.c.l.bf16 %v612
        %v629 = vunpack.c.l.bf16 %v613
        %v630 = vunpack.c.l.bf16 %v614
        %v631 = vunpack.c.l.bf16 %v615
        %v632 = vunpack.c.l.bf16 %v616
        %v633 = vunpack.c.l.bf16 %v617
        %v650 = vlaneseq
        %v651 = vshrl.u32 %v650, 7
        %v652 = vsub.s32 1, %v651
        %v653 = vrot.slane %v618, %v652
        %v654 = vlaneseq
        %v655 = vshrl.u32 %v654, 7
        %v656 = vsub.s32 1, %v655
        %v657 = vrot.slane %v619, %v656
        %v658 = vlaneseq
        %v659 = vshrl.u32 %v658, 7
        %v660 = vsub.s32 1, %v659
        %v661 = vrot.slane %v620, %v660
        %v662 = vlaneseq
        %v663 = vshrl.u32 %v662, 7
        %v664 = vsub.s32 1, %v663
        %v665 = vrot.slane %v621, %v664
        %v666 = vlaneseq
        %v667 = vshrl.u32 %v666, 7
        %v668 = vsub.s32 1, %v667
        %v669 = vrot.slane %v622, %v668
        %v670 = vlaneseq
        %v671 = vshrl.u32 %v670, 7
        %v672 = vsub.s32 1, %v671
        %v673 = vrot.slane %v623, %v672
        %v674 = vlaneseq
        %v675 = vshrl.u32 %v674, 7
        %v676 = vsub.s32 1, %v675
        %v677 = vrot.slane %v624, %v676
        %v678 = vlaneseq
        %v679 = vshrl.u32 %v678, 7
        %v680 = vsub.s32 1, %v679
        %v681 = vrot.slane %v625, %v680
        %v682 = vlaneseq
        %v683 = vshrl.u32 %v682, 7
        %v684 = vsub.s32 1, %v683
        %v685 = vrot.slane %v626, %v684
        %v686 = vlaneseq
        %v687 = vshrl.u32 %v686, 7
        %v688 = vsub.s32 1, %v687
        %v689 = vrot.slane %v627, %v688
        %v690 = vlaneseq
        %v691 = vshrl.u32 %v690, 7
        %v692 = vsub.s32 1, %v691
        %v693 = vrot.slane %v628, %v692
        %v694 = vlaneseq
        %v695 = vshrl.u32 %v694, 7
        %v696 = vsub.s32 1, %v695
        %v697 = vrot.slane %v629, %v696
        %v698 = vlaneseq
        %v699 = vshrl.u32 %v698, 7
        %v700 = vsub.s32 1, %v699
        %v701 = vrot.slane %v630, %v700
        %v702 = vlaneseq
        %v703 = vshrl.u32 %v702, 7
        %v704 = vsub.s32 1, %v703
        %v705 = vrot.slane %v631, %v704
        %v706 = vlaneseq
        %v707 = vshrl.u32 %v706, 7
        %v708 = vsub.s32 1, %v707
        %v709 = vrot.slane %v632, %v708
        %v710 = vlaneseq
        %v711 = vshrl.u32 %v710, 7
        %v712 = vsub.s32 1, %v711
        %v713 = vrot.slane %v633, %v712
        %v714 = vsel %vm570, %v657, %v653
        %v715 = vsel %vm572, %v661, %v714
        %v716 = vsel %vm574, %v665, %v715
        %v717 = vsel %vm576, %v669, %v716
        %v718 = vsel %vm578, %v673, %v717
        %v719 = vsel %vm580, %v677, %v718
        %v720 = vsel %vm582, %v681, %v719
        %v721 = vsel %vm570, %v689, %v685
        %v722 = vsel %vm572, %v693, %v721
        %v723 = vsel %vm574, %v697, %v722
        %v724 = vsel %vm576, %v701, %v723
        %v725 = vsel %vm578, %v705, %v724
        %v726 = vsel %vm580, %v709, %v725
        %v727 = vsel %vm582, %v713, %v726
        %730 = vst.msk [vmem:[%s595 + $0x8] sm:$0xff] %vm453, %v720
        %731 = vst.msk [vmem:[%s595 + $0x20] sm:$0xff] %vm453, %v727
        %s732 = scalar_lea.vmem [#allocation2], 96
        %733 = vst [vmem:[%s732] sm:$0xff] 0.0
        %734 = vst [vmem:[%s732 + $0x8] sm:$0xff] 0.0
        %735 = vst.msk [vmem:[%s732 + $0x10] sm:$0xff] %vm453, 0.0
        %736 = vst [vmem:[%s732 + $0x18] sm:$0xff] 0.0
        %737 = vst [vmem:[%s732 + $0x20] sm:$0xff] 0.0
        %738 = vst.msk [vmem:[%s732 + $0x28] sm:$0xff] %vm453, 0.0
        %v739 = vld [vmem:[%s319] sm:$0x2]
        %v740 = vld [vmem:[%s319 + $0x2] sm:$0x2]
        %v741 = vld [vmem:[%s319 + $0x4] sm:$0x2]
        %v742 = vld [vmem:[%s319 + $0x6] sm:$0x2]
        %v743 = vld [vmem:[%s319 + $0x8] sm:$0x2]
        %v744 = vld [vmem:[%s319 + $0xa] sm:$0x2]
        %v745 = vld [vmem:[%s319 + $0xc] sm:$0x2]
        %v746 = vld [vmem:[%s319 + $0xe] sm:$0x2]
        %v747 = vld [vmem:[%s319 + $0x10] sm:$0x2]
        %v748 = vld [vmem:[%s319 + $0x12] sm:$0x2]
        %v749 = vld [vmem:[%s319 + $0x14] sm:$0x2]
        %v750 = vld [vmem:[%s319 + $0x16] sm:$0x2]
        %v751 = vld [vmem:[%s319 + $0x18] sm:$0x2]
        %v752 = vld [vmem:[%s319 + $0x1a] sm:$0x2]
        %v753 = vld [vmem:[%s319 + $0x1c] sm:$0x2]
        %v754 = vld [vmem:[%s319 + $0x1e] sm:$0x2]
        %v755 = vunpack.c.l.bf16 %v739
        %v756 = vunpack.c.l.bf16 %v740
        %v757 = vunpack.c.l.bf16 %v741
        %v758 = vunpack.c.l.bf16 %v742
        %v759 = vunpack.c.l.bf16 %v743
        %v760 = vunpack.c.l.bf16 %v744
        %v761 = vunpack.c.l.bf16 %v745
        %v762 = vunpack.c.l.bf16 %v746
        %v763 = vunpack.c.l.bf16 %v747
        %v764 = vunpack.c.l.bf16 %v748
        %v765 = vunpack.c.l.bf16 %v749
        %v766 = vunpack.c.l.bf16 %v750
        %v767 = vunpack.c.l.bf16 %v751
        %v768 = vunpack.c.l.bf16 %v752
        %v769 = vunpack.c.l.bf16 %v753
        %v770 = vunpack.c.l.bf16 %v754
        %v787 = vlaneseq
        %v788 = vshrl.u32 %v787, 7
        %v789 = vsub.s32 2, %v788
        %v790 = vrot.slane %v755, %v789
        %v791 = vlaneseq
        %v792 = vshrl.u32 %v791, 7
        %v793 = vsub.s32 2, %v792
        %v794 = vrot.slane %v756, %v793
        %v795 = vlaneseq
        %v796 = vshrl.u32 %v795, 7
        %v797 = vsub.s32 2, %v796
        %v798 = vrot.slane %v757, %v797
        %v799 = vlaneseq
        %v800 = vshrl.u32 %v799, 7
        %v801 = vsub.s32 2, %v800
        %v802 = vrot.slane %v758, %v801
        %v803 = vlaneseq
        %v804 = vshrl.u32 %v803, 7
        %v805 = vsub.s32 2, %v804
        %v806 = vrot.slane %v759, %v805
        %v807 = vlaneseq
        %v808 = vshrl.u32 %v807, 7
        %v809 = vsub.s32 2, %v808
        %v810 = vrot.slane %v760, %v809
        %v811 = vlaneseq
        %v812 = vshrl.u32 %v811, 7
        %v813 = vsub.s32 2, %v812
        %v814 = vrot.slane %v761, %v813
        %v815 = vlaneseq
        %v816 = vshrl.u32 %v815, 7
        %v817 = vsub.s32 2, %v816
        %v818 = vrot.slane %v762, %v817
        %v819 = vlaneseq
        %v820 = vshrl.u32 %v819, 7
        %v821 = vsub.s32 2, %v820
        %v822 = vrot.slane %v763, %v821
        %v823 = vlaneseq
        %v824 = vshrl.u32 %v823, 7
        %v825 = vsub.s32 2, %v824
        %v826 = vrot.slane %v764, %v825
        %v827 = vlaneseq
        %v828 = vshrl.u32 %v827, 7
        %v829 = vsub.s32 2, %v828
        %v830 = vrot.slane %v765, %v829
        %v831 = vlaneseq
        %v832 = vshrl.u32 %v831, 7
        %v833 = vsub.s32 2, %v832
        %v834 = vrot.slane %v766, %v833
        %v835 = vlaneseq
        %v836 = vshrl.u32 %v835, 7
        %v837 = vsub.s32 2, %v836
        %v838 = vrot.slane %v767, %v837
        %v839 = vlaneseq
        %v840 = vshrl.u32 %v839, 7
        %v841 = vsub.s32 2, %v840
        %v842 = vrot.slane %v768, %v841
        %v843 = vlaneseq
        %v844 = vshrl.u32 %v843, 7
        %v845 = vsub.s32 2, %v844
        %v846 = vrot.slane %v769, %v845
        %v847 = vlaneseq
        %v848 = vshrl.u32 %v847, 7
        %v849 = vsub.s32 2, %v848
        %v850 = vrot.slane %v770, %v849
        %v851 = vsel %vm570, %v794, %v790
        %v852 = vsel %vm572, %v798, %v851
        %v853 = vsel %vm574, %v802, %v852
        %v854 = vsel %vm576, %v806, %v853
        %v855 = vsel %vm578, %v810, %v854
        %v856 = vsel %vm580, %v814, %v855
        %v857 = vsel %vm582, %v818, %v856
        %v858 = vsel %vm570, %v826, %v822
        %v859 = vsel %vm572, %v830, %v858
        %v860 = vsel %vm574, %v834, %v859
        %v861 = vsel %vm576, %v838, %v860
        %v862 = vsel %vm578, %v842, %v861
        %v863 = vsel %vm580, %v846, %v862
        %v864 = vsel %vm582, %v850, %v863
        %867 = vst.msk [vmem:[%s732 + $0x8] sm:$0xff] %vm453, %v857
        %868 = vst.msk [vmem:[%s732 + $0x20] sm:$0xff] %vm453, %v864
        %s869 = scalar_lea.vmem [#allocation2], 144
        %870 = vst [vmem:[%s869] sm:$0xff] 0.0
        %871 = vst [vmem:[%s869 + $0x8] sm:$0xff] 0.0
        %872 = vst.msk [vmem:[%s869 + $0x10] sm:$0xff] %vm453, 0.0
        %873 = vst [vmem:[%s869 + $0x18] sm:$0xff] 0.0
        %874 = vst [vmem:[%s869 + $0x20] sm:$0xff] 0.0
        %875 = vst.msk [vmem:[%s869 + $0x28] sm:$0xff] %vm453, 0.0
        %v876 = vld [vmem:[%s319] sm:$0x2]
        %v877 = vld [vmem:[%s319 + $0x2] sm:$0x2]
        %v878 = vld [vmem:[%s319 + $0x4] sm:$0x2]
        %v879 = vld [vmem:[%s319 + $0x6] sm:$0x2]
        %v880 = vld [vmem:[%s319 + $0x8] sm:$0x2]
        %v881 = vld [vmem:[%s319 + $0xa] sm:$0x2]
        %v882 = vld [vmem:[%s319 + $0xc] sm:$0x2]
        %v883 = vld [vmem:[%s319 + $0xe] sm:$0x2]
        %v884 = vld [vmem:[%s319 + $0x10] sm:$0x2]
        %v885 = vld [vmem:[%s319 + $0x12] sm:$0x2]
        %v886 = vld [vmem:[%s319 + $0x14] sm:$0x2]
        %v887 = vld [vmem:[%s319 + $0x16] sm:$0x2]
        %v888 = vld [vmem:[%s319 + $0x18] sm:$0x2]
        %v889 = vld [vmem:[%s319 + $0x1a] sm:$0x2]
        %v890 = vld [vmem:[%s319 + $0x1c] sm:$0x2]
        %v891 = vld [vmem:[%s319 + $0x1e] sm:$0x2]
        %v892 = vunpack.c.l.bf16 %v876
        %v893 = vunpack.c.l.bf16 %v877
        %v894 = vunpack.c.l.bf16 %v878
        %v895 = vunpack.c.l.bf16 %v879
        %v896 = vunpack.c.l.bf16 %v880
        %v897 = vunpack.c.l.bf16 %v881
        %v898 = vunpack.c.l.bf16 %v882
        %v899 = vunpack.c.l.bf16 %v883
        %v900 = vunpack.c.l.bf16 %v884
        %v901 = vunpack.c.l.bf16 %v885
        %v902 = vunpack.c.l.bf16 %v886
        %v903 = vunpack.c.l.bf16 %v887
        %v904 = vunpack.c.l.bf16 %v888
        %v905 = vunpack.c.l.bf16 %v889
        %v906 = vunpack.c.l.bf16 %v890
        %v907 = vunpack.c.l.bf16 %v891
        %v924 = vlaneseq
        %v925 = vshrl.u32 %v924, 7
        %v926 = vsub.s32 3, %v925
        %v927 = vrot.slane %v892, %v926
        %v928 = vlaneseq
        %v929 = vshrl.u32 %v928, 7
        %v930 = vsub.s32 3, %v929
        %v931 = vrot.slane %v893, %v930
        %v932 = vlaneseq
        %v933 = vshrl.u32 %v932, 7
        %v934 = vsub.s32 3, %v933
        %v935 = vrot.slane %v894, %v934
        %v936 = vlaneseq
        %v937 = vshrl.u32 %v936, 7
        %v938 = vsub.s32 3, %v937
        %v939 = vrot.slane %v895, %v938
        %v940 = vlaneseq
        %v941 = vshrl.u32 %v940, 7
        %v942 = vsub.s32 3, %v941
        %v943 = vrot.slane %v896, %v942
        %v944 = vlaneseq
        %v945 = vshrl.u32 %v944, 7
        %v946 = vsub.s32 3, %v945
        %v947 = vrot.slane %v897, %v946
        %v948 = vlaneseq
        %v949 = vshrl.u32 %v948, 7
        %v950 = vsub.s32 3, %v949
        %v951 = vrot.slane %v898, %v950
        %v952 = vlaneseq
        %v953 = vshrl.u32 %v952, 7
        %v954 = vsub.s32 3, %v953
        %v955 = vrot.slane %v899, %v954
        %v956 = vlaneseq
        %v957 = vshrl.u32 %v956, 7
        %v958 = vsub.s32 3, %v957
        %v959 = vrot.slane %v900, %v958
        %v960 = vlaneseq
        %v961 = vshrl.u32 %v960, 7
        %v962 = vsub.s32 3, %v961
        %v963 = vrot.slane %v901, %v962
        %v964 = vlaneseq
        %v965 = vshrl.u32 %v964, 7
        %v966 = vsub.s32 3, %v965
        %v967 = vrot.slane %v902, %v966
        %v968 = vlaneseq
        %v969 = vshrl.u32 %v968, 7
        %v970 = vsub.s32 3, %v969
        %v971 = vrot.slane %v903, %v970
        %v972 = vlaneseq
        %v973 = vshrl.u32 %v972, 7
        %v974 = vsub.s32 3, %v973
        %v975 = vrot.slane %v904, %v974
        %v976 = vlaneseq
        %v977 = vshrl.u32 %v976, 7
        %v978 = vsub.s32 3, %v977
        %v979 = vrot.slane %v905, %v978
        %v980 = vlaneseq
        %v981 = vshrl.u32 %v980, 7
        %v982 = vsub.s32 3, %v981
        %v983 = vrot.slane %v906, %v982
        %v984 = vlaneseq
        %v985 = vshrl.u32 %v984, 7
        %v986 = vsub.s32 3, %v985
        %v987 = vrot.slane %v907, %v986
        %v988 = vsel %vm570, %v931, %v927
        %v989 = vsel %vm572, %v935, %v988
        %v990 = vsel %vm574, %v939, %v989
        %v991 = vsel %vm576, %v943, %v990
        %v992 = vsel %vm578, %v947, %v991
        %v993 = vsel %vm580, %v951, %v992
        %v994 = vsel %vm582, %v955, %v993
        %v995 = vsel %vm570, %v963, %v959
        %v996 = vsel %vm572, %v967, %v995
        %v997 = vsel %vm574, %v971, %v996
        %v998 = vsel %vm576, %v975, %v997
        %v999 = vsel %vm578, %v979, %v998
        %v1000 = vsel %vm580, %v983, %v999
        %v1001 = vsel %vm582, %v987, %v1000
        %1004 = vst.msk [vmem:[%s869 + $0x8] sm:$0xff] %vm453, %v994
        %1005 = vst.msk [vmem:[%s869 + $0x20] sm:$0xff] %vm453, %v1001
        %v1006 = vld [vmem:[%s869] sm:$0xff]
        %v1007 = vld [vmem:[%s869 + $0x8] sm:$0xff]
        %v1008 = vld [vmem:[%s869 + $0x18] sm:$0xff]
        %v1009 = vld [vmem:[%s869 + $0x20] sm:$0xff]
        %vm1010 = vcmp.ge.s32.totalorder %v450, 1
        %v1011 = vsel %vm1010, 1, 0
        %vm1012 = vcmp.eq.s32.totalorder %v1011, 1
        %1017 = vrot.lane.b32.xlu0 %v1006, 9
        %v1018 = vpop.permute.xlu0 %1017
        %1019 = vrot.lane.b32.xlu0 %v1007, 9
        %v1020 = vpop.permute.xlu0 %1019
        %1021 = vrot.lane.b32.xlu0 %v1008, 9
        %v1022 = vpop.permute.xlu0 %1021
        %1023 = vrot.lane.b32.xlu0 %v1009, 9
        %v1024 = vpop.permute.xlu0 %1023
        %vm1025 = vcmask 72704
        %v1026 = vsel %vm1025, %v1018, %v1020
        %v1027 = vsel %vm1025, %v1022, %v1024
        %v1030 = vsel %vm1012, %v1026, 0.0
        %v1031 = vsel %vm1012, %v1027, 0.0
        %1032 = vst.msk [vmem:[#allocation3] sm:$0xff] %vm453, %v1030
        %1033 = vst.msk [vmem:[#allocation3 + $0x8] sm:$0xff] %vm453, %v1031
        %v1034 = vld [vmem:[%s732] sm:$0xff]
        %v1035 = vld [vmem:[%s732 + $0x8] sm:$0xff]
        %v1036 = vld [vmem:[%s732 + $0x18] sm:$0xff]
        %v1037 = vld [vmem:[%s732 + $0x20] sm:$0xff]
        %1042 = vrot.lane.b32.xlu0 %v1034, 8
        %v1043 = vpop.permute.xlu0 %1042
        %1044 = vrot.lane.b32.xlu0 %v1035, 8
        %v1045 = vpop.permute.xlu0 %1044
        %1046 = vrot.lane.b32.xlu0 %v1036, 8
        %v1047 = vpop.permute.xlu0 %1046
        %1048 = vrot.lane.b32.xlu0 %v1037, 8
        %v1049 = vpop.permute.xlu0 %1048
        %v1050 = vsel %vm376, %v1043, %v1045
        %v1051 = vsel %vm376, %v1047, %v1049
        %1054 = vst.msk [vmem:[#allocation3 + $0x10] sm:$0xff] %vm453, %v1050
        %1055 = vst.msk [vmem:[#allocation3 + $0x18] sm:$0xff] %vm453, %v1051
        %v1056 = vld [vmem:[%s869] sm:$0xff]
        %v1057 = vld [vmem:[%s869 + $0x8] sm:$0xff]
        %v1058 = vld [vmem:[%s869 + $0x18] sm:$0xff]
        %v1059 = vld [vmem:[%s869 + $0x20] sm:$0xff]
        %1064 = vrot.lane.b32.xlu0 %v1056, 8
        %v1065 = vpop.permute.xlu0 %1064
        %1066 = vrot.lane.b32.xlu0 %v1057, 8
        %v1067 = vpop.permute.xlu0 %1066
        %1068 = vrot.lane.b32.xlu0 %v1058, 8
        %v1069 = vpop.permute.xlu0 %1068
        %1070 = vrot.lane.b32.xlu0 %v1059, 8
        %v1071 = vpop.permute.xlu0 %1070
        %v1072 = vsel %vm376, %v1065, %v1067
        %v1073 = vsel %vm376, %v1069, %v1071
        %1076 = vst.msk [vmem:[#allocation3 + $0x20] sm:$0xff] %vm453, %v1072
        %1077 = vst.msk [vmem:[#allocation3 + $0x28] sm:$0xff] %vm453, %v1073
        %v1078 = vld [vmem:[%s595] sm:$0xff]
        %v1079 = vld [vmem:[%s595 + $0x8] sm:$0xff]
        %v1080 = vld [vmem:[%s595 + $0x18] sm:$0xff]
        %v1081 = vld [vmem:[%s595 + $0x20] sm:$0xff]
        %1086 = vrot.lane.b32.xlu0 %v1078, 1
        %v1087 = vpop.permute.xlu0 %1086
        %1088 = vrot.lane.b32.xlu0 %v1079, 1
        %v1089 = vpop.permute.xlu0 %1088
        %1090 = vrot.lane.b32.xlu0 %v1080, 1
        %v1091 = vpop.permute.xlu0 %1090
        %1092 = vrot.lane.b32.xlu0 %v1081, 1
        %v1093 = vpop.permute.xlu0 %1092
        %vm1094 = vcmask 7168
        %v1095 = vsel %vm1094, %v1087, %v1089
        %v1096 = vsel %vm1094, %v1091, %v1093
        %v1099 = vsel %vm1012, %v1095, 0.0
        %v1100 = vsel %vm1012, %v1096, 0.0
        %1101 = vst.msk [vmem:[#allocation3 + $0x30] sm:$0xff] %vm453, %v1099
        %1102 = vst.msk [vmem:[#allocation3 + $0x38] sm:$0xff] %vm453, %v1100
        %v1103 = vld [vmem:[#allocation2 + $0x8] sm:$0xff]
        %v1104 = vld [vmem:[#allocation2 + $0x20] sm:$0xff]
        %1105 = vst.msk [vmem:[#allocation3 + $0x40] sm:$0xff] %vm453, %v1103
        %1106 = vst.msk [vmem:[#allocation3 + $0x48] sm:$0xff] %vm453, %v1104
        %v1107 = vld [vmem:[%s595 + $0x8] sm:$0xff]
        %v1108 = vld [vmem:[%s595 + $0x20] sm:$0xff]
        %1109 = vst.msk [vmem:[#allocation3 + $0x50] sm:$0xff] %vm453, %v1107
        %1110 = vst.msk [vmem:[#allocation3 + $0x58] sm:$0xff] %vm453, %v1108
        %v1111 = vld [vmem:[%s869] sm:$0xff]
        %v1112 = vld [vmem:[%s869 + $0x8] sm:$0xff]
        %v1113 = vld [vmem:[%s869 + $0x18] sm:$0xff]
        %v1114 = vld [vmem:[%s869 + $0x20] sm:$0xff]
        %1119 = vrot.lane.b32.xlu0 %v1111, 1
        %v1120 = vpop.permute.xlu0 %1119
        %1121 = vrot.lane.b32.xlu0 %v1112, 1
        %v1122 = vpop.permute.xlu0 %1121
        %1123 = vrot.lane.b32.xlu0 %v1113, 1
        %v1124 = vpop.permute.xlu0 %1123
        %1125 = vrot.lane.b32.xlu0 %v1114, 1
        %v1126 = vpop.permute.xlu0 %1125
        %v1127 = vsel %vm1094, %v1120, %v1122
        %v1128 = vsel %vm1094, %v1124, %v1126
        %v1131 = vsel %vm1012, %v1127, 0.0
        %v1132 = vsel %vm1012, %v1128, 0.0
        %1133 = vst.msk [vmem:[#allocation3 + $0x60] sm:$0xff] %vm453, %v1131
        %1134 = vst.msk [vmem:[#allocation3 + $0x68] sm:$0xff] %vm453, %v1132
        %v1135 = vld [vmem:[%s732 + $0x8] sm:$0xff]
        %v1136 = vld [vmem:[%s732 + $0x20] sm:$0xff]
        %1137 = vst.msk [vmem:[#allocation3 + $0x70] sm:$0xff] %vm453, %v1135
        %1138 = vst.msk [vmem:[#allocation3 + $0x78] sm:$0xff] %vm453, %v1136
        %v1139 = vld [vmem:[%s869 + $0x8] sm:$0xff]
        %v1140 = vld [vmem:[%s869 + $0x20] sm:$0xff]
        %1141 = vst.msk [vmem:[#allocation3 + $0x80] sm:$0xff] %vm453, %v1139
        %1142 = vst.msk [vmem:[#allocation3 + $0x88] sm:$0xff] %vm453, %v1140
        %v1143 = vld [vmem:[#allocation4] sm:$0xff]
        %v1144 = vld [vmem:[#allocation4 + $0x8] sm:$0xff]
        %v1145 = vld [vmem:[#allocation3] sm:$0xff]
        %v1146 = vld [vmem:[#allocation3 + $0x8] sm:$0xff]
        %v1147 = vld [vmem:[#allocation3 + $0x10] sm:$0xff]
        %v1148 = vld [vmem:[#allocation3 + $0x18] sm:$0xff]
        %v1149 = vld [vmem:[#allocation3 + $0x20] sm:$0xff]
        %v1150 = vld [vmem:[#allocation3 + $0x28] sm:$0xff]
        %v1151 = vld [vmem:[#allocation3 + $0x30] sm:$0xff]
        %v1152 = vld [vmem:[#allocation3 + $0x38] sm:$0xff]
        %v1153 = vld [vmem:[#allocation3 + $0x40] sm:$0xff]
        %v1154 = vld [vmem:[#allocation3 + $0x48] sm:$0xff]
        %v1155 = vld [vmem:[#allocation3 + $0x50] sm:$0xff]
        %v1156 = vld [vmem:[#allocation3 + $0x58] sm:$0xff]
        %v1157 = vld [vmem:[#allocation3 + $0x60] sm:$0xff]
        %v1158 = vld [vmem:[#allocation3 + $0x68] sm:$0xff]
        %v1159 = vld [vmem:[#allocation3 + $0x70] sm:$0xff]
        %v1160 = vld [vmem:[#allocation3 + $0x78] sm:$0xff]
        %v1161 = vld [vmem:[#allocation3 + $0x80] sm:$0xff]
        %v1162 = vld [vmem:[#allocation3 + $0x88] sm:$0xff]
        %v1163 = vpack.c.bf16 %v1146, %v1145
        %v1164 = vpack.c.bf16 %v1148, %v1147
        %v1165 = vpack.c.bf16 %v1150, %v1149
        %v1166 = vpack.c.bf16 %v1152, %v1151
        %v1167 = vpack.c.bf16 %v1154, %v1153
        %v1168 = vpack.c.bf16 %v1156, %v1155
        %v1169 = vpack.c.bf16 %v1158, %v1157
        %v1170 = vpack.c.bf16 %v1160, %v1159
        %v1171 = vpack.c.bf16 %v1162, %v1161
        %v1174 = vunpack.c.l.b16 %v1143
        %v1175 = vunpack.c.h.b16 %v1143
        %v1176 = vunpack.c.l.b16 %v1144
        %v1177 = vunpack.c.h.b16 %v1144
        %v1178 = vpack.c.b16 %v1176, %v1174
        %v1179 = vpack.c.b16 %v1177, %v1175
        %vm1181 = vcmask 130048
        %v1183 = vsel %vm1181, %v1179, 0
        %1185 = vmatprep.subr.bf16.mxu0 0
        %1186 = vmatpush1.bf16.msra.mxu0 %v1163
        %1187 = vmatprep.subr.bf16.mxu0 0
        %1188 = vmatpush1.bf16.msra.mxu0 %v1164
        %1189 = vmatprep.subr.bf16.mxu0 0
        %1190 = vmatpush1.bf16.msra.mxu0 %v1165
        %1191 = vmatprep.subr.bf16.mxu0 0
        %1192 = vmatpush1.bf16.msra.mxu0 %v1166
        %1193 = vmatprep.subr.bf16.mxu0 0
        %1194 = vmatpush1.bf16.msra.mxu0 %v1167
        %1195 = vmatprep.subr.bf16.mxu0 0
        %1196 = vmatpush1.bf16.msra.mxu0 %v1168
        %1197 = vmatprep.subr.bf16.mxu0 0
        %1198 = vmatpush1.bf16.msra.mxu0 %v1169
        %1199 = vmatprep.subr.bf16.mxu0 0
        %1200 = vmatpush1.bf16.msra.mxu0 %v1170
        %1201 = vmatprep.subr.bf16.mxu0 0
        %1202 = vmatpush1.bf16.msra.mxu0 %v1171
        %1203 = vmatprep.subr.bf16.mxu0 0
        %1204 = vmatpush1.bf16.msra.mxu0 0
        %1205 = vmatprep.subr.bf16.mxu0 0
        %1206 = vmatpush1.bf16.msra.mxu0 0
        %1207 = vmatprep.subr.bf16.mxu0 0
        %1208 = vmatpush1.bf16.msra.mxu0 0
        %1209 = vmatprep.subr.bf16.mxu0 0
        %1210 = vmatpush1.bf16.msra.mxu0 0
        %1211 = vmatprep.subr.bf16.mxu0 0
        %1212 = vmatpush1.bf16.msra.mxu0 0
        %1213 = vmatprep.subr.bf16.mxu0 0
        %1214 = vmatpush1.bf16.msra.mxu0 0
        %1215 = vmatprep.subr.bf16.mxu0 0
        %1216 = vmatpush1.bf16.msra.mxu0 0
        %1217 = vmatprep.mubr.bf16.mxu0 %v1183
        %1218 = vmatmul.mubr.bf16.gmra.mrb[0].mxu0 %v1178
        %v1219 = vpop.f32.mrb[0].mxu0
        %v1220 = vadd.f32 %v435, %v1219
        %v1221 = vpop.f32.mrb[0].mxu0
        %v1222 = vpop.f32.mrb[0].mxu0
        %v1223 = vadd.f32 %v436, %v1222
        %v1224 = vpop.f32.mrb[0].mxu0
        %1225 = vdwg.mxu0
        %v1228 = vcombine.high %v1220, %v1220
        %v1230 = vunpack.c.l.s4 1966171168
        %v1231 = vunpack.c.0.s8 %v1230
        %v1232 = vlaneseq
        %v1233 = vshrl.u32 %v1232, 7
        %v1234 = vsub.s32 %v1231, %v1233
        %v1235 = vrot.slane %v1220, %v1234
        %v1237 = vunpack.c.l.s4 1966171168
        %v1238 = vunpack.c.0.s8 %v1237
        %v1239 = vlaneseq
        %v1240 = vshrl.u32 %v1239, 7
        %v1241 = vsub.s32 %v1238, %v1240
        %v1242 = vrot.slane %v1228, %v1241
        %v1243 = vcombine.high %v1235, %v1235
        %v1244 = vcombine.high %v1242, %v1242
        %v1246 = vunpack.c.l.s4 1966171168
        %v1247 = vunpack.c.0.s8 %v1246
        %v1248 = vlaneseq
        %v1249 = vshrl.u32 %v1248, 7
        %v1250 = vsub.s32 %v1247, %v1249
        %v1251 = vrot.slane %v1235, %v1250
        %v1253 = vunpack.c.l.s4 1966171168
        %v1254 = vunpack.c.0.s8 %v1253
        %v1255 = vlaneseq
        %v1256 = vshrl.u32 %v1255, 7
        %v1257 = vsub.s32 %v1254, %v1256
        %v1258 = vrot.slane %v1242, %v1257
        %v1260 = vunpack.c.l.s4 1966171168
        %v1261 = vunpack.c.0.s8 %v1260
        %v1262 = vlaneseq
        %v1263 = vshrl.u32 %v1262, 7
        %v1264 = vsub.s32 %v1261, %v1263
        %v1265 = vrot.slane %v1243, %v1264
        %v1267 = vunpack.c.l.s4 1966171168
        %v1268 = vunpack.c.0.s8 %v1267
        %v1269 = vlaneseq
        %v1270 = vshrl.u32 %v1269, 7
        %v1271 = vsub.s32 %v1268, %v1270
        %v1272 = vrot.slane %v1244, %v1271
        %v1273 = vcombine.high %v1251, %v1251
        %v1274 = vcombine.high %v1258, %v1258
        %v1275 = vcombine.high %v1265, %v1265
        %v1276 = vcombine.high %v1272, %v1272
        %v1277 = vcombine.high %v1223, %v1223
        %v1279 = vunpack.c.l.s4 1966171168
        %v1280 = vunpack.c.0.s8 %v1279
        %v1281 = vlaneseq
        %v1282 = vshrl.u32 %v1281, 7
        %v1283 = vsub.s32 %v1280, %v1282
        %v1284 = vrot.slane %v1223, %v1283
        %v1286 = vunpack.c.l.s4 1966171168
        %v1287 = vunpack.c.0.s8 %v1286
        %v1288 = vlaneseq
        %v1289 = vshrl.u32 %v1288, 7
        %v1290 = vsub.s32 %v1287, %v1289
        %v1291 = vrot.slane %v1277, %v1290
        %v1292 = vcombine.high %v1284, %v1284
        %v1293 = vcombine.high %v1291, %v1291
        %v1295 = vunpack.c.l.s4 1966171168
        %v1296 = vunpack.c.0.s8 %v1295
        %v1297 = vlaneseq
        %v1298 = vshrl.u32 %v1297, 7
        %v1299 = vsub.s32 %v1296, %v1298
        %v1300 = vrot.slane %v1284, %v1299
        %v1302 = vunpack.c.l.s4 1966171168
        %v1303 = vunpack.c.0.s8 %v1302
        %v1304 = vlaneseq
        %v1305 = vshrl.u32 %v1304, 7
        %v1306 = vsub.s32 %v1303, %v1305
        %v1307 = vrot.slane %v1291, %v1306
        %v1309 = vunpack.c.l.s4 1966171168
        %v1310 = vunpack.c.0.s8 %v1309
        %v1311 = vlaneseq
        %v1312 = vshrl.u32 %v1311, 7
        %v1313 = vsub.s32 %v1310, %v1312
        %v1314 = vrot.slane %v1292, %v1313
        %v1316 = vunpack.c.l.s4 1966171168
        %v1317 = vunpack.c.0.s8 %v1316
        %v1318 = vlaneseq
        %v1319 = vshrl.u32 %v1318, 7
        %v1320 = vsub.s32 %v1317, %v1319
        %v1321 = vrot.slane %v1293, %v1320
        %v1322 = vcombine.high %v1300, %v1300
        %v1323 = vcombine.high %v1307, %v1307
        %v1324 = vcombine.high %v1314, %v1314
        %v1325 = vcombine.high %v1321, %v1321
        %vm1342 = vcmask 516096
        %1343 = vst.msk [vmem:[%s359] sm:$0x1] %vm1342, %v1251
        %1344 = vst.msk [vmem:[%s359 + $0x4] sm:$0x1] %vm1342, %v1265
        %1345 = vst.msk [vmem:[%s359 + $0x8] sm:$0x1] %vm1342, %v1273
        %1346 = vst.msk [vmem:[%s359 + $0xc] sm:$0x1] %vm1342, %v1275
        %1347 = vst.msk [vmem:[%s359 + $0x10] sm:$0x1] %vm1342, %v1258
        %1348 = vst.msk [vmem:[%s359 + $0x14] sm:$0x1] %vm1342, %v1272
        %1349 = vst.msk [vmem:[%s359 + $0x18] sm:$0x1] %vm1342, %v1274
        %1350 = vst.msk [vmem:[%s359 + $0x1c] sm:$0x1] %vm1342, %v1276
        %1351 = vst.msk [vmem:[%s359 + $0x20] sm:$0x1] %vm1342, %v1300
        %1352 = vst.msk [vmem:[%s359 + $0x24] sm:$0x1] %vm1342, %v1314
        %1353 = vst.msk [vmem:[%s359 + $0x28] sm:$0x1] %vm1342, %v1322
        %1354 = vst.msk [vmem:[%s359 + $0x2c] sm:$0x1] %vm1342, %v1324
        %1355 = vst.msk [vmem:[%s359 + $0x30] sm:$0x1] %vm1342, %v1307
        %1356 = vst.msk [vmem:[%s359 + $0x34] sm:$0x1] %vm1342, %v1321
        %1357 = vst.msk [vmem:[%s359 + $0x38] sm:$0x1] %vm1342, %v1323
        %1358 = vst.msk [vmem:[%s359 + $0x3c] sm:$0x1] %vm1342, %v1325
        %v1359 = vld [vmem:[%s732] sm:$0xff]
        %v1360 = vld [vmem:[%s732 + $0x8] sm:$0xff]
        %v1361 = vld [vmem:[%s732 + $0x18] sm:$0xff]
        %v1362 = vld [vmem:[%s732 + $0x20] sm:$0xff]
        %1367 = vrot.lane.b32.xlu0 %v1359, 8
        %v1368 = vpop.permute.xlu0 %1367
        %1369 = vrot.lane.b32.xlu0 %v1360, 8
        %v1370 = vpop.permute.xlu0 %1369
        %1371 = vrot.lane.b32.xlu0 %v1361, 8
        %v1372 = vpop.permute.xlu0 %1371
        %1373 = vrot.lane.b32.xlu0 %v1362, 8
        %v1374 = vpop.permute.xlu0 %1373
        %v1375 = vsel %vm376, %v1368, %v1370
        %v1376 = vsel %vm376, %v1372, %v1374
        %1379 = vst.msk [vmem:[#allocation3] sm:$0xff] %vm453, %v1375
        %1380 = vst.msk [vmem:[#allocation3 + $0x8] sm:$0xff] %vm453, %v1376
        %v1381 = vld [vmem:[%s869] sm:$0xff]
        %v1382 = vld [vmem:[%s869 + $0x8] sm:$0xff]
        %v1383 = vld [vmem:[%s869 + $0x18] sm:$0xff]
        %v1384 = vld [vmem:[%s869 + $0x20] sm:$0xff]
        %1389 = vrot.lane.b32.xlu0 %v1381, 8
        %v1390 = vpop.permute.xlu0 %1389
        %1391 = vrot.lane.b32.xlu0 %v1382, 8
        %v1392 = vpop.permute.xlu0 %1391
        %1393 = vrot.lane.b32.xlu0 %v1383, 8
        %v1394 = vpop.permute.xlu0 %1393
        %1395 = vrot.lane.b32.xlu0 %v1384, 8
        %v1396 = vpop.permute.xlu0 %1395
        %v1397 = vsel %vm376, %v1390, %v1392
        %v1398 = vsel %vm376, %v1394, %v1396
        %1401 = vst.msk [vmem:[#allocation3 + $0x10] sm:$0xff] %vm453, %v1397
        %1402 = vst.msk [vmem:[#allocation3 + $0x18] sm:$0xff] %vm453, %v1398
        %v1403 = vld [vmem:[%s732] sm:$0xff]
        %v1404 = vld [vmem:[%s732 + $0x8] sm:$0xff]
        %v1405 = vld [vmem:[%s732 + $0x18] sm:$0xff]
        %v1406 = vld [vmem:[%s732 + $0x20] sm:$0xff]
        %vm1407 = vcmp.lt.s32.totalorder %v450, 7
        %v1408 = vsel %vm1407, 1, 0
        %vm1409 = vcmp.eq.s32.totalorder %v1408, 1
        %1414 = vrot.lane.b32.xlu0 %v1403, 7
        %v1415 = vpop.permute.xlu0 %1414
        %1416 = vrot.lane.b32.xlu0 %v1404, 7
        %v1417 = vpop.permute.xlu0 %1416
        %1418 = vrot.lane.b32.xlu0 %v1405, 7
        %v1419 = vpop.permute.xlu0 %1418
        %1420 = vrot.lane.b32.xlu0 %v1406, 7
        %v1421 = vpop.permute.xlu0 %1420
        %vm1422 = vcmask 56320
        %v1423 = vsel %vm1422, %v1415, %v1417
        %v1424 = vsel %vm1422, %v1419, %v1421
        %v1427 = vsel %vm1409, %v1423, 0.0
        %v1428 = vsel %vm1409, %v1424, 0.0
        %1429 = vst.msk [vmem:[#allocation3 + $0x20] sm:$0xff] %vm453, %v1427
        %1430 = vst.msk [vmem:[#allocation3 + $0x28] sm:$0xff] %vm453, %v1428
        %v1431 = vld [vmem:[#allocation2 + $0x8] sm:$0xff]
        %v1432 = vld [vmem:[#allocation2 + $0x20] sm:$0xff]
        %1433 = vst.msk [vmem:[#allocation3 + $0x30] sm:$0xff] %vm453, %v1431
        %1434 = vst.msk [vmem:[#allocation3 + $0x38] sm:$0xff] %vm453, %v1432
        %v1435 = vld [vmem:[%s595 + $0x8] sm:$0xff]
        %v1436 = vld [vmem:[%s595 + $0x20] sm:$0xff]
        %1437 = vst.msk [vmem:[#allocation3 + $0x40] sm:$0xff] %vm453, %v1435
        %1438 = vst.msk [vmem:[#allocation3 + $0x48] sm:$0xff] %vm453, %v1436
        %v1439 = vld [vmem:[#allocation2 + $0x8] sm:$0xff]
        %v1440 = vld [vmem:[#allocation2 + $0x20] sm:$0xff]
        %1443 = vrot.lane.b32.xlu0 %v1439, 127
        %v1444 = vpop.permute.xlu0 %1443
        %1445 = vrot.lane.b32.xlu0 %v1440, 127
        %v1446 = vpop.permute.xlu0 %1445
        %v1449 = vsel %vm1409, %v1444, 0.0
        %v1450 = vsel %vm1409, %v1446, 0.0
        %1451 = vst.msk [vmem:[#allocation3 + $0x50] sm:$0xff] %vm453, %v1449
        %1452 = vst.msk [vmem:[#allocation3 + $0x58] sm:$0xff] %vm453, %v1450
        %v1453 = vld [vmem:[%s732 + $0x8] sm:$0xff]
        %v1454 = vld [vmem:[%s732 + $0x20] sm:$0xff]
        %1455 = vst.msk [vmem:[#allocation3 + $0x60] sm:$0xff] %vm453, %v1453
        %1456 = vst.msk [vmem:[#allocation3 + $0x68] sm:$0xff] %vm453, %v1454
        %v1457 = vld [vmem:[%s869 + $0x8] sm:$0xff]
        %v1458 = vld [vmem:[%s869 + $0x20] sm:$0xff]
        %1459 = vst.msk [vmem:[#allocation3 + $0x70] sm:$0xff] %vm453, %v1457
        %1460 = vst.msk [vmem:[#allocation3 + $0x78] sm:$0xff] %vm453, %v1458
        %v1461 = vld [vmem:[%s732 + $0x8] sm:$0xff]
        %v1462 = vld [vmem:[%s732 + $0x20] sm:$0xff]
        %1465 = vrot.lane.b32.xlu0 %v1461, 127
        %v1466 = vpop.permute.xlu0 %1465
        %1467 = vrot.lane.b32.xlu0 %v1462, 127
        %v1468 = vpop.permute.xlu0 %1467
        %v1471 = vsel %vm1409, %v1466, 0.0
        %v1472 = vsel %vm1409, %v1468, 0.0
        %1473 = vst.msk [vmem:[#allocation3 + $0x80] sm:$0xff] %vm453, %v1471
        %1474 = vst.msk [vmem:[#allocation3 + $0x88] sm:$0xff] %vm453, %v1472
        %v1475 = vld [vmem:[#allocation4] sm:$0xff]
        %v1476 = vld [vmem:[#allocation4 + $0x8] sm:$0xff]
        %v1477 = vld [vmem:[#allocation3] sm:$0xff]
        %v1478 = vld [vmem:[#allocation3 + $0x8] sm:$0xff]
        %v1479 = vld [vmem:[#allocation3 + $0x10] sm:$0xff]
        %v1480 = vld [vmem:[#allocation3 + $0x18] sm:$0xff]
        %v1481 = vld [vmem:[#allocation3 + $0x20] sm:$0xff]
        %v1482 = vld [vmem:[#allocation3 + $0x28] sm:$0xff]
        %v1483 = vld [vmem:[#allocation3 + $0x30] sm:$0xff]
        %v1484 = vld [vmem:[#allocation3 + $0x38] sm:$0xff]
        %v1485 = vld [vmem:[#allocation3 + $0x40] sm:$0xff]
        %v1486 = vld [vmem:[#allocation3 + $0x48] sm:$0xff]
        %v1487 = vld [vmem:[#allocation3 + $0x50] sm:$0xff]
        %v1488 = vld [vmem:[#allocation3 + $0x58] sm:$0xff]
        %v1489 = vld [vmem:[#allocation3 + $0x60] sm:$0xff]
        %v1490 = vld [vmem:[#allocation3 + $0x68] sm:$0xff]
        %v1491 = vld [vmem:[#allocation3 + $0x70] sm:$0xff]
        %v1492 = vld [vmem:[#allocation3 + $0x78] sm:$0xff]
        %v1493 = vld [vmem:[#allocation3 + $0x80] sm:$0xff]
        %v1494 = vld [vmem:[#allocation3 + $0x88] sm:$0xff]
        %v1495 = vpack.c.bf16 %v1478, %v1477
        %v1496 = vpack.c.bf16 %v1480, %v1479
        %v1497 = vpack.c.bf16 %v1482, %v1481
        %v1498 = vpack.c.bf16 %v1484, %v1483
        %v1499 = vpack.c.bf16 %v1486, %v1485
        %v1500 = vpack.c.bf16 %v1488, %v1487
        %v1501 = vpack.c.bf16 %v1490, %v1489
        %v1502 = vpack.c.bf16 %v1492, %v1491
        %v1503 = vpack.c.bf16 %v1494, %v1493
        %v1506 = vunpack.c.l.b16 %v1475
        %v1507 = vunpack.c.h.b16 %v1475
        %v1508 = vunpack.c.l.b16 %v1476
        %v1509 = vunpack.c.h.b16 %v1476
        %v1510 = vpack.c.b16 %v1508, %v1506
        %v1511 = vpack.c.b16 %v1509, %v1507
        %v1514 = vsel %vm1181, %v1511, 0
        %1516 = vmatprep.subr.bf16.mxu0 0
        %1517 = vmatpush1.bf16.msra.mxu0 %v1495
        %1518 = vmatprep.subr.bf16.mxu0 0
        %1519 = vmatpush1.bf16.msra.mxu0 %v1496
        %1520 = vmatprep.subr.bf16.mxu0 0
        %1521 = vmatpush1.bf16.msra.mxu0 %v1497
        %1522 = vmatprep.subr.bf16.mxu0 0
        %1523 = vmatpush1.bf16.msra.mxu0 %v1498
        %1524 = vmatprep.subr.bf16.mxu0 0
        %1525 = vmatpush1.bf16.msra.mxu0 %v1499
        %1526 = vmatprep.subr.bf16.mxu0 0
        %1527 = vmatpush1.bf16.msra.mxu0 %v1500
        %1528 = vmatprep.subr.bf16.mxu0 0
        %1529 = vmatpush1.bf16.msra.mxu0 %v1501
        %1530 = vmatprep.subr.bf16.mxu0 0
        %1531 = vmatpush1.bf16.msra.mxu0 %v1502
        %1532 = vmatprep.subr.bf16.mxu0 0
        %1533 = vmatpush1.bf16.msra.mxu0 %v1503
        %1534 = vmatprep.subr.bf16.mxu0 0
        %1535 = vmatpush1.bf16.msra.mxu0 0
        %1536 = vmatprep.subr.bf16.mxu0 0
        %1537 = vmatpush1.bf16.msra.mxu0 0
        %1538 = vmatprep.subr.bf16.mxu0 0
        %1539 = vmatpush1.bf16.msra.mxu0 0
        %1540 = vmatprep.subr.bf16.mxu0 0
        %1541 = vmatpush1.bf16.msra.mxu0 0
        %1542 = vmatprep.subr.bf16.mxu0 0
        %1543 = vmatpush1.bf16.msra.mxu0 0
        %1544 = vmatprep.subr.bf16.mxu0 0
        %1545 = vmatpush1.bf16.msra.mxu0 0
        %1546 = vmatprep.subr.bf16.mxu0 0
        %1547 = vmatpush1.bf16.msra.mxu0 0
        %1548 = vmatprep.mubr.bf16.mxu0 %v1514
        %1549 = vmatmul.mubr.bf16.gmra.mrb[0].mxu0 %v1510
        %v1550 = vpop.f32.mrb[0].mxu0
        %v1551 = vadd.f32 %v435, %v1550
        %v1552 = vpop.f32.mrb[0].mxu0
        %v1553 = vpop.f32.mrb[0].mxu0
        %v1554 = vadd.f32 %v436, %v1553
        %v1555 = vpop.f32.mrb[0].mxu0
        %1556 = vdwg.mxu0
        %v1559 = vcombine.high %v1551, %v1551
        %v1561 = vunpack.c.l.s4 1966171168
        %v1562 = vunpack.c.0.s8 %v1561
        %v1563 = vlaneseq
        %v1564 = vshrl.u32 %v1563, 7
        %v1565 = vsub.s32 %v1562, %v1564
        %v1566 = vrot.slane %v1551, %v1565
        %v1568 = vunpack.c.l.s4 1966171168
        %v1569 = vunpack.c.0.s8 %v1568
        %v1570 = vlaneseq
        %v1571 = vshrl.u32 %v1570, 7
        %v1572 = vsub.s32 %v1569, %v1571
        %v1573 = vrot.slane %v1559, %v1572
        %v1574 = vcombine.high %v1566, %v1566
        %v1575 = vcombine.high %v1573, %v1573
        %v1577 = vunpack.c.l.s4 1966171168
        %v1578 = vunpack.c.0.s8 %v1577
        %v1579 = vlaneseq
        %v1580 = vshrl.u32 %v1579, 7
        %v1581 = vsub.s32 %v1578, %v1580
        %v1582 = vrot.slane %v1566, %v1581
        %v1584 = vunpack.c.l.s4 1966171168
        %v1585 = vunpack.c.0.s8 %v1584
        %v1586 = vlaneseq
        %v1587 = vshrl.u32 %v1586, 7
        %v1588 = vsub.s32 %v1585, %v1587
        %v1589 = vrot.slane %v1573, %v1588
        %v1591 = vunpack.c.l.s4 1966171168
        %v1592 = vunpack.c.0.s8 %v1591
        %v1593 = vlaneseq
        %v1594 = vshrl.u32 %v1593, 7
        %v1595 = vsub.s32 %v1592, %v1594
        %v1596 = vrot.slane %v1574, %v1595
        %v1598 = vunpack.c.l.s4 1966171168
        %v1599 = vunpack.c.0.s8 %v1598
        %v1600 = vlaneseq
        %v1601 = vshrl.u32 %v1600, 7
        %v1602 = vsub.s32 %v1599, %v1601
        %v1603 = vrot.slane %v1575, %v1602
        %v1604 = vcombine.high %v1582, %v1582
        %v1605 = vcombine.high %v1589, %v1589
        %v1606 = vcombine.high %v1596, %v1596
        %v1607 = vcombine.high %v1603, %v1603
        %v1608 = vcombine.high %v1554, %v1554
        %v1610 = vunpack.c.l.s4 1966171168
        %v1611 = vunpack.c.0.s8 %v1610
        %v1612 = vlaneseq
        %v1613 = vshrl.u32 %v1612, 7
        %v1614 = vsub.s32 %v1611, %v1613
        %v1615 = vrot.slane %v1554, %v1614
        %v1617 = vunpack.c.l.s4 1966171168
        %v1618 = vunpack.c.0.s8 %v1617
        %v1619 = vlaneseq
        %v1620 = vshrl.u32 %v1619, 7
        %v1621 = vsub.s32 %v1618, %v1620
        %v1622 = vrot.slane %v1608, %v1621
        %v1623 = vcombine.high %v1615, %v1615
        %v1624 = vcombine.high %v1622, %v1622
        %v1626 = vunpack.c.l.s4 1966171168
        %v1627 = vunpack.c.0.s8 %v1626
        %v1628 = vlaneseq
        %v1629 = vshrl.u32 %v1628, 7
        %v1630 = vsub.s32 %v1627, %v1629
        %v1631 = vrot.slane %v1615, %v1630
        %v1633 = vunpack.c.l.s4 1966171168
        %v1634 = vunpack.c.0.s8 %v1633
        %v1635 = vlaneseq
        %v1636 = vshrl.u32 %v1635, 7
        %v1637 = vsub.s32 %v1634, %v1636
        %v1638 = vrot.slane %v1622, %v1637
        %v1640 = vunpack.c.l.s4 1966171168
        %v1641 = vunpack.c.0.s8 %v1640
        %v1642 = vlaneseq
        %v1643 = vshrl.u32 %v1642, 7
        %v1644 = vsub.s32 %v1641, %v1643
        %v1645 = vrot.slane %v1623, %v1644
        %v1647 = vunpack.c.l.s4 1966171168
        %v1648 = vunpack.c.0.s8 %v1647
        %v1649 = vlaneseq
        %v1650 = vshrl.u32 %v1649, 7
        %v1651 = vsub.s32 %v1648, %v1650
        %v1652 = vrot.slane %v1624, %v1651
        %v1653 = vcombine.high %v1631, %v1631
        %v1654 = vcombine.high %v1638, %v1638
        %v1655 = vcombine.high %v1645, %v1645
        %v1656 = vcombine.high %v1652, %v1652
        %1673 = vst.msk [vmem:[%s359 + $0x1] sm:$0x1] %vm1342, %v1582
        %1674 = vst.msk [vmem:[%s359 + $0x5] sm:$0x1] %vm1342, %v1596
        %1675 = vst.msk [vmem:[%s359 + $0x9] sm:$0x1] %vm1342, %v1604
        %1676 = vst.msk [vmem:[%s359 + $0xd] sm:$0x1] %vm1342, %v1606
        %1677 = vst.msk [vmem:[%s359 + $0x11] sm:$0x1] %vm1342, %v1589
        %1678 = vst.msk [vmem:[%s359 + $0x15] sm:$0x1] %vm1342, %v1603
        %1679 = vst.msk [vmem:[%s359 + $0x19] sm:$0x1] %vm1342, %v1605
        %1680 = vst.msk [vmem:[%s359 + $0x1d] sm:$0x1] %vm1342, %v1607
        %1681 = vst.msk [vmem:[%s359 + $0x21] sm:$0x1] %vm1342, %v1631
        %1682 = vst.msk [vmem:[%s359 + $0x25] sm:$0x1] %vm1342, %v1645
        %1683 = vst.msk [vmem:[%s359 + $0x29] sm:$0x1] %vm1342, %v1653
        %1684 = vst.msk [vmem:[%s359 + $0x2d] sm:$0x1] %vm1342, %v1655
        %1685 = vst.msk [vmem:[%s359 + $0x31] sm:$0x1] %vm1342, %v1638
        %1686 = vst.msk [vmem:[%s359 + $0x35] sm:$0x1] %vm1342, %v1652
        %1687 = vst.msk [vmem:[%s359 + $0x39] sm:$0x1] %vm1342, %v1654
        %1688 = vst.msk [vmem:[%s359 + $0x3d] sm:$0x1] %vm1342, %v1656
        %v1689 = vld [vmem:[%s595] sm:$0xff]
        %v1690 = vld [vmem:[%s595 + $0x8] sm:$0xff]
        %v1691 = vld [vmem:[%s595 + $0x18] sm:$0xff]
        %v1692 = vld [vmem:[%s595 + $0x20] sm:$0xff]
        %1697 = vrot.lane.b32.xlu0 %v1689, 1
        %v1698 = vpop.permute.xlu0 %1697
        %1699 = vrot.lane.b32.xlu0 %v1690, 1
        %v1700 = vpop.permute.xlu0 %1699
        %1701 = vrot.lane.b32.xlu0 %v1691, 1
        %v1702 = vpop.permute.xlu0 %1701
        %1703 = vrot.lane.b32.xlu0 %v1692, 1
        %v1704 = vpop.permute.xlu0 %1703
        %v1705 = vsel %vm1094, %v1698, %v1700
        %v1706 = vsel %vm1094, %v1702, %v1704
        %v1709 = vsel %vm1012, %v1705, 0.0
        %v1710 = vsel %vm1012, %v1706, 0.0
        %1711 = vst.msk [vmem:[#allocation3] sm:$0xff] %vm453, %v1709
        %1712 = vst.msk [vmem:[#allocation3 + $0x8] sm:$0xff] %vm453, %v1710
        %v1713 = vld [vmem:[#allocation2 + $0x8] sm:$0xff]
        %v1714 = vld [vmem:[#allocation2 + $0x20] sm:$0xff]
        %1715 = vst.msk [vmem:[#allocation3 + $0x10] sm:$0xff] %vm453, %v1713
        %1716 = vst.msk [vmem:[#allocation3 + $0x18] sm:$0xff] %vm453, %v1714
        %v1717 = vld [vmem:[%s595 + $0x8] sm:$0xff]
        %v1718 = vld [vmem:[%s595 + $0x20] sm:$0xff]
        %1719 = vst.msk [vmem:[#allocation3 + $0x20] sm:$0xff] %vm453, %v1717
        %1720 = vst.msk [vmem:[#allocation3 + $0x28] sm:$0xff] %vm453, %v1718
        %v1721 = vld [vmem:[%s869] sm:$0xff]
        %v1722 = vld [vmem:[%s869 + $0x8] sm:$0xff]
        %v1723 = vld [vmem:[%s869 + $0x18] sm:$0xff]
        %v1724 = vld [vmem:[%s869 + $0x20] sm:$0xff]
        %1729 = vrot.lane.b32.xlu0 %v1721, 1
        %v1730 = vpop.permute.xlu0 %1729
        %1731 = vrot.lane.b32.xlu0 %v1722, 1
        %v1732 = vpop.permute.xlu0 %1731
        %1733 = vrot.lane.b32.xlu0 %v1723, 1
        %v1734 = vpop.permute.xlu0 %1733
        %1735 = vrot.lane.b32.xlu0 %v1724, 1
        %v1736 = vpop.permute.xlu0 %1735
        %v1737 = vsel %vm1094, %v1730, %v1732
        %v1738 = vsel %vm1094, %v1734, %v1736
        %v1741 = vsel %vm1012, %v1737, 0.0
        %v1742 = vsel %vm1012, %v1738, 0.0
        %1743 = vst.msk [vmem:[#allocation3 + $0x30] sm:$0xff] %vm453, %v1741
        %1744 = vst.msk [vmem:[#allocation3 + $0x38] sm:$0xff] %vm453, %v1742
        %v1745 = vld [vmem:[%s732 + $0x8] sm:$0xff]
        %v1746 = vld [vmem:[%s732 + $0x20] sm:$0xff]
        %1747 = vst.msk [vmem:[#allocation3 + $0x40] sm:$0xff] %vm453, %v1745
        %1748 = vst.msk [vmem:[#allocation3 + $0x48] sm:$0xff] %vm453, %v1746
        %v1749 = vld [vmem:[%s869 + $0x8] sm:$0xff]
        %v1750 = vld [vmem:[%s869 + $0x20] sm:$0xff]
        %1751 = vst.msk [vmem:[#allocation3 + $0x50] sm:$0xff] %vm453, %v1749
        %1752 = vst.msk [vmem:[#allocation3 + $0x58] sm:$0xff] %vm453, %v1750
        %v1753 = vld [vmem:[%s595 + $0x8] sm:$0xff]
        %v1754 = vld [vmem:[%s595 + $0x20] sm:$0xff]
        %1757 = vrot.lane.b32.xlu0 %v1753, 121
        %v1758 = vpop.permute.xlu0 %1757
        %1759 = vrot.lane.b32.xlu0 %v1754, 121
        %v1760 = vpop.permute.xlu0 %1759
        %v1763 = vsel %vm1012, %v1758, 0.0
        %v1764 = vsel %vm1012, %v1760, 0.0
        %1765 = vst.msk [vmem:[#allocation3 + $0x60] sm:$0xff] %vm453, %v1763
        %1766 = vst.msk [vmem:[#allocation3 + $0x68] sm:$0xff] %vm453, %v1764
        %v1767 = vld [vmem:[#allocation2 + $0x8] sm:$0xff]
        %v1768 = vld [vmem:[#allocation2 + $0x20] sm:$0xff]
        %1771 = vrot.lane.b32.xlu0 %v1767, 120
        %v1772 = vpop.permute.xlu0 %1771
        %1773 = vrot.lane.b32.xlu0 %v1768, 120
        %v1774 = vpop.permute.xlu0 %1773
        %1777 = vst.msk [vmem:[#allocation3 + $0x70] sm:$0xff] %vm453, %v1772
        %1778 = vst.msk [vmem:[#allocation3 + $0x78] sm:$0xff] %vm453, %v1774
        %v1779 = vld [vmem:[%s595 + $0x8] sm:$0xff]
        %v1780 = vld [vmem:[%s595 + $0x20] sm:$0xff]
        %1783 = vrot.lane.b32.xlu0 %v1779, 120
        %v1784 = vpop.permute.xlu0 %1783
        %1785 = vrot.lane.b32.xlu0 %v1780, 120
        %v1786 = vpop.permute.xlu0 %1785
        %1789 = vst.msk [vmem:[#allocation3 + $0x80] sm:$0xff] %vm453, %v1784
        %1790 = vst.msk [vmem:[#allocation3 + $0x88] sm:$0xff] %vm453, %v1786
        %v1791 = vld [vmem:[#allocation4] sm:$0xff]
        %v1792 = vld [vmem:[#allocation4 + $0x8] sm:$0xff]
        %v1793 = vld [vmem:[#allocation3] sm:$0xff]
        %v1794 = vld [vmem:[#allocation3 + $0x8] sm:$0xff]
        %v1795 = vld [vmem:[#allocation3 + $0x10] sm:$0xff]
        %v1796 = vld [vmem:[#allocation3 + $0x18] sm:$0xff]
        %v1797 = vld [vmem:[#allocation3 + $0x20] sm:$0xff]
        %v1798 = vld [vmem:[#allocation3 + $0x28] sm:$0xff]
        %v1799 = vld [vmem:[#allocation3 + $0x30] sm:$0xff]
        %v1800 = vld [vmem:[#allocation3 + $0x38] sm:$0xff]
        %v1801 = vld [vmem:[#allocation3 + $0x40] sm:$0xff]
        %v1802 = vld [vmem:[#allocation3 + $0x48] sm:$0xff]
        %v1803 = vld [vmem:[#allocation3 + $0x50] sm:$0xff]
        %v1804 = vld [vmem:[#allocation3 + $0x58] sm:$0xff]
        %v1805 = vld [vmem:[#allocation3 + $0x60] sm:$0xff]
        %v1806 = vld [vmem:[#allocation3 + $0x68] sm:$0xff]
        %v1807 = vld [vmem:[#allocation3 + $0x70] sm:$0xff]
        %v1808 = vld [vmem:[#allocation3 + $0x78] sm:$0xff]
        %v1809 = vld [vmem:[#allocation3 + $0x80] sm:$0xff]
        %v1810 = vld [vmem:[#allocation3 + $0x88] sm:$0xff]
        %v1811 = vpack.c.bf16 %v1794, %v1793
        %v1812 = vpack.c.bf16 %v1796, %v1795
        %v1813 = vpack.c.bf16 %v1798, %v1797
        %v1814 = vpack.c.bf16 %v1800, %v1799
        %v1815 = vpack.c.bf16 %v1802, %v1801
        %v1816 = vpack.c.bf16 %v1804, %v1803
        %v1817 = vpack.c.bf16 %v1806, %v1805
        %v1818 = vpack.c.bf16 %v1808, %v1807
        %v1819 = vpack.c.bf16 %v1810, %v1809
        %v1822 = vunpack.c.l.b16 %v1791
        %v1823 = vunpack.c.h.b16 %v1791
        %v1824 = vunpack.c.l.b16 %v1792
        %v1825 = vunpack.c.h.b16 %v1792
        %v1826 = vpack.c.b16 %v1824, %v1822
        %v1827 = vpack.c.b16 %v1825, %v1823
        %v1830 = vsel %vm1181, %v1827, 0
        %1832 = vmatprep.subr.bf16.mxu0 0
        %1833 = vmatpush1.bf16.msra.mxu0 %v1811
        %1834 = vmatprep.subr.bf16.mxu0 0
        %1835 = vmatpush1.bf16.msra.mxu0 %v1812
        %1836 = vmatprep.subr.bf16.mxu0 0
        %1837 = vmatpush1.bf16.msra.mxu0 %v1813
        %1838 = vmatprep.subr.bf16.mxu0 0
        %1839 = vmatpush1.bf16.msra.mxu0 %v1814
        %1840 = vmatprep.subr.bf16.mxu0 0
        %1841 = vmatpush1.bf16.msra.mxu0 %v1815
        %1842 = vmatprep.subr.bf16.mxu0 0
        %1843 = vmatpush1.bf16.msra.mxu0 %v1816
        %1844 = vmatprep.subr.bf16.mxu0 0
        %1845 = vmatpush1.bf16.msra.mxu0 %v1817
        %1846 = vmatprep.subr.bf16.mxu0 0
        %1847 = vmatpush1.bf16.msra.mxu0 %v1818
        %1848 = vmatprep.subr.bf16.mxu0 0
        %1849 = vmatpush1.bf16.msra.mxu0 %v1819
        %1850 = vmatprep.subr.bf16.mxu0 0
        %1851 = vmatpush1.bf16.msra.mxu0 0
        %1852 = vmatprep.subr.bf16.mxu0 0
        %1853 = vmatpush1.bf16.msra.mxu0 0
        %1854 = vmatprep.subr.bf16.mxu0 0
        %1855 = vmatpush1.bf16.msra.mxu0 0
        %1856 = vmatprep.subr.bf16.mxu0 0
        %1857 = vmatpush1.bf16.msra.mxu0 0
        %1858 = vmatprep.subr.bf16.mxu0 0
        %1859 = vmatpush1.bf16.msra.mxu0 0
        %1860 = vmatprep.subr.bf16.mxu0 0
        %1861 = vmatpush1.bf16.msra.mxu0 0
        %1862 = vmatprep.subr.bf16.mxu0 0
        %1863 = vmatpush1.bf16.msra.mxu0 0
        %1864 = vmatprep.mubr.bf16.mxu0 %v1830
        %1865 = vmatmul.mubr.bf16.gmra.mrb[0].mxu0 %v1826
        %v1866 = vpop.f32.mrb[0].mxu0
        %v1867 = vadd.f32 %v435, %v1866
        %v1868 = vpop.f32.mrb[0].mxu0
        %v1869 = vpop.f32.mrb[0].mxu0
        %v1870 = vadd.f32 %v436, %v1869
        %v1871 = vpop.f32.mrb[0].mxu0
        %1872 = vdwg.mxu0
        %v1875 = vcombine.high %v1867, %v1867
        %v1877 = vunpack.c.l.s4 1966171168
        %v1878 = vunpack.c.0.s8 %v1877
        %v1879 = vlaneseq
        %v1880 = vshrl.u32 %v1879, 7
        %v1881 = vsub.s32 %v1878, %v1880
        %v1882 = vrot.slane %v1867, %v1881
        %v1884 = vunpack.c.l.s4 1966171168
        %v1885 = vunpack.c.0.s8 %v1884
        %v1886 = vlaneseq
        %v1887 = vshrl.u32 %v1886, 7
        %v1888 = vsub.s32 %v1885, %v1887
        %v1889 = vrot.slane %v1875, %v1888
        %v1890 = vcombine.high %v1882, %v1882
        %v1891 = vcombine.high %v1889, %v1889
        %v1893 = vunpack.c.l.s4 1966171168
        %v1894 = vunpack.c.0.s8 %v1893
        %v1895 = vlaneseq
        %v1896 = vshrl.u32 %v1895, 7
        %v1897 = vsub.s32 %v1894, %v1896
        %v1898 = vrot.slane %v1882, %v1897
        %v1900 = vunpack.c.l.s4 1966171168
        %v1901 = vunpack.c.0.s8 %v1900
        %v1902 = vlaneseq
        %v1903 = vshrl.u32 %v1902, 7
        %v1904 = vsub.s32 %v1901, %v1903
        %v1905 = vrot.slane %v1889, %v1904
        %v1907 = vunpack.c.l.s4 1966171168
        %v1908 = vunpack.c.0.s8 %v1907
        %v1909 = vlaneseq
        %v1910 = vshrl.u32 %v1909, 7
        %v1911 = vsub.s32 %v1908, %v1910
        %v1912 = vrot.slane %v1890, %v1911
        %v1914 = vunpack.c.l.s4 1966171168
        %v1915 = vunpack.c.0.s8 %v1914
        %v1916 = vlaneseq
        %v1917 = vshrl.u32 %v1916, 7
        %v1918 = vsub.s32 %v1915, %v1917
        %v1919 = vrot.slane %v1891, %v1918
        %v1920 = vcombine.high %v1898, %v1898
        %v1921 = vcombine.high %v1905, %v1905
        %v1922 = vcombine.high %v1912, %v1912
        %v1923 = vcombine.high %v1919, %v1919
        %v1924 = vcombine.high %v1870, %v1870
        %v1926 = vunpack.c.l.s4 1966171168
        %v1927 = vunpack.c.0.s8 %v1926
        %v1928 = vlaneseq
        %v1929 = vshrl.u32 %v1928, 7
        %v1930 = vsub.s32 %v1927, %v1929
        %v1931 = vrot.slane %v1870, %v1930
        %v1933 = vunpack.c.l.s4 1966171168
        %v1934 = vunpack.c.0.s8 %v1933
        %v1935 = vlaneseq
        %v1936 = vshrl.u32 %v1935, 7
        %v1937 = vsub.s32 %v1934, %v1936
        %v1938 = vrot.slane %v1924, %v1937
        %v1939 = vcombine.high %v1931, %v1931
        %v1940 = vcombine.high %v1938, %v1938
        %v1942 = vunpack.c.l.s4 1966171168
        %v1943 = vunpack.c.0.s8 %v1942
        %v1944 = vlaneseq
        %v1945 = vshrl.u32 %v1944, 7
        %v1946 = vsub.s32 %v1943, %v1945
        %v1947 = vrot.slane %v1931, %v1946
        %v1949 = vunpack.c.l.s4 1966171168
        %v1950 = vunpack.c.0.s8 %v1949
        %v1951 = vlaneseq
        %v1952 = vshrl.u32 %v1951, 7
        %v1953 = vsub.s32 %v1950, %v1952
        %v1954 = vrot.slane %v1938, %v1953
        %v1956 = vunpack.c.l.s4 1966171168
        %v1957 = vunpack.c.0.s8 %v1956
        %v1958 = vlaneseq
        %v1959 = vshrl.u32 %v1958, 7
        %v1960 = vsub.s32 %v1957, %v1959
        %v1961 = vrot.slane %v1939, %v1960
        %v1963 = vunpack.c.l.s4 1966171168
        %v1964 = vunpack.c.0.s8 %v1963
        %v1965 = vlaneseq
        %v1966 = vshrl.u32 %v1965, 7
        %v1967 = vsub.s32 %v1964, %v1966
        %v1968 = vrot.slane %v1940, %v1967
        %v1969 = vcombine.high %v1947, %v1947
        %v1970 = vcombine.high %v1954, %v1954
        %v1971 = vcombine.high %v1961, %v1961
        %v1972 = vcombine.high %v1968, %v1968
        %1989 = vst.msk [vmem:[%s359 + $0x2] sm:$0x1] %vm1342, %v1898
        %1990 = vst.msk [vmem:[%s359 + $0x6] sm:$0x1] %vm1342, %v1912
        %1991 = vst.msk [vmem:[%s359 + $0xa] sm:$0x1] %vm1342, %v1920
        %1992 = vst.msk [vmem:[%s359 + $0xe] sm:$0x1] %vm1342, %v1922
        %1993 = vst.msk [vmem:[%s359 + $0x12] sm:$0x1] %vm1342, %v1905
        %1994 = vst.msk [vmem:[%s359 + $0x16] sm:$0x1] %vm1342, %v1919
        %1995 = vst.msk [vmem:[%s359 + $0x1a] sm:$0x1] %vm1342, %v1921
        %1996 = vst.msk [vmem:[%s359 + $0x1e] sm:$0x1] %vm1342, %v1923
        %1997 = vst.msk [vmem:[%s359 + $0x22] sm:$0x1] %vm1342, %v1947
        %1998 = vst.msk [vmem:[%s359 + $0x26] sm:$0x1] %vm1342, %v1961
        %1999 = vst.msk [vmem:[%s359 + $0x2a] sm:$0x1] %vm1342, %v1969
        %2000 = vst.msk [vmem:[%s359 + $0x2e] sm:$0x1] %vm1342, %v1971
        %2001 = vst.msk [vmem:[%s359 + $0x32] sm:$0x1] %vm1342, %v1954
        %2002 = vst.msk [vmem:[%s359 + $0x36] sm:$0x1] %vm1342, %v1968
        %2003 = vst.msk [vmem:[%s359 + $0x3a] sm:$0x1] %vm1342, %v1970
        %2004 = vst.msk [vmem:[%s359 + $0x3e] sm:$0x1] %vm1342, %v1972
        %v2005 = vld [vmem:[#allocation2 + $0x8] sm:$0xff]
        %v2006 = vld [vmem:[#allocation2 + $0x20] sm:$0xff]
        %2007 = vst.msk [vmem:[#allocation3] sm:$0xff] %vm453, %v2005
        %2008 = vst.msk [vmem:[#allocation3 + $0x8] sm:$0xff] %vm453, %v2006
        %v2009 = vld [vmem:[%s595 + $0x8] sm:$0xff]
        %v2010 = vld [vmem:[%s595 + $0x20] sm:$0xff]
        %2011 = vst.msk [vmem:[#allocation3 + $0x10] sm:$0xff] %vm453, %v2009
        %2012 = vst.msk [vmem:[#allocation3 + $0x18] sm:$0xff] %vm453, %v2010
        %v2013 = vld [vmem:[#allocation2 + $0x8] sm:$0xff]
        %v2014 = vld [vmem:[#allocation2 + $0x20] sm:$0xff]
        %2017 = vrot.lane.b32.xlu0 %v2013, 127
        %v2018 = vpop.permute.xlu0 %2017
        %2019 = vrot.lane.b32.xlu0 %v2014, 127
        %v2020 = vpop.permute.xlu0 %2019
        %v2023 = vsel %vm1409, %v2018, 0.0
        %v2024 = vsel %vm1409, %v2020, 0.0
        %2025 = vst.msk [vmem:[#allocation3 + $0x20] sm:$0xff] %vm453, %v2023
        %2026 = vst.msk [vmem:[#allocation3 + $0x28] sm:$0xff] %vm453, %v2024
        %v2027 = vld [vmem:[%s732 + $0x8] sm:$0xff]
        %v2028 = vld [vmem:[%s732 + $0x20] sm:$0xff]
        %2029 = vst.msk [vmem:[#allocation3 + $0x30] sm:$0xff] %vm453, %v2027
        %2030 = vst.msk [vmem:[#allocation3 + $0x38] sm:$0xff] %vm453, %v2028
        %v2031 = vld [vmem:[%s869 + $0x8] sm:$0xff]
        %v2032 = vld [vmem:[%s869 + $0x20] sm:$0xff]
        %2033 = vst.msk [vmem:[#allocation3 + $0x40] sm:$0xff] %vm453, %v2031
        %2034 = vst.msk [vmem:[#allocation3 + $0x48] sm:$0xff] %vm453, %v2032
        %v2035 = vld [vmem:[%s732 + $0x8] sm:$0xff]
        %v2036 = vld [vmem:[%s732 + $0x20] sm:$0xff]
        %2039 = vrot.lane.b32.xlu0 %v2035, 127
        %v2040 = vpop.permute.xlu0 %2039
        %2041 = vrot.lane.b32.xlu0 %v2036, 127
        %v2042 = vpop.permute.xlu0 %2041
        %v2045 = vsel %vm1409, %v2040, 0.0
        %v2046 = vsel %vm1409, %v2042, 0.0
        %2047 = vst.msk [vmem:[#allocation3 + $0x50] sm:$0xff] %vm453, %v2045
        %2048 = vst.msk [vmem:[#allocation3 + $0x58] sm:$0xff] %vm453, %v2046
        %v2049 = vld [vmem:[#allocation2 + $0x8] sm:$0xff]
        %v2050 = vld [vmem:[#allocation2 + $0x20] sm:$0xff]
        %2053 = vrot.lane.b32.xlu0 %v2049, 120
        %v2054 = vpop.permute.xlu0 %2053
        %2055 = vrot.lane.b32.xlu0 %v2050, 120
        %v2056 = vpop.permute.xlu0 %2055
        %2059 = vst.msk [vmem:[#allocation3 + $0x60] sm:$0xff] %vm453, %v2054
        %2060 = vst.msk [vmem:[#allocation3 + $0x68] sm:$0xff] %vm453, %v2056
        %v2061 = vld [vmem:[%s595 + $0x8] sm:$0xff]
        %v2062 = vld [vmem:[%s595 + $0x20] sm:$0xff]
        %2065 = vrot.lane.b32.xlu0 %v2061, 120
        %v2066 = vpop.permute.xlu0 %2065
        %2067 = vrot.lane.b32.xlu0 %v2062, 120
        %v2068 = vpop.permute.xlu0 %2067
        %2071 = vst.msk [vmem:[#allocation3 + $0x70] sm:$0xff] %vm453, %v2066
        %2072 = vst.msk [vmem:[#allocation3 + $0x78] sm:$0xff] %vm453, %v2068
        %v2073 = vld [vmem:[#allocation2 + $0x8] sm:$0xff]
        %v2074 = vld [vmem:[#allocation2 + $0x20] sm:$0xff]
        %2077 = vrot.lane.b32.xlu0 %v2073, 119
        %v2078 = vpop.permute.xlu0 %2077
        %2079 = vrot.lane.b32.xlu0 %v2074, 119
        %v2080 = vpop.permute.xlu0 %2079
        %v2083 = vsel %vm1409, %v2078, 0.0
        %v2084 = vsel %vm1409, %v2080, 0.0
        %2085 = vst.msk [vmem:[#allocation3 + $0x80] sm:$0xff] %vm453, %v2083
        %2086 = vst.msk [vmem:[#allocation3 + $0x88] sm:$0xff] %vm453, %v2084
        %v2087 = vld [vmem:[#allocation4] sm:$0xff]
        %v2088 = vld [vmem:[#allocation4 + $0x8] sm:$0xff]
        %v2089 = vld [vmem:[#allocation3] sm:$0xff]
        %v2090 = vld [vmem:[#allocation3 + $0x8] sm:$0xff]
        %v2091 = vld [vmem:[#allocation3 + $0x10] sm:$0xff]
        %v2092 = vld [vmem:[#allocation3 + $0x18] sm:$0xff]
        %v2093 = vld [vmem:[#allocation3 + $0x20] sm:$0xff]
        %v2094 = vld [vmem:[#allocation3 + $0x28] sm:$0xff]
        %v2095 = vld [vmem:[#allocation3 + $0x30] sm:$0xff]
        %v2096 = vld [vmem:[#allocation3 + $0x38] sm:$0xff]
        %v2097 = vld [vmem:[#allocation3 + $0x40] sm:$0xff]
        %v2098 = vld [vmem:[#allocation3 + $0x48] sm:$0xff]
        %v2099 = vld [vmem:[#allocation3 + $0x50] sm:$0xff]
        %v2100 = vld [vmem:[#allocation3 + $0x58] sm:$0xff]
        %v2101 = vld [vmem:[#allocation3 + $0x60] sm:$0xff]
        %v2102 = vld [vmem:[#allocation3 + $0x68] sm:$0xff]
        %v2103 = vld [vmem:[#allocation3 + $0x70] sm:$0xff]
        %v2104 = vld [vmem:[#allocation3 + $0x78] sm:$0xff]
        %v2105 = vld [vmem:[#allocation3 + $0x80] sm:$0xff]
        %v2106 = vld [vmem:[#allocation3 + $0x88] sm:$0xff]
        %v2107 = vpack.c.bf16 %v2090, %v2089
        %v2108 = vpack.c.bf16 %v2092, %v2091
        %v2109 = vpack.c.bf16 %v2094, %v2093
        %v2110 = vpack.c.bf16 %v2096, %v2095
        %v2111 = vpack.c.bf16 %v2098, %v2097
        %v2112 = vpack.c.bf16 %v2100, %v2099
        %v2113 = vpack.c.bf16 %v2102, %v2101
        %v2114 = vpack.c.bf16 %v2104, %v2103
        %v2115 = vpack.c.bf16 %v2106, %v2105
        %v2118 = vunpack.c.l.b16 %v2087
        %v2119 = vunpack.c.h.b16 %v2087
        %v2120 = vunpack.c.l.b16 %v2088
        %v2121 = vunpack.c.h.b16 %v2088
        %v2122 = vpack.c.b16 %v2120, %v2118
        %v2123 = vpack.c.b16 %v2121, %v2119
        %v2126 = vsel %vm1181, %v2123, 0
        %2128 = vmatprep.subr.bf16.mxu0 0
        %2129 = vmatpush1.bf16.msra.mxu0 %v2107
        %2130 = vmatprep.subr.bf16.mxu0 0
        %2131 = vmatpush1.bf16.msra.mxu0 %v2108
        %2132 = vmatprep.subr.bf16.mxu0 0
        %2133 = vmatpush1.bf16.msra.mxu0 %v2109
        %2134 = vmatprep.subr.bf16.mxu0 0
        %2135 = vmatpush1.bf16.msra.mxu0 %v2110
        %2136 = vmatprep.subr.bf16.mxu0 0
        %2137 = vmatpush1.bf16.msra.mxu0 %v2111
        %2138 = vmatprep.subr.bf16.mxu0 0
        %2139 = vmatpush1.bf16.msra.mxu0 %v2112
        %2140 = vmatprep.subr.bf16.mxu0 0
        %2141 = vmatpush1.bf16.msra.mxu0 %v2113
        %2142 = vmatprep.subr.bf16.mxu0 0
        %2143 = vmatpush1.bf16.msra.mxu0 %v2114
        %2144 = vmatprep.subr.bf16.mxu0 0
        %2145 = vmatpush1.bf16.msra.mxu0 %v2115
        %2146 = vmatprep.subr.bf16.mxu0 0
        %2147 = vmatpush1.bf16.msra.mxu0 0
        %2148 = vmatprep.subr.bf16.mxu0 0
        %2149 = vmatpush1.bf16.msra.mxu0 0
        %2150 = vmatprep.subr.bf16.mxu0 0
        %2151 = vmatpush1.bf16.msra.mxu0 0
        %2152 = vmatprep.subr.bf16.mxu0 0
        %2153 = vmatpush1.bf16.msra.mxu0 0
        %2154 = vmatprep.subr.bf16.mxu0 0
        %2155 = vmatpush1.bf16.msra.mxu0 0
        %2156 = vmatprep.subr.bf16.mxu0 0
        %2157 = vmatpush1.bf16.msra.mxu0 0
        %2158 = vmatprep.subr.bf16.mxu0 0
        %2159 = vmatpush1.bf16.msra.mxu0 0
        %2160 = vmatprep.mubr.bf16.mxu0 %v2126
        %2161 = vmatmul.mubr.bf16.gmra.mrb[0].mxu0 %v2122
        %v2162 = vpop.f32.mrb[0].mxu0
        %v2163 = vadd.f32 %v435, %v2162
        %v2164 = vpop.f32.mrb[0].mxu0
        %v2165 = vpop.f32.mrb[0].mxu0
        %v2166 = vadd.f32 %v436, %v2165
        %v2167 = vpop.f32.mrb[0].mxu0
        %2168 = vdwg.mxu0
        %v2171 = vcombine.high %v2163, %v2163
        %v2173 = vunpack.c.l.s4 1966171168
        %v2174 = vunpack.c.0.s8 %v2173
        %v2175 = vlaneseq
        %v2176 = vshrl.u32 %v2175, 7
        %v2177 = vsub.s32 %v2174, %v2176
        %v2178 = vrot.slane %v2163, %v2177
        %v2180 = vunpack.c.l.s4 1966171168
        %v2181 = vunpack.c.0.s8 %v2180
        %v2182 = vlaneseq
        %v2183 = vshrl.u32 %v2182, 7
        %v2184 = vsub.s32 %v2181, %v2183
        %v2185 = vrot.slane %v2171, %v2184
        %v2186 = vcombine.high %v2178, %v2178
        %v2187 = vcombine.high %v2185, %v2185
        %v2189 = vunpack.c.l.s4 1966171168
        %v2190 = vunpack.c.0.s8 %v2189
        %v2191 = vlaneseq
        %v2192 = vshrl.u32 %v2191, 7
        %v2193 = vsub.s32 %v2190, %v2192
        %v2194 = vrot.slane %v2178, %v2193
        %v2196 = vunpack.c.l.s4 1966171168
        %v2197 = vunpack.c.0.s8 %v2196
        %v2198 = vlaneseq
        %v2199 = vshrl.u32 %v2198, 7
        %v2200 = vsub.s32 %v2197, %v2199
        %v2201 = vrot.slane %v2185, %v2200
        %v2203 = vunpack.c.l.s4 1966171168
        %v2204 = vunpack.c.0.s8 %v2203
        %v2205 = vlaneseq
        %v2206 = vshrl.u32 %v2205, 7
        %v2207 = vsub.s32 %v2204, %v2206
        %v2208 = vrot.slane %v2186, %v2207
        %v2210 = vunpack.c.l.s4 1966171168
        %v2211 = vunpack.c.0.s8 %v2210
        %v2212 = vlaneseq
        %v2213 = vshrl.u32 %v2212, 7
        %v2214 = vsub.s32 %v2211, %v2213
        %v2215 = vrot.slane %v2187, %v2214
        %v2216 = vcombine.high %v2194, %v2194
        %v2217 = vcombine.high %v2201, %v2201
        %v2218 = vcombine.high %v2208, %v2208
        %v2219 = vcombine.high %v2215, %v2215
        %v2220 = vcombine.high %v2166, %v2166
        %v2222 = vunpack.c.l.s4 1966171168
        %v2223 = vunpack.c.0.s8 %v2222
        %v2224 = vlaneseq
        %v2225 = vshrl.u32 %v2224, 7
        %v2226 = vsub.s32 %v2223, %v2225
        %v2227 = vrot.slane %v2166, %v2226
        %v2229 = vunpack.c.l.s4 1966171168
        %v2230 = vunpack.c.0.s8 %v2229
        %v2231 = vlaneseq
        %v2232 = vshrl.u32 %v2231, 7
        %v2233 = vsub.s32 %v2230, %v2232
        %v2234 = vrot.slane %v2220, %v2233
        %v2235 = vcombine.high %v2227, %v2227
        %v2236 = vcombine.high %v2234, %v2234
        %v2238 = vunpack.c.l.s4 1966171168
        %v2239 = vunpack.c.0.s8 %v2238
        %v2240 = vlaneseq
        %v2241 = vshrl.u32 %v2240, 7
        %v2242 = vsub.s32 %v2239, %v2241
        %v2243 = vrot.slane %v2227, %v2242
        %v2245 = vunpack.c.l.s4 1966171168
        %v2246 = vunpack.c.0.s8 %v2245
        %v2247 = vlaneseq
        %v2248 = vshrl.u32 %v2247, 7
        %v2249 = vsub.s32 %v2246, %v2248
        %v2250 = vrot.slane %v2234, %v2249
        %v2252 = vunpack.c.l.s4 1966171168
        %v2253 = vunpack.c.0.s8 %v2252
        %v2254 = vlaneseq
        %v2255 = vshrl.u32 %v2254, 7
        %v2256 = vsub.s32 %v2253, %v2255
        %v2257 = vrot.slane %v2235, %v2256
        %v2259 = vunpack.c.l.s4 1966171168
        %v2260 = vunpack.c.0.s8 %v2259
        %v2261 = vlaneseq
        %v2262 = vshrl.u32 %v2261, 7
        %v2263 = vsub.s32 %v2260, %v2262
        %v2264 = vrot.slane %v2236, %v2263
        %v2265 = vcombine.high %v2243, %v2243
        %v2266 = vcombine.high %v2250, %v2250
        %v2267 = vcombine.high %v2257, %v2257
        %v2268 = vcombine.high %v2264, %v2264
        %2285 = vst.msk [vmem:[%s359 + $0x3] sm:$0x1] %vm1342, %v2194
        %2286 = vst.msk [vmem:[%s359 + $0x7] sm:$0x1] %vm1342, %v2208
        %2287 = vst.msk [vmem:[%s359 + $0xb] sm:$0x1] %vm1342, %v2216
        %2288 = vst.msk [vmem:[%s359 + $0xf] sm:$0x1] %vm1342, %v2218
        %2289 = vst.msk [vmem:[%s359 + $0x13] sm:$0x1] %vm1342, %v2201
        %2290 = vst.msk [vmem:[%s359 + $0x17] sm:$0x1] %vm1342, %v2215
        %2291 = vst.msk [vmem:[%s359 + $0x1b] sm:$0x1] %vm1342, %v2217
        %2292 = vst.msk [vmem:[%s359 + $0x1f] sm:$0x1] %vm1342, %v2219
        %2293 = vst.msk [vmem:[%s359 + $0x23] sm:$0x1] %vm1342, %v2243
        %2294 = vst.msk [vmem:[%s359 + $0x27] sm:$0x1] %vm1342, %v2257
        %2295 = vst.msk [vmem:[%s359 + $0x2b] sm:$0x1] %vm1342, %v2265
        %2296 = vst.msk [vmem:[%s359 + $0x2f] sm:$0x1] %vm1342, %v2267
        %2297 = vst.msk [vmem:[%s359 + $0x33] sm:$0x1] %vm1342, %v2250
        %2298 = vst.msk [vmem:[%s359 + $0x37] sm:$0x1] %vm1342, %v2264
        %2299 = vst.msk [vmem:[%s359 + $0x3b] sm:$0x1] %vm1342, %v2266
        %2300 = vst.msk [vmem:[%s359 + $0x3f] sm:$0x1] %vm1342, %v2268
        %s2301 = sand.u32 %s176, 1
        %s2302 = scalar_lea.sflag [#allocation6], %s2301
        %s2303 = sand.u32 %s176, 1
        %s2304 = smul.addr %s2303, 64
        %s2305 = scalar_lea.vmem [#allocation13], %s2304
        // Predicated region
        $region61: #{attn_res_block_up.7} parent=39 // pred_check
          %p2306 = pneg %p186
        $region62: #{attn_res_block_up.7} parent=39 // pred_check_branch
          %2308 = sbr.rel (%p2306) target = $region64
        $region63: #{attn_res_block_up.7} parent=39 // pred_region
          %s2309 = smul.u32 16, %s29
          %s2311 = ssub.s32 1024, 1024
          %2312 = vsyncadd %s2302, %s2311
          %s2313 = smul.addr %s28, 16
          %s2314 = sadd.s32 %s2309, %s2313
          %s2315 = smul.addr %s2314, 64
          %s2316 = scalar_lea.hbm %s5, %s2315
          %s2317 = sshll.u32 %s2305, 4
          %s2318 = int_to_ptr.vmem [resolvable:$true] %s2317
          %2323 = dma.vmem_to_hbm [thread:$0]  %s2318, 1024, %s2316, %s2302, 64, 64, 4
        $region64: #{attn_res_block_up.7} parent=39 // pred_fallthru
          _
      $region40: #{attn_res_block_up.7} parent=5 // pred_fallthru
        _
      %p2324 = scmp.le.s32.totalorder 2, %s19
      // Predicated region
      $region65: #{attn_res_block_up.7} parent=5 // pred_check
        %p2325 = pneg %p2324
      $region66: #{attn_res_block_up.7} parent=5 // pred_check_branch
        %2327 = sbr.rel (%p2325) target = $region68
      $region67: #{attn_res_block_up.7} parent=5 // pred_region
        %s2328 = ssub.s32 %s19, 2
        // Predicated region
        $region69: #{attn_res_block_up.7} parent=67 // pred_check
          %p2329 = pneg %p192
        $region70: #{attn_res_block_up.7} parent=67 // pred_check_branch
          %2331 = sbr.rel (%p2329) target = $region72
        $region71: #{attn_res_block_up.7} parent=67 // pred_region
          %s2332 = sand.u32 %s177, 1
          %s2333 = scalar_lea.sflag [#allocation6], %s2332
          %s2334 = sand.u32 %s177, 1
          %s2335 = smul.addr %s2334, 64
          %s2336 = scalar_lea.vmem [#allocation13], %s2335
          %2337 = dma.done %s2333, 1024
        $region72: #{attn_res_block_up.7} parent=67 // pred_fallthru
          _
      $region68: #{attn_res_block_up.7} parent=5 // pred_fallthru
        _
    $region6: #{attn_res_block_up.7} parent=1 // loop_footer
      %s23 = sadd.s32 1, %s19
    $region7: #{attn_res_block_up.7} parent=1 // loop_footer_branch
      %18 = sbr.rel target = $region3
    $region8: #{attn_res_block_up.7} parent=1 // loop_exit
      _
    %2338 = vsyncpa [#allocation5], 1
    %s2339 = scalar_lea.sflag [#allocation5], 1
    %2340 = vsyncpa %s2339, 1
    %2341 = vsyncpa [#allocation8], 1
    %2342 = vsyncpa [#allocation11], 1
    %s2343 = scalar_lea.sflag [#allocation11], 1
    %2344 = vsyncpa %s2343, 1
    %2345 = vsyncpa [#allocation6], 1
    %s2346 = scalar_lea.sflag [#allocation6], 1
    %2347 = vsyncpa %s2346, 1

</llo_original>
